<compile_context>
chip_gen: v6e
topology: v6e:2x2x1
jax: 0.10.0
libtpu: 0.0.40
codegen_flags: <defaults>
</compile_context>

<pallas_src>
import math

import jax
import jax.numpy as jnp
from jax.experimental import pallas as pl
from jax.experimental.pallas import tpu as pltpu

# ----------------------------- model hyperparams -----------------------------
EMB = 48                 # emb_size (hard-coded by `.view(1, -1, 48)` in module)
NHEAD = 4
HEAD_DIM = EMB // NHEAD  # 12
FFN = 64                 # dim_feedforward (small for the demo)
N_ENC = 2
N_DEC = 2
SRC_VOCAB = 16
TGT_VOCAB = 16
FEAT_DIM = 12            # nn.Linear(12, emb_size)

# special token ids (globals in the reference script)
PAD_IDX, BOS_IDX, EOS_IDX, LINS_IDX, AIR_IDX = 1, 2, 3, 4, 5

NEG_INF = jnp.float32(-1e30)
LN_EPS = 1e-5

# ----------------------------- weight packing plan ----------------------------
# attention blocks: [enc0.self, enc1.self, dec0.self, dec0.cross, dec1.self, dec1.cross]
ATTN_ENC_SELF = tuple(range(N_ENC))                            # (0, 1)
ATTN_DEC_SELF = tuple(N_ENC + 2 * l for l in range(N_DEC))     # (2, 4)
ATTN_DEC_CROSS = tuple(N_ENC + 2 * l + 1 for l in range(N_DEC))  # (3, 5)
N_ATTN = N_ENC + 2 * N_DEC                                     # 6
# ffn blocks: [enc0, enc1, dec0, dec1]
N_FFN = N_ENC + N_DEC                                          # 4
# layernorms: enc layer l -> 2l, 2l+1 ; dec layer l -> 4+3l, 5+3l, 6+3l ;
#             10 = encoder final norm, 11 = decoder final norm
LN_DEC_BASE = 2 * N_ENC
LN_ENC_FINAL = 2 * N_ENC + 3 * N_DEC                           # 10
LN_DEC_FINAL = LN_ENC_FINAL + 1                                # 11
N_LN = LN_DEC_FINAL + 1                                        # 12


# ------------------------------ fused Pallas kernel ---------------------------
def _fused_forward_kernel(
    src_base_ref, src_feat_ref, src_rm_ref,
    tgt_base_ref, tgt_feat_ref, tgt_rm_ref,
    enc_mask_ref, dec_mask_ref, cross_mask_ref,
    head_mask_ref,
    fc_w_ref, fc_b_ref,
    attn_w_ref, attn_b_ref,
    ffn_w1_ref, ffn_b1_ref, ffn_w2_ref, ffn_b2_ref,
    ln_g_ref, ln_b_ref,
    out_ref):
  """Entire Seq2SeqTransformer forward; everything VMEM-resident, one launch."""
  scale = 1.0 / math.sqrt(HEAD_DIM)

  def mm_t(x, w):
    # x: (M, K) activation, w: (N, K) weight in torch (out, in) layout.
    # bf16 MXU operands, f32 accumulation; contracting last axes of both
    # operands avoids any explicit transpose.
    return jax.lax.dot_general(
        x.astype(jnp.bfloat16), w.astype(jnp.bfloat16),
        dimension_numbers=(((1,), (1,)), ((), ())),
        preferred_element_type=jnp.float32)

  def mm(x, y):
    # plain (M, K) @ (K, N), bf16 MXU operands, f32 accumulation.
    return jax.lax.dot_general(
        x.astype(jnp.bfloat16), y.astype(jnp.bfloat16),
        dimension_numbers=(((1,), (0,)), ((), ())),
        preferred_element_type=jnp.float32)

  def layer_norm(x, idx):
    mu = jnp.mean(x, axis=-1, keepdims=True)
    xc = x - mu
    var = jnp.mean(xc * xc, axis=-1, keepdims=True)
    return xc * jax.lax.rsqrt(var + LN_EPS) * ln_g_ref[idx] + ln_b_ref[idx]

  # per-head 0/1 lane masks, loaded once (constants on the VPU).
  hmask = [head_mask_ref[h] for h in range(NHEAD)]               # each (1, EMB)

  def attention(blk, x_q, x_kv, mask):
    # Full-width Q/K/V projections (one matmul each).  Per-head separation is
    # done by zeroing non-head lanes of Q / V before the score / context
    # matmuls: (q*m_h) @ K^T == q_h @ k_h^T because the zeroed Q lanes kill
    # contributions from K's other-head lanes, and p_h @ (v*m_h) drops each
    # head's context straight into its own lane slot -> the multi-head concat
    # is just an accumulate, and the output projection is a single matmul.
    q = (mm_t(x_q, attn_w_ref[blk, 0]) + attn_b_ref[blk, 0]) * scale
    k = mm_t(x_kv, attn_w_ref[blk, 1]) + attn_b_ref[blk, 1]
    v = mm_t(x_kv, attn_w_ref[blk, 2]) + attn_b_ref[blk, 2]
    ctx = None
    for h in range(NHEAD):
      m = hmask[h]
      s = mm_t(q * m, k) + mask                  # (Sq, Skv) per-head scores
      s = s - jnp.max(s, axis=-1, keepdims=True)
      p = jnp.exp(s)
      p = p * pl.reciprocal(jnp.sum(p, axis=-1, keepdims=True), approx=True)
      c = mm(p, v * m)                           # head-h context in its lanes
      ctx = c if ctx is None else ctx + c
    return mm_t(ctx, attn_w_ref[blk, 3]) + attn_b_ref[blk, 3]

  def ffn(x, idx):
    h = jnp.maximum(mm_t(x, ffn_w1_ref[idx]) + ffn_b1_ref[idx], 0.0)
    return mm_t(h, ffn_w2_ref[idx]) + ffn_b2_ref[idx]

  # --- TokenEmbedding.fc projection fused in-kernel ---------------------------
  # `embeddings[:, 1:1+S, :] += fc(features)` realised as a row-masked add
  # (features are zero-padded at the BOS/EOS rows, row mask kills the bias there).
  x = src_base_ref[...] + src_rm_ref[...] * (
      mm_t(src_feat_ref[...], fc_w_ref[0]) + fc_b_ref[0])
  y = tgt_base_ref[...] + tgt_rm_ref[...] * (
      mm_t(tgt_feat_ref[...], fc_w_ref[1]) + fc_b_ref[1])

  enc_mask = enc_mask_ref[...]
  dec_mask = dec_mask_ref[...]
  cross_mask = cross_mask_ref[...]

  # --- encoder (post-norm, nn.Transformer default) ----------------------------
  for l in range(N_ENC):
    x = layer_norm(x + attention(ATTN_ENC_SELF[l], x, x, enc_mask), 2 * l)
    x = layer_norm(x + ffn(x, l), 2 * l + 1)
  memory = layer_norm(x, LN_ENC_FINAL)

  # --- decoder -----------------------------------------------------------------
  for l in range(N_DEC):
    base = LN_DEC_BASE + 3 * l
    y = layer_norm(y + attention(ATTN_DEC_SELF[l], y, y, dec_mask), base)
    y = layer_norm(
        y + attention(ATTN_DEC_CROSS[l], y, memory, cross_mask), base + 1)
    y = layer_norm(y + ffn(y, N_ENC + l), base + 2)
  y = layer_norm(y, LN_DEC_FINAL)

  out_ref[...] = y


# ----------------------- glue: tokens / pos-enc / masks ------------------------
def make_tokens(seq_len):
  # tensor_transform([AIR if odd else LINS ...]) -> [BOS, LINS, AIR, ..., EOS]
  ids = [AIR_IDX if i % 2 else LINS_IDX for i in range(seq_len)]
  return jnp.array([BOS_IDX] + ids + [EOS_IDX], dtype=jnp.int32)      # (S+2,)


def make_pos_embedding(maxlen=64):
  den = jnp.exp(-jnp.arange(0, EMB, 2, dtype=jnp.float32) * math.log(10000.0) / EMB)
  pos = jnp.arange(0, maxlen, dtype=jnp.float32)[:, None]
  pe = jnp.zeros((maxlen, EMB), jnp.float32)
  pe = pe.at[:, 0::2].set(jnp.sin(pos * den))
  pe = pe.at[:, 1::2].set(jnp.cos(pos * den))
  return pe


def pad_features(feat):
  """(S, 12) features -> ((S+2, 12) zero-padded rows, (S+2, 1) row mask)."""
  S = feat.shape[0]
  z = jnp.zeros((1, FEAT_DIM), jnp.float32)
  feat_p = jnp.concatenate([z, feat.astype(jnp.float32), z], axis=0)
  row_mask = jnp.concatenate(
      [jnp.zeros((1, 1), jnp.float32),
       jnp.ones((S, 1), jnp.float32),
       jnp.zeros((1, 1), jnp.float32)], axis=0)
  return feat_p, row_mask


def build_masks(src_tokens, tgt_tokens):
  Ss, St = src_tokens.shape[0], tgt_tokens.shape[0]
  src_pad = jnp.where(src_tokens == PAD_IDX, NEG_INF, 0.0)
  tgt_pad = jnp.where(tgt_tokens == PAD_IDX, NEG_INF, 0.0)
  enc_self = jnp.broadcast_to(src_pad[None, :], (Ss, Ss))
  causal = jnp.where(jnp.triu(jnp.ones((St, St), jnp.float32), k=1) > 0, NEG_INF, 0.0)
  dec_self = causal + tgt_pad[None, :]
  cross = jnp.broadcast_to(src_pad[None, :], (St, Ss))
  return enc_self, dec_self, cross


def make_head_masks():
  hm = jnp.zeros((NHEAD, 1, EMB), jnp.float32)
  for h in range(NHEAD):
    hm = hm.at[h, 0, h * HEAD_DIM:(h + 1) * HEAD_DIM].set(1.0)
  return hm


# --------------------------------- full model ----------------------------------
def seq2seq_forward(params, src, trg):
  # PositionalEncoding quirk of the reference (batch_first input, pe[:size(0)]):
  # only pe[0] is added, broadcast over the whole sequence.
  pe0 = params["pos_embedding"][0][None, :]

  s_feat = src[0].astype(jnp.float32)          # (S_src, 12)
  t_feat = trg[0].astype(jnp.float32)          # (S_tgt, 12)
  src_tokens = make_tokens(s_feat.shape[0])    # (S_src + 2,)
  tgt_tokens = make_tokens(t_feat.shape[0])    # (S_tgt + 2,)

  src_base = params["src_emb"][src_tokens] * math.sqrt(EMB) + pe0
  tgt_base = params["tgt_emb"][tgt_tokens] * math.sqrt(EMB) + pe0
  src_feat_p, src_rm = pad_features(s_feat)
  tgt_feat_p, tgt_rm = pad_features(t_feat)
  enc_mask, dec_mask, cross_mask = build_masks(src_tokens, tgt_tokens)

  St = int(tgt_tokens.shape[0])
  y = pl.pallas_call(
      _fused_forward_kernel,
      out_shape=jax.ShapeDtypeStruct((St, EMB), jnp.float32),
      compiler_params=pltpu.CompilerParams(vmem_limit_bytes=32 * 1024 * 1024),
  )(src_base, src_feat_p, src_rm,
    tgt_base, tgt_feat_p, tgt_rm,
    enc_mask, dec_mask, cross_mask,
    params["head_mask"],
    params["fc_w"], params["fc_b"],
    params["attn_w"], params["attn_b"],
    params["ffn_w1"], params["ffn_b1"], params["ffn_w2"], params["ffn_b2"],
    params["ln_g"], params["ln_b"])
  return y[None]                                # (1, S_tgt + 2, EMB)


# ------------------------------ parameter init ----------------------------------
def init_params(key):
  keys = iter(jax.random.split(key, 128))

  def w(shape, scale=0.05):
    return jax.random.normal(next(keys), shape, jnp.float32) * scale

  # Attention blocks, torch (out, in) layout: [Wq, Wk, Wv, Wo] per block.
  attn_w = jnp.stack([jnp.stack([w((EMB, EMB)) for _ in range(4)])
                      for _ in range(N_ATTN)])                  # (6, 4, EMB, EMB)
  attn_b = jnp.stack([jnp.stack([w((1, EMB), 0.02) for _ in range(4)])
                      for _ in range(N_ATTN)])                  # (6, 4, 1, EMB)

  ffn_w1 = jnp.stack([w((FFN, EMB)) for _ in range(N_FFN)])     # (4, FFN, EMB)
  ffn_w2 = jnp.stack([w((EMB, FFN)) for _ in range(N_FFN)])     # (4, EMB, FFN)

  params = {
      "src_emb": w((SRC_VOCAB, EMB), 0.1),
      "tgt_emb": w((TGT_VOCAB, EMB), 0.1),
      "pos_embedding": make_pos_embedding(),
      "head_mask": make_head_masks(),                           # (H, 1, EMB)
      # TokenEmbedding.fc for [src, tgt], torch (out, in) layout
      "fc_w": jnp.stack([w((EMB, FEAT_DIM)), w((EMB, FEAT_DIM))]).astype(jnp.bfloat16),
      "fc_b": jnp.stack([w((1, EMB), 0.02), w((1, EMB), 0.02)]),
      "attn_w": attn_w.astype(jnp.bfloat16),
      "attn_b": attn_b,
      "ffn_w1": ffn_w1.astype(jnp.bfloat16),
      "ffn_b1": jnp.stack([w((1, FFN), 0.02) for _ in range(N_FFN)]),
      "ffn_w2": ffn_w2.astype(jnp.bfloat16),
      "ffn_b2": jnp.stack([w((1, EMB), 0.02) for _ in range(N_FFN)]),
      "ln_g": jnp.ones((N_LN, 1, EMB), jnp.float32),
      "ln_b": jnp.zeros((N_LN, 1, EMB), jnp.float32),
  }
  return params


# ----------------------------------- main ---------------------------------------
if __name__ == "__main__":
  key = jax.random.PRNGKey(0)
  kp, ks, kt = jax.random.split(key, 3)
  params = init_params(kp)

  # src: (batch=1, S_src=6, feat=12), trg: (1, S_tgt=4, 12)
  src = jax.random.normal(ks, (1, 6, FEAT_DIM), jnp.float32)
  trg = jax.random.normal(kt, (1, 4, FEAT_DIM), jnp.float32)

  fwd = jax.jit(seq2seq_forward)
  out = jax.block_until_ready(fwd(params, src, trg))

  assert out.shape == (1, trg.shape[1] + 2, EMB), out.shape
  assert bool(jnp.all(jnp.isfinite(out)))
  print("KERNEL_OK")
</pallas_src>

<mosaic_0001>
module attributes {stable_mosaic.version = 11 : i64} {
  func.func @_fused_forward_kernel(%arg0: memref<8x48xf32, #tpu.memory_space<vmem>>, %arg1: memref<8x12xf32, #tpu.memory_space<vmem>>, %arg2: memref<8x1xf32, #tpu.memory_space<vmem>>, %arg3: memref<6x48xf32, #tpu.memory_space<vmem>>, %arg4: memref<6x12xf32, #tpu.memory_space<vmem>>, %arg5: memref<6x1xf32, #tpu.memory_space<vmem>>, %arg6: memref<8x8xf32, #tpu.memory_space<vmem>>, %arg7: memref<6x6xf32, #tpu.memory_space<vmem>>, %arg8: memref<6x8xf32, #tpu.memory_space<vmem>>, %arg9: memref<4x1x48xf32, #tpu.memory_space<vmem>>, %arg10: memref<2x48x12xbf16, #tpu.memory_space<vmem>>, %arg11: memref<2x1x48xf32, #tpu.memory_space<vmem>>, %arg12: memref<6x4x48x48xbf16, #tpu.memory_space<vmem>>, %arg13: memref<6x4x1x48xf32, #tpu.memory_space<vmem>>, %arg14: memref<4x64x48xbf16, #tpu.memory_space<vmem>>, %arg15: memref<4x1x64xf32, #tpu.memory_space<vmem>>, %arg16: memref<4x48x64xbf16, #tpu.memory_space<vmem>>, %arg17: memref<4x1x48xf32, #tpu.memory_space<vmem>>, %arg18: memref<12x1x48xf32, #tpu.memory_space<vmem>>, %arg19: memref<12x1x48xf32, #tpu.memory_space<vmem>>, %arg20: memref<6x48xf32, #tpu.memory_space<vmem>>) attributes {dimension_semantics = [], scalar_prefetch = 0 : i64, scratch_operands = 0 : i64, tpu.core_type = #tpu.core_type<tc>} {
    %c0 = arith.constant 0 : index
    %c0_0 = arith.constant 0 : index
    %c0_1 = arith.constant 0 : index
    %0 = vector.load %arg9[%c0, %c0_0, %c0_1] : memref<4x1x48xf32, #tpu.memory_space<vmem>>, vector<1x1x48xf32>
    %1 = vector.shape_cast %0 : vector<1x1x48xf32> to vector<1x48xf32>
    %c1 = arith.constant 1 : index
    %c0_2 = arith.constant 0 : index
    %c0_3 = arith.constant 0 : index
    %2 = vector.load %arg9[%c1, %c0_2, %c0_3] : memref<4x1x48xf32, #tpu.memory_space<vmem>>, vector<1x1x48xf32>
    %3 = vector.shape_cast %2 : vector<1x1x48xf32> to vector<1x48xf32>
    %c2 = arith.constant 2 : index
    %c0_4 = arith.constant 0 : index
    %c0_5 = arith.constant 0 : index
    %4 = vector.load %arg9[%c2, %c0_4, %c0_5] : memref<4x1x48xf32, #tpu.memory_space<vmem>>, vector<1x1x48xf32>
    %5 = vector.shape_cast %4 : vector<1x1x48xf32> to vector<1x48xf32>
    %c3 = arith.constant 3 : index
    %c0_6 = arith.constant 0 : index
    %c0_7 = arith.constant 0 : index
    %6 = vector.load %arg9[%c3, %c0_6, %c0_7] : memref<4x1x48xf32, #tpu.memory_space<vmem>>, vector<1x1x48xf32>
    %7 = vector.shape_cast %6 : vector<1x1x48xf32> to vector<1x48xf32>
    %c0_8 = arith.constant 0 : index
    %c0_9 = arith.constant 0 : index
    %8 = vector.load %arg0[%c0_8, %c0_9] : memref<8x48xf32, #tpu.memory_space<vmem>>, vector<8x48xf32>
    %c0_10 = arith.constant 0 : index
    %c0_11 = arith.constant 0 : index
    %9 = vector.load %arg2[%c0_10, %c0_11] : memref<8x1xf32, #tpu.memory_space<vmem>>, vector<8x1xf32>
    %c0_12 = arith.constant 0 : index
    %c0_13 = arith.constant 0 : index
    %10 = vector.load %arg1[%c0_12, %c0_13] : memref<8x12xf32, #tpu.memory_space<vmem>>, vector<8x12xf32>
    %c0_14 = arith.constant 0 : index
    %c0_15 = arith.constant 0 : index
    %c0_16 = arith.constant 0 : index
    %11 = vector.load %arg10[%c0_14, %c0_15, %c0_16] : memref<2x48x12xbf16, #tpu.memory_space<vmem>>, vector<1x48x12xbf16>
    %12 = vector.shape_cast %11 : vector<1x48x12xbf16> to vector<48x12xbf16>
    %13 = arith.truncf %10 : vector<8x12xf32> to vector<8x12xbf16>
    %cst = arith.constant dense<0.000000e+00> : vector<8x48xf32>
    %14 = tpu.matmul %13, %12, %cst {dimension_numbers = #tpu.dot_dimension_numbers<[1], [1], [0], [0], [0, 0, 1, 0], [], []>} : vector<8x12xbf16>, vector<48x12xbf16>, vector<8x48xf32> -> vector<8x48xf32>
    %c0_17 = arith.constant 0 : index
    %c0_18 = arith.constant 0 : index
    %c0_19 = arith.constant 0 : index
    %15 = vector.load %arg11[%c0_17, %c0_18, %c0_19] : memref<2x1x48xf32, #tpu.memory_space<vmem>>, vector<1x1x48xf32>
    %16 = vector.shape_cast %15 : vector<1x1x48xf32> to vector<1x48xf32>
    %17 = vector.broadcast %16 : vector<1x48xf32> to vector<8x48xf32>
    %18 = arith.addf %14, %17 : vector<8x48xf32>
    %19 = vector.broadcast %9 : vector<8x1xf32> to vector<8x48xf32>
    %20 = arith.mulf %19, %18 : vector<8x48xf32>
    %21 = arith.addf %8, %20 : vector<8x48xf32>
    %c0_20 = arith.constant 0 : index
    %c0_21 = arith.constant 0 : index
    %22 = vector.load %arg3[%c0_20, %c0_21] : memref<6x48xf32, #tpu.memory_space<vmem>>, vector<6x48xf32>
    %c0_22 = arith.constant 0 : index
    %c0_23 = arith.constant 0 : index
    %23 = vector.load %arg5[%c0_22, %c0_23] : memref<6x1xf32, #tpu.memory_space<vmem>>, vector<6x1xf32>
    %c0_24 = arith.constant 0 : index
    %c0_25 = arith.constant 0 : index
    %24 = vector.load %arg4[%c0_24, %c0_25] : memref<6x12xf32, #tpu.memory_space<vmem>>, vector<6x12xf32>
    %c1_26 = arith.constant 1 : index
    %c0_27 = arith.constant 0 : index
    %c0_28 = arith.constant 0 : index
    %25 = vector.load %arg10[%c1_26, %c0_27, %c0_28] : memref<2x48x12xbf16, #tpu.memory_space<vmem>>, vector<1x48x12xbf16>
    %26 = vector.shape_cast %25 : vector<1x48x12xbf16> to vector<48x12xbf16>
    %27 = arith.truncf %24 : vector<6x12xf32> to vector<6x12xbf16>
    %cst_29 = arith.constant dense<0.000000e+00> : vector<6x48xf32>
    %28 = tpu.matmul %27, %26, %cst_29 {dimension_numbers = #tpu.dot_dimension_numbers<[1], [1], [0], [0], [0, 0, 1, 0], [], []>} : vector<6x12xbf16>, vector<48x12xbf16>, vector<6x48xf32> -> vector<6x48xf32>
    %c1_30 = arith.constant 1 : index
    %c0_31 = arith.constant 0 : index
    %c0_32 = arith.constant 0 : index
    %29 = vector.load %arg11[%c1_30, %c0_31, %c0_32] : memref<2x1x48xf32, #tpu.memory_space<vmem>>, vector<1x1x48xf32>
    %30 = vector.shape_cast %29 : vector<1x1x48xf32> to vector<1x48xf32>
    %31 = vector.broadcast %30 : vector<1x48xf32> to vector<6x48xf32>
    %32 = arith.addf %28, %31 : vector<6x48xf32>
    %33 = vector.broadcast %23 : vector<6x1xf32> to vector<6x48xf32>
    %34 = arith.mulf %33, %32 : vector<6x48xf32>
    %35 = arith.addf %22, %34 : vector<6x48xf32>
    %c0_33 = arith.constant 0 : index
    %c0_34 = arith.constant 0 : index
    %36 = vector.load %arg6[%c0_33, %c0_34] : memref<8x8xf32, #tpu.memory_space<vmem>>, vector<8x8xf32>
    %c0_35 = arith.constant 0 : index
    %c0_36 = arith.constant 0 : index
    %37 = vector.load %arg7[%c0_35, %c0_36] : memref<6x6xf32, #tpu.memory_space<vmem>>, vector<6x6xf32>
    %c0_37 = arith.constant 0 : index
    %c0_38 = arith.constant 0 : index
    %38 = vector.load %arg8[%c0_37, %c0_38] : memref<6x8xf32, #tpu.memory_space<vmem>>, vector<6x8xf32>
    %c0_39 = arith.constant 0 : index
    %c0_40 = arith.constant 0 : index
    %c0_41 = arith.constant 0 : index
    %c0_42 = arith.constant 0 : index
    %39 = vector.load %arg12[%c0_39, %c0_40, %c0_41, %c0_42] : memref<6x4x48x48xbf16, #tpu.memory_space<vmem>>, vector<1x1x48x48xbf16>
    %40 = vector.shape_cast %39 : vector<1x1x48x48xbf16> to vector<48x48xbf16>
    %41 = arith.truncf %21 : vector<8x48xf32> to vector<8x48xbf16>
    %cst_43 = arith.constant dense<0.000000e+00> : vector<8x48xf32>
    %42 = tpu.matmul %41, %40, %cst_43 {dimension_numbers = #tpu.dot_dimension_numbers<[1], [1], [0], [0], [0, 0, 1, 0], [], []>} : vector<8x48xbf16>, vector<48x48xbf16>, vector<8x48xf32> -> vector<8x48xf32>
    %c0_44 = arith.constant 0 : index
    %c0_45 = arith.constant 0 : index
    %c0_46 = arith.constant 0 : index
    %c0_47 = arith.constant 0 : index
    %43 = vector.load %arg13[%c0_44, %c0_45, %c0_46, %c0_47] : memref<6x4x1x48xf32, #tpu.memory_space<vmem>>, vector<1x1x1x48xf32>
    %44 = vector.shape_cast %43 : vector<1x1x1x48xf32> to vector<1x48xf32>
    %45 = vector.broadcast %44 : vector<1x48xf32> to vector<8x48xf32>
    %46 = arith.addf %42, %45 : vector<8x48xf32>
    %cst_48 = arith.constant 0.288675129 : f32
    %47 = vector.broadcast %cst_48 : f32 to vector<8x48xf32>
    %48 = arith.mulf %46, %47 : vector<8x48xf32>
    %c0_49 = arith.constant 0 : index
    %c1_50 = arith.constant 1 : index
    %c0_51 = arith.constant 0 : index
    %c0_52 = arith.constant 0 : index
    %49 = vector.load %arg12[%c0_49, %c1_50, %c0_51, %c0_52] : memref<6x4x48x48xbf16, #tpu.memory_space<vmem>>, vector<1x1x48x48xbf16>
    %50 = vector.shape_cast %49 : vector<1x1x48x48xbf16> to vector<48x48xbf16>
    %51 = arith.truncf %21 : vector<8x48xf32> to vector<8x48xbf16>
    %cst_53 = arith.constant dense<0.000000e+00> : vector<8x48xf32>
    %52 = tpu.matmul %51, %50, %cst_53 {dimension_numbers = #tpu.dot_dimension_numbers<[1], [1], [0], [0], [0, 0, 1, 0], [], []>} : vector<8x48xbf16>, vector<48x48xbf16>, vector<8x48xf32> -> vector<8x48xf32>
    %c0_54 = arith.constant 0 : index
    %c1_55 = arith.constant 1 : index
    %c0_56 = arith.constant 0 : index
    %c0_57 = arith.constant 0 : index
    %53 = vector.load %arg13[%c0_54, %c1_55, %c0_56, %c0_57] : memref<6x4x1x48xf32, #tpu.memory_space<vmem>>, vector<1x1x1x48xf32>
    %54 = vector.shape_cast %53 : vector<1x1x1x48xf32> to vector<1x48xf32>
    %55 = vector.broadcast %54 : vector<1x48xf32> to vector<8x48xf32>
    %56 = arith.addf %52, %55 : vector<8x48xf32>
    %c0_58 = arith.constant 0 : index
    %c2_59 = arith.constant 2 : index
    %c0_60 = arith.constant 0 : index
    %c0_61 = arith.constant 0 : index
    %57 = vector.load %arg12[%c0_58, %c2_59, %c0_60, %c0_61] : memref<6x4x48x48xbf16, #tpu.memory_space<vmem>>, vector<1x1x48x48xbf16>
    %58 = vector.shape_cast %57 : vector<1x1x48x48xbf16> to vector<48x48xbf16>
    %59 = arith.truncf %21 : vector<8x48xf32> to vector<8x48xbf16>
    %cst_62 = arith.constant dense<0.000000e+00> : vector<8x48xf32>
    %60 = tpu.matmul %59, %58, %cst_62 {dimension_numbers = #tpu.dot_dimension_numbers<[1], [1], [0], [0], [0, 0, 1, 0], [], []>} : vector<8x48xbf16>, vector<48x48xbf16>, vector<8x48xf32> -> vector<8x48xf32>
    %c0_63 = arith.constant 0 : index
    %c2_64 = arith.constant 2 : index
    %c0_65 = arith.constant 0 : index
    %c0_66 = arith.constant 0 : index
    %61 = vector.load %arg13[%c0_63, %c2_64, %c0_65, %c0_66] : memref<6x4x1x48xf32, #tpu.memory_space<vmem>>, vector<1x1x1x48xf32>
    %62 = vector.shape_cast %61 : vector<1x1x1x48xf32> to vector<1x48xf32>
    %63 = vector.broadcast %62 : vector<1x48xf32> to vector<8x48xf32>
    %64 = arith.addf %60, %63 : vector<8x48xf32>
    %65 = vector.broadcast %1 : vector<1x48xf32> to vector<8x48xf32>
    %66 = arith.mulf %48, %65 : vector<8x48xf32>
    %67 = arith.truncf %66 : vector<8x48xf32> to vector<8x48xbf16>
    %68 = arith.truncf %56 : vector<8x48xf32> to vector<8x48xbf16>
    %cst_67 = arith.constant dense<0.000000e+00> : vector<8x8xf32>
    %69 = tpu.matmul %67, %68, %cst_67 {dimension_numbers = #tpu.dot_dimension_numbers<[1], [1], [0], [0], [0, 0, 1, 0], [], []>} : vector<8x48xbf16>, vector<8x48xbf16>, vector<8x8xf32> -> vector<8x8xf32>
    %70 = arith.addf %69, %36 : vector<8x8xf32>
    %cst_68 = arith.constant dense<0xFF800000> : vector<8xf32>
    %71 = vector.multi_reduction <maximumf>, %70, %cst_68 [1] : vector<8x8xf32> to vector<8xf32>
    %72 = vector.shape_cast %71 : vector<8xf32> to vector<8x1xf32>
    %73 = vector.broadcast %72 : vector<8x1xf32> to vector<8x8xf32>
    %74 = arith.subf %70, %73 : vector<8x8xf32>
    %75 = math.exp %74 : vector<8x8xf32>
    %cst_69 = arith.constant dense<0.000000e+00> : vector<8xf32>
    %76 = vector.multi_reduction <add>, %75, %cst_69 [1] : vector<8x8xf32> to vector<8xf32>
    %77 = vector.shape_cast %76 : vector<8xf32> to vector<8x1xf32>
    %78 = tpu.reciprocal %77 {approx = true} : vector<8x1xf32> -> vector<8x1xf32>
    %79 = vector.broadcast %78 : vector<8x1xf32> to vector<8x8xf32>
    %80 = arith.mulf %75, %79 : vector<8x8xf32>
    %81 = vector.broadcast %1 : vector<1x48xf32> to vector<8x48xf32>
    %82 = arith.mulf %64, %81 : vector<8x48xf32>
    %83 = arith.truncf %80 : vector<8x8xf32> to vector<8x8xbf16>
    %84 = arith.truncf %82 : vector<8x48xf32> to vector<8x48xbf16>
    %cst_70 = arith.constant dense<0.000000e+00> : vector<8x48xf32>
    %85 = tpu.matmul %83, %84, %cst_70 {dimension_numbers = #tpu.dot_dimension_numbers<[1], [0], [0], [1], [0, 0, 1, 1], [], []>} : vector<8x8xbf16>, vector<8x48xbf16>, vector<8x48xf32> -> vector<8x48xf32>
    %86 = vector.broadcast %3 : vector<1x48xf32> to vector<8x48xf32>
    %87 = arith.mulf %48, %86 : vector<8x48xf32>
    %88 = arith.truncf %87 : vector<8x48xf32> to vector<8x48xbf16>
    %89 = arith.truncf %56 : vector<8x48xf32> to vector<8x48xbf16>
    %cst_71 = arith.constant dense<0.000000e+00> : vector<8x8xf32>
    %90 = tpu.matmul %88, %89, %cst_71 {dimension_numbers = #tpu.dot_dimension_numbers<[1], [1], [0], [0], [0, 0, 1, 0], [], []>} : vector<8x48xbf16>, vector<8x48xbf16>, vector<8x8xf32> -> vector<8x8xf32>
    %91 = arith.addf %90, %36 : vector<8x8xf32>
    %cst_72 = arith.constant dense<0xFF800000> : vector<8xf32>
    %92 = vector.multi_reduction <maximumf>, %91, %cst_72 [1] : vector<8x8xf32> to vector<8xf32>
    %93 = vector.shape_cast %92 : vector<8xf32> to vector<8x1xf32>
    %94 = vector.broadcast %93 : vector<8x1xf32> to vector<8x8xf32>
    %95 = arith.subf %91, %94 : vector<8x8xf32>
    %96 = math.exp %95 : vector<8x8xf32>
    %cst_73 = arith.constant dense<0.000000e+00> : vector<8xf32>
    %97 = vector.multi_reduction <add>, %96, %cst_73 [1] : vector<8x8xf32> to vector<8xf32>
    %98 = vector.shape_cast %97 : vector<8xf32> to vector<8x1xf32>
    %99 = tpu.reciprocal %98 {approx = true} : vector<8x1xf32> -> vector<8x1xf32>
    %100 = vector.broadcast %99 : vector<8x1xf32> to vector<8x8xf32>
    %101 = arith.mulf %96, %100 : vector<8x8xf32>
    %102 = vector.broadcast %3 : vector<1x48xf32> to vector<8x48xf32>
    %103 = arith.mulf %64, %102 : vector<8x48xf32>
    %104 = arith.truncf %101 : vector<8x8xf32> to vector<8x8xbf16>
    %105 = arith.truncf %103 : vector<8x48xf32> to vector<8x48xbf16>
    %cst_74 = arith.constant dense<0.000000e+00> : vector<8x48xf32>
    %106 = tpu.matmul %104, %105, %cst_74 {dimension_numbers = #tpu.dot_dimension_numbers<[1], [0], [0], [1], [0, 0, 1, 1], [], []>} : vector<8x8xbf16>, vector<8x48xbf16>, vector<8x48xf32> -> vector<8x48xf32>
    %107 = arith.addf %85, %106 : vector<8x48xf32>
    %108 = vector.broadcast %5 : vector<1x48xf32> to vector<8x48xf32>
    %109 = arith.mulf %48, %108 : vector<8x48xf32>
    %110 = arith.truncf %109 : vector<8x48xf32> to vector<8x48xbf16>
    %111 = arith.truncf %56 : vector<8x48xf32> to vector<8x48xbf16>
    %cst_75 = arith.constant dense<0.000000e+00> : vector<8x8xf32>
    %112 = tpu.matmul %110, %111, %cst_75 {dimension_numbers = #tpu.dot_dimension_numbers<[1], [1], [0], [0], [0, 0, 1, 0], [], []>} : vector<8x48xbf16>, vector<8x48xbf16>, vector<8x8xf32> -> vector<8x8xf32>
    %113 = arith.addf %112, %36 : vector<8x8xf32>
    %cst_76 = arith.constant dense<0xFF800000> : vector<8xf32>
    %114 = vector.multi_reduction <maximumf>, %113, %cst_76 [1] : vector<8x8xf32> to vector<8xf32>
    %115 = vector.shape_cast %114 : vector<8xf32> to vector<8x1xf32>
    %116 = vector.broadcast %115 : vector<8x1xf32> to vector<8x8xf32>
    %117 = arith.subf %113, %116 : vector<8x8xf32>
    %118 = math.exp %117 : vector<8x8xf32>
    %cst_77 = arith.constant dense<0.000000e+00> : vector<8xf32>
    %119 = vector.multi_reduction <add>, %118, %cst_77 [1] : vector<8x8xf32> to vector<8xf32>
    %120 = vector.shape_cast %119 : vector<8xf32> to vector<8x1xf32>
    %121 = tpu.reciprocal %120 {approx = true} : vector<8x1xf32> -> vector<8x1xf32>
    %122 = vector.broadcast %121 : vector<8x1xf32> to vector<8x8xf32>
    %123 = arith.mulf %118, %122 : vector<8x8xf32>
    %124 = vector.broadcast %5 : vector<1x48xf32> to vector<8x48xf32>
    %125 = arith.mulf %64, %124 : vector<8x48xf32>
    %126 = arith.truncf %123 : vector<8x8xf32> to vector<8x8xbf16>
    %127 = arith.truncf %125 : vector<8x48xf32> to vector<8x48xbf16>
    %cst_78 = arith.constant dense<0.000000e+00> : vector<8x48xf32>
    %128 = tpu.matmul %126, %127, %cst_78 {dimension_numbers = #tpu.dot_dimension_numbers<[1], [0], [0], [1], [0, 0, 1, 1], [], []>} : vector<8x8xbf16>, vector<8x48xbf16>, vector<8x48xf32> -> vector<8x48xf32>
    %129 = arith.addf %107, %128 : vector<8x48xf32>
    %130 = vector.broadcast %7 : vector<1x48xf32> to vector<8x48xf32>
    %131 = arith.mulf %48, %130 : vector<8x48xf32>
    %132 = arith.truncf %131 : vector<8x48xf32> to vector<8x48xbf16>
    %133 = arith.truncf %56 : vector<8x48xf32> to vector<8x48xbf16>
    %cst_79 = arith.constant dense<0.000000e+00> : vector<8x8xf32>
    %134 = tpu.matmul %132, %133, %cst_79 {dimension_numbers = #tpu.dot_dimension_numbers<[1], [1], [0], [0], [0, 0, 1, 0], [], []>} : vector<8x48xbf16>, vector<8x48xbf16>, vector<8x8xf32> -> vector<8x8xf32>
    %135 = arith.addf %134, %36 : vector<8x8xf32>
    %cst_80 = arith.constant dense<0xFF800000> : vector<8xf32>
    %136 = vector.multi_reduction <maximumf>, %135, %cst_80 [1] : vector<8x8xf32> to vector<8xf32>
    %137 = vector.shape_cast %136 : vector<8xf32> to vector<8x1xf32>
    %138 = vector.broadcast %137 : vector<8x1xf32> to vector<8x8xf32>
    %139 = arith.subf %135, %138 : vector<8x8xf32>
    %140 = math.exp %139 : vector<8x8xf32>
    %cst_81 = arith.constant dense<0.000000e+00> : vector<8xf32>
    %141 = vector.multi_reduction <add>, %140, %cst_81 [1] : vector<8x8xf32> to vector<8xf32>
    %142 = vector.shape_cast %141 : vector<8xf32> to vector<8x1xf32>
    %143 = tpu.reciprocal %142 {approx = true} : vector<8x1xf32> -> vector<8x1xf32>
    %144 = vector.broadcast %143 : vector<8x1xf32> to vector<8x8xf32>
    %145 = arith.mulf %140, %144 : vector<8x8xf32>
    %146 = vector.broadcast %7 : vector<1x48xf32> to vector<8x48xf32>
    %147 = arith.mulf %64, %146 : vector<8x48xf32>
    %148 = arith.truncf %145 : vector<8x8xf32> to vector<8x8xbf16>
    %149 = arith.truncf %147 : vector<8x48xf32> to vector<8x48xbf16>
    %cst_82 = arith.constant dense<0.000000e+00> : vector<8x48xf32>
    %150 = tpu.matmul %148, %149, %cst_82 {dimension_numbers = #tpu.dot_dimension_numbers<[1], [0], [0], [1], [0, 0, 1, 1], [], []>} : vector<8x8xbf16>, vector<8x48xbf16>, vector<8x48xf32> -> vector<8x48xf32>
    %151 = arith.addf %129, %150 : vector<8x48xf32>
    %c0_83 = arith.constant 0 : index
    %c3_84 = arith.constant 3 : index
    %c0_85 = arith.constant 0 : index
    %c0_86 = arith.constant 0 : index
    %152 = vector.load %arg12[%c0_83, %c3_84, %c0_85, %c0_86] : memref<6x4x48x48xbf16, #tpu.memory_space<vmem>>, vector<1x1x48x48xbf16>
    %153 = vector.shape_cast %152 : vector<1x1x48x48xbf16> to vector<48x48xbf16>
    %154 = arith.truncf %151 : vector<8x48xf32> to vector<8x48xbf16>
    %cst_87 = arith.constant dense<0.000000e+00> : vector<8x48xf32>
    %155 = tpu.matmul %154, %153, %cst_87 {dimension_numbers = #tpu.dot_dimension_numbers<[1], [1], [0], [0], [0, 0, 1, 0], [], []>} : vector<8x48xbf16>, vector<48x48xbf16>, vector<8x48xf32> -> vector<8x48xf32>
    %c0_88 = arith.constant 0 : index
    %c3_89 = arith.constant 3 : index
    %c0_90 = arith.constant 0 : index
    %c0_91 = arith.constant 0 : index
    %156 = vector.load %arg13[%c0_88, %c3_89, %c0_90, %c0_91] : memref<6x4x1x48xf32, #tpu.memory_space<vmem>>, vector<1x1x1x48xf32>
    %157 = vector.shape_cast %156 : vector<1x1x1x48xf32> to vector<1x48xf32>
    %158 = vector.broadcast %157 : vector<1x48xf32> to vector<8x48xf32>
    %159 = arith.addf %155, %158 : vector<8x48xf32>
    %160 = arith.addf %21, %159 : vector<8x48xf32>
    %cst_92 = arith.constant dense<0.000000e+00> : vector<8xf32>
    %161 = vector.multi_reduction <add>, %160, %cst_92 [1] : vector<8x48xf32> to vector<8xf32>
    %162 = vector.shape_cast %161 : vector<8xf32> to vector<8x1xf32>
    %cst_93 = arith.constant 4.800000e+01 : f32
    %163 = vector.broadcast %cst_93 : f32 to vector<8x1xf32>
    %164 = arith.divf %162, %163 : vector<8x1xf32>
    %165 = vector.broadcast %164 : vector<8x1xf32> to vector<8x48xf32>
    %166 = arith.subf %160, %165 : vector<8x48xf32>
    %167 = arith.mulf %166, %166 : vector<8x48xf32>
    %cst_94 = arith.constant dense<0.000000e+00> : vector<8xf32>
    %168 = vector.multi_reduction <add>, %167, %cst_94 [1] : vector<8x48xf32> to vector<8xf32>
    %169 = vector.shape_cast %168 : vector<8xf32> to vector<8x1xf32>
    %cst_95 = arith.constant 4.800000e+01 : f32
    %170 = vector.broadcast %cst_95 : f32 to vector<8x1xf32>
    %171 = arith.divf %169, %170 : vector<8x1xf32>
    %cst_96 = arith.constant 9.99999974E-6 : f32
    %172 = vector.broadcast %cst_96 : f32 to vector<8x1xf32>
    %173 = arith.addf %171, %172 : vector<8x1xf32>
    %174 = math.rsqrt %173 : vector<8x1xf32>
    %175 = vector.broadcast %174 : vector<8x1xf32> to vector<8x48xf32>
    %176 = arith.mulf %166, %175 : vector<8x48xf32>
    %c0_97 = arith.constant 0 : index
    %c0_98 = arith.constant 0 : index
    %c0_99 = arith.constant 0 : index
    %177 = vector.load %arg18[%c0_97, %c0_98, %c0_99] : memref<12x1x48xf32, #tpu.memory_space<vmem>>, vector<1x1x48xf32>
    %178 = vector.shape_cast %177 : vector<1x1x48xf32> to vector<1x48xf32>
    %179 = vector.broadcast %178 : vector<1x48xf32> to vector<8x48xf32>
    %180 = arith.mulf %176, %179 : vector<8x48xf32>
    %c0_100 = arith.constant 0 : index
    %c0_101 = arith.constant 0 : index
    %c0_102 = arith.constant 0 : index
    %181 = vector.load %arg19[%c0_100, %c0_101, %c0_102] : memref<12x1x48xf32, #tpu.memory_space<vmem>>, vector<1x1x48xf32>
    %182 = vector.shape_cast %181 : vector<1x1x48xf32> to vector<1x48xf32>
    %183 = vector.broadcast %182 : vector<1x48xf32> to vector<8x48xf32>
    %184 = arith.addf %180, %183 : vector<8x48xf32>
    %c0_103 = arith.constant 0 : index
    %c0_104 = arith.constant 0 : index
    %c0_105 = arith.constant 0 : index
    %185 = vector.load %arg14[%c0_103, %c0_104, %c0_105] : memref<4x64x48xbf16, #tpu.memory_space<vmem>>, vector<1x64x48xbf16>
    %186 = vector.shape_cast %185 : vector<1x64x48xbf16> to vector<64x48xbf16>
    %187 = arith.truncf %184 : vector<8x48xf32> to vector<8x48xbf16>
    %cst_106 = arith.constant dense<0.000000e+00> : vector<8x64xf32>
    %188 = tpu.matmul %187, %186, %cst_106 {dimension_numbers = #tpu.dot_dimension_numbers<[1], [1], [0], [0], [0, 0, 1, 0], [], []>} : vector<8x48xbf16>, vector<64x48xbf16>, vector<8x64xf32> -> vector<8x64xf32>
    %c0_107 = arith.constant 0 : index
    %c0_108 = arith.constant 0 : index
    %c0_109 = arith.constant 0 : index
    %189 = vector.load %arg15[%c0_107, %c0_108, %c0_109] : memref<4x1x64xf32, #tpu.memory_space<vmem>>, vector<1x1x64xf32>
    %190 = vector.shape_cast %189 : vector<1x1x64xf32> to vector<1x64xf32>
    %191 = vector.broadcast %190 : vector<1x64xf32> to vector<8x64xf32>
    %192 = arith.addf %188, %191 : vector<8x64xf32>
    %cst_110 = arith.constant 0.000000e+00 : f32
    %193 = vector.broadcast %cst_110 : f32 to vector<8x64xf32>
    %194 = arith.maximumf %192, %193 : vector<8x64xf32>
    %c0_111 = arith.constant 0 : index
    %c0_112 = arith.constant 0 : index
    %c0_113 = arith.constant 0 : index
    %195 = vector.load %arg16[%c0_111, %c0_112, %c0_113] : memref<4x48x64xbf16, #tpu.memory_space<vmem>>, vector<1x48x64xbf16>
    %196 = vector.shape_cast %195 : vector<1x48x64xbf16> to vector<48x64xbf16>
    %197 = arith.truncf %194 : vector<8x64xf32> to vector<8x64xbf16>
    %cst_114 = arith.constant dense<0.000000e+00> : vector<8x48xf32>
    %198 = tpu.matmul %197, %196, %cst_114 {dimension_numbers = #tpu.dot_dimension_numbers<[1], [1], [0], [0], [0, 0, 1, 0], [], []>} : vector<8x64xbf16>, vector<48x64xbf16>, vector<8x48xf32> -> vector<8x48xf32>
    %c0_115 = arith.constant 0 : index
    %c0_116 = arith.constant 0 : index
    %c0_117 = arith.constant 0 : index
    %199 = vector.load %arg17[%c0_115, %c0_116, %c0_117] : memref<4x1x48xf32, #tpu.memory_space<vmem>>, vector<1x1x48xf32>
    %200 = vector.shape_cast %199 : vector<1x1x48xf32> to vector<1x48xf32>
    %201 = vector.broadcast %200 : vector<1x48xf32> to vector<8x48xf32>
    %202 = arith.addf %198, %201 : vector<8x48xf32>
    %203 = arith.addf %184, %202 : vector<8x48xf32>
    %cst_118 = arith.constant dense<0.000000e+00> : vector<8xf32>
    %204 = vector.multi_reduction <add>, %203, %cst_118 [1] : vector<8x48xf32> to vector<8xf32>
    %205 = vector.shape_cast %204 : vector<8xf32> to vector<8x1xf32>
    %cst_119 = arith.constant 4.800000e+01 : f32
    %206 = vector.broadcast %cst_119 : f32 to vector<8x1xf32>
    %207 = arith.divf %205, %206 : vector<8x1xf32>
    %208 = vector.broadcast %207 : vector<8x1xf32> to vector<8x48xf32>
    %209 = arith.subf %203, %208 : vector<8x48xf32>
    %210 = arith.mulf %209, %209 : vector<8x48xf32>
    %cst_120 = arith.constant dense<0.000000e+00> : vector<8xf32>
    %211 = vector.multi_reduction <add>, %210, %cst_120 [1] : vector<8x48xf32> to vector<8xf32>
    %212 = vector.shape_cast %211 : vector<8xf32> to vector<8x1xf32>
    %cst_121 = arith.constant 4.800000e+01 : f32
    %213 = vector.broadcast %cst_121 : f32 to vector<8x1xf32>
    %214 = arith.divf %212, %213 : vector<8x1xf32>
    %cst_122 = arith.constant 9.99999974E-6 : f32
    %215 = vector.broadcast %cst_122 : f32 to vector<8x1xf32>
    %216 = arith.addf %214, %215 : vector<8x1xf32>
    %217 = math.rsqrt %216 : vector<8x1xf32>
    %218 = vector.broadcast %217 : vector<8x1xf32> to vector<8x48xf32>
    %219 = arith.mulf %209, %218 : vector<8x48xf32>
    %c1_123 = arith.constant 1 : index
    %c0_124 = arith.constant 0 : index
    %c0_125 = arith.constant 0 : index
    %220 = vector.load %arg18[%c1_123, %c0_124, %c0_125] : memref<12x1x48xf32, #tpu.memory_space<vmem>>, vector<1x1x48xf32>
    %221 = vector.shape_cast %220 : vector<1x1x48xf32> to vector<1x48xf32>
    %222 = vector.broadcast %221 : vector<1x48xf32> to vector<8x48xf32>
    %223 = arith.mulf %219, %222 : vector<8x48xf32>
    %c1_126 = arith.constant 1 : index
    %c0_127 = arith.constant 0 : index
    %c0_128 = arith.constant 0 : index
    %224 = vector.load %arg19[%c1_126, %c0_127, %c0_128] : memref<12x1x48xf32, #tpu.memory_space<vmem>>, vector<1x1x48xf32>
    %225 = vector.shape_cast %224 : vector<1x1x48xf32> to vector<1x48xf32>
    %226 = vector.broadcast %225 : vector<1x48xf32> to vector<8x48xf32>
    %227 = arith.addf %223, %226 : vector<8x48xf32>
    %c1_129 = arith.constant 1 : index
    %c0_130 = arith.constant 0 : index
    %c0_131 = arith.constant 0 : index
    %c0_132 = arith.constant 0 : index
    %228 = vector.load %arg12[%c1_129, %c0_130, %c0_131, %c0_132] : memref<6x4x48x48xbf16, #tpu.memory_space<vmem>>, vector<1x1x48x48xbf16>
    %229 = vector.shape_cast %228 : vector<1x1x48x48xbf16> to vector<48x48xbf16>
    %230 = arith.truncf %227 : vector<8x48xf32> to vector<8x48xbf16>
    %cst_133 = arith.constant dense<0.000000e+00> : vector<8x48xf32>
    %231 = tpu.matmul %230, %229, %cst_133 {dimension_numbers = #tpu.dot_dimension_numbers<[1], [1], [0], [0], [0, 0, 1, 0], [], []>} : vector<8x48xbf16>, vector<48x48xbf16>, vector<8x48xf32> -> vector<8x48xf32>
    %c1_134 = arith.constant 1 : index
    %c0_135 = arith.constant 0 : index
    %c0_136 = arith.constant 0 : index
    %c0_137 = arith.constant 0 : index
    %232 = vector.load %arg13[%c1_134, %c0_135, %c0_136, %c0_137] : memref<6x4x1x48xf32, #tpu.memory_space<vmem>>, vector<1x1x1x48xf32>
    %233 = vector.shape_cast %232 : vector<1x1x1x48xf32> to vector<1x48xf32>
    %234 = vector.broadcast %233 : vector<1x48xf32> to vector<8x48xf32>
    %235 = arith.addf %231, %234 : vector<8x48xf32>
    %cst_138 = arith.constant 0.288675129 : f32
    %236 = vector.broadcast %cst_138 : f32 to vector<8x48xf32>
    %237 = arith.mulf %235, %236 : vector<8x48xf32>
    %c1_139 = arith.constant 1 : index
    %c1_140 = arith.constant 1 : index
    %c0_141 = arith.constant 0 : index
    %c0_142 = arith.constant 0 : index
    %238 = vector.load %arg12[%c1_139, %c1_140, %c0_141, %c0_142] : memref<6x4x48x48xbf16, #tpu.memory_space<vmem>>, vector<1x1x48x48xbf16>
    %239 = vector.shape_cast %238 : vector<1x1x48x48xbf16> to vector<48x48xbf16>
    %240 = arith.truncf %227 : vector<8x48xf32> to vector<8x48xbf16>
    %cst_143 = arith.constant dense<0.000000e+00> : vector<8x48xf32>
    %241 = tpu.matmul %240, %239, %cst_143 {dimension_numbers = #tpu.dot_dimension_numbers<[1], [1], [0], [0], [0, 0, 1, 0], [], []>} : vector<8x48xbf16>, vector<48x48xbf16>, vector<8x48xf32> -> vector<8x48xf32>
    %c1_144 = arith.constant 1 : index
    %c1_145 = arith.constant 1 : index
    %c0_146 = arith.constant 0 : index
    %c0_147 = arith.constant 0 : index
    %242 = vector.load %arg13[%c1_144, %c1_145, %c0_146, %c0_147] : memref<6x4x1x48xf32, #tpu.memory_space<vmem>>, vector<1x1x1x48xf32>
    %243 = vector.shape_cast %242 : vector<1x1x1x48xf32> to vector<1x48xf32>
    %244 = vector.broadcast %243 : vector<1x48xf32> to vector<8x48xf32>
    %245 = arith.addf %241, %244 : vector<8x48xf32>
    %c1_148 = arith.constant 1 : index
    %c2_149 = arith.constant 2 : index
    %c0_150 = arith.constant 0 : index
    %c0_151 = arith.constant 0 : index
    %246 = vector.load %arg12[%c1_148, %c2_149, %c0_150, %c0_151] : memref<6x4x48x48xbf16, #tpu.memory_space<vmem>>, vector<1x1x48x48xbf16>
    %247 = vector.shape_cast %246 : vector<1x1x48x48xbf16> to vector<48x48xbf16>
    %248 = arith.truncf %227 : vector<8x48xf32> to vector<8x48xbf16>
    %cst_152 = arith.constant dense<0.000000e+00> : vector<8x48xf32>
    %249 = tpu.matmul %248, %247, %cst_152 {dimension_numbers = #tpu.dot_dimension_numbers<[1], [1], [0], [0], [0, 0, 1, 0], [], []>} : vector<8x48xbf16>, vector<48x48xbf16>, vector<8x48xf32> -> vector<8x48xf32>
    %c1_153 = arith.constant 1 : index
    %c2_154 = arith.constant 2 : index
    %c0_155 = arith.constant 0 : index
    %c0_156 = arith.constant 0 : index
    %250 = vector.load %arg13[%c1_153, %c2_154, %c0_155, %c0_156] : memref<6x4x1x48xf32, #tpu.memory_space<vmem>>, vector<1x1x1x48xf32>
    %251 = vector.shape_cast %250 : vector<1x1x1x48xf32> to vector<1x48xf32>
    %252 = vector.broadcast %251 : vector<1x48xf32> to vector<8x48xf32>
    %253 = arith.addf %249, %252 : vector<8x48xf32>
    %254 = vector.broadcast %1 : vector<1x48xf32> to vector<8x48xf32>
    %255 = arith.mulf %237, %254 : vector<8x48xf32>
    %256 = arith.truncf %255 : vector<8x48xf32> to vector<8x48xbf16>
    %257 = arith.truncf %245 : vector<8x48xf32> to vector<8x48xbf16>
    %cst_157 = arith.constant dense<0.000000e+00> : vector<8x8xf32>
    %258 = tpu.matmul %256, %257, %cst_157 {dimension_numbers = #tpu.dot_dimension_numbers<[1], [1], [0], [0], [0, 0, 1, 0], [], []>} : vector<8x48xbf16>, vector<8x48xbf16>, vector<8x8xf32> -> vector<8x8xf32>
    %259 = arith.addf %258, %36 : vector<8x8xf32>
    %cst_158 = arith.constant dense<0xFF800000> : vector<8xf32>
    %260 = vector.multi_reduction <maximumf>, %259, %cst_158 [1] : vector<8x8xf32> to vector<8xf32>
    %261 = vector.shape_cast %260 : vector<8xf32> to vector<8x1xf32>
    %262 = vector.broadcast %261 : vector<8x1xf32> to vector<8x8xf32>
    %263 = arith.subf %259, %262 : vector<8x8xf32>
    %264 = math.exp %263 : vector<8x8xf32>
    %cst_159 = arith.constant dense<0.000000e+00> : vector<8xf32>
    %265 = vector.multi_reduction <add>, %264, %cst_159 [1] : vector<8x8xf32> to vector<8xf32>
    %266 = vector.shape_cast %265 : vector<8xf32> to vector<8x1xf32>
    %267 = tpu.reciprocal %266 {approx = true} : vector<8x1xf32> -> vector<8x1xf32>
    %268 = vector.broadcast %267 : vector<8x1xf32> to vector<8x8xf32>
    %269 = arith.mulf %264, %268 : vector<8x8xf32>
    %270 = vector.broadcast %1 : vector<1x48xf32> to vector<8x48xf32>
    %271 = arith.mulf %253, %270 : vector<8x48xf32>
    %272 = arith.truncf %269 : vector<8x8xf32> to vector<8x8xbf16>
    %273 = arith.truncf %271 : vector<8x48xf32> to vector<8x48xbf16>
    %cst_160 = arith.constant dense<0.000000e+00> : vector<8x48xf32>
    %274 = tpu.matmul %272, %273, %cst_160 {dimension_numbers = #tpu.dot_dimension_numbers<[1], [0], [0], [1], [0, 0, 1, 1], [], []>} : vector<8x8xbf16>, vector<8x48xbf16>, vector<8x48xf32> -> vector<8x48xf32>
    %275 = vector.broadcast %3 : vector<1x48xf32> to vector<8x48xf32>
    %276 = arith.mulf %237, %275 : vector<8x48xf32>
    %277 = arith.truncf %276 : vector<8x48xf32> to vector<8x48xbf16>
    %278 = arith.truncf %245 : vector<8x48xf32> to vector<8x48xbf16>
    %cst_161 = arith.constant dense<0.000000e+00> : vector<8x8xf32>
    %279 = tpu.matmul %277, %278, %cst_161 {dimension_numbers = #tpu.dot_dimension_numbers<[1], [1], [0], [0], [0, 0, 1, 0], [], []>} : vector<8x48xbf16>, vector<8x48xbf16>, vector<8x8xf32> -> vector<8x8xf32>
    %280 = arith.addf %279, %36 : vector<8x8xf32>
    %cst_162 = arith.constant dense<0xFF800000> : vector<8xf32>
    %281 = vector.multi_reduction <maximumf>, %280, %cst_162 [1] : vector<8x8xf32> to vector<8xf32>
    %282 = vector.shape_cast %281 : vector<8xf32> to vector<8x1xf32>
    %283 = vector.broadcast %282 : vector<8x1xf32> to vector<8x8xf32>
    %284 = arith.subf %280, %283 : vector<8x8xf32>
    %285 = math.exp %284 : vector<8x8xf32>
    %cst_163 = arith.constant dense<0.000000e+00> : vector<8xf32>
    %286 = vector.multi_reduction <add>, %285, %cst_163 [1] : vector<8x8xf32> to vector<8xf32>
    %287 = vector.shape_cast %286 : vector<8xf32> to vector<8x1xf32>
    %288 = tpu.reciprocal %287 {approx = true} : vector<8x1xf32> -> vector<8x1xf32>
    %289 = vector.broadcast %288 : vector<8x1xf32> to vector<8x8xf32>
    %290 = arith.mulf %285, %289 : vector<8x8xf32>
    %291 = vector.broadcast %3 : vector<1x48xf32> to vector<8x48xf32>
    %292 = arith.mulf %253, %291 : vector<8x48xf32>
    %293 = arith.truncf %290 : vector<8x8xf32> to vector<8x8xbf16>
    %294 = arith.truncf %292 : vector<8x48xf32> to vector<8x48xbf16>
    %cst_164 = arith.constant dense<0.000000e+00> : vector<8x48xf32>
    %295 = tpu.matmul %293, %294, %cst_164 {dimension_numbers = #tpu.dot_dimension_numbers<[1], [0], [0], [1], [0, 0, 1, 1], [], []>} : vector<8x8xbf16>, vector<8x48xbf16>, vector<8x48xf32> -> vector<8x48xf32>
    %296 = arith.addf %274, %295 : vector<8x48xf32>
    %297 = vector.broadcast %5 : vector<1x48xf32> to vector<8x48xf32>
    %298 = arith.mulf %237, %297 : vector<8x48xf32>
    %299 = arith.truncf %298 : vector<8x48xf32> to vector<8x48xbf16>
    %300 = arith.truncf %245 : vector<8x48xf32> to vector<8x48xbf16>
    %cst_165 = arith.constant dense<0.000000e+00> : vector<8x8xf32>
    %301 = tpu.matmul %299, %300, %cst_165 {dimension_numbers = #tpu.dot_dimension_numbers<[1], [1], [0], [0], [0, 0, 1, 0], [], []>} : vector<8x48xbf16>, vector<8x48xbf16>, vector<8x8xf32> -> vector<8x8xf32>
    %302 = arith.addf %301, %36 : vector<8x8xf32>
    %cst_166 = arith.constant dense<0xFF800000> : vector<8xf32>
    %303 = vector.multi_reduction <maximumf>, %302, %cst_166 [1] : vector<8x8xf32> to vector<8xf32>
    %304 = vector.shape_cast %303 : vector<8xf32> to vector<8x1xf32>
    %305 = vector.broadcast %304 : vector<8x1xf32> to vector<8x8xf32>
    %306 = arith.subf %302, %305 : vector<8x8xf32>
    %307 = math.exp %306 : vector<8x8xf32>
    %cst_167 = arith.constant dense<0.000000e+00> : vector<8xf32>
    %308 = vector.multi_reduction <add>, %307, %cst_167 [1] : vector<8x8xf32> to vector<8xf32>
    %309 = vector.shape_cast %308 : vector<8xf32> to vector<8x1xf32>
    %310 = tpu.reciprocal %309 {approx = true} : vector<8x1xf32> -> vector<8x1xf32>
    %311 = vector.broadcast %310 : vector<8x1xf32> to vector<8x8xf32>
    %312 = arith.mulf %307, %311 : vector<8x8xf32>
    %313 = vector.broadcast %5 : vector<1x48xf32> to vector<8x48xf32>
    %314 = arith.mulf %253, %313 : vector<8x48xf32>
    %315 = arith.truncf %312 : vector<8x8xf32> to vector<8x8xbf16>
    %316 = arith.truncf %314 : vector<8x48xf32> to vector<8x48xbf16>
    %cst_168 = arith.constant dense<0.000000e+00> : vector<8x48xf32>
    %317 = tpu.matmul %315, %316, %cst_168 {dimension_numbers = #tpu.dot_dimension_numbers<[1], [0], [0], [1], [0, 0, 1, 1], [], []>} : vector<8x8xbf16>, vector<8x48xbf16>, vector<8x48xf32> -> vector<8x48xf32>
    %318 = arith.addf %296, %317 : vector<8x48xf32>
    %319 = vector.broadcast %7 : vector<1x48xf32> to vector<8x48xf32>
    %320 = arith.mulf %237, %319 : vector<8x48xf32>
    %321 = arith.truncf %320 : vector<8x48xf32> to vector<8x48xbf16>
    %322 = arith.truncf %245 : vector<8x48xf32> to vector<8x48xbf16>
    %cst_169 = arith.constant dense<0.000000e+00> : vector<8x8xf32>
    %323 = tpu.matmul %321, %322, %cst_169 {dimension_numbers = #tpu.dot_dimension_numbers<[1], [1], [0], [0], [0, 0, 1, 0], [], []>} : vector<8x48xbf16>, vector<8x48xbf16>, vector<8x8xf32> -> vector<8x8xf32>
    %324 = arith.addf %323, %36 : vector<8x8xf32>
    %cst_170 = arith.constant dense<0xFF800000> : vector<8xf32>
    %325 = vector.multi_reduction <maximumf>, %324, %cst_170 [1] : vector<8x8xf32> to vector<8xf32>
    %326 = vector.shape_cast %325 : vector<8xf32> to vector<8x1xf32>
    %327 = vector.broadcast %326 : vector<8x1xf32> to vector<8x8xf32>
    %328 = arith.subf %324, %327 : vector<8x8xf32>
    %329 = math.exp %328 : vector<8x8xf32>
    %cst_171 = arith.constant dense<0.000000e+00> : vector<8xf32>
    %330 = vector.multi_reduction <add>, %329, %cst_171 [1] : vector<8x8xf32> to vector<8xf32>
    %331 = vector.shape_cast %330 : vector<8xf32> to vector<8x1xf32>
    %332 = tpu.reciprocal %331 {approx = true} : vector<8x1xf32> -> vector<8x1xf32>
    %333 = vector.broadcast %332 : vector<8x1xf32> to vector<8x8xf32>
    %334 = arith.mulf %329, %333 : vector<8x8xf32>
    %335 = vector.broadcast %7 : vector<1x48xf32> to vector<8x48xf32>
    %336 = arith.mulf %253, %335 : vector<8x48xf32>
    %337 = arith.truncf %334 : vector<8x8xf32> to vector<8x8xbf16>
    %338 = arith.truncf %336 : vector<8x48xf32> to vector<8x48xbf16>
    %cst_172 = arith.constant dense<0.000000e+00> : vector<8x48xf32>
    %339 = tpu.matmul %337, %338, %cst_172 {dimension_numbers = #tpu.dot_dimension_numbers<[1], [0], [0], [1], [0, 0, 1, 1], [], []>} : vector<8x8xbf16>, vector<8x48xbf16>, vector<8x48xf32> -> vector<8x48xf32>
    %340 = arith.addf %318, %339 : vector<8x48xf32>
    %c1_173 = arith.constant 1 : index
    %c3_174 = arith.constant 3 : index
    %c0_175 = arith.constant 0 : index
    %c0_176 = arith.constant 0 : index
    %341 = vector.load %arg12[%c1_173, %c3_174, %c0_175, %c0_176] : memref<6x4x48x48xbf16, #tpu.memory_space<vmem>>, vector<1x1x48x48xbf16>
    %342 = vector.shape_cast %341 : vector<1x1x48x48xbf16> to vector<48x48xbf16>
    %343 = arith.truncf %340 : vector<8x48xf32> to vector<8x48xbf16>
    %cst_177 = arith.constant dense<0.000000e+00> : vector<8x48xf32>
    %344 = tpu.matmul %343, %342, %cst_177 {dimension_numbers = #tpu.dot_dimension_numbers<[1], [1], [0], [0], [0, 0, 1, 0], [], []>} : vector<8x48xbf16>, vector<48x48xbf16>, vector<8x48xf32> -> vector<8x48xf32>
    %c1_178 = arith.constant 1 : index
    %c3_179 = arith.constant 3 : index
    %c0_180 = arith.constant 0 : index
    %c0_181 = arith.constant 0 : index
    %345 = vector.load %arg13[%c1_178, %c3_179, %c0_180, %c0_181] : memref<6x4x1x48xf32, #tpu.memory_space<vmem>>, vector<1x1x1x48xf32>
    %346 = vector.shape_cast %345 : vector<1x1x1x48xf32> to vector<1x48xf32>
    %347 = vector.broadcast %346 : vector<1x48xf32> to vector<8x48xf32>
    %348 = arith.addf %344, %347 : vector<8x48xf32>
    %349 = arith.addf %227, %348 : vector<8x48xf32>
    %cst_182 = arith.constant dense<0.000000e+00> : vector<8xf32>
    %350 = vector.multi_reduction <add>, %349, %cst_182 [1] : vector<8x48xf32> to vector<8xf32>
    %351 = vector.shape_cast %350 : vector<8xf32> to vector<8x1xf32>
    %cst_183 = arith.constant 4.800000e+01 : f32
    %352 = vector.broadcast %cst_183 : f32 to vector<8x1xf32>
    %353 = arith.divf %351, %352 : vector<8x1xf32>
    %354 = vector.broadcast %353 : vector<8x1xf32> to vector<8x48xf32>
    %355 = arith.subf %349, %354 : vector<8x48xf32>
    %356 = arith.mulf %355, %355 : vector<8x48xf32>
    %cst_184 = arith.constant dense<0.000000e+00> : vector<8xf32>
    %357 = vector.multi_reduction <add>, %356, %cst_184 [1] : vector<8x48xf32> to vector<8xf32>
    %358 = vector.shape_cast %357 : vector<8xf32> to vector<8x1xf32>
    %cst_185 = arith.constant 4.800000e+01 : f32
    %359 = vector.broadcast %cst_185 : f32 to vector<8x1xf32>
    %360 = arith.divf %358, %359 : vector<8x1xf32>
    %cst_186 = arith.constant 9.99999974E-6 : f32
    %361 = vector.broadcast %cst_186 : f32 to vector<8x1xf32>
    %362 = arith.addf %360, %361 : vector<8x1xf32>
    %363 = math.rsqrt %362 : vector<8x1xf32>
    %364 = vector.broadcast %363 : vector<8x1xf32> to vector<8x48xf32>
    %365 = arith.mulf %355, %364 : vector<8x48xf32>
    %c2_187 = arith.constant 2 : index
    %c0_188 = arith.constant 0 : index
    %c0_189 = arith.constant 0 : index
    %366 = vector.load %arg18[%c2_187, %c0_188, %c0_189] : memref<12x1x48xf32, #tpu.memory_space<vmem>>, vector<1x1x48xf32>
    %367 = vector.shape_cast %366 : vector<1x1x48xf32> to vector<1x48xf32>
    %368 = vector.broadcast %367 : vector<1x48xf32> to vector<8x48xf32>
    %369 = arith.mulf %365, %368 : vector<8x48xf32>
    %c2_190 = arith.constant 2 : index
    %c0_191 = arith.constant 0 : index
    %c0_192 = arith.constant 0 : index
    %370 = vector.load %arg19[%c2_190, %c0_191, %c0_192] : memref<12x1x48xf32, #tpu.memory_space<vmem>>, vector<1x1x48xf32>
    %371 = vector.shape_cast %370 : vector<1x1x48xf32> to vector<1x48xf32>
    %372 = vector.broadcast %371 : vector<1x48xf32> to vector<8x48xf32>
    %373 = arith.addf %369, %372 : vector<8x48xf32>
    %c1_193 = arith.constant 1 : index
    %c0_194 = arith.constant 0 : index
    %c0_195 = arith.constant 0 : index
    %374 = vector.load %arg14[%c1_193, %c0_194, %c0_195] : memref<4x64x48xbf16, #tpu.memory_space<vmem>>, vector<1x64x48xbf16>
    %375 = vector.shape_cast %374 : vector<1x64x48xbf16> to vector<64x48xbf16>
    %376 = arith.truncf %373 : vector<8x48xf32> to vector<8x48xbf16>
    %cst_196 = arith.constant dense<0.000000e+00> : vector<8x64xf32>
    %377 = tpu.matmul %376, %375, %cst_196 {dimension_numbers = #tpu.dot_dimension_numbers<[1], [1], [0], [0], [0, 0, 1, 0], [], []>} : vector<8x48xbf16>, vector<64x48xbf16>, vector<8x64xf32> -> vector<8x64xf32>
    %c1_197 = arith.constant 1 : index
    %c0_198 = arith.constant 0 : index
    %c0_199 = arith.constant 0 : index
    %378 = vector.load %arg15[%c1_197, %c0_198, %c0_199] : memref<4x1x64xf32, #tpu.memory_space<vmem>>, vector<1x1x64xf32>
    %379 = vector.shape_cast %378 : vector<1x1x64xf32> to vector<1x64xf32>
    %380 = vector.broadcast %379 : vector<1x64xf32> to vector<8x64xf32>
    %381 = arith.addf %377, %380 : vector<8x64xf32>
    %cst_200 = arith.constant 0.000000e+00 : f32
    %382 = vector.broadcast %cst_200 : f32 to vector<8x64xf32>
    %383 = arith.maximumf %381, %382 : vector<8x64xf32>
    %c1_201 = arith.constant 1 : index
    %c0_202 = arith.constant 0 : index
    %c0_203 = arith.constant 0 : index
    %384 = vector.load %arg16[%c1_201, %c0_202, %c0_203] : memref<4x48x64xbf16, #tpu.memory_space<vmem>>, vector<1x48x64xbf16>
    %385 = vector.shape_cast %384 : vector<1x48x64xbf16> to vector<48x64xbf16>
    %386 = arith.truncf %383 : vector<8x64xf32> to vector<8x64xbf16>
    %cst_204 = arith.constant dense<0.000000e+00> : vector<8x48xf32>
    %387 = tpu.matmul %386, %385, %cst_204 {dimension_numbers = #tpu.dot_dimension_numbers<[1], [1], [0], [0], [0, 0, 1, 0], [], []>} : vector<8x64xbf16>, vector<48x64xbf16>, vector<8x48xf32> -> vector<8x48xf32>
    %c1_205 = arith.constant 1 : index
    %c0_206 = arith.constant 0 : index
    %c0_207 = arith.constant 0 : index
    %388 = vector.load %arg17[%c1_205, %c0_206, %c0_207] : memref<4x1x48xf32, #tpu.memory_space<vmem>>, vector<1x1x48xf32>
    %389 = vector.shape_cast %388 : vector<1x1x48xf32> to vector<1x48xf32>
    %390 = vector.broadcast %389 : vector<1x48xf32> to vector<8x48xf32>
    %391 = arith.addf %387, %390 : vector<8x48xf32>
    %392 = arith.addf %373, %391 : vector<8x48xf32>
    %cst_208 = arith.constant dense<0.000000e+00> : vector<8xf32>
    %393 = vector.multi_reduction <add>, %392, %cst_208 [1] : vector<8x48xf32> to vector<8xf32>
    %394 = vector.shape_cast %393 : vector<8xf32> to vector<8x1xf32>
    %cst_209 = arith.constant 4.800000e+01 : f32
    %395 = vector.broadcast %cst_209 : f32 to vector<8x1xf32>
    %396 = arith.divf %394, %395 : vector<8x1xf32>
    %397 = vector.broadcast %396 : vector<8x1xf32> to vector<8x48xf32>
    %398 = arith.subf %392, %397 : vector<8x48xf32>
    %399 = arith.mulf %398, %398 : vector<8x48xf32>
    %cst_210 = arith.constant dense<0.000000e+00> : vector<8xf32>
    %400 = vector.multi_reduction <add>, %399, %cst_210 [1] : vector<8x48xf32> to vector<8xf32>
    %401 = vector.shape_cast %400 : vector<8xf32> to vector<8x1xf32>
    %cst_211 = arith.constant 4.800000e+01 : f32
    %402 = vector.broadcast %cst_211 : f32 to vector<8x1xf32>
    %403 = arith.divf %401, %402 : vector<8x1xf32>
    %cst_212 = arith.constant 9.99999974E-6 : f32
    %404 = vector.broadcast %cst_212 : f32 to vector<8x1xf32>
    %405 = arith.addf %403, %404 : vector<8x1xf32>
    %406 = math.rsqrt %405 : vector<8x1xf32>
    %407 = vector.broadcast %406 : vector<8x1xf32> to vector<8x48xf32>
    %408 = arith.mulf %398, %407 : vector<8x48xf32>
    %c3_213 = arith.constant 3 : index
    %c0_214 = arith.constant 0 : index
    %c0_215 = arith.constant 0 : index
    %409 = vector.load %arg18[%c3_213, %c0_214, %c0_215] : memref<12x1x48xf32, #tpu.memory_space<vmem>>, vector<1x1x48xf32>
    %410 = vector.shape_cast %409 : vector<1x1x48xf32> to vector<1x48xf32>
    %411 = vector.broadcast %410 : vector<1x48xf32> to vector<8x48xf32>
    %412 = arith.mulf %408, %411 : vector<8x48xf32>
    %c3_216 = arith.constant 3 : index
    %c0_217 = arith.constant 0 : index
    %c0_218 = arith.constant 0 : index
    %413 = vector.load %arg19[%c3_216, %c0_217, %c0_218] : memref<12x1x48xf32, #tpu.memory_space<vmem>>, vector<1x1x48xf32>
    %414 = vector.shape_cast %413 : vector<1x1x48xf32> to vector<1x48xf32>
    %415 = vector.broadcast %414 : vector<1x48xf32> to vector<8x48xf32>
    %416 = arith.addf %412, %415 : vector<8x48xf32>
    %cst_219 = arith.constant dense<0.000000e+00> : vector<8xf32>
    %417 = vector.multi_reduction <add>, %416, %cst_219 [1] : vector<8x48xf32> to vector<8xf32>
    %418 = vector.shape_cast %417 : vector<8xf32> to vector<8x1xf32>
    %cst_220 = arith.constant 4.800000e+01 : f32
    %419 = vector.broadcast %cst_220 : f32 to vector<8x1xf32>
    %420 = arith.divf %418, %419 : vector<8x1xf32>
    %421 = vector.broadcast %420 : vector<8x1xf32> to vector<8x48xf32>
    %422 = arith.subf %416, %421 : vector<8x48xf32>
    %423 = arith.mulf %422, %422 : vector<8x48xf32>
    %cst_221 = arith.constant dense<0.000000e+00> : vector<8xf32>
    %424 = vector.multi_reduction <add>, %423, %cst_221 [1] : vector<8x48xf32> to vector<8xf32>
    %425 = vector.shape_cast %424 : vector<8xf32> to vector<8x1xf32>
    %cst_222 = arith.constant 4.800000e+01 : f32
    %426 = vector.broadcast %cst_222 : f32 to vector<8x1xf32>
    %427 = arith.divf %425, %426 : vector<8x1xf32>
    %cst_223 = arith.constant 9.99999974E-6 : f32
    %428 = vector.broadcast %cst_223 : f32 to vector<8x1xf32>
    %429 = arith.addf %427, %428 : vector<8x1xf32>
    %430 = math.rsqrt %429 : vector<8x1xf32>
    %431 = vector.broadcast %430 : vector<8x1xf32> to vector<8x48xf32>
    %432 = arith.mulf %422, %431 : vector<8x48xf32>
    %c10 = arith.constant 10 : index
    %c0_224 = arith.constant 0 : index
    %c0_225 = arith.constant 0 : index
    %433 = vector.load %arg18[%c10, %c0_224, %c0_225] : memref<12x1x48xf32, #tpu.memory_space<vmem>>, vector<1x1x48xf32>
    %434 = vector.shape_cast %433 : vector<1x1x48xf32> to vector<1x48xf32>
    %435 = vector.broadcast %434 : vector<1x48xf32> to vector<8x48xf32>
    %436 = arith.mulf %432, %435 : vector<8x48xf32>
    %c10_226 = arith.constant 10 : index
    %c0_227 = arith.constant 0 : index
    %c0_228 = arith.constant 0 : index
    %437 = vector.load %arg19[%c10_226, %c0_227, %c0_228] : memref<12x1x48xf32, #tpu.memory_space<vmem>>, vector<1x1x48xf32>
    %438 = vector.shape_cast %437 : vector<1x1x48xf32> to vector<1x48xf32>
    %439 = vector.broadcast %438 : vector<1x48xf32> to vector<8x48xf32>
    %440 = arith.addf %436, %439 : vector<8x48xf32>
    %c2_229 = arith.constant 2 : index
    %c0_230 = arith.constant 0 : index
    %c0_231 = arith.constant 0 : index
    %c0_232 = arith.constant 0 : index
    %441 = vector.load %arg12[%c2_229, %c0_230, %c0_231, %c0_232] : memref<6x4x48x48xbf16, #tpu.memory_space<vmem>>, vector<1x1x48x48xbf16>
    %442 = vector.shape_cast %441 : vector<1x1x48x48xbf16> to vector<48x48xbf16>
    %443 = arith.truncf %35 : vector<6x48xf32> to vector<6x48xbf16>
    %cst_233 = arith.constant dense<0.000000e+00> : vector<6x48xf32>
    %444 = tpu.matmul %443, %442, %cst_233 {dimension_numbers = #tpu.dot_dimension_numbers<[1], [1], [0], [0], [0, 0, 1, 0], [], []>} : vector<6x48xbf16>, vector<48x48xbf16>, vector<6x48xf32> -> vector<6x48xf32>
    %c2_234 = arith.constant 2 : index
    %c0_235 = arith.constant 0 : index
    %c0_236 = arith.constant 0 : index
    %c0_237 = arith.constant 0 : index
    %445 = vector.load %arg13[%c2_234, %c0_235, %c0_236, %c0_237] : memref<6x4x1x48xf32, #tpu.memory_space<vmem>>, vector<1x1x1x48xf32>
    %446 = vector.shape_cast %445 : vector<1x1x1x48xf32> to vector<1x48xf32>
    %447 = vector.broadcast %446 : vector<1x48xf32> to vector<6x48xf32>
    %448 = arith.addf %444, %447 : vector<6x48xf32>
    %cst_238 = arith.constant 0.288675129 : f32
    %449 = vector.broadcast %cst_238 : f32 to vector<6x48xf32>
    %450 = arith.mulf %448, %449 : vector<6x48xf32>
    %c2_239 = arith.constant 2 : index
    %c1_240 = arith.constant 1 : index
    %c0_241 = arith.constant 0 : index
    %c0_242 = arith.constant 0 : index
    %451 = vector.load %arg12[%c2_239, %c1_240, %c0_241, %c0_242] : memref<6x4x48x48xbf16, #tpu.memory_space<vmem>>, vector<1x1x48x48xbf16>
    %452 = vector.shape_cast %451 : vector<1x1x48x48xbf16> to vector<48x48xbf16>
    %453 = arith.truncf %35 : vector<6x48xf32> to vector<6x48xbf16>
    %cst_243 = arith.constant dense<0.000000e+00> : vector<6x48xf32>
    %454 = tpu.matmul %453, %452, %cst_243 {dimension_numbers = #tpu.dot_dimension_numbers<[1], [1], [0], [0], [0, 0, 1, 0], [], []>} : vector<6x48xbf16>, vector<48x48xbf16>, vector<6x48xf32> -> vector<6x48xf32>
    %c2_244 = arith.constant 2 : index
    %c1_245 = arith.constant 1 : index
    %c0_246 = arith.constant 0 : index
    %c0_247 = arith.constant 0 : index
    %455 = vector.load %arg13[%c2_244, %c1_245, %c0_246, %c0_247] : memref<6x4x1x48xf32, #tpu.memory_space<vmem>>, vector<1x1x1x48xf32>
    %456 = vector.shape_cast %455 : vector<1x1x1x48xf32> to vector<1x48xf32>
    %457 = vector.broadcast %456 : vector<1x48xf32> to vector<6x48xf32>
    %458 = arith.addf %454, %457 : vector<6x48xf32>
    %c2_248 = arith.constant 2 : index
    %c2_249 = arith.constant 2 : index
    %c0_250 = arith.constant 0 : index
    %c0_251 = arith.constant 0 : index
    %459 = vector.load %arg12[%c2_248, %c2_249, %c0_250, %c0_251] : memref<6x4x48x48xbf16, #tpu.memory_space<vmem>>, vector<1x1x48x48xbf16>
    %460 = vector.shape_cast %459 : vector<1x1x48x48xbf16> to vector<48x48xbf16>
    %461 = arith.truncf %35 : vector<6x48xf32> to vector<6x48xbf16>
    %cst_252 = arith.constant dense<0.000000e+00> : vector<6x48xf32>
    %462 = tpu.matmul %461, %460, %cst_252 {dimension_numbers = #tpu.dot_dimension_numbers<[1], [1], [0], [0], [0, 0, 1, 0], [], []>} : vector<6x48xbf16>, vector<48x48xbf16>, vector<6x48xf32> -> vector<6x48xf32>
    %c2_253 = arith.constant 2 : index
    %c2_254 = arith.constant 2 : index
    %c0_255 = arith.constant 0 : index
    %c0_256 = arith.constant 0 : index
    %463 = vector.load %arg13[%c2_253, %c2_254, %c0_255, %c0_256] : memref<6x4x1x48xf32, #tpu.memory_space<vmem>>, vector<1x1x1x48xf32>
    %464 = vector.shape_cast %463 : vector<1x1x1x48xf32> to vector<1x48xf32>
    %465 = vector.broadcast %464 : vector<1x48xf32> to vector<6x48xf32>
    %466 = arith.addf %462, %465 : vector<6x48xf32>
    %467 = vector.broadcast %1 : vector<1x48xf32> to vector<6x48xf32>
    %468 = arith.mulf %450, %467 : vector<6x48xf32>
    %469 = arith.truncf %468 : vector<6x48xf32> to vector<6x48xbf16>
    %470 = arith.truncf %458 : vector<6x48xf32> to vector<6x48xbf16>
    %cst_257 = arith.constant dense<0.000000e+00> : vector<6x6xf32>
    %471 = tpu.matmul %469, %470, %cst_257 {dimension_numbers = #tpu.dot_dimension_numbers<[1], [1], [0], [0], [0, 0, 1, 0], [], []>} : vector<6x48xbf16>, vector<6x48xbf16>, vector<6x6xf32> -> vector<6x6xf32>
    %472 = arith.addf %471, %37 : vector<6x6xf32>
    %cst_258 = arith.constant dense<0xFF800000> : vector<6xf32>
    %473 = vector.multi_reduction <maximumf>, %472, %cst_258 [1] : vector<6x6xf32> to vector<6xf32>
    %474 = vector.shape_cast %473 : vector<6xf32> to vector<6x1xf32>
    %475 = vector.broadcast %474 : vector<6x1xf32> to vector<6x6xf32>
    %476 = arith.subf %472, %475 : vector<6x6xf32>
    %477 = math.exp %476 : vector<6x6xf32>
    %cst_259 = arith.constant dense<0.000000e+00> : vector<6xf32>
    %478 = vector.multi_reduction <add>, %477, %cst_259 [1] : vector<6x6xf32> to vector<6xf32>
    %479 = vector.shape_cast %478 : vector<6xf32> to vector<6x1xf32>
    %480 = tpu.reciprocal %479 {approx = true} : vector<6x1xf32> -> vector<6x1xf32>
    %481 = vector.broadcast %480 : vector<6x1xf32> to vector<6x6xf32>
    %482 = arith.mulf %477, %481 : vector<6x6xf32>
    %483 = vector.broadcast %1 : vector<1x48xf32> to vector<6x48xf32>
    %484 = arith.mulf %466, %483 : vector<6x48xf32>
    %485 = arith.truncf %482 : vector<6x6xf32> to vector<6x6xbf16>
    %486 = arith.truncf %484 : vector<6x48xf32> to vector<6x48xbf16>
    %cst_260 = arith.constant dense<0.000000e+00> : vector<6x48xf32>
    %487 = tpu.matmul %485, %486, %cst_260 {dimension_numbers = #tpu.dot_dimension_numbers<[1], [0], [0], [1], [0, 0, 1, 1], [], []>} : vector<6x6xbf16>, vector<6x48xbf16>, vector<6x48xf32> -> vector<6x48xf32>
    %488 = vector.broadcast %3 : vector<1x48xf32> to vector<6x48xf32>
    %489 = arith.mulf %450, %488 : vector<6x48xf32>
    %490 = arith.truncf %489 : vector<6x48xf32> to vector<6x48xbf16>
    %491 = arith.truncf %458 : vector<6x48xf32> to vector<6x48xbf16>
    %cst_261 = arith.constant dense<0.000000e+00> : vector<6x6xf32>
    %492 = tpu.matmul %490, %491, %cst_261 {dimension_numbers = #tpu.dot_dimension_numbers<[1], [1], [0], [0], [0, 0, 1, 0], [], []>} : vector<6x48xbf16>, vector<6x48xbf16>, vector<6x6xf32> -> vector<6x6xf32>
    %493 = arith.addf %492, %37 : vector<6x6xf32>
    %cst_262 = arith.constant dense<0xFF800000> : vector<6xf32>
    %494 = vector.multi_reduction <maximumf>, %493, %cst_262 [1] : vector<6x6xf32> to vector<6xf32>
    %495 = vector.shape_cast %494 : vector<6xf32> to vector<6x1xf32>
    %496 = vector.broadcast %495 : vector<6x1xf32> to vector<6x6xf32>
    %497 = arith.subf %493, %496 : vector<6x6xf32>
    %498 = math.exp %497 : vector<6x6xf32>
    %cst_263 = arith.constant dense<0.000000e+00> : vector<6xf32>
    %499 = vector.multi_reduction <add>, %498, %cst_263 [1] : vector<6x6xf32> to vector<6xf32>
    %500 = vector.shape_cast %499 : vector<6xf32> to vector<6x1xf32>
    %501 = tpu.reciprocal %500 {approx = true} : vector<6x1xf32> -> vector<6x1xf32>
    %502 = vector.broadcast %501 : vector<6x1xf32> to vector<6x6xf32>
    %503 = arith.mulf %498, %502 : vector<6x6xf32>
    %504 = vector.broadcast %3 : vector<1x48xf32> to vector<6x48xf32>
    %505 = arith.mulf %466, %504 : vector<6x48xf32>
    %506 = arith.truncf %503 : vector<6x6xf32> to vector<6x6xbf16>
    %507 = arith.truncf %505 : vector<6x48xf32> to vector<6x48xbf16>
    %cst_264 = arith.constant dense<0.000000e+00> : vector<6x48xf32>
    %508 = tpu.matmul %506, %507, %cst_264 {dimension_numbers = #tpu.dot_dimension_numbers<[1], [0], [0], [1], [0, 0, 1, 1], [], []>} : vector<6x6xbf16>, vector<6x48xbf16>, vector<6x48xf32> -> vector<6x48xf32>
    %509 = arith.addf %487, %508 : vector<6x48xf32>
    %510 = vector.broadcast %5 : vector<1x48xf32> to vector<6x48xf32>
    %511 = arith.mulf %450, %510 : vector<6x48xf32>
    %512 = arith.truncf %511 : vector<6x48xf32> to vector<6x48xbf16>
    %513 = arith.truncf %458 : vector<6x48xf32> to vector<6x48xbf16>
    %cst_265 = arith.constant dense<0.000000e+00> : vector<6x6xf32>
    %514 = tpu.matmul %512, %513, %cst_265 {dimension_numbers = #tpu.dot_dimension_numbers<[1], [1], [0], [0], [0, 0, 1, 0], [], []>} : vector<6x48xbf16>, vector<6x48xbf16>, vector<6x6xf32> -> vector<6x6xf32>
    %515 = arith.addf %514, %37 : vector<6x6xf32>
    %cst_266 = arith.constant dense<0xFF800000> : vector<6xf32>
    %516 = vector.multi_reduction <maximumf>, %515, %cst_266 [1] : vector<6x6xf32> to vector<6xf32>
    %517 = vector.shape_cast %516 : vector<6xf32> to vector<6x1xf32>
    %518 = vector.broadcast %517 : vector<6x1xf32> to vector<6x6xf32>
    %519 = arith.subf %515, %518 : vector<6x6xf32>
    %520 = math.exp %519 : vector<6x6xf32>
    %cst_267 = arith.constant dense<0.000000e+00> : vector<6xf32>
    %521 = vector.multi_reduction <add>, %520, %cst_267 [1] : vector<6x6xf32> to vector<6xf32>
    %522 = vector.shape_cast %521 : vector<6xf32> to vector<6x1xf32>
    %523 = tpu.reciprocal %522 {approx = true} : vector<6x1xf32> -> vector<6x1xf32>
    %524 = vector.broadcast %523 : vector<6x1xf32> to vector<6x6xf32>
    %525 = arith.mulf %520, %524 : vector<6x6xf32>
    %526 = vector.broadcast %5 : vector<1x48xf32> to vector<6x48xf32>
    %527 = arith.mulf %466, %526 : vector<6x48xf32>
    %528 = arith.truncf %525 : vector<6x6xf32> to vector<6x6xbf16>
    %529 = arith.truncf %527 : vector<6x48xf32> to vector<6x48xbf16>
    %cst_268 = arith.constant dense<0.000000e+00> : vector<6x48xf32>
    %530 = tpu.matmul %528, %529, %cst_268 {dimension_numbers = #tpu.dot_dimension_numbers<[1], [0], [0], [1], [0, 0, 1, 1], [], []>} : vector<6x6xbf16>, vector<6x48xbf16>, vector<6x48xf32> -> vector<6x48xf32>
    %531 = arith.addf %509, %530 : vector<6x48xf32>
    %532 = vector.broadcast %7 : vector<1x48xf32> to vector<6x48xf32>
    %533 = arith.mulf %450, %532 : vector<6x48xf32>
    %534 = arith.truncf %533 : vector<6x48xf32> to vector<6x48xbf16>
    %535 = arith.truncf %458 : vector<6x48xf32> to vector<6x48xbf16>
    %cst_269 = arith.constant dense<0.000000e+00> : vector<6x6xf32>
    %536 = tpu.matmul %534, %535, %cst_269 {dimension_numbers = #tpu.dot_dimension_numbers<[1], [1], [0], [0], [0, 0, 1, 0], [], []>} : vector<6x48xbf16>, vector<6x48xbf16>, vector<6x6xf32> -> vector<6x6xf32>
    %537 = arith.addf %536, %37 : vector<6x6xf32>
    %cst_270 = arith.constant dense<0xFF800000> : vector<6xf32>
    %538 = vector.multi_reduction <maximumf>, %537, %cst_270 [1] : vector<6x6xf32> to vector<6xf32>
    %539 = vector.shape_cast %538 : vector<6xf32> to vector<6x1xf32>
    %540 = vector.broadcast %539 : vector<6x1xf32> to vector<6x6xf32>
    %541 = arith.subf %537, %540 : vector<6x6xf32>
    %542 = math.exp %541 : vector<6x6xf32>
    %cst_271 = arith.constant dense<0.000000e+00> : vector<6xf32>
    %543 = vector.multi_reduction <add>, %542, %cst_271 [1] : vector<6x6xf32> to vector<6xf32>
    %544 = vector.shape_cast %543 : vector<6xf32> to vector<6x1xf32>
    %545 = tpu.reciprocal %544 {approx = true} : vector<6x1xf32> -> vector<6x1xf32>
    %546 = vector.broadcast %545 : vector<6x1xf32> to vector<6x6xf32>
    %547 = arith.mulf %542, %546 : vector<6x6xf32>
    %548 = vector.broadcast %7 : vector<1x48xf32> to vector<6x48xf32>
    %549 = arith.mulf %466, %548 : vector<6x48xf32>
    %550 = arith.truncf %547 : vector<6x6xf32> to vector<6x6xbf16>
    %551 = arith.truncf %549 : vector<6x48xf32> to vector<6x48xbf16>
    %cst_272 = arith.constant dense<0.000000e+00> : vector<6x48xf32>
    %552 = tpu.matmul %550, %551, %cst_272 {dimension_numbers = #tpu.dot_dimension_numbers<[1], [0], [0], [1], [0, 0, 1, 1], [], []>} : vector<6x6xbf16>, vector<6x48xbf16>, vector<6x48xf32> -> vector<6x48xf32>
    %553 = arith.addf %531, %552 : vector<6x48xf32>
    %c2_273 = arith.constant 2 : index
    %c3_274 = arith.constant 3 : index
    %c0_275 = arith.constant 0 : index
    %c0_276 = arith.constant 0 : index
    %554 = vector.load %arg12[%c2_273, %c3_274, %c0_275, %c0_276] : memref<6x4x48x48xbf16, #tpu.memory_space<vmem>>, vector<1x1x48x48xbf16>
    %555 = vector.shape_cast %554 : vector<1x1x48x48xbf16> to vector<48x48xbf16>
    %556 = arith.truncf %553 : vector<6x48xf32> to vector<6x48xbf16>
    %cst_277 = arith.constant dense<0.000000e+00> : vector<6x48xf32>
    %557 = tpu.matmul %556, %555, %cst_277 {dimension_numbers = #tpu.dot_dimension_numbers<[1], [1], [0], [0], [0, 0, 1, 0], [], []>} : vector<6x48xbf16>, vector<48x48xbf16>, vector<6x48xf32> -> vector<6x48xf32>
    %c2_278 = arith.constant 2 : index
    %c3_279 = arith.constant 3 : index
    %c0_280 = arith.constant 0 : index
    %c0_281 = arith.constant 0 : index
    %558 = vector.load %arg13[%c2_278, %c3_279, %c0_280, %c0_281] : memref<6x4x1x48xf32, #tpu.memory_space<vmem>>, vector<1x1x1x48xf32>
    %559 = vector.shape_cast %558 : vector<1x1x1x48xf32> to vector<1x48xf32>
    %560 = vector.broadcast %559 : vector<1x48xf32> to vector<6x48xf32>
    %561 = arith.addf %557, %560 : vector<6x48xf32>
    %562 = arith.addf %35, %561 : vector<6x48xf32>
    %cst_282 = arith.constant dense<0.000000e+00> : vector<6xf32>
    %563 = vector.multi_reduction <add>, %562, %cst_282 [1] : vector<6x48xf32> to vector<6xf32>
    %564 = vector.shape_cast %563 : vector<6xf32> to vector<6x1xf32>
    %cst_283 = arith.constant 4.800000e+01 : f32
    %565 = vector.broadcast %cst_283 : f32 to vector<6x1xf32>
    %566 = arith.divf %564, %565 : vector<6x1xf32>
    %567 = vector.broadcast %566 : vector<6x1xf32> to vector<6x48xf32>
    %568 = arith.subf %562, %567 : vector<6x48xf32>
    %569 = arith.mulf %568, %568 : vector<6x48xf32>
    %cst_284 = arith.constant dense<0.000000e+00> : vector<6xf32>
    %570 = vector.multi_reduction <add>, %569, %cst_284 [1] : vector<6x48xf32> to vector<6xf32>
    %571 = vector.shape_cast %570 : vector<6xf32> to vector<6x1xf32>
    %cst_285 = arith.constant 4.800000e+01 : f32
    %572 = vector.broadcast %cst_285 : f32 to vector<6x1xf32>
    %573 = arith.divf %571, %572 : vector<6x1xf32>
    %cst_286 = arith.constant 9.99999974E-6 : f32
    %574 = vector.broadcast %cst_286 : f32 to vector<6x1xf32>
    %575 = arith.addf %573, %574 : vector<6x1xf32>
    %576 = math.rsqrt %575 : vector<6x1xf32>
    %577 = vector.broadcast %576 : vector<6x1xf32> to vector<6x48xf32>
    %578 = arith.mulf %568, %577 : vector<6x48xf32>
    %c4 = arith.constant 4 : index
    %c0_287 = arith.constant 0 : index
    %c0_288 = arith.constant 0 : index
    %579 = vector.load %arg18[%c4, %c0_287, %c0_288] : memref<12x1x48xf32, #tpu.memory_space<vmem>>, vector<1x1x48xf32>
    %580 = vector.shape_cast %579 : vector<1x1x48xf32> to vector<1x48xf32>
    %581 = vector.broadcast %580 : vector<1x48xf32> to vector<6x48xf32>
    %582 = arith.mulf %578, %581 : vector<6x48xf32>
    %c4_289 = arith.constant 4 : index
    %c0_290 = arith.constant 0 : index
    %c0_291 = arith.constant 0 : index
    %583 = vector.load %arg19[%c4_289, %c0_290, %c0_291] : memref<12x1x48xf32, #tpu.memory_space<vmem>>, vector<1x1x48xf32>
    %584 = vector.shape_cast %583 : vector<1x1x48xf32> to vector<1x48xf32>
    %585 = vector.broadcast %584 : vector<1x48xf32> to vector<6x48xf32>
    %586 = arith.addf %582, %585 : vector<6x48xf32>
    %c3_292 = arith.constant 3 : index
    %c0_293 = arith.constant 0 : index
    %c0_294 = arith.constant 0 : index
    %c0_295 = arith.constant 0 : index
    %587 = vector.load %arg12[%c3_292, %c0_293, %c0_294, %c0_295] : memref<6x4x48x48xbf16, #tpu.memory_space<vmem>>, vector<1x1x48x48xbf16>
    %588 = vector.shape_cast %587 : vector<1x1x48x48xbf16> to vector<48x48xbf16>
    %589 = arith.truncf %586 : vector<6x48xf32> to vector<6x48xbf16>
    %cst_296 = arith.constant dense<0.000000e+00> : vector<6x48xf32>
    %590 = tpu.matmul %589, %588, %cst_296 {dimension_numbers = #tpu.dot_dimension_numbers<[1], [1], [0], [0], [0, 0, 1, 0], [], []>} : vector<6x48xbf16>, vector<48x48xbf16>, vector<6x48xf32> -> vector<6x48xf32>
    %c3_297 = arith.constant 3 : index
    %c0_298 = arith.constant 0 : index
    %c0_299 = arith.constant 0 : index
    %c0_300 = arith.constant 0 : index
    %591 = vector.load %arg13[%c3_297, %c0_298, %c0_299, %c0_300] : memref<6x4x1x48xf32, #tpu.memory_space<vmem>>, vector<1x1x1x48xf32>
    %592 = vector.shape_cast %591 : vector<1x1x1x48xf32> to vector<1x48xf32>
    %593 = vector.broadcast %592 : vector<1x48xf32> to vector<6x48xf32>
    %594 = arith.addf %590, %593 : vector<6x48xf32>
    %cst_301 = arith.constant 0.288675129 : f32
    %595 = vector.broadcast %cst_301 : f32 to vector<6x48xf32>
    %596 = arith.mulf %594, %595 : vector<6x48xf32>
    %c3_302 = arith.constant 3 : index
    %c1_303 = arith.constant 1 : index
    %c0_304 = arith.constant 0 : index
    %c0_305 = arith.constant 0 : index
    %597 = vector.load %arg12[%c3_302, %c1_303, %c0_304, %c0_305] : memref<6x4x48x48xbf16, #tpu.memory_space<vmem>>, vector<1x1x48x48xbf16>
    %598 = vector.shape_cast %597 : vector<1x1x48x48xbf16> to vector<48x48xbf16>
    %599 = arith.truncf %440 : vector<8x48xf32> to vector<8x48xbf16>
    %cst_306 = arith.constant dense<0.000000e+00> : vector<8x48xf32>
    %600 = tpu.matmul %599, %598, %cst_306 {dimension_numbers = #tpu.dot_dimension_numbers<[1], [1], [0], [0], [0, 0, 1, 0], [], []>} : vector<8x48xbf16>, vector<48x48xbf16>, vector<8x48xf32> -> vector<8x48xf32>
    %c3_307 = arith.constant 3 : index
    %c1_308 = arith.constant 1 : index
    %c0_309 = arith.constant 0 : index
    %c0_310 = arith.constant 0 : index
    %601 = vector.load %arg13[%c3_307, %c1_308, %c0_309, %c0_310] : memref<6x4x1x48xf32, #tpu.memory_space<vmem>>, vector<1x1x1x48xf32>
    %602 = vector.shape_cast %601 : vector<1x1x1x48xf32> to vector<1x48xf32>
    %603 = vector.broadcast %602 : vector<1x48xf32> to vector<8x48xf32>
    %604 = arith.addf %600, %603 : vector<8x48xf32>
    %c3_311 = arith.constant 3 : index
    %c2_312 = arith.constant 2 : index
    %c0_313 = arith.constant 0 : index
    %c0_314 = arith.constant 0 : index
    %605 = vector.load %arg12[%c3_311, %c2_312, %c0_313, %c0_314] : memref<6x4x48x48xbf16, #tpu.memory_space<vmem>>, vector<1x1x48x48xbf16>
    %606 = vector.shape_cast %605 : vector<1x1x48x48xbf16> to vector<48x48xbf16>
    %607 = arith.truncf %440 : vector<8x48xf32> to vector<8x48xbf16>
    %cst_315 = arith.constant dense<0.000000e+00> : vector<8x48xf32>
    %608 = tpu.matmul %607, %606, %cst_315 {dimension_numbers = #tpu.dot_dimension_numbers<[1], [1], [0], [0], [0, 0, 1, 0], [], []>} : vector<8x48xbf16>, vector<48x48xbf16>, vector<8x48xf32> -> vector<8x48xf32>
    %c3_316 = arith.constant 3 : index
    %c2_317 = arith.constant 2 : index
    %c0_318 = arith.constant 0 : index
    %c0_319 = arith.constant 0 : index
    %609 = vector.load %arg13[%c3_316, %c2_317, %c0_318, %c0_319] : memref<6x4x1x48xf32, #tpu.memory_space<vmem>>, vector<1x1x1x48xf32>
    %610 = vector.shape_cast %609 : vector<1x1x1x48xf32> to vector<1x48xf32>
    %611 = vector.broadcast %610 : vector<1x48xf32> to vector<8x48xf32>
    %612 = arith.addf %608, %611 : vector<8x48xf32>
    %613 = vector.broadcast %1 : vector<1x48xf32> to vector<6x48xf32>
    %614 = arith.mulf %596, %613 : vector<6x48xf32>
    %615 = arith.truncf %614 : vector<6x48xf32> to vector<6x48xbf16>
    %616 = arith.truncf %604 : vector<8x48xf32> to vector<8x48xbf16>
    %cst_320 = arith.constant dense<0.000000e+00> : vector<6x8xf32>
    %617 = tpu.matmul %615, %616, %cst_320 {dimension_numbers = #tpu.dot_dimension_numbers<[1], [1], [0], [0], [0, 0, 1, 0], [], []>} : vector<6x48xbf16>, vector<8x48xbf16>, vector<6x8xf32> -> vector<6x8xf32>
    %618 = arith.addf %617, %38 : vector<6x8xf32>
    %cst_321 = arith.constant dense<0xFF800000> : vector<6xf32>
    %619 = vector.multi_reduction <maximumf>, %618, %cst_321 [1] : vector<6x8xf32> to vector<6xf32>
    %620 = vector.shape_cast %619 : vector<6xf32> to vector<6x1xf32>
    %621 = vector.broadcast %620 : vector<6x1xf32> to vector<6x8xf32>
    %622 = arith.subf %618, %621 : vector<6x8xf32>
    %623 = math.exp %622 : vector<6x8xf32>
    %cst_322 = arith.constant dense<0.000000e+00> : vector<6xf32>
    %624 = vector.multi_reduction <add>, %623, %cst_322 [1] : vector<6x8xf32> to vector<6xf32>
    %625 = vector.shape_cast %624 : vector<6xf32> to vector<6x1xf32>
    %626 = tpu.reciprocal %625 {approx = true} : vector<6x1xf32> -> vector<6x1xf32>
    %627 = vector.broadcast %626 : vector<6x1xf32> to vector<6x8xf32>
    %628 = arith.mulf %623, %627 : vector<6x8xf32>
    %629 = vector.broadcast %1 : vector<1x48xf32> to vector<8x48xf32>
    %630 = arith.mulf %612, %629 : vector<8x48xf32>
    %631 = arith.truncf %628 : vector<6x8xf32> to vector<6x8xbf16>
    %632 = arith.truncf %630 : vector<8x48xf32> to vector<8x48xbf16>
    %cst_323 = arith.constant dense<0.000000e+00> : vector<6x48xf32>
    %633 = tpu.matmul %631, %632, %cst_323 {dimension_numbers = #tpu.dot_dimension_numbers<[1], [0], [0], [1], [0, 0, 1, 1], [], []>} : vector<6x8xbf16>, vector<8x48xbf16>, vector<6x48xf32> -> vector<6x48xf32>
    %634 = vector.broadcast %3 : vector<1x48xf32> to vector<6x48xf32>
    %635 = arith.mulf %596, %634 : vector<6x48xf32>
    %636 = arith.truncf %635 : vector<6x48xf32> to vector<6x48xbf16>
    %637 = arith.truncf %604 : vector<8x48xf32> to vector<8x48xbf16>
    %cst_324 = arith.constant dense<0.000000e+00> : vector<6x8xf32>
    %638 = tpu.matmul %636, %637, %cst_324 {dimension_numbers = #tpu.dot_dimension_numbers<[1], [1], [0], [0], [0, 0, 1, 0], [], []>} : vector<6x48xbf16>, vector<8x48xbf16>, vector<6x8xf32> -> vector<6x8xf32>
    %639 = arith.addf %638, %38 : vector<6x8xf32>
    %cst_325 = arith.constant dense<0xFF800000> : vector<6xf32>
    %640 = vector.multi_reduction <maximumf>, %639, %cst_325 [1] : vector<6x8xf32> to vector<6xf32>
    %641 = vector.shape_cast %640 : vector<6xf32> to vector<6x1xf32>
    %642 = vector.broadcast %641 : vector<6x1xf32> to vector<6x8xf32>
    %643 = arith.subf %639, %642 : vector<6x8xf32>
    %644 = math.exp %643 : vector<6x8xf32>
    %cst_326 = arith.constant dense<0.000000e+00> : vector<6xf32>
    %645 = vector.multi_reduction <add>, %644, %cst_326 [1] : vector<6x8xf32> to vector<6xf32>
    %646 = vector.shape_cast %645 : vector<6xf32> to vector<6x1xf32>
    %647 = tpu.reciprocal %646 {approx = true} : vector<6x1xf32> -> vector<6x1xf32>
    %648 = vector.broadcast %647 : vector<6x1xf32> to vector<6x8xf32>
    %649 = arith.mulf %644, %648 : vector<6x8xf32>
    %650 = vector.broadcast %3 : vector<1x48xf32> to vector<8x48xf32>
    %651 = arith.mulf %612, %650 : vector<8x48xf32>
    %652 = arith.truncf %649 : vector<6x8xf32> to vector<6x8xbf16>
    %653 = arith.truncf %651 : vector<8x48xf32> to vector<8x48xbf16>
    %cst_327 = arith.constant dense<0.000000e+00> : vector<6x48xf32>
    %654 = tpu.matmul %652, %653, %cst_327 {dimension_numbers = #tpu.dot_dimension_numbers<[1], [0], [0], [1], [0, 0, 1, 1], [], []>} : vector<6x8xbf16>, vector<8x48xbf16>, vector<6x48xf32> -> vector<6x48xf32>
    %655 = arith.addf %633, %654 : vector<6x48xf32>
    %656 = vector.broadcast %5 : vector<1x48xf32> to vector<6x48xf32>
    %657 = arith.mulf %596, %656 : vector<6x48xf32>
    %658 = arith.truncf %657 : vector<6x48xf32> to vector<6x48xbf16>
    %659 = arith.truncf %604 : vector<8x48xf32> to vector<8x48xbf16>
    %cst_328 = arith.constant dense<0.000000e+00> : vector<6x8xf32>
    %660 = tpu.matmul %658, %659, %cst_328 {dimension_numbers = #tpu.dot_dimension_numbers<[1], [1], [0], [0], [0, 0, 1, 0], [], []>} : vector<6x48xbf16>, vector<8x48xbf16>, vector<6x8xf32> -> vector<6x8xf32>
    %661 = arith.addf %660, %38 : vector<6x8xf32>
    %cst_329 = arith.constant dense<0xFF800000> : vector<6xf32>
    %662 = vector.multi_reduction <maximumf>, %661, %cst_329 [1] : vector<6x8xf32> to vector<6xf32>
    %663 = vector.shape_cast %662 : vector<6xf32> to vector<6x1xf32>
    %664 = vector.broadcast %663 : vector<6x1xf32> to vector<6x8xf32>
    %665 = arith.subf %661, %664 : vector<6x8xf32>
    %666 = math.exp %665 : vector<6x8xf32>
    %cst_330 = arith.constant dense<0.000000e+00> : vector<6xf32>
    %667 = vector.multi_reduction <add>, %666, %cst_330 [1] : vector<6x8xf32> to vector<6xf32>
    %668 = vector.shape_cast %667 : vector<6xf32> to vector<6x1xf32>
    %669 = tpu.reciprocal %668 {approx = true} : vector<6x1xf32> -> vector<6x1xf32>
    %670 = vector.broadcast %669 : vector<6x1xf32> to vector<6x8xf32>
    %671 = arith.mulf %666, %670 : vector<6x8xf32>
    %672 = vector.broadcast %5 : vector<1x48xf32> to vector<8x48xf32>
    %673 = arith.mulf %612, %672 : vector<8x48xf32>
    %674 = arith.truncf %671 : vector<6x8xf32> to vector<6x8xbf16>
    %675 = arith.truncf %673 : vector<8x48xf32> to vector<8x48xbf16>
    %cst_331 = arith.constant dense<0.000000e+00> : vector<6x48xf32>
    %676 = tpu.matmul %674, %675, %cst_331 {dimension_numbers = #tpu.dot_dimension_numbers<[1], [0], [0], [1], [0, 0, 1, 1], [], []>} : vector<6x8xbf16>, vector<8x48xbf16>, vector<6x48xf32> -> vector<6x48xf32>
    %677 = arith.addf %655, %676 : vector<6x48xf32>
    %678 = vector.broadcast %7 : vector<1x48xf32> to vector<6x48xf32>
    %679 = arith.mulf %596, %678 : vector<6x48xf32>
    %680 = arith.truncf %679 : vector<6x48xf32> to vector<6x48xbf16>
    %681 = arith.truncf %604 : vector<8x48xf32> to vector<8x48xbf16>
    %cst_332 = arith.constant dense<0.000000e+00> : vector<6x8xf32>
    %682 = tpu.matmul %680, %681, %cst_332 {dimension_numbers = #tpu.dot_dimension_numbers<[1], [1], [0], [0], [0, 0, 1, 0], [], []>} : vector<6x48xbf16>, vector<8x48xbf16>, vector<6x8xf32> -> vector<6x8xf32>
    %683 = arith.addf %682, %38 : vector<6x8xf32>
    %cst_333 = arith.constant dense<0xFF800000> : vector<6xf32>
    %684 = vector.multi_reduction <maximumf>, %683, %cst_333 [1] : vector<6x8xf32> to vector<6xf32>
    %685 = vector.shape_cast %684 : vector<6xf32> to vector<6x1xf32>
    %686 = vector.broadcast %685 : vector<6x1xf32> to vector<6x8xf32>
    %687 = arith.subf %683, %686 : vector<6x8xf32>
    %688 = math.exp %687 : vector<6x8xf32>
    %cst_334 = arith.constant dense<0.000000e+00> : vector<6xf32>
    %689 = vector.multi_reduction <add>, %688, %cst_334 [1] : vector<6x8xf32> to vector<6xf32>
    %690 = vector.shape_cast %689 : vector<6xf32> to vector<6x1xf32>
    %691 = tpu.reciprocal %690 {approx = true} : vector<6x1xf32> -> vector<6x1xf32>
    %692 = vector.broadcast %691 : vector<6x1xf32> to vector<6x8xf32>
    %693 = arith.mulf %688, %692 : vector<6x8xf32>
    %694 = vector.broadcast %7 : vector<1x48xf32> to vector<8x48xf32>
    %695 = arith.mulf %612, %694 : vector<8x48xf32>
    %696 = arith.truncf %693 : vector<6x8xf32> to vector<6x8xbf16>
    %697 = arith.truncf %695 : vector<8x48xf32> to vector<8x48xbf16>
    %cst_335 = arith.constant dense<0.000000e+00> : vector<6x48xf32>
    %698 = tpu.matmul %696, %697, %cst_335 {dimension_numbers = #tpu.dot_dimension_numbers<[1], [0], [0], [1], [0, 0, 1, 1], [], []>} : vector<6x8xbf16>, vector<8x48xbf16>, vector<6x48xf32> -> vector<6x48xf32>
    %699 = arith.addf %677, %698 : vector<6x48xf32>
    %c3_336 = arith.constant 3 : index
    %c3_337 = arith.constant 3 : index
    %c0_338 = arith.constant 0 : index
    %c0_339 = arith.constant 0 : index
    %700 = vector.load %arg12[%c3_336, %c3_337, %c0_338, %c0_339] : memref<6x4x48x48xbf16, #tpu.memory_space<vmem>>, vector<1x1x48x48xbf16>
    %701 = vector.shape_cast %700 : vector<1x1x48x48xbf16> to vector<48x48xbf16>
    %702 = arith.truncf %699 : vector<6x48xf32> to vector<6x48xbf16>
    %cst_340 = arith.constant dense<0.000000e+00> : vector<6x48xf32>
    %703 = tpu.matmul %702, %701, %cst_340 {dimension_numbers = #tpu.dot_dimension_numbers<[1], [1], [0], [0], [0, 0, 1, 0], [], []>} : vector<6x48xbf16>, vector<48x48xbf16>, vector<6x48xf32> -> vector<6x48xf32>
    %c3_341 = arith.constant 3 : index
    %c3_342 = arith.constant 3 : index
    %c0_343 = arith.constant 0 : index
    %c0_344 = arith.constant 0 : index
    %704 = vector.load %arg13[%c3_341, %c3_342, %c0_343, %c0_344] : memref<6x4x1x48xf32, #tpu.memory_space<vmem>>, vector<1x1x1x48xf32>
    %705 = vector.shape_cast %704 : vector<1x1x1x48xf32> to vector<1x48xf32>
    %706 = vector.broadcast %705 : vector<1x48xf32> to vector<6x48xf32>
    %707 = arith.addf %703, %706 : vector<6x48xf32>
    %708 = arith.addf %586, %707 : vector<6x48xf32>
    %cst_345 = arith.constant dense<0.000000e+00> : vector<6xf32>
    %709 = vector.multi_reduction <add>, %708, %cst_345 [1] : vector<6x48xf32> to vector<6xf32>
    %710 = vector.shape_cast %709 : vector<6xf32> to vector<6x1xf32>
    %cst_346 = arith.constant 4.800000e+01 : f32
    %711 = vector.broadcast %cst_346 : f32 to vector<6x1xf32>
    %712 = arith.divf %710, %711 : vector<6x1xf32>
    %713 = vector.broadcast %712 : vector<6x1xf32> to vector<6x48xf32>
    %714 = arith.subf %708, %713 : vector<6x48xf32>
    %715 = arith.mulf %714, %714 : vector<6x48xf32>
    %cst_347 = arith.constant dense<0.000000e+00> : vector<6xf32>
    %716 = vector.multi_reduction <add>, %715, %cst_347 [1] : vector<6x48xf32> to vector<6xf32>
    %717 = vector.shape_cast %716 : vector<6xf32> to vector<6x1xf32>
    %cst_348 = arith.constant 4.800000e+01 : f32
    %718 = vector.broadcast %cst_348 : f32 to vector<6x1xf32>
    %719 = arith.divf %717, %718 : vector<6x1xf32>
    %cst_349 = arith.constant 9.99999974E-6 : f32
    %720 = vector.broadcast %cst_349 : f32 to vector<6x1xf32>
    %721 = arith.addf %719, %720 : vector<6x1xf32>
    %722 = math.rsqrt %721 : vector<6x1xf32>
    %723 = vector.broadcast %722 : vector<6x1xf32> to vector<6x48xf32>
    %724 = arith.mulf %714, %723 : vector<6x48xf32>
    %c5 = arith.constant 5 : index
    %c0_350 = arith.constant 0 : index
    %c0_351 = arith.constant 0 : index
    %725 = vector.load %arg18[%c5, %c0_350, %c0_351] : memref<12x1x48xf32, #tpu.memory_space<vmem>>, vector<1x1x48xf32>
    %726 = vector.shape_cast %725 : vector<1x1x48xf32> to vector<1x48xf32>
    %727 = vector.broadcast %726 : vector<1x48xf32> to vector<6x48xf32>
    %728 = arith.mulf %724, %727 : vector<6x48xf32>
    %c5_352 = arith.constant 5 : index
    %c0_353 = arith.constant 0 : index
    %c0_354 = arith.constant 0 : index
    %729 = vector.load %arg19[%c5_352, %c0_353, %c0_354] : memref<12x1x48xf32, #tpu.memory_space<vmem>>, vector<1x1x48xf32>
    %730 = vector.shape_cast %729 : vector<1x1x48xf32> to vector<1x48xf32>
    %731 = vector.broadcast %730 : vector<1x48xf32> to vector<6x48xf32>
    %732 = arith.addf %728, %731 : vector<6x48xf32>
    %c2_355 = arith.constant 2 : index
    %c0_356 = arith.constant 0 : index
    %c0_357 = arith.constant 0 : index
    %733 = vector.load %arg14[%c2_355, %c0_356, %c0_357] : memref<4x64x48xbf16, #tpu.memory_space<vmem>>, vector<1x64x48xbf16>
    %734 = vector.shape_cast %733 : vector<1x64x48xbf16> to vector<64x48xbf16>
    %735 = arith.truncf %732 : vector<6x48xf32> to vector<6x48xbf16>
    %cst_358 = arith.constant dense<0.000000e+00> : vector<6x64xf32>
    %736 = tpu.matmul %735, %734, %cst_358 {dimension_numbers = #tpu.dot_dimension_numbers<[1], [1], [0], [0], [0, 0, 1, 0], [], []>} : vector<6x48xbf16>, vector<64x48xbf16>, vector<6x64xf32> -> vector<6x64xf32>
    %c2_359 = arith.constant 2 : index
    %c0_360 = arith.constant 0 : index
    %c0_361 = arith.constant 0 : index
    %737 = vector.load %arg15[%c2_359, %c0_360, %c0_361] : memref<4x1x64xf32, #tpu.memory_space<vmem>>, vector<1x1x64xf32>
    %738 = vector.shape_cast %737 : vector<1x1x64xf32> to vector<1x64xf32>
    %739 = vector.broadcast %738 : vector<1x64xf32> to vector<6x64xf32>
    %740 = arith.addf %736, %739 : vector<6x64xf32>
    %cst_362 = arith.constant 0.000000e+00 : f32
    %741 = vector.broadcast %cst_362 : f32 to vector<6x64xf32>
    %742 = arith.maximumf %740, %741 : vector<6x64xf32>
    %c2_363 = arith.constant 2 : index
    %c0_364 = arith.constant 0 : index
    %c0_365 = arith.constant 0 : index
    %743 = vector.load %arg16[%c2_363, %c0_364, %c0_365] : memref<4x48x64xbf16, #tpu.memory_space<vmem>>, vector<1x48x64xbf16>
    %744 = vector.shape_cast %743 : vector<1x48x64xbf16> to vector<48x64xbf16>
    %745 = arith.truncf %742 : vector<6x64xf32> to vector<6x64xbf16>
    %cst_366 = arith.constant dense<0.000000e+00> : vector<6x48xf32>
    %746 = tpu.matmul %745, %744, %cst_366 {dimension_numbers = #tpu.dot_dimension_numbers<[1], [1], [0], [0], [0, 0, 1, 0], [], []>} : vector<6x64xbf16>, vector<48x64xbf16>, vector<6x48xf32> -> vector<6x48xf32>
    %c2_367 = arith.constant 2 : index
    %c0_368 = arith.constant 0 : index
    %c0_369 = arith.constant 0 : index
    %747 = vector.load %arg17[%c2_367, %c0_368, %c0_369] : memref<4x1x48xf32, #tpu.memory_space<vmem>>, vector<1x1x48xf32>
    %748 = vector.shape_cast %747 : vector<1x1x48xf32> to vector<1x48xf32>
    %749 = vector.broadcast %748 : vector<1x48xf32> to vector<6x48xf32>
    %750 = arith.addf %746, %749 : vector<6x48xf32>
    %751 = arith.addf %732, %750 : vector<6x48xf32>
    %cst_370 = arith.constant dense<0.000000e+00> : vector<6xf32>
    %752 = vector.multi_reduction <add>, %751, %cst_370 [1] : vector<6x48xf32> to vector<6xf32>
    %753 = vector.shape_cast %752 : vector<6xf32> to vector<6x1xf32>
    %cst_371 = arith.constant 4.800000e+01 : f32
    %754 = vector.broadcast %cst_371 : f32 to vector<6x1xf32>
    %755 = arith.divf %753, %754 : vector<6x1xf32>
    %756 = vector.broadcast %755 : vector<6x1xf32> to vector<6x48xf32>
    %757 = arith.subf %751, %756 : vector<6x48xf32>
    %758 = arith.mulf %757, %757 : vector<6x48xf32>
    %cst_372 = arith.constant dense<0.000000e+00> : vector<6xf32>
    %759 = vector.multi_reduction <add>, %758, %cst_372 [1] : vector<6x48xf32> to vector<6xf32>
    %760 = vector.shape_cast %759 : vector<6xf32> to vector<6x1xf32>
    %cst_373 = arith.constant 4.800000e+01 : f32
    %761 = vector.broadcast %cst_373 : f32 to vector<6x1xf32>
    %762 = arith.divf %760, %761 : vector<6x1xf32>
    %cst_374 = arith.constant 9.99999974E-6 : f32
    %763 = vector.broadcast %cst_374 : f32 to vector<6x1xf32>
    %764 = arith.addf %762, %763 : vector<6x1xf32>
    %765 = math.rsqrt %764 : vector<6x1xf32>
    %766 = vector.broadcast %765 : vector<6x1xf32> to vector<6x48xf32>
    %767 = arith.mulf %757, %766 : vector<6x48xf32>
    %c6 = arith.constant 6 : index
    %c0_375 = arith.constant 0 : index
    %c0_376 = arith.constant 0 : index
    %768 = vector.load %arg18[%c6, %c0_375, %c0_376] : memref<12x1x48xf32, #tpu.memory_space<vmem>>, vector<1x1x48xf32>
    %769 = vector.shape_cast %768 : vector<1x1x48xf32> to vector<1x48xf32>
    %770 = vector.broadcast %769 : vector<1x48xf32> to vector<6x48xf32>
    %771 = arith.mulf %767, %770 : vector<6x48xf32>
    %c6_377 = arith.constant 6 : index
    %c0_378 = arith.constant 0 : index
    %c0_379 = arith.constant 0 : index
    %772 = vector.load %arg19[%c6_377, %c0_378, %c0_379] : memref<12x1x48xf32, #tpu.memory_space<vmem>>, vector<1x1x48xf32>
    %773 = vector.shape_cast %772 : vector<1x1x48xf32> to vector<1x48xf32>
    %774 = vector.broadcast %773 : vector<1x48xf32> to vector<6x48xf32>
    %775 = arith.addf %771, %774 : vector<6x48xf32>
    %c4_380 = arith.constant 4 : index
    %c0_381 = arith.constant 0 : index
    %c0_382 = arith.constant 0 : index
    %c0_383 = arith.constant 0 : index
    %776 = vector.load %arg12[%c4_380, %c0_381, %c0_382, %c0_383] : memref<6x4x48x48xbf16, #tpu.memory_space<vmem>>, vector<1x1x48x48xbf16>
    %777 = vector.shape_cast %776 : vector<1x1x48x48xbf16> to vector<48x48xbf16>
    %778 = arith.truncf %775 : vector<6x48xf32> to vector<6x48xbf16>
    %cst_384 = arith.constant dense<0.000000e+00> : vector<6x48xf32>
    %779 = tpu.matmul %778, %777, %cst_384 {dimension_numbers = #tpu.dot_dimension_numbers<[1], [1], [0], [0], [0, 0, 1, 0], [], []>} : vector<6x48xbf16>, vector<48x48xbf16>, vector<6x48xf32> -> vector<6x48xf32>
    %c4_385 = arith.constant 4 : index
    %c0_386 = arith.constant 0 : index
    %c0_387 = arith.constant 0 : index
    %c0_388 = arith.constant 0 : index
    %780 = vector.load %arg13[%c4_385, %c0_386, %c0_387, %c0_388] : memref<6x4x1x48xf32, #tpu.memory_space<vmem>>, vector<1x1x1x48xf32>
    %781 = vector.shape_cast %780 : vector<1x1x1x48xf32> to vector<1x48xf32>
    %782 = vector.broadcast %781 : vector<1x48xf32> to vector<6x48xf32>
    %783 = arith.addf %779, %782 : vector<6x48xf32>
    %cst_389 = arith.constant 0.288675129 : f32
    %784 = vector.broadcast %cst_389 : f32 to vector<6x48xf32>
    %785 = arith.mulf %783, %784 : vector<6x48xf32>
    %c4_390 = arith.constant 4 : index
    %c1_391 = arith.constant 1 : index
    %c0_392 = arith.constant 0 : index
    %c0_393 = arith.constant 0 : index
    %786 = vector.load %arg12[%c4_390, %c1_391, %c0_392, %c0_393] : memref<6x4x48x48xbf16, #tpu.memory_space<vmem>>, vector<1x1x48x48xbf16>
    %787 = vector.shape_cast %786 : vector<1x1x48x48xbf16> to vector<48x48xbf16>
    %788 = arith.truncf %775 : vector<6x48xf32> to vector<6x48xbf16>
    %cst_394 = arith.constant dense<0.000000e+00> : vector<6x48xf32>
    %789 = tpu.matmul %788, %787, %cst_394 {dimension_numbers = #tpu.dot_dimension_numbers<[1], [1], [0], [0], [0, 0, 1, 0], [], []>} : vector<6x48xbf16>, vector<48x48xbf16>, vector<6x48xf32> -> vector<6x48xf32>
    %c4_395 = arith.constant 4 : index
    %c1_396 = arith.constant 1 : index
    %c0_397 = arith.constant 0 : index
    %c0_398 = arith.constant 0 : index
    %790 = vector.load %arg13[%c4_395, %c1_396, %c0_397, %c0_398] : memref<6x4x1x48xf32, #tpu.memory_space<vmem>>, vector<1x1x1x48xf32>
    %791 = vector.shape_cast %790 : vector<1x1x1x48xf32> to vector<1x48xf32>
    %792 = vector.broadcast %791 : vector<1x48xf32> to vector<6x48xf32>
    %793 = arith.addf %789, %792 : vector<6x48xf32>
    %c4_399 = arith.constant 4 : index
    %c2_400 = arith.constant 2 : index
    %c0_401 = arith.constant 0 : index
    %c0_402 = arith.constant 0 : index
    %794 = vector.load %arg12[%c4_399, %c2_400, %c0_401, %c0_402] : memref<6x4x48x48xbf16, #tpu.memory_space<vmem>>, vector<1x1x48x48xbf16>
    %795 = vector.shape_cast %794 : vector<1x1x48x48xbf16> to vector<48x48xbf16>
    %796 = arith.truncf %775 : vector<6x48xf32> to vector<6x48xbf16>
    %cst_403 = arith.constant dense<0.000000e+00> : vector<6x48xf32>
    %797 = tpu.matmul %796, %795, %cst_403 {dimension_numbers = #tpu.dot_dimension_numbers<[1], [1], [0], [0], [0, 0, 1, 0], [], []>} : vector<6x48xbf16>, vector<48x48xbf16>, vector<6x48xf32> -> vector<6x48xf32>
    %c4_404 = arith.constant 4 : index
    %c2_405 = arith.constant 2 : index
    %c0_406 = arith.constant 0 : index
    %c0_407 = arith.constant 0 : index
    %798 = vector.load %arg13[%c4_404, %c2_405, %c0_406, %c0_407] : memref<6x4x1x48xf32, #tpu.memory_space<vmem>>, vector<1x1x1x48xf32>
    %799 = vector.shape_cast %798 : vector<1x1x1x48xf32> to vector<1x48xf32>
    %800 = vector.broadcast %799 : vector<1x48xf32> to vector<6x48xf32>
    %801 = arith.addf %797, %800 : vector<6x48xf32>
    %802 = vector.broadcast %1 : vector<1x48xf32> to vector<6x48xf32>
    %803 = arith.mulf %785, %802 : vector<6x48xf32>
    %804 = arith.truncf %803 : vector<6x48xf32> to vector<6x48xbf16>
    %805 = arith.truncf %793 : vector<6x48xf32> to vector<6x48xbf16>
    %cst_408 = arith.constant dense<0.000000e+00> : vector<6x6xf32>
    %806 = tpu.matmul %804, %805, %cst_408 {dimension_numbers = #tpu.dot_dimension_numbers<[1], [1], [0], [0], [0, 0, 1, 0], [], []>} : vector<6x48xbf16>, vector<6x48xbf16>, vector<6x6xf32> -> vector<6x6xf32>
    %807 = arith.addf %806, %37 : vector<6x6xf32>
    %cst_409 = arith.constant dense<0xFF800000> : vector<6xf32>
    %808 = vector.multi_reduction <maximumf>, %807, %cst_409 [1] : vector<6x6xf32> to vector<6xf32>
    %809 = vector.shape_cast %808 : vector<6xf32> to vector<6x1xf32>
    %810 = vector.broadcast %809 : vector<6x1xf32> to vector<6x6xf32>
    %811 = arith.subf %807, %810 : vector<6x6xf32>
    %812 = math.exp %811 : vector<6x6xf32>
    %cst_410 = arith.constant dense<0.000000e+00> : vector<6xf32>
    %813 = vector.multi_reduction <add>, %812, %cst_410 [1] : vector<6x6xf32> to vector<6xf32>
    %814 = vector.shape_cast %813 : vector<6xf32> to vector<6x1xf32>
    %815 = tpu.reciprocal %814 {approx = true} : vector<6x1xf32> -> vector<6x1xf32>
    %816 = vector.broadcast %815 : vector<6x1xf32> to vector<6x6xf32>
    %817 = arith.mulf %812, %816 : vector<6x6xf32>
    %818 = vector.broadcast %1 : vector<1x48xf32> to vector<6x48xf32>
    %819 = arith.mulf %801, %818 : vector<6x48xf32>
    %820 = arith.truncf %817 : vector<6x6xf32> to vector<6x6xbf16>
    %821 = arith.truncf %819 : vector<6x48xf32> to vector<6x48xbf16>
    %cst_411 = arith.constant dense<0.000000e+00> : vector<6x48xf32>
    %822 = tpu.matmul %820, %821, %cst_411 {dimension_numbers = #tpu.dot_dimension_numbers<[1], [0], [0], [1], [0, 0, 1, 1], [], []>} : vector<6x6xbf16>, vector<6x48xbf16>, vector<6x48xf32> -> vector<6x48xf32>
    %823 = vector.broadcast %3 : vector<1x48xf32> to vector<6x48xf32>
    %824 = arith.mulf %785, %823 : vector<6x48xf32>
    %825 = arith.truncf %824 : vector<6x48xf32> to vector<6x48xbf16>
    %826 = arith.truncf %793 : vector<6x48xf32> to vector<6x48xbf16>
    %cst_412 = arith.constant dense<0.000000e+00> : vector<6x6xf32>
    %827 = tpu.matmul %825, %826, %cst_412 {dimension_numbers = #tpu.dot_dimension_numbers<[1], [1], [0], [0], [0, 0, 1, 0], [], []>} : vector<6x48xbf16>, vector<6x48xbf16>, vector<6x6xf32> -> vector<6x6xf32>
    %828 = arith.addf %827, %37 : vector<6x6xf32>
    %cst_413 = arith.constant dense<0xFF800000> : vector<6xf32>
    %829 = vector.multi_reduction <maximumf>, %828, %cst_413 [1] : vector<6x6xf32> to vector<6xf32>
    %830 = vector.shape_cast %829 : vector<6xf32> to vector<6x1xf32>
    %831 = vector.broadcast %830 : vector<6x1xf32> to vector<6x6xf32>
    %832 = arith.subf %828, %831 : vector<6x6xf32>
    %833 = math.exp %832 : vector<6x6xf32>
    %cst_414 = arith.constant dense<0.000000e+00> : vector<6xf32>
    %834 = vector.multi_reduction <add>, %833, %cst_414 [1] : vector<6x6xf32> to vector<6xf32>
    %835 = vector.shape_cast %834 : vector<6xf32> to vector<6x1xf32>
    %836 = tpu.reciprocal %835 {approx = true} : vector<6x1xf32> -> vector<6x1xf32>
    %837 = vector.broadcast %836 : vector<6x1xf32> to vector<6x6xf32>
    %838 = arith.mulf %833, %837 : vector<6x6xf32>
    %839 = vector.broadcast %3 : vector<1x48xf32> to vector<6x48xf32>
    %840 = arith.mulf %801, %839 : vector<6x48xf32>
    %841 = arith.truncf %838 : vector<6x6xf32> to vector<6x6xbf16>
    %842 = arith.truncf %840 : vector<6x48xf32> to vector<6x48xbf16>
    %cst_415 = arith.constant dense<0.000000e+00> : vector<6x48xf32>
    %843 = tpu.matmul %841, %842, %cst_415 {dimension_numbers = #tpu.dot_dimension_numbers<[1], [0], [0], [1], [0, 0, 1, 1], [], []>} : vector<6x6xbf16>, vector<6x48xbf16>, vector<6x48xf32> -> vector<6x48xf32>
    %844 = arith.addf %822, %843 : vector<6x48xf32>
    %845 = vector.broadcast %5 : vector<1x48xf32> to vector<6x48xf32>
    %846 = arith.mulf %785, %845 : vector<6x48xf32>
    %847 = arith.truncf %846 : vector<6x48xf32> to vector<6x48xbf16>
    %848 = arith.truncf %793 : vector<6x48xf32> to vector<6x48xbf16>
    %cst_416 = arith.constant dense<0.000000e+00> : vector<6x6xf32>
    %849 = tpu.matmul %847, %848, %cst_416 {dimension_numbers = #tpu.dot_dimension_numbers<[1], [1], [0], [0], [0, 0, 1, 0], [], []>} : vector<6x48xbf16>, vector<6x48xbf16>, vector<6x6xf32> -> vector<6x6xf32>
    %850 = arith.addf %849, %37 : vector<6x6xf32>
    %cst_417 = arith.constant dense<0xFF800000> : vector<6xf32>
    %851 = vector.multi_reduction <maximumf>, %850, %cst_417 [1] : vector<6x6xf32> to vector<6xf32>
    %852 = vector.shape_cast %851 : vector<6xf32> to vector<6x1xf32>
    %853 = vector.broadcast %852 : vector<6x1xf32> to vector<6x6xf32>
    %854 = arith.subf %850, %853 : vector<6x6xf32>
    %855 = math.exp %854 : vector<6x6xf32>
    %cst_418 = arith.constant dense<0.000000e+00> : vector<6xf32>
    %856 = vector.multi_reduction <add>, %855, %cst_418 [1] : vector<6x6xf32> to vector<6xf32>
    %857 = vector.shape_cast %856 : vector<6xf32> to vector<6x1xf32>
    %858 = tpu.reciprocal %857 {approx = true} : vector<6x1xf32> -> vector<6x1xf32>
    %859 = vector.broadcast %858 : vector<6x1xf32> to vector<6x6xf32>
    %860 = arith.mulf %855, %859 : vector<6x6xf32>
    %861 = vector.broadcast %5 : vector<1x48xf32> to vector<6x48xf32>
    %862 = arith.mulf %801, %861 : vector<6x48xf32>
    %863 = arith.truncf %860 : vector<6x6xf32> to vector<6x6xbf16>
    %864 = arith.truncf %862 : vector<6x48xf32> to vector<6x48xbf16>
    %cst_419 = arith.constant dense<0.000000e+00> : vector<6x48xf32>
    %865 = tpu.matmul %863, %864, %cst_419 {dimension_numbers = #tpu.dot_dimension_numbers<[1], [0], [0], [1], [0, 0, 1, 1], [], []>} : vector<6x6xbf16>, vector<6x48xbf16>, vector<6x48xf32> -> vector<6x48xf32>
    %866 = arith.addf %844, %865 : vector<6x48xf32>
    %867 = vector.broadcast %7 : vector<1x48xf32> to vector<6x48xf32>
    %868 = arith.mulf %785, %867 : vector<6x48xf32>
    %869 = arith.truncf %868 : vector<6x48xf32> to vector<6x48xbf16>
    %870 = arith.truncf %793 : vector<6x48xf32> to vector<6x48xbf16>
    %cst_420 = arith.constant dense<0.000000e+00> : vector<6x6xf32>
    %871 = tpu.matmul %869, %870, %cst_420 {dimension_numbers = #tpu.dot_dimension_numbers<[1], [1], [0], [0], [0, 0, 1, 0], [], []>} : vector<6x48xbf16>, vector<6x48xbf16>, vector<6x6xf32> -> vector<6x6xf32>
    %872 = arith.addf %871, %37 : vector<6x6xf32>
    %cst_421 = arith.constant dense<0xFF800000> : vector<6xf32>
    %873 = vector.multi_reduction <maximumf>, %872, %cst_421 [1] : vector<6x6xf32> to vector<6xf32>
    %874 = vector.shape_cast %873 : vector<6xf32> to vector<6x1xf32>
    %875 = vector.broadcast %874 : vector<6x1xf32> to vector<6x6xf32>
    %876 = arith.subf %872, %875 : vector<6x6xf32>
    %877 = math.exp %876 : vector<6x6xf32>
    %cst_422 = arith.constant dense<0.000000e+00> : vector<6xf32>
    %878 = vector.multi_reduction <add>, %877, %cst_422 [1] : vector<6x6xf32> to vector<6xf32>
    %879 = vector.shape_cast %878 : vector<6xf32> to vector<6x1xf32>
    %880 = tpu.reciprocal %879 {approx = true} : vector<6x1xf32> -> vector<6x1xf32>
    %881 = vector.broadcast %880 : vector<6x1xf32> to vector<6x6xf32>
    %882 = arith.mulf %877, %881 : vector<6x6xf32>
    %883 = vector.broadcast %7 : vector<1x48xf32> to vector<6x48xf32>
    %884 = arith.mulf %801, %883 : vector<6x48xf32>
    %885 = arith.truncf %882 : vector<6x6xf32> to vector<6x6xbf16>
    %886 = arith.truncf %884 : vector<6x48xf32> to vector<6x48xbf16>
    %cst_423 = arith.constant dense<0.000000e+00> : vector<6x48xf32>
    %887 = tpu.matmul %885, %886, %cst_423 {dimension_numbers = #tpu.dot_dimension_numbers<[1], [0], [0], [1], [0, 0, 1, 1], [], []>} : vector<6x6xbf16>, vector<6x48xbf16>, vector<6x48xf32> -> vector<6x48xf32>
    %888 = arith.addf %866, %887 : vector<6x48xf32>
    %c4_424 = arith.constant 4 : index
    %c3_425 = arith.constant 3 : index
    %c0_426 = arith.constant 0 : index
    %c0_427 = arith.constant 0 : index
    %889 = vector.load %arg12[%c4_424, %c3_425, %c0_426, %c0_427] : memref<6x4x48x48xbf16, #tpu.memory_space<vmem>>, vector<1x1x48x48xbf16>
    %890 = vector.shape_cast %889 : vector<1x1x48x48xbf16> to vector<48x48xbf16>
    %891 = arith.truncf %888 : vector<6x48xf32> to vector<6x48xbf16>
    %cst_428 = arith.constant dense<0.000000e+00> : vector<6x48xf32>
    %892 = tpu.matmul %891, %890, %cst_428 {dimension_numbers = #tpu.dot_dimension_numbers<[1], [1], [0], [0], [0, 0, 1, 0], [], []>} : vector<6x48xbf16>, vector<48x48xbf16>, vector<6x48xf32> -> vector<6x48xf32>
    %c4_429 = arith.constant 4 : index
    %c3_430 = arith.constant 3 : index
    %c0_431 = arith.constant 0 : index
    %c0_432 = arith.constant 0 : index
    %893 = vector.load %arg13[%c4_429, %c3_430, %c0_431, %c0_432] : memref<6x4x1x48xf32, #tpu.memory_space<vmem>>, vector<1x1x1x48xf32>
    %894 = vector.shape_cast %893 : vector<1x1x1x48xf32> to vector<1x48xf32>
    %895 = vector.broadcast %894 : vector<1x48xf32> to vector<6x48xf32>
    %896 = arith.addf %892, %895 : vector<6x48xf32>
    %897 = arith.addf %775, %896 : vector<6x48xf32>
    %cst_433 = arith.constant dense<0.000000e+00> : vector<6xf32>
    %898 = vector.multi_reduction <add>, %897, %cst_433 [1] : vector<6x48xf32> to vector<6xf32>
    %899 = vector.shape_cast %898 : vector<6xf32> to vector<6x1xf32>
    %cst_434 = arith.constant 4.800000e+01 : f32
    %900 = vector.broadcast %cst_434 : f32 to vector<6x1xf32>
    %901 = arith.divf %899, %900 : vector<6x1xf32>
    %902 = vector.broadcast %901 : vector<6x1xf32> to vector<6x48xf32>
    %903 = arith.subf %897, %902 : vector<6x48xf32>
    %904 = arith.mulf %903, %903 : vector<6x48xf32>
    %cst_435 = arith.constant dense<0.000000e+00> : vector<6xf32>
    %905 = vector.multi_reduction <add>, %904, %cst_435 [1] : vector<6x48xf32> to vector<6xf32>
    %906 = vector.shape_cast %905 : vector<6xf32> to vector<6x1xf32>
    %cst_436 = arith.constant 4.800000e+01 : f32
    %907 = vector.broadcast %cst_436 : f32 to vector<6x1xf32>
    %908 = arith.divf %906, %907 : vector<6x1xf32>
    %cst_437 = arith.constant 9.99999974E-6 : f32
    %909 = vector.broadcast %cst_437 : f32 to vector<6x1xf32>
    %910 = arith.addf %908, %909 : vector<6x1xf32>
    %911 = math.rsqrt %910 : vector<6x1xf32>
    %912 = vector.broadcast %911 : vector<6x1xf32> to vector<6x48xf32>
    %913 = arith.mulf %903, %912 : vector<6x48xf32>
    %c7 = arith.constant 7 : index
    %c0_438 = arith.constant 0 : index
    %c0_439 = arith.constant 0 : index
    %914 = vector.load %arg18[%c7, %c0_438, %c0_439] : memref<12x1x48xf32, #tpu.memory_space<vmem>>, vector<1x1x48xf32>
    %915 = vector.shape_cast %914 : vector<1x1x48xf32> to vector<1x48xf32>
    %916 = vector.broadcast %915 : vector<1x48xf32> to vector<6x48xf32>
    %917 = arith.mulf %913, %916 : vector<6x48xf32>
    %c7_440 = arith.constant 7 : index
    %c0_441 = arith.constant 0 : index
    %c0_442 = arith.constant 0 : index
    %918 = vector.load %arg19[%c7_440, %c0_441, %c0_442] : memref<12x1x48xf32, #tpu.memory_space<vmem>>, vector<1x1x48xf32>
    %919 = vector.shape_cast %918 : vector<1x1x48xf32> to vector<1x48xf32>
    %920 = vector.broadcast %919 : vector<1x48xf32> to vector<6x48xf32>
    %921 = arith.addf %917, %920 : vector<6x48xf32>
    %c5_443 = arith.constant 5 : index
    %c0_444 = arith.constant 0 : index
    %c0_445 = arith.constant 0 : index
    %c0_446 = arith.constant 0 : index
    %922 = vector.load %arg12[%c5_443, %c0_444, %c0_445, %c0_446] : memref<6x4x48x48xbf16, #tpu.memory_space<vmem>>, vector<1x1x48x48xbf16>
    %923 = vector.shape_cast %922 : vector<1x1x48x48xbf16> to vector<48x48xbf16>
    %924 = arith.truncf %921 : vector<6x48xf32> to vector<6x48xbf16>
    %cst_447 = arith.constant dense<0.000000e+00> : vector<6x48xf32>
    %925 = tpu.matmul %924, %923, %cst_447 {dimension_numbers = #tpu.dot_dimension_numbers<[1], [1], [0], [0], [0, 0, 1, 0], [], []>} : vector<6x48xbf16>, vector<48x48xbf16>, vector<6x48xf32> -> vector<6x48xf32>
    %c5_448 = arith.constant 5 : index
    %c0_449 = arith.constant 0 : index
    %c0_450 = arith.constant 0 : index
    %c0_451 = arith.constant 0 : index
    %926 = vector.load %arg13[%c5_448, %c0_449, %c0_450, %c0_451] : memref<6x4x1x48xf32, #tpu.memory_space<vmem>>, vector<1x1x1x48xf32>
    %927 = vector.shape_cast %926 : vector<1x1x1x48xf32> to vector<1x48xf32>
    %928 = vector.broadcast %927 : vector<1x48xf32> to vector<6x48xf32>
    %929 = arith.addf %925, %928 : vector<6x48xf32>
    %cst_452 = arith.constant 0.288675129 : f32
    %930 = vector.broadcast %cst_452 : f32 to vector<6x48xf32>
    %931 = arith.mulf %929, %930 : vector<6x48xf32>
    %c5_453 = arith.constant 5 : index
    %c1_454 = arith.constant 1 : index
    %c0_455 = arith.constant 0 : index
    %c0_456 = arith.constant 0 : index
    %932 = vector.load %arg12[%c5_453, %c1_454, %c0_455, %c0_456] : memref<6x4x48x48xbf16, #tpu.memory_space<vmem>>, vector<1x1x48x48xbf16>
    %933 = vector.shape_cast %932 : vector<1x1x48x48xbf16> to vector<48x48xbf16>
    %934 = arith.truncf %440 : vector<8x48xf32> to vector<8x48xbf16>
    %cst_457 = arith.constant dense<0.000000e+00> : vector<8x48xf32>
    %935 = tpu.matmul %934, %933, %cst_457 {dimension_numbers = #tpu.dot_dimension_numbers<[1], [1], [0], [0], [0, 0, 1, 0], [], []>} : vector<8x48xbf16>, vector<48x48xbf16>, vector<8x48xf32> -> vector<8x48xf32>
    %c5_458 = arith.constant 5 : index
    %c1_459 = arith.constant 1 : index
    %c0_460 = arith.constant 0 : index
    %c0_461 = arith.constant 0 : index
    %936 = vector.load %arg13[%c5_458, %c1_459, %c0_460, %c0_461] : memref<6x4x1x48xf32, #tpu.memory_space<vmem>>, vector<1x1x1x48xf32>
    %937 = vector.shape_cast %936 : vector<1x1x1x48xf32> to vector<1x48xf32>
    %938 = vector.broadcast %937 : vector<1x48xf32> to vector<8x48xf32>
    %939 = arith.addf %935, %938 : vector<8x48xf32>
    %c5_462 = arith.constant 5 : index
    %c2_463 = arith.constant 2 : index
    %c0_464 = arith.constant 0 : index
    %c0_465 = arith.constant 0 : index
    %940 = vector.load %arg12[%c5_462, %c2_463, %c0_464, %c0_465] : memref<6x4x48x48xbf16, #tpu.memory_space<vmem>>, vector<1x1x48x48xbf16>
    %941 = vector.shape_cast %940 : vector<1x1x48x48xbf16> to vector<48x48xbf16>
    %942 = arith.truncf %440 : vector<8x48xf32> to vector<8x48xbf16>
    %cst_466 = arith.constant dense<0.000000e+00> : vector<8x48xf32>
    %943 = tpu.matmul %942, %941, %cst_466 {dimension_numbers = #tpu.dot_dimension_numbers<[1], [1], [0], [0], [0, 0, 1, 0], [], []>} : vector<8x48xbf16>, vector<48x48xbf16>, vector<8x48xf32> -> vector<8x48xf32>
    %c5_467 = arith.constant 5 : index
    %c2_468 = arith.constant 2 : index
    %c0_469 = arith.constant 0 : index
    %c0_470 = arith.constant 0 : index
    %944 = vector.load %arg13[%c5_467, %c2_468, %c0_469, %c0_470] : memref<6x4x1x48xf32, #tpu.memory_space<vmem>>, vector<1x1x1x48xf32>
    %945 = vector.shape_cast %944 : vector<1x1x1x48xf32> to vector<1x48xf32>
    %946 = vector.broadcast %945 : vector<1x48xf32> to vector<8x48xf32>
    %947 = arith.addf %943, %946 : vector<8x48xf32>
    %948 = vector.broadcast %1 : vector<1x48xf32> to vector<6x48xf32>
    %949 = arith.mulf %931, %948 : vector<6x48xf32>
    %950 = arith.truncf %949 : vector<6x48xf32> to vector<6x48xbf16>
    %951 = arith.truncf %939 : vector<8x48xf32> to vector<8x48xbf16>
    %cst_471 = arith.constant dense<0.000000e+00> : vector<6x8xf32>
    %952 = tpu.matmul %950, %951, %cst_471 {dimension_numbers = #tpu.dot_dimension_numbers<[1], [1], [0], [0], [0, 0, 1, 0], [], []>} : vector<6x48xbf16>, vector<8x48xbf16>, vector<6x8xf32> -> vector<6x8xf32>
    %953 = arith.addf %952, %38 : vector<6x8xf32>
    %cst_472 = arith.constant dense<0xFF800000> : vector<6xf32>
    %954 = vector.multi_reduction <maximumf>, %953, %cst_472 [1] : vector<6x8xf32> to vector<6xf32>
    %955 = vector.shape_cast %954 : vector<6xf32> to vector<6x1xf32>
    %956 = vector.broadcast %955 : vector<6x1xf32> to vector<6x8xf32>
    %957 = arith.subf %953, %956 : vector<6x8xf32>
    %958 = math.exp %957 : vector<6x8xf32>
    %cst_473 = arith.constant dense<0.000000e+00> : vector<6xf32>
    %959 = vector.multi_reduction <add>, %958, %cst_473 [1] : vector<6x8xf32> to vector<6xf32>
    %960 = vector.shape_cast %959 : vector<6xf32> to vector<6x1xf32>
    %961 = tpu.reciprocal %960 {approx = true} : vector<6x1xf32> -> vector<6x1xf32>
    %962 = vector.broadcast %961 : vector<6x1xf32> to vector<6x8xf32>
    %963 = arith.mulf %958, %962 : vector<6x8xf32>
    %964 = vector.broadcast %1 : vector<1x48xf32> to vector<8x48xf32>
    %965 = arith.mulf %947, %964 : vector<8x48xf32>
    %966 = arith.truncf %963 : vector<6x8xf32> to vector<6x8xbf16>
    %967 = arith.truncf %965 : vector<8x48xf32> to vector<8x48xbf16>
    %cst_474 = arith.constant dense<0.000000e+00> : vector<6x48xf32>
    %968 = tpu.matmul %966, %967, %cst_474 {dimension_numbers = #tpu.dot_dimension_numbers<[1], [0], [0], [1], [0, 0, 1, 1], [], []>} : vector<6x8xbf16>, vector<8x48xbf16>, vector<6x48xf32> -> vector<6x48xf32>
    %969 = vector.broadcast %3 : vector<1x48xf32> to vector<6x48xf32>
    %970 = arith.mulf %931, %969 : vector<6x48xf32>
    %971 = arith.truncf %970 : vector<6x48xf32> to vector<6x48xbf16>
    %972 = arith.truncf %939 : vector<8x48xf32> to vector<8x48xbf16>
    %cst_475 = arith.constant dense<0.000000e+00> : vector<6x8xf32>
    %973 = tpu.matmul %971, %972, %cst_475 {dimension_numbers = #tpu.dot_dimension_numbers<[1], [1], [0], [0], [0, 0, 1, 0], [], []>} : vector<6x48xbf16>, vector<8x48xbf16>, vector<6x8xf32> -> vector<6x8xf32>
    %974 = arith.addf %973, %38 : vector<6x8xf32>
    %cst_476 = arith.constant dense<0xFF800000> : vector<6xf32>
    %975 = vector.multi_reduction <maximumf>, %974, %cst_476 [1] : vector<6x8xf32> to vector<6xf32>
    %976 = vector.shape_cast %975 : vector<6xf32> to vector<6x1xf32>
    %977 = vector.broadcast %976 : vector<6x1xf32> to vector<6x8xf32>
    %978 = arith.subf %974, %977 : vector<6x8xf32>
    %979 = math.exp %978 : vector<6x8xf32>
    %cst_477 = arith.constant dense<0.000000e+00> : vector<6xf32>
    %980 = vector.multi_reduction <add>, %979, %cst_477 [1] : vector<6x8xf32> to vector<6xf32>
    %981 = vector.shape_cast %980 : vector<6xf32> to vector<6x1xf32>
    %982 = tpu.reciprocal %981 {approx = true} : vector<6x1xf32> -> vector<6x1xf32>
    %983 = vector.broadcast %982 : vector<6x1xf32> to vector<6x8xf32>
    %984 = arith.mulf %979, %983 : vector<6x8xf32>
    %985 = vector.broadcast %3 : vector<1x48xf32> to vector<8x48xf32>
    %986 = arith.mulf %947, %985 : vector<8x48xf32>
    %987 = arith.truncf %984 : vector<6x8xf32> to vector<6x8xbf16>
    %988 = arith.truncf %986 : vector<8x48xf32> to vector<8x48xbf16>
    %cst_478 = arith.constant dense<0.000000e+00> : vector<6x48xf32>
    %989 = tpu.matmul %987, %988, %cst_478 {dimension_numbers = #tpu.dot_dimension_numbers<[1], [0], [0], [1], [0, 0, 1, 1], [], []>} : vector<6x8xbf16>, vector<8x48xbf16>, vector<6x48xf32> -> vector<6x48xf32>
    %990 = arith.addf %968, %989 : vector<6x48xf32>
    %991 = vector.broadcast %5 : vector<1x48xf32> to vector<6x48xf32>
    %992 = arith.mulf %931, %991 : vector<6x48xf32>
    %993 = arith.truncf %992 : vector<6x48xf32> to vector<6x48xbf16>
    %994 = arith.truncf %939 : vector<8x48xf32> to vector<8x48xbf16>
    %cst_479 = arith.constant dense<0.000000e+00> : vector<6x8xf32>
    %995 = tpu.matmul %993, %994, %cst_479 {dimension_numbers = #tpu.dot_dimension_numbers<[1], [1], [0], [0], [0, 0, 1, 0], [], []>} : vector<6x48xbf16>, vector<8x48xbf16>, vector<6x8xf32> -> vector<6x8xf32>
    %996 = arith.addf %995, %38 : vector<6x8xf32>
    %cst_480 = arith.constant dense<0xFF800000> : vector<6xf32>
    %997 = vector.multi_reduction <maximumf>, %996, %cst_480 [1] : vector<6x8xf32> to vector<6xf32>
    %998 = vector.shape_cast %997 : vector<6xf32> to vector<6x1xf32>
    %999 = vector.broadcast %998 : vector<6x1xf32> to vector<6x8xf32>
    %1000 = arith.subf %996, %999 : vector<6x8xf32>
    %1001 = math.exp %1000 : vector<6x8xf32>
    %cst_481 = arith.constant dense<0.000000e+00> : vector<6xf32>
    %1002 = vector.multi_reduction <add>, %1001, %cst_481 [1] : vector<6x8xf32> to vector<6xf32>
    %1003 = vector.shape_cast %1002 : vector<6xf32> to vector<6x1xf32>
    %1004 = tpu.reciprocal %1003 {approx = true} : vector<6x1xf32> -> vector<6x1xf32>
    %1005 = vector.broadcast %1004 : vector<6x1xf32> to vector<6x8xf32>
    %1006 = arith.mulf %1001, %1005 : vector<6x8xf32>
    %1007 = vector.broadcast %5 : vector<1x48xf32> to vector<8x48xf32>
    %1008 = arith.mulf %947, %1007 : vector<8x48xf32>
    %1009 = arith.truncf %1006 : vector<6x8xf32> to vector<6x8xbf16>
    %1010 = arith.truncf %1008 : vector<8x48xf32> to vector<8x48xbf16>
    %cst_482 = arith.constant dense<0.000000e+00> : vector<6x48xf32>
    %1011 = tpu.matmul %1009, %1010, %cst_482 {dimension_numbers = #tpu.dot_dimension_numbers<[1], [0], [0], [1], [0, 0, 1, 1], [], []>} : vector<6x8xbf16>, vector<8x48xbf16>, vector<6x48xf32> -> vector<6x48xf32>
    %1012 = arith.addf %990, %1011 : vector<6x48xf32>
    %1013 = vector.broadcast %7 : vector<1x48xf32> to vector<6x48xf32>
    %1014 = arith.mulf %931, %1013 : vector<6x48xf32>
    %1015 = arith.truncf %1014 : vector<6x48xf32> to vector<6x48xbf16>
    %1016 = arith.truncf %939 : vector<8x48xf32> to vector<8x48xbf16>
    %cst_483 = arith.constant dense<0.000000e+00> : vector<6x8xf32>
    %1017 = tpu.matmul %1015, %1016, %cst_483 {dimension_numbers = #tpu.dot_dimension_numbers<[1], [1], [0], [0], [0, 0, 1, 0], [], []>} : vector<6x48xbf16>, vector<8x48xbf16>, vector<6x8xf32> -> vector<6x8xf32>
    %1018 = arith.addf %1017, %38 : vector<6x8xf32>
    %cst_484 = arith.constant dense<0xFF800000> : vector<6xf32>
    %1019 = vector.multi_reduction <maximumf>, %1018, %cst_484 [1] : vector<6x8xf32> to vector<6xf32>
    %1020 = vector.shape_cast %1019 : vector<6xf32> to vector<6x1xf32>
    %1021 = vector.broadcast %1020 : vector<6x1xf32> to vector<6x8xf32>
    %1022 = arith.subf %1018, %1021 : vector<6x8xf32>
    %1023 = math.exp %1022 : vector<6x8xf32>
    %cst_485 = arith.constant dense<0.000000e+00> : vector<6xf32>
    %1024 = vector.multi_reduction <add>, %1023, %cst_485 [1] : vector<6x8xf32> to vector<6xf32>
    %1025 = vector.shape_cast %1024 : vector<6xf32> to vector<6x1xf32>
    %1026 = tpu.reciprocal %1025 {approx = true} : vector<6x1xf32> -> vector<6x1xf32>
    %1027 = vector.broadcast %1026 : vector<6x1xf32> to vector<6x8xf32>
    %1028 = arith.mulf %1023, %1027 : vector<6x8xf32>
    %1029 = vector.broadcast %7 : vector<1x48xf32> to vector<8x48xf32>
    %1030 = arith.mulf %947, %1029 : vector<8x48xf32>
    %1031 = arith.truncf %1028 : vector<6x8xf32> to vector<6x8xbf16>
    %1032 = arith.truncf %1030 : vector<8x48xf32> to vector<8x48xbf16>
    %cst_486 = arith.constant dense<0.000000e+00> : vector<6x48xf32>
    %1033 = tpu.matmul %1031, %1032, %cst_486 {dimension_numbers = #tpu.dot_dimension_numbers<[1], [0], [0], [1], [0, 0, 1, 1], [], []>} : vector<6x8xbf16>, vector<8x48xbf16>, vector<6x48xf32> -> vector<6x48xf32>
    %1034 = arith.addf %1012, %1033 : vector<6x48xf32>
    %c5_487 = arith.constant 5 : index
    %c3_488 = arith.constant 3 : index
    %c0_489 = arith.constant 0 : index
    %c0_490 = arith.constant 0 : index
    %1035 = vector.load %arg12[%c5_487, %c3_488, %c0_489, %c0_490] : memref<6x4x48x48xbf16, #tpu.memory_space<vmem>>, vector<1x1x48x48xbf16>
    %1036 = vector.shape_cast %1035 : vector<1x1x48x48xbf16> to vector<48x48xbf16>
    %1037 = arith.truncf %1034 : vector<6x48xf32> to vector<6x48xbf16>
    %cst_491 = arith.constant dense<0.000000e+00> : vector<6x48xf32>
    %1038 = tpu.matmul %1037, %1036, %cst_491 {dimension_numbers = #tpu.dot_dimension_numbers<[1], [1], [0], [0], [0, 0, 1, 0], [], []>} : vector<6x48xbf16>, vector<48x48xbf16>, vector<6x48xf32> -> vector<6x48xf32>
    %c5_492 = arith.constant 5 : index
    %c3_493 = arith.constant 3 : index
    %c0_494 = arith.constant 0 : index
    %c0_495 = arith.constant 0 : index
    %1039 = vector.load %arg13[%c5_492, %c3_493, %c0_494, %c0_495] : memref<6x4x1x48xf32, #tpu.memory_space<vmem>>, vector<1x1x1x48xf32>
    %1040 = vector.shape_cast %1039 : vector<1x1x1x48xf32> to vector<1x48xf32>
    %1041 = vector.broadcast %1040 : vector<1x48xf32> to vector<6x48xf32>
    %1042 = arith.addf %1038, %1041 : vector<6x48xf32>
    %1043 = arith.addf %921, %1042 : vector<6x48xf32>
    %cst_496 = arith.constant dense<0.000000e+00> : vector<6xf32>
    %1044 = vector.multi_reduction <add>, %1043, %cst_496 [1] : vector<6x48xf32> to vector<6xf32>
    %1045 = vector.shape_cast %1044 : vector<6xf32> to vector<6x1xf32>
    %cst_497 = arith.constant 4.800000e+01 : f32
    %1046 = vector.broadcast %cst_497 : f32 to vector<6x1xf32>
    %1047 = arith.divf %1045, %1046 : vector<6x1xf32>
    %1048 = vector.broadcast %1047 : vector<6x1xf32> to vector<6x48xf32>
    %1049 = arith.subf %1043, %1048 : vector<6x48xf32>
    %1050 = arith.mulf %1049, %1049 : vector<6x48xf32>
    %cst_498 = arith.constant dense<0.000000e+00> : vector<6xf32>
    %1051 = vector.multi_reduction <add>, %1050, %cst_498 [1] : vector<6x48xf32> to vector<6xf32>
    %1052 = vector.shape_cast %1051 : vector<6xf32> to vector<6x1xf32>
    %cst_499 = arith.constant 4.800000e+01 : f32
    %1053 = vector.broadcast %cst_499 : f32 to vector<6x1xf32>
    %1054 = arith.divf %1052, %1053 : vector<6x1xf32>
    %cst_500 = arith.constant 9.99999974E-6 : f32
    %1055 = vector.broadcast %cst_500 : f32 to vector<6x1xf32>
    %1056 = arith.addf %1054, %1055 : vector<6x1xf32>
    %1057 = math.rsqrt %1056 : vector<6x1xf32>
    %1058 = vector.broadcast %1057 : vector<6x1xf32> to vector<6x48xf32>
    %1059 = arith.mulf %1049, %1058 : vector<6x48xf32>
    %c8 = arith.constant 8 : index
    %c0_501 = arith.constant 0 : index
    %c0_502 = arith.constant 0 : index
    %1060 = vector.load %arg18[%c8, %c0_501, %c0_502] : memref<12x1x48xf32, #tpu.memory_space<vmem>>, vector<1x1x48xf32>
    %1061 = vector.shape_cast %1060 : vector<1x1x48xf32> to vector<1x48xf32>
    %1062 = vector.broadcast %1061 : vector<1x48xf32> to vector<6x48xf32>
    %1063 = arith.mulf %1059, %1062 : vector<6x48xf32>
    %c8_503 = arith.constant 8 : index
    %c0_504 = arith.constant 0 : index
    %c0_505 = arith.constant 0 : index
    %1064 = vector.load %arg19[%c8_503, %c0_504, %c0_505] : memref<12x1x48xf32, #tpu.memory_space<vmem>>, vector<1x1x48xf32>
    %1065 = vector.shape_cast %1064 : vector<1x1x48xf32> to vector<1x48xf32>
    %1066 = vector.broadcast %1065 : vector<1x48xf32> to vector<6x48xf32>
    %1067 = arith.addf %1063, %1066 : vector<6x48xf32>
    %c3_506 = arith.constant 3 : index
    %c0_507 = arith.constant 0 : index
    %c0_508 = arith.constant 0 : index
    %1068 = vector.load %arg14[%c3_506, %c0_507, %c0_508] : memref<4x64x48xbf16, #tpu.memory_space<vmem>>, vector<1x64x48xbf16>
    %1069 = vector.shape_cast %1068 : vector<1x64x48xbf16> to vector<64x48xbf16>
    %1070 = arith.truncf %1067 : vector<6x48xf32> to vector<6x48xbf16>
    %cst_509 = arith.constant dense<0.000000e+00> : vector<6x64xf32>
    %1071 = tpu.matmul %1070, %1069, %cst_509 {dimension_numbers = #tpu.dot_dimension_numbers<[1], [1], [0], [0], [0, 0, 1, 0], [], []>} : vector<6x48xbf16>, vector<64x48xbf16>, vector<6x64xf32> -> vector<6x64xf32>
    %c3_510 = arith.constant 3 : index
    %c0_511 = arith.constant 0 : index
    %c0_512 = arith.constant 0 : index
    %1072 = vector.load %arg15[%c3_510, %c0_511, %c0_512] : memref<4x1x64xf32, #tpu.memory_space<vmem>>, vector<1x1x64xf32>
    %1073 = vector.shape_cast %1072 : vector<1x1x64xf32> to vector<1x64xf32>
    %1074 = vector.broadcast %1073 : vector<1x64xf32> to vector<6x64xf32>
    %1075 = arith.addf %1071, %1074 : vector<6x64xf32>
    %cst_513 = arith.constant 0.000000e+00 : f32
    %1076 = vector.broadcast %cst_513 : f32 to vector<6x64xf32>
    %1077 = arith.maximumf %1075, %1076 : vector<6x64xf32>
    %c3_514 = arith.constant 3 : index
    %c0_515 = arith.constant 0 : index
    %c0_516 = arith.constant 0 : index
    %1078 = vector.load %arg16[%c3_514, %c0_515, %c0_516] : memref<4x48x64xbf16, #tpu.memory_space<vmem>>, vector<1x48x64xbf16>
    %1079 = vector.shape_cast %1078 : vector<1x48x64xbf16> to vector<48x64xbf16>
    %1080 = arith.truncf %1077 : vector<6x64xf32> to vector<6x64xbf16>
    %cst_517 = arith.constant dense<0.000000e+00> : vector<6x48xf32>
    %1081 = tpu.matmul %1080, %1079, %cst_517 {dimension_numbers = #tpu.dot_dimension_numbers<[1], [1], [0], [0], [0, 0, 1, 0], [], []>} : vector<6x64xbf16>, vector<48x64xbf16>, vector<6x48xf32> -> vector<6x48xf32>
    %c3_518 = arith.constant 3 : index
    %c0_519 = arith.constant 0 : index
    %c0_520 = arith.constant 0 : index
    %1082 = vector.load %arg17[%c3_518, %c0_519, %c0_520] : memref<4x1x48xf32, #tpu.memory_space<vmem>>, vector<1x1x48xf32>
    %1083 = vector.shape_cast %1082 : vector<1x1x48xf32> to vector<1x48xf32>
    %1084 = vector.broadcast %1083 : vector<1x48xf32> to vector<6x48xf32>
    %1085 = arith.addf %1081, %1084 : vector<6x48xf32>
    %1086 = arith.addf %1067, %1085 : vector<6x48xf32>
    %cst_521 = arith.constant dense<0.000000e+00> : vector<6xf32>
    %1087 = vector.multi_reduction <add>, %1086, %cst_521 [1] : vector<6x48xf32> to vector<6xf32>
    %1088 = vector.shape_cast %1087 : vector<6xf32> to vector<6x1xf32>
    %cst_522 = arith.constant 4.800000e+01 : f32
    %1089 = vector.broadcast %cst_522 : f32 to vector<6x1xf32>
    %1090 = arith.divf %1088, %1089 : vector<6x1xf32>
    %1091 = vector.broadcast %1090 : vector<6x1xf32> to vector<6x48xf32>
    %1092 = arith.subf %1086, %1091 : vector<6x48xf32>
    %1093 = arith.mulf %1092, %1092 : vector<6x48xf32>
    %cst_523 = arith.constant dense<0.000000e+00> : vector<6xf32>
    %1094 = vector.multi_reduction <add>, %1093, %cst_523 [1] : vector<6x48xf32> to vector<6xf32>
    %1095 = vector.shape_cast %1094 : vector<6xf32> to vector<6x1xf32>
    %cst_524 = arith.constant 4.800000e+01 : f32
    %1096 = vector.broadcast %cst_524 : f32 to vector<6x1xf32>
    %1097 = arith.divf %1095, %1096 : vector<6x1xf32>
    %cst_525 = arith.constant 9.99999974E-6 : f32
    %1098 = vector.broadcast %cst_525 : f32 to vector<6x1xf32>
    %1099 = arith.addf %1097, %1098 : vector<6x1xf32>
    %1100 = math.rsqrt %1099 : vector<6x1xf32>
    %1101 = vector.broadcast %1100 : vector<6x1xf32> to vector<6x48xf32>
    %1102 = arith.mulf %1092, %1101 : vector<6x48xf32>
    %c9 = arith.constant 9 : index
    %c0_526 = arith.constant 0 : index
    %c0_527 = arith.constant 0 : index
    %1103 = vector.load %arg18[%c9, %c0_526, %c0_527] : memref<12x1x48xf32, #tpu.memory_space<vmem>>, vector<1x1x48xf32>
    %1104 = vector.shape_cast %1103 : vector<1x1x48xf32> to vector<1x48xf32>
    %1105 = vector.broadcast %1104 : vector<1x48xf32> to vector<6x48xf32>
    %1106 = arith.mulf %1102, %1105 : vector<6x48xf32>
    %c9_528 = arith.constant 9 : index
    %c0_529 = arith.constant 0 : index
    %c0_530 = arith.constant 0 : index
    %1107 = vector.load %arg19[%c9_528, %c0_529, %c0_530] : memref<12x1x48xf32, #tpu.memory_space<vmem>>, vector<1x1x48xf32>
    %1108 = vector.shape_cast %1107 : vector<1x1x48xf32> to vector<1x48xf32>
    %1109 = vector.broadcast %1108 : vector<1x48xf32> to vector<6x48xf32>
    %1110 = arith.addf %1106, %1109 : vector<6x48xf32>
    %cst_531 = arith.constant dense<0.000000e+00> : vector<6xf32>
    %1111 = vector.multi_reduction <add>, %1110, %cst_531 [1] : vector<6x48xf32> to vector<6xf32>
    %1112 = vector.shape_cast %1111 : vector<6xf32> to vector<6x1xf32>
    %cst_532 = arith.constant 4.800000e+01 : f32
    %1113 = vector.broadcast %cst_532 : f32 to vector<6x1xf32>
    %1114 = arith.divf %1112, %1113 : vector<6x1xf32>
    %1115 = vector.broadcast %1114 : vector<6x1xf32> to vector<6x48xf32>
    %1116 = arith.subf %1110, %1115 : vector<6x48xf32>
    %1117 = arith.mulf %1116, %1116 : vector<6x48xf32>
    %cst_533 = arith.constant dense<0.000000e+00> : vector<6xf32>
    %1118 = vector.multi_reduction <add>, %1117, %cst_533 [1] : vector<6x48xf32> to vector<6xf32>
    %1119 = vector.shape_cast %1118 : vector<6xf32> to vector<6x1xf32>
    %cst_534 = arith.constant 4.800000e+01 : f32
    %1120 = vector.broadcast %cst_534 : f32 to vector<6x1xf32>
    %1121 = arith.divf %1119, %1120 : vector<6x1xf32>
    %cst_535 = arith.constant 9.99999974E-6 : f32
    %1122 = vector.broadcast %cst_535 : f32 to vector<6x1xf32>
    %1123 = arith.addf %1121, %1122 : vector<6x1xf32>
    %1124 = math.rsqrt %1123 : vector<6x1xf32>
    %1125 = vector.broadcast %1124 : vector<6x1xf32> to vector<6x48xf32>
    %1126 = arith.mulf %1116, %1125 : vector<6x48xf32>
    %c11 = arith.constant 11 : index
    %c0_536 = arith.constant 0 : index
    %c0_537 = arith.constant 0 : index
    %1127 = vector.load %arg18[%c11, %c0_536, %c0_537] : memref<12x1x48xf32, #tpu.memory_space<vmem>>, vector<1x1x48xf32>
    %1128 = vector.shape_cast %1127 : vector<1x1x48xf32> to vector<1x48xf32>
    %1129 = vector.broadcast %1128 : vector<1x48xf32> to vector<6x48xf32>
    %1130 = arith.mulf %1126, %1129 : vector<6x48xf32>
    %c11_538 = arith.constant 11 : index
    %c0_539 = arith.constant 0 : index
    %c0_540 = arith.constant 0 : index
    %1131 = vector.load %arg19[%c11_538, %c0_539, %c0_540] : memref<12x1x48xf32, #tpu.memory_space<vmem>>, vector<1x1x48xf32>
    %1132 = vector.shape_cast %1131 : vector<1x1x48xf32> to vector<1x48xf32>
    %1133 = vector.broadcast %1132 : vector<1x48xf32> to vector<6x48xf32>
    %1134 = arith.addf %1130, %1133 : vector<6x48xf32>
    %c0_541 = arith.constant 0 : index
    %c0_542 = arith.constant 0 : index
    %1135 = vector.load %arg20[%c0_541, %c0_542] : memref<6x48xf32, #tpu.memory_space<vmem>>, vector<6x48xf32>
    tpu.vector_store %arg20[%c0_541, %c0_542], %1134 {strides = array<i32>} : memref<6x48xf32, #tpu.memory_space<vmem>>, vector<6x48xf32>,
    return
  }
}

</mosaic_0001>

<llo_original>
// kernel: seq2seq_forward.1
$region0: #{seq2seq_forward.1}
  #allocation0 [shape = 'u32[]', space=smem, size = 0x4, offset = 0x4, fixed_abs, tag = 'smem constant byte address 0x4 - core index']
  #allocation1 [shape = 'u32[144,128]{1,0:T(1,128)}', space=vmem, size = 0x12000, scoped, tag = 'internal scratch']
  %s0 = inlined_call_operand.vmem [shape: f32[8,48], index: 0, kind: input, shape index: {}]
  %s1 = inlined_call_operand.vmem [shape: f32[8,12], index: 1, kind: input, shape index: {}]
  %s2 = inlined_call_operand.vmem [shape: f32[8,1], index: 2, kind: input, shape index: {}]
  %s3 = inlined_call_operand.vmem [shape: f32[6,48], index: 3, kind: input, shape index: {}]
  %s4 = inlined_call_operand.vmem [shape: f32[6,12], index: 4, kind: input, shape index: {}]
  %s5 = inlined_call_operand.vmem [shape: f32[6,1], index: 5, kind: input, shape index: {}]
  %s6 = inlined_call_operand.vmem [shape: f32[8,8], index: 6, kind: input, shape index: {}]
  %s7 = inlined_call_operand.vmem [shape: f32[6,6], index: 7, kind: input, shape index: {}]
  %s8 = inlined_call_operand.vmem [shape: f32[6,8], index: 8, kind: input, shape index: {}]
  %s9 = inlined_call_operand.hbm [shape: f32[4,1,48], index: 9, kind: input, shape index: {}]
  %s10 = inlined_call_operand.vmem [shape: bf16[2,48,12], index: 10, kind: input, shape index: {}]
  %s11 = inlined_call_operand.hbm [shape: f32[2,1,48], index: 11, kind: input, shape index: {}]
  %s12 = inlined_call_operand.vmem [shape: bf16[6,4,48,48], index: 12, kind: input, shape index: {}]
  %s13 = inlined_call_operand.hbm [shape: f32[6,4,1,48], index: 13, kind: input, shape index: {}]
  %s14 = inlined_call_operand.vmem [shape: bf16[4,64,48], index: 14, kind: input, shape index: {}]
  %s15 = inlined_call_operand.hbm [shape: f32[4,1,64], index: 15, kind: input, shape index: {}]
  %s16 = inlined_call_operand.hbm [shape: bf16[4,48,64], index: 16, kind: input, shape index: {}]
  %s17 = inlined_call_operand.hbm [shape: f32[4,1,48], index: 17, kind: input, shape index: {}]
  %s18 = inlined_call_operand.vmem [shape: f32[12,1,48], index: 18, kind: input, shape index: {}]
  %s19 = inlined_call_operand.hbm [shape: f32[12,1,48], index: 19, kind: input, shape index: {}]
  %s20 = inlined_call_operand.vmem [shape: f32[6,48], index: 20, kind: output, shape index: {}]
  %s21 = sld [smem:[#allocation0]]
  $region118: #{seq2seq_forward.1} parent=0
    _
  %s23 = ssub.s32 1, %s21
  %s24 = scalar_select 0, %s23, %s21
  $region1: #{seq2seq_forward.1} parent=0
    #allocation2 [shape = 'u8[2048]{0}', space=vmem, size = 0x800, scoped, tag = 'input window, operand 9, single buffered']
    #allocation3 [shape = 's32[1]{0}', space=sflag, size = 0x4, scoped, tag = 'scoped memory for seq2seq_forward.1']
    #allocation4 [shape = 'u8[1024]{0}', space=vmem, size = 0x400, scoped, tag = 'input window, operand 11, single buffered']
    #allocation5 [shape = 's32[1]{0}', space=sflag, size = 0x4, scoped, tag = 'scoped memory for seq2seq_forward.1']
    #allocation6 [shape = 'u8[12288]{0}', space=vmem, size = 0x3000, scoped, tag = 'input window, operand 13, single buffered']
    #allocation7 [shape = 'u8[2048]{0}', space=vmem, size = 0x800, scoped, tag = 'input window, operand 15, single buffered']
    #allocation8 [shape = 's32[1]{0}', space=sflag, size = 0x4, scoped, tag = 'scoped memory for seq2seq_forward.1']
    #allocation9 [shape = 'u8[49152]{0}', space=vmem, size = 0xc000, scoped, tag = 'input window, operand 16, single buffered']
    #allocation10 [shape = 'u8[2048]{0}', space=vmem, size = 0x800, scoped, tag = 'input window, operand 17, single buffered']
    #allocation11 [shape = 's32[1]{0}', space=sflag, size = 0x4, scoped, tag = 'scoped memory for seq2seq_forward.1']
    #allocation12 [shape = 'u8[6144]{0}', space=vmem, size = 0x1800, scoped, tag = 'input window, operand 19, single buffered']
    %25 = vsyncpa [#allocation3], 0
    %26 = vsyncpa [#allocation5], 0
    %27 = vsyncpa [#allocation8], 0
    %28 = vsyncpa [#allocation11], 0
    // Predicated region
    $region2: #{seq2seq_forward.1} parent=1 // pred_check
      _
    $region3: #{seq2seq_forward.1} parent=1 // pred_check_branch
      %30 = sbr.rel (0) target = $region5
    $region4: #{seq2seq_forward.1} parent=1 // pred_region
      _
    $region5: #{seq2seq_forward.1} parent=1 // pred_fallthru
      _
    // Predicated region
    $region6: #{seq2seq_forward.1} parent=1 // pred_check
      _
    $region7: #{seq2seq_forward.1} parent=1 // pred_check_branch
      %32 = sbr.rel (0) target = $region9
    $region8: #{seq2seq_forward.1} parent=1 // pred_region
      _
    $region9: #{seq2seq_forward.1} parent=1 // pred_fallthru
      _
    // Predicated region
    $region10: #{seq2seq_forward.1} parent=1 // pred_check
      _
    $region11: #{seq2seq_forward.1} parent=1 // pred_check_branch
      %34 = sbr.rel (0) target = $region13
    $region12: #{seq2seq_forward.1} parent=1 // pred_region
      _
    $region13: #{seq2seq_forward.1} parent=1 // pred_fallthru
      _
    // Predicated region
    $region14: #{seq2seq_forward.1} parent=1 // pred_check
      _
    $region15: #{seq2seq_forward.1} parent=1 // pred_check_branch
      %36 = sbr.rel (0) target = $region17
    $region16: #{seq2seq_forward.1} parent=1 // pred_region
      _
    $region17: #{seq2seq_forward.1} parent=1 // pred_fallthru
      _
    // Predicated region
    $region18: #{seq2seq_forward.1} parent=1 // pred_check
      _
    $region19: #{seq2seq_forward.1} parent=1 // pred_check_branch
      %38 = sbr.rel (0) target = $region21
    $region20: #{seq2seq_forward.1} parent=1 // pred_region
      _
    $region21: #{seq2seq_forward.1} parent=1 // pred_fallthru
      _
    // Predicated region
    $region22: #{seq2seq_forward.1} parent=1 // pred_check
      _
    $region23: #{seq2seq_forward.1} parent=1 // pred_check_branch
      %40 = sbr.rel (0) target = $region25
    $region24: #{seq2seq_forward.1} parent=1 // pred_region
      _
    $region25: #{seq2seq_forward.1} parent=1 // pred_fallthru
      _
    // Predicated region
    $region26: #{seq2seq_forward.1} parent=1 // pred_check
      _
    $region27: #{seq2seq_forward.1} parent=1 // pred_check_branch
      %42 = sbr.rel (0) target = $region29
    $region28: #{seq2seq_forward.1} parent=1 // pred_region
      _
    $region29: #{seq2seq_forward.1} parent=1 // pred_fallthru
      _
    // Predicated region
    $region30: #{seq2seq_forward.1} parent=1 // pred_check
      _
    $region31: #{seq2seq_forward.1} parent=1 // pred_check_branch
      %44 = sbr.rel (0) target = $region33
    $region32: #{seq2seq_forward.1} parent=1 // pred_region
      _
    $region33: #{seq2seq_forward.1} parent=1 // pred_fallthru
      _
    // Predicated region
    $region34: #{seq2seq_forward.1} parent=1 // pred_check
      _
    $region35: #{seq2seq_forward.1} parent=1 // pred_check_branch
      %46 = sbr.rel (0) target = $region37
    $region36: #{seq2seq_forward.1} parent=1 // pred_region
      _
    $region37: #{seq2seq_forward.1} parent=1 // pred_fallthru
      _
    // Predicated region
    $region38: #{seq2seq_forward.1} parent=1 // pred_check
      _
    $region39: #{seq2seq_forward.1} parent=1 // pred_check_branch
      %48 = sbr.rel (0) target = $region41
    $region40: #{seq2seq_forward.1} parent=1 // pred_region
      %s50 = ssub.s32 64, 64
      %51 = vsyncadd [#allocation3], %s50
      %s52 = sshll.u32 [#allocation2], 4
      %s53 = int_to_ptr.vmem [resolvable:$true] %s52
      %58 = dma.hbm_to_vmem [thread:$0]  %s9, 64, %s53, [#allocation3], 16, 16, 1
    $region41: #{seq2seq_forward.1} parent=1 // pred_fallthru
      _
    // Predicated region
    $region42: #{seq2seq_forward.1} parent=1 // pred_check
      _
    $region43: #{seq2seq_forward.1} parent=1 // pred_check_branch
      %60 = sbr.rel (0) target = $region45
    $region44: #{seq2seq_forward.1} parent=1 // pred_region
      _
    $region45: #{seq2seq_forward.1} parent=1 // pred_fallthru
      _
    // Predicated region
    $region46: #{seq2seq_forward.1} parent=1 // pred_check
      _
    $region47: #{seq2seq_forward.1} parent=1 // pred_check_branch
      %62 = sbr.rel (0) target = $region49
    $region48: #{seq2seq_forward.1} parent=1 // pred_region
      %s64 = ssub.s32 32, 32
      %65 = vsyncadd [#allocation5], %s64
      %s66 = sshll.u32 [#allocation4], 4
      %s67 = int_to_ptr.vmem [resolvable:$true] %s66
      %72 = dma.hbm_to_vmem [thread:$0]  %s11, 32, %s67, [#allocation5], 16, 16, 1
    $region49: #{seq2seq_forward.1} parent=1 // pred_fallthru
      _
    // Predicated region
    $region50: #{seq2seq_forward.1} parent=1 // pred_check
      _
    $region51: #{seq2seq_forward.1} parent=1 // pred_check_branch
      %74 = sbr.rel (0) target = $region53
    $region52: #{seq2seq_forward.1} parent=1 // pred_region
      _
    $region53: #{seq2seq_forward.1} parent=1 // pred_fallthru
      _
    // Predicated region
    $region54: #{seq2seq_forward.1} parent=1 // pred_check
      _
    $region55: #{seq2seq_forward.1} parent=1 // pred_check_branch
      %76 = sbr.rel (0) target = $region57
    $region56: #{seq2seq_forward.1} parent=1 // pred_region
      %s78 = ssub.s32 384, 384
      %79 = vsyncadd [#allocation5], %s78
      %s80 = sshll.u32 [#allocation6], 4
      %s81 = int_to_ptr.vmem [resolvable:$true] %s80
      %86 = dma.hbm_to_vmem [thread:$0]  %s13, 384, %s81, [#allocation5], 16, 16, 1
    $region57: #{seq2seq_forward.1} parent=1 // pred_fallthru
      _
    // Predicated region
    $region58: #{seq2seq_forward.1} parent=1 // pred_check
      _
    $region59: #{seq2seq_forward.1} parent=1 // pred_check_branch
      %88 = sbr.rel (0) target = $region61
    $region60: #{seq2seq_forward.1} parent=1 // pred_region
      _
    $region61: #{seq2seq_forward.1} parent=1 // pred_fallthru
      _
    // Predicated region
    $region62: #{seq2seq_forward.1} parent=1 // pred_check
      _
    $region63: #{seq2seq_forward.1} parent=1 // pred_check_branch
      %90 = sbr.rel (0) target = $region65
    $region64: #{seq2seq_forward.1} parent=1 // pred_region
      %s92 = ssub.s32 64, 64
      %93 = vsyncadd [#allocation8], %s92
      %s94 = sshll.u32 [#allocation7], 4
      %s95 = int_to_ptr.vmem [resolvable:$true] %s94
      %100 = dma.hbm_to_vmem [thread:$0]  %s15, 64, %s95, [#allocation8], 16, 16, 1
    $region65: #{seq2seq_forward.1} parent=1 // pred_fallthru
      _
    // Predicated region
    $region66: #{seq2seq_forward.1} parent=1 // pred_check
      _
    $region67: #{seq2seq_forward.1} parent=1 // pred_check_branch
      %102 = sbr.rel (0) target = $region69
    $region68: #{seq2seq_forward.1} parent=1 // pred_region
      %s104 = ssub.s32 1536, 1536
      %105 = vsyncadd [#allocation8], %s104
      %s106 = sshll.u32 [#allocation9], 4
      %s107 = int_to_ptr.vmem [resolvable:$true] %s106
      %112 = dma.hbm_to_vmem [thread:$0]  %s16, 1536, %s107, [#allocation8], 64, 64, 4
    $region69: #{seq2seq_forward.1} parent=1 // pred_fallthru
      _
    // Predicated region
    $region70: #{seq2seq_forward.1} parent=1 // pred_check
      _
    $region71: #{seq2seq_forward.1} parent=1 // pred_check_branch
      %114 = sbr.rel (0) target = $region73
    $region72: #{seq2seq_forward.1} parent=1 // pred_region
      %s116 = ssub.s32 64, 64
      %117 = vsyncadd [#allocation11], %s116
      %s118 = sshll.u32 [#allocation10], 4
      %s119 = int_to_ptr.vmem [resolvable:$true] %s118
      %124 = dma.hbm_to_vmem [thread:$0]  %s17, 64, %s119, [#allocation11], 16, 16, 1
    $region73: #{seq2seq_forward.1} parent=1 // pred_fallthru
      _
    // Predicated region
    $region74: #{seq2seq_forward.1} parent=1 // pred_check
      _
    $region75: #{seq2seq_forward.1} parent=1 // pred_check_branch
      %126 = sbr.rel (0) target = $region77
    $region76: #{seq2seq_forward.1} parent=1 // pred_region
      _
    $region77: #{seq2seq_forward.1} parent=1 // pred_fallthru
      _
    // Predicated region
    $region78: #{seq2seq_forward.1} parent=1 // pred_check
      _
    $region79: #{seq2seq_forward.1} parent=1 // pred_check_branch
      %128 = sbr.rel (0) target = $region81
    $region80: #{seq2seq_forward.1} parent=1 // pred_region
      %s130 = ssub.s32 192, 192
      %131 = vsyncadd [#allocation11], %s130
      %s132 = sshll.u32 [#allocation12], 4
      %s133 = int_to_ptr.vmem [resolvable:$true] %s132
      %138 = dma.hbm_to_vmem [thread:$0]  %s19, 192, %s133, [#allocation11], 16, 16, 1
    $region81: #{seq2seq_forward.1} parent=1 // pred_fallthru
      _
    // Predicated region
    $region82: #{seq2seq_forward.1} parent=1 // pred_check
      _
    $region83: #{seq2seq_forward.1} parent=1 // pred_check_branch
      %140 = sbr.rel (0) target = $region85
    $region84: #{seq2seq_forward.1} parent=1 // pred_region
      %141 = dma.done [#allocation3], 64
    $region85: #{seq2seq_forward.1} parent=1 // pred_fallthru
      _
    // Predicated region
    $region86: #{seq2seq_forward.1} parent=1 // pred_check
      _
    $region87: #{seq2seq_forward.1} parent=1 // pred_check_branch
      %143 = sbr.rel (0) target = $region89
    $region88: #{seq2seq_forward.1} parent=1 // pred_region
      %144 = dma.done [#allocation5], 32
    $region89: #{seq2seq_forward.1} parent=1 // pred_fallthru
      _
    // Predicated region
    $region90: #{seq2seq_forward.1} parent=1 // pred_check
      _
    $region91: #{seq2seq_forward.1} parent=1 // pred_check_branch
      %146 = sbr.rel (0) target = $region93
    $region92: #{seq2seq_forward.1} parent=1 // pred_region
      %147 = dma.done [#allocation5], 384
    $region93: #{seq2seq_forward.1} parent=1 // pred_fallthru
      _
    // Predicated region
    $region94: #{seq2seq_forward.1} parent=1 // pred_check
      _
    $region95: #{seq2seq_forward.1} parent=1 // pred_check_branch
      %149 = sbr.rel (0) target = $region97
    $region96: #{seq2seq_forward.1} parent=1 // pred_region
      %150 = dma.done [#allocation8], 64
    $region97: #{seq2seq_forward.1} parent=1 // pred_fallthru
      _
    // Predicated region
    $region98: #{seq2seq_forward.1} parent=1 // pred_check
      _
    $region99: #{seq2seq_forward.1} parent=1 // pred_check_branch
      %152 = sbr.rel (0) target = $region101
    $region100: #{seq2seq_forward.1} parent=1 // pred_region
      %153 = dma.done [#allocation8], 1536
    $region101: #{seq2seq_forward.1} parent=1 // pred_fallthru
      _
    // Predicated region
    $region102: #{seq2seq_forward.1} parent=1 // pred_check
      _
    $region103: #{seq2seq_forward.1} parent=1 // pred_check_branch
      %155 = sbr.rel (0) target = $region105
    $region104: #{seq2seq_forward.1} parent=1 // pred_region
      %156 = dma.done [#allocation11], 64
    $region105: #{seq2seq_forward.1} parent=1 // pred_fallthru
      _
    // Predicated region
    $region106: #{seq2seq_forward.1} parent=1 // pred_check
      _
    $region107: #{seq2seq_forward.1} parent=1 // pred_check_branch
      %158 = sbr.rel (0) target = $region109
    $region108: #{seq2seq_forward.1} parent=1 // pred_region
      %159 = dma.done [#allocation11], 192
    $region109: #{seq2seq_forward.1} parent=1 // pred_fallthru
      _
    %v161 = vld [vmem:[#allocation2] sm:$0x1]
    %s162 = scalar_lea.vmem [#allocation2], 1
    %v163 = vld [vmem:[%s162] sm:$0x1]
    %s164 = scalar_lea.vmem [#allocation2], 2
    %v165 = vld [vmem:[%s164] sm:$0x1]
    %s166 = scalar_lea.vmem [#allocation2], 3
    %v167 = vld [vmem:[%s166] sm:$0x1]
    %v168 = vld [vmem:[%s0] sm:$0xff]
    %v169 = vld [vmem:[%s2] sm:$0xff]
    %v170 = vld [vmem:[%s1] sm:$0xff]
    %v171 = vld [vmem:[%s10] sm:$0xf]
    %v172 = vld [vmem:[%s10 + $0x4] sm:$0xf]
    %v173 = vld [vmem:[%s10 + $0x8] sm:$0xf]
    %v174 = vld [vmem:[%s10 + $0xc] sm:$0xf]
    %v175 = vld [vmem:[%s10 + $0x10] sm:$0xf]
    %v176 = vld [vmem:[%s10 + $0x14] sm:$0xf]
    %v177 = vpack.c.bf16 %v170, %v170
    %v178 = vld [vmem:[#allocation4] sm:$0x1]
    %v180 = vlaneseq
    %v181 = vshrl.u32 %v180, 7
    %v182 = vsub.s32 0, %v181
    %v183 = vrot.slane %v178, %v182
    %v191 = vunpack.c.l.b16 %v171
    %v192 = vunpack.c.l.b16 %v172
    %v193 = vunpack.c.l.b16 %v173
    %v194 = vunpack.c.l.b16 %v174
    %v195 = vunpack.c.l.b16 %v175
    %v196 = vunpack.c.l.b16 %v176
    %v197 = vpack.c.b16 %v192, %v191
    %v198 = vpack.c.b16 %v194, %v193
    %v199 = vpack.c.b16 %v196, %v195
    %vm200 = vcmask 97280
    %v202 = vsel %vm200, %v177, 0
    %v205 = vsel %vm200, %v197, 0
    %v208 = vsel %vm200, %v198, 0
    %v211 = vsel %vm200, %v199, 0
    %213 = vmatprep.subr.bf16.mxu0 0
    %214 = vmatpush1.bf16.xpose.msra.mxu0 0
    %215 = vmatprep.subr.bf16.mxu0 0
    %216 = vmatpush1.bf16.xpose.msra.mxu0 0
    %217 = vmatprep.subr.bf16.mxu0 0
    %218 = vmatpush1.bf16.xpose.msra.mxu0 0
    %219 = vmatprep.subr.bf16.mxu0 0
    %220 = vmatpush1.bf16.xpose.msra.mxu0 0
    %221 = vmatprep.subr.bf16.mxu0 0
    %222 = vmatpush1.bf16.xpose.msra.mxu0 0
    %223 = vmatprep.subr.bf16.mxu0 0
    %224 = vmatpush1.bf16.xpose.msra.mxu0 %v211
    %225 = vmatprep.subr.bf16.mxu0 0
    %226 = vmatpush1.bf16.xpose.msra.mxu0 %v208
    %227 = vmatprep.subr.bf16.mxu0 0
    %228 = vmatpush1.bf16.xpose.msra.mxu0 %v205
    %229 = vmatprep.subr.bf16.mxu0 0
    %230 = vmatpush2.bf16.xpose.msra.mxu0 0
    %231 = vmatprep.subr.bf16.mxu0 0
    %232 = vmatpush2.bf16.xpose.msra.mxu0 0
    %233 = vmatprep.subr.bf16.mxu0 0
    %234 = vmatpush2.bf16.xpose.msra.mxu0 0
    %235 = vmatprep.subr.bf16.mxu0 0
    %236 = vmatpush2.bf16.xpose.msra.mxu0 0
    %237 = vmatprep.subr.bf16.mxu0 0
    %238 = vmatpush2.bf16.xpose.msra.mxu0 0
    %239 = vmatprep.subr.bf16.mxu0 0
    %240 = vmatpush2.bf16.xpose.msra.mxu0 0
    %241 = vmatprep.subr.bf16.mxu0 0
    %242 = vmatpush2.bf16.xpose.msra.mxu0 0
    %243 = vmatprep.subr.bf16.mxu0 0
    %244 = vmatpush2.bf16.xpose.msra.mxu0 0
    %245 = vmatprep.mubr.bf16.mxu0 0
    %246 = vmatmul.mubr.bf16.gmra.mxu0 %v202
    %v247 = vpop.f32.mrf.mxu0
    %v248 = vadd.f32 %v183, %v247
    %v249 = vpop.f32.mrf.mxu0
    %v250 = vpop.f32.mrf.mxu0
    %v251 = vpop.f32.mrf.mxu0
    %252 = vdwg.mxu0
    %254 = vset.pattern.permute.xlu0 0
    %255 = vperm.xlu0 %254, %v169
    %v256 = vpop.permute.xlu0 %255
    %v258 = vmul.f32 %v256, %v248
    %v259 = vadd.f32 %v168, %v258
    %v260 = vld [vmem:[%s3] sm:$0x3f]
    %v261 = vld [vmem:[%s5] sm:$0x3f]
    %v262 = vld [vmem:[%s4] sm:$0x3f]
    %s263 = scalar_lea.vmem %s10, 24
    %v264 = vld [vmem:[%s263] sm:$0xf]
    %v265 = vld [vmem:[%s263 + $0x4] sm:$0xf]
    %v266 = vld [vmem:[%s263 + $0x8] sm:$0xf]
    %v267 = vld [vmem:[%s263 + $0xc] sm:$0xf]
    %v268 = vld [vmem:[%s263 + $0x10] sm:$0xf]
    %v269 = vld [vmem:[%s263 + $0x14] sm:$0xf]
    %v270 = vpack.c.bf16 %v262, %v262
    %s271 = scalar_lea.vmem [#allocation4], 1
    %v272 = vld [vmem:[%s271] sm:$0x1]
    %v274 = vlaneseq
    %v275 = vshrl.u32 %v274, 7
    %v276 = vsub.s32 0, %v275
    %v277 = vrot.slane %v272, %v276
    %v285 = vunpack.c.l.b16 %v264
    %v286 = vunpack.c.l.b16 %v265
    %v287 = vunpack.c.l.b16 %v266
    %v288 = vunpack.c.l.b16 %v267
    %v289 = vunpack.c.l.b16 %v268
    %v290 = vunpack.c.l.b16 %v269
    %v291 = vpack.c.b16 %v286, %v285
    %v292 = vpack.c.b16 %v288, %v287
    %v293 = vpack.c.b16 %v290, %v289
    %v295 = vsel %vm200, %v270, 0
    %v298 = vsel %vm200, %v291, 0
    %v301 = vsel %vm200, %v292, 0
    %v304 = vsel %vm200, %v293, 0
    %306 = vmatprep.subr.bf16.mxu0 0
    %307 = vmatpush1.bf16.xpose.msra.mxu0 0
    %308 = vmatprep.subr.bf16.mxu0 0
    %309 = vmatpush1.bf16.xpose.msra.mxu0 0
    %310 = vmatprep.subr.bf16.mxu0 0
    %311 = vmatpush1.bf16.xpose.msra.mxu0 0
    %312 = vmatprep.subr.bf16.mxu0 0
    %313 = vmatpush1.bf16.xpose.msra.mxu0 0
    %314 = vmatprep.subr.bf16.mxu0 0
    %315 = vmatpush1.bf16.xpose.msra.mxu0 0
    %316 = vmatprep.subr.bf16.mxu0 0
    %317 = vmatpush1.bf16.xpose.msra.mxu0 %v304
    %318 = vmatprep.subr.bf16.mxu0 0
    %319 = vmatpush1.bf16.xpose.msra.mxu0 %v301
    %320 = vmatprep.subr.bf16.mxu0 0
    %321 = vmatpush1.bf16.xpose.msra.mxu0 %v298
    %322 = vmatprep.subr.bf16.mxu0 0
    %323 = vmatpush2.bf16.xpose.msra.mxu0 0
    %324 = vmatprep.subr.bf16.mxu0 0
    %325 = vmatpush2.bf16.xpose.msra.mxu0 0
    %326 = vmatprep.subr.bf16.mxu0 0
    %327 = vmatpush2.bf16.xpose.msra.mxu0 0
    %328 = vmatprep.subr.bf16.mxu0 0
    %329 = vmatpush2.bf16.xpose.msra.mxu0 0
    %330 = vmatprep.subr.bf16.mxu0 0
    %331 = vmatpush2.bf16.xpose.msra.mxu0 0
    %332 = vmatprep.subr.bf16.mxu0 0
    %333 = vmatpush2.bf16.xpose.msra.mxu0 0
    %334 = vmatprep.subr.bf16.mxu0 0
    %335 = vmatpush2.bf16.xpose.msra.mxu0 0
    %336 = vmatprep.subr.bf16.mxu0 0
    %337 = vmatpush2.bf16.xpose.msra.mxu0 0
    %338 = vmatprep.mubr.bf16.mxu0 0
    %339 = vmatmul.mubr.bf16.gmra.mxu0 %v295
    %v340 = vpop.f32.mrf.mxu0
    %v341 = vadd.f32 %v277, %v340
    %v342 = vpop.f32.mrf.mxu0
    %v343 = vpop.f32.mrf.mxu0
    %v344 = vpop.f32.mrf.mxu0
    %345 = vdwg.mxu0
    %347 = vset.pattern.permute.xlu0 0
    %348 = vperm.xlu0 %347, %v261
    %v349 = vpop.permute.xlu0 %348
    %v351 = vmul.f32 %v349, %v341
    %v352 = vadd.f32 %v260, %v351
    %v353 = vld [vmem:[%s6] sm:$0xff]
    %v354 = vld [vmem:[%s7] sm:$0x3f]
    %v355 = vld [vmem:[%s8] sm:$0x3f]
    %v356 = vld [vmem:[%s12] sm:$0xf]
    %v357 = vld [vmem:[%s12 + $0x4] sm:$0xf]
    %v358 = vld [vmem:[%s12 + $0x8] sm:$0xf]
    %v359 = vld [vmem:[%s12 + $0xc] sm:$0xf]
    %v360 = vld [vmem:[%s12 + $0x10] sm:$0xf]
    %v361 = vld [vmem:[%s12 + $0x14] sm:$0xf]
    %v362 = vpack.c.bf16 %v259, %v259
    %v363 = vld [vmem:[#allocation6] sm:$0x1]
    %v365 = vlaneseq
    %v366 = vshrl.u32 %v365, 7
    %v367 = vsub.s32 0, %v366
    %v368 = vrot.slane %v363, %v367
    %v376 = vunpack.c.l.b16 %v356
    %v377 = vunpack.c.l.b16 %v357
    %v378 = vunpack.c.l.b16 %v358
    %v379 = vunpack.c.l.b16 %v359
    %v380 = vunpack.c.l.b16 %v360
    %v381 = vunpack.c.l.b16 %v361
    %v382 = vpack.c.b16 %v377, %v376
    %v383 = vpack.c.b16 %v379, %v378
    %v384 = vpack.c.b16 %v381, %v380
    %vm385 = vcmask 392192
    %v387 = vsel %vm385, %v362, 0
    %v390 = vsel %vm385, %v382, 0
    %v393 = vsel %vm385, %v383, 0
    %v396 = vsel %vm385, %v384, 0
    %398 = vmatprep.subr.bf16.mxu0 0
    %399 = vmatpush1.bf16.xpose.msra.mxu0 0
    %400 = vmatprep.subr.bf16.mxu0 0
    %401 = vmatpush1.bf16.xpose.msra.mxu0 0
    %402 = vmatprep.subr.bf16.mxu0 0
    %403 = vmatpush1.bf16.xpose.msra.mxu0 0
    %404 = vmatprep.subr.bf16.mxu0 0
    %405 = vmatpush1.bf16.xpose.msra.mxu0 0
    %406 = vmatprep.subr.bf16.mxu0 0
    %407 = vmatpush1.bf16.xpose.msra.mxu0 0
    %408 = vmatprep.subr.bf16.mxu0 0
    %409 = vmatpush1.bf16.xpose.msra.mxu0 %v396
    %410 = vmatprep.subr.bf16.mxu0 0
    %411 = vmatpush1.bf16.xpose.msra.mxu0 %v393
    %412 = vmatprep.subr.bf16.mxu0 0
    %413 = vmatpush1.bf16.xpose.msra.mxu0 %v390
    %414 = vmatprep.subr.bf16.mxu0 0
    %415 = vmatpush2.bf16.xpose.msra.mxu0 0
    %416 = vmatprep.subr.bf16.mxu0 0
    %417 = vmatpush2.bf16.xpose.msra.mxu0 0
    %418 = vmatprep.subr.bf16.mxu0 0
    %419 = vmatpush2.bf16.xpose.msra.mxu0 0
    %420 = vmatprep.subr.bf16.mxu0 0
    %421 = vmatpush2.bf16.xpose.msra.mxu0 0
    %422 = vmatprep.subr.bf16.mxu0 0
    %423 = vmatpush2.bf16.xpose.msra.mxu0 0
    %424 = vmatprep.subr.bf16.mxu0 0
    %425 = vmatpush2.bf16.xpose.msra.mxu0 0
    %426 = vmatprep.subr.bf16.mxu0 0
    %427 = vmatpush2.bf16.xpose.msra.mxu0 0
    %428 = vmatprep.subr.bf16.mxu0 0
    %429 = vmatpush2.bf16.xpose.msra.mxu0 0
    %430 = vmatprep.mubr.bf16.mxu0 0
    %431 = vmatmul.mubr.bf16.gmra.mxu0 %v387
    %v432 = vpop.f32.mrf.mxu0
    %v433 = vadd.f32 %v368, %v432
    %v434 = vpop.f32.mrf.mxu0
    %v435 = vpop.f32.mrf.mxu0
    %v436 = vpop.f32.mrf.mxu0
    %437 = vdwg.mxu0
    %v438 = vmul.f32 %v433, 0.28867513
    %s439 = scalar_lea.vmem %s12, 24
    %v440 = vld [vmem:[%s439] sm:$0xf]
    %v441 = vld [vmem:[%s439 + $0x4] sm:$0xf]
    %v442 = vld [vmem:[%s439 + $0x8] sm:$0xf]
    %v443 = vld [vmem:[%s439 + $0xc] sm:$0xf]
    %v444 = vld [vmem:[%s439 + $0x10] sm:$0xf]
    %v445 = vld [vmem:[%s439 + $0x14] sm:$0xf]
    %s446 = scalar_lea.vmem [#allocation6], 1
    %v447 = vld [vmem:[%s446] sm:$0x1]
    %v449 = vlaneseq
    %v450 = vshrl.u32 %v449, 7
    %v451 = vsub.s32 0, %v450
    %v452 = vrot.slane %v447, %v451
    %v460 = vunpack.c.l.b16 %v440
    %v461 = vunpack.c.l.b16 %v441
    %v462 = vunpack.c.l.b16 %v442
    %v463 = vunpack.c.l.b16 %v443
    %v464 = vunpack.c.l.b16 %v444
    %v465 = vunpack.c.l.b16 %v445
    %v466 = vpack.c.b16 %v461, %v460
    %v467 = vpack.c.b16 %v463, %v462
    %v468 = vpack.c.b16 %v465, %v464
    %v470 = vsel %vm385, %v466, 0
    %v473 = vsel %vm385, %v467, 0
    %v476 = vsel %vm385, %v468, 0
    %478 = vmatprep.subr.bf16.mxu0 0
    %479 = vmatpush1.bf16.xpose.msra.mxu0 0
    %480 = vmatprep.subr.bf16.mxu0 0
    %481 = vmatpush1.bf16.xpose.msra.mxu0 0
    %482 = vmatprep.subr.bf16.mxu0 0
    %483 = vmatpush1.bf16.xpose.msra.mxu0 0
    %484 = vmatprep.subr.bf16.mxu0 0
    %485 = vmatpush1.bf16.xpose.msra.mxu0 0
    %486 = vmatprep.subr.bf16.mxu0 0
    %487 = vmatpush1.bf16.xpose.msra.mxu0 0
    %488 = vmatprep.subr.bf16.mxu0 0
    %489 = vmatpush1.bf16.xpose.msra.mxu0 %v476
    %490 = vmatprep.subr.bf16.mxu0 0
    %491 = vmatpush1.bf16.xpose.msra.mxu0 %v473
    %492 = vmatprep.subr.bf16.mxu0 0
    %493 = vmatpush1.bf16.xpose.msra.mxu0 %v470
    %494 = vmatprep.subr.bf16.mxu0 0
    %495 = vmatpush2.bf16.xpose.msra.mxu0 0
    %496 = vmatprep.subr.bf16.mxu0 0
    %497 = vmatpush2.bf16.xpose.msra.mxu0 0
    %498 = vmatprep.subr.bf16.mxu0 0
    %499 = vmatpush2.bf16.xpose.msra.mxu0 0
    %500 = vmatprep.subr.bf16.mxu0 0
    %501 = vmatpush2.bf16.xpose.msra.mxu0 0
    %502 = vmatprep.subr.bf16.mxu0 0
    %503 = vmatpush2.bf16.xpose.msra.mxu0 0
    %504 = vmatprep.subr.bf16.mxu0 0
    %505 = vmatpush2.bf16.xpose.msra.mxu0 0
    %506 = vmatprep.subr.bf16.mxu0 0
    %507 = vmatpush2.bf16.xpose.msra.mxu0 0
    %508 = vmatprep.subr.bf16.mxu0 0
    %509 = vmatpush2.bf16.xpose.msra.mxu0 0
    %510 = vmatprep.mubr.bf16.mxu0 0
    %511 = vmatmul.mubr.bf16.gmra.mxu0 %v387
    %v512 = vpop.f32.mrf.mxu0
    %v513 = vadd.f32 %v452, %v512
    %v514 = vpop.f32.mrf.mxu0
    %v515 = vpop.f32.mrf.mxu0
    %v516 = vpop.f32.mrf.mxu0
    %517 = vdwg.mxu0
    %s518 = scalar_lea.vmem %s12, 48
    %v519 = vld [vmem:[%s518] sm:$0xf]
    %v520 = vld [vmem:[%s518 + $0x4] sm:$0xf]
    %v521 = vld [vmem:[%s518 + $0x8] sm:$0xf]
    %v522 = vld [vmem:[%s518 + $0xc] sm:$0xf]
    %v523 = vld [vmem:[%s518 + $0x10] sm:$0xf]
    %v524 = vld [vmem:[%s518 + $0x14] sm:$0xf]
    %s525 = scalar_lea.vmem [#allocation6], 2
    %v526 = vld [vmem:[%s525] sm:$0x1]
    %v528 = vlaneseq
    %v529 = vshrl.u32 %v528, 7
    %v530 = vsub.s32 0, %v529
    %v531 = vrot.slane %v526, %v530
    %v539 = vunpack.c.l.b16 %v519
    %v540 = vunpack.c.l.b16 %v520
    %v541 = vunpack.c.l.b16 %v521
    %v542 = vunpack.c.l.b16 %v522
    %v543 = vunpack.c.l.b16 %v523
    %v544 = vunpack.c.l.b16 %v524
    %v545 = vpack.c.b16 %v540, %v539
    %v546 = vpack.c.b16 %v542, %v541
    %v547 = vpack.c.b16 %v544, %v543
    %v549 = vsel %vm385, %v545, 0
    %v552 = vsel %vm385, %v546, 0
    %v555 = vsel %vm385, %v547, 0
    %557 = vmatprep.subr.bf16.mxu0 0
    %558 = vmatpush1.bf16.xpose.msra.mxu0 0
    %559 = vmatprep.subr.bf16.mxu0 0
    %560 = vmatpush1.bf16.xpose.msra.mxu0 0
    %561 = vmatprep.subr.bf16.mxu0 0
    %562 = vmatpush1.bf16.xpose.msra.mxu0 0
    %563 = vmatprep.subr.bf16.mxu0 0
    %564 = vmatpush1.bf16.xpose.msra.mxu0 0
    %565 = vmatprep.subr.bf16.mxu0 0
    %566 = vmatpush1.bf16.xpose.msra.mxu0 0
    %567 = vmatprep.subr.bf16.mxu0 0
    %568 = vmatpush1.bf16.xpose.msra.mxu0 %v555
    %569 = vmatprep.subr.bf16.mxu0 0
    %570 = vmatpush1.bf16.xpose.msra.mxu0 %v552
    %571 = vmatprep.subr.bf16.mxu0 0
    %572 = vmatpush1.bf16.xpose.msra.mxu0 %v549
    %573 = vmatprep.subr.bf16.mxu0 0
    %574 = vmatpush2.bf16.xpose.msra.mxu0 0
    %575 = vmatprep.subr.bf16.mxu0 0
    %576 = vmatpush2.bf16.xpose.msra.mxu0 0
    %577 = vmatprep.subr.bf16.mxu0 0
    %578 = vmatpush2.bf16.xpose.msra.mxu0 0
    %579 = vmatprep.subr.bf16.mxu0 0
    %580 = vmatpush2.bf16.xpose.msra.mxu0 0
    %581 = vmatprep.subr.bf16.mxu0 0
    %582 = vmatpush2.bf16.xpose.msra.mxu0 0
    %583 = vmatprep.subr.bf16.mxu0 0
    %584 = vmatpush2.bf16.xpose.msra.mxu0 0
    %585 = vmatprep.subr.bf16.mxu0 0
    %586 = vmatpush2.bf16.xpose.msra.mxu0 0
    %587 = vmatprep.subr.bf16.mxu0 0
    %588 = vmatpush2.bf16.xpose.msra.mxu0 0
    %589 = vmatprep.mubr.bf16.mxu0 0
    %590 = vmatmul.mubr.bf16.gmra.mxu0 %v387
    %v591 = vpop.f32.mrf.mxu0
    %v592 = vadd.f32 %v531, %v591
    %v593 = vpop.f32.mrf.mxu0
    %v594 = vpop.f32.mrf.mxu0
    %v595 = vpop.f32.mrf.mxu0
    %596 = vdwg.mxu0
    %v598 = vlaneseq
    %v599 = vshrl.u32 %v598, 7
    %v600 = vsub.s32 0, %v599
    %v601 = vrot.slane %v161, %v600
    %v603 = vmul.f32 %v438, %v601
    %v604 = vpack.c.bf16 %v603, %v603
    %v605 = vpack.c.bf16 %v513, %v513
    %v607 = vsel %vm385, %v604, 0
    %v610 = vsel %vm385, %v605, 0
    %612 = vmatprep.subr.bf16.mxu0 0
    %613 = vmatpush1.bf16.xpose.msra.mxu0 0
    %614 = vmatprep.subr.bf16.mxu0 0
    %615 = vmatpush1.bf16.xpose.msra.mxu0 0
    %616 = vmatprep.subr.bf16.mxu0 0
    %617 = vmatpush1.bf16.xpose.msra.mxu0 0
    %618 = vmatprep.subr.bf16.mxu0 0
    %619 = vmatpush1.bf16.xpose.msra.mxu0 0
    %620 = vmatprep.subr.bf16.mxu0 0
    %621 = vmatpush1.bf16.xpose.msra.mxu0 0
    %622 = vmatprep.subr.bf16.mxu0 0
    %623 = vmatpush1.bf16.xpose.msra.mxu0 0
    %624 = vmatprep.subr.bf16.mxu0 0
    %625 = vmatpush1.bf16.xpose.msra.mxu0 0
    %626 = vmatprep.subr.bf16.mxu0 0
    %627 = vmatpush1.bf16.xpose.msra.mxu0 %v610
    %628 = vmatprep.subr.bf16.mxu0 0
    %629 = vmatpush2.bf16.xpose.msra.mxu0 0
    %630 = vmatprep.subr.bf16.mxu0 0
    %631 = vmatpush2.bf16.xpose.msra.mxu0 0
    %632 = vmatprep.subr.bf16.mxu0 0
    %633 = vmatpush2.bf16.xpose.msra.mxu0 0
    %634 = vmatprep.subr.bf16.mxu0 0
    %635 = vmatpush2.bf16.xpose.msra.mxu0 0
    %636 = vmatprep.subr.bf16.mxu0 0
    %637 = vmatpush2.bf16.xpose.msra.mxu0 0
    %638 = vmatprep.subr.bf16.mxu0 0
    %639 = vmatpush2.bf16.xpose.msra.mxu0 0
    %640 = vmatprep.subr.bf16.mxu0 0
    %641 = vmatpush2.bf16.xpose.msra.mxu0 0
    %642 = vmatprep.subr.bf16.mxu0 0
    %643 = vmatpush2.bf16.xpose.msra.mxu0 0
    %644 = vmatprep.mubr.bf16.mxu0 0
    %645 = vmatmul.mubr.bf16.gmra.mxu0 %v607
    %v646 = vpop.f32.mrf.mxu0
    %v647 = vadd.f32 %v353, %v646
    %v648 = vpop.f32.mrf.mxu0
    %v649 = vpop.f32.mrf.mxu0
    %v650 = vpop.f32.mrf.mxu0
    %651 = vdwg.mxu0
    %vm652 = vcmask 64512
    %v653 = vsel %vm652, %v647, -inf
    %654 = vmax.xlane.f32.xlu0 %v653
    %v655 = vpop.xlane.xlu0 %654
    %v656 = vsub.f32 %v647, %v655
    %v657 = vmul.f32 %v656, 1.442695
    %v658 = vpow.pop %v657
    %v659 = vsel %vm652, %v658, 0.0
    %660 = vadd.xlane.f32.xlu0 %v659
    %v661 = vpop.xlane.xlu0 %660
    %v662 = vrcp.pop %v661
    %v663 = vmul.f32 %v658, %v662
    %v664 = vmul.f32 %v592, %v601
    %v665 = vpack.c.bf16 %v663, %v663
    %v666 = vpack.c.bf16 %v664, %v664
    %v668 = vlaneseq
    %v669 = vshrl.u32 %v668, 7
    %v670 = vsub.s32 0, %v669
    %v671 = vrot.slane %v163, %v670
    %v673 = vmul.f32 %v438, %v671
    %v674 = vpack.c.bf16 %v673, %v673
    %v676 = vsel %vm385, %v674, 0
    %678 = vmatprep.subr.bf16.mxu0 0
    %679 = vmatpush1.bf16.xpose.msra.mxu0 0
    %680 = vmatprep.subr.bf16.mxu0 0
    %681 = vmatpush1.bf16.xpose.msra.mxu0 0
    %682 = vmatprep.subr.bf16.mxu0 0
    %683 = vmatpush1.bf16.xpose.msra.mxu0 0
    %684 = vmatprep.subr.bf16.mxu0 0
    %685 = vmatpush1.bf16.xpose.msra.mxu0 0
    %686 = vmatprep.subr.bf16.mxu0 0
    %687 = vmatpush1.bf16.xpose.msra.mxu0 0
    %688 = vmatprep.subr.bf16.mxu0 0
    %689 = vmatpush1.bf16.xpose.msra.mxu0 0
    %690 = vmatprep.subr.bf16.mxu0 0
    %691 = vmatpush1.bf16.xpose.msra.mxu0 0
    %692 = vmatprep.subr.bf16.mxu0 0
    %693 = vmatpush1.bf16.xpose.msra.mxu0 %v610
    %694 = vmatprep.subr.bf16.mxu0 0
    %695 = vmatpush2.bf16.xpose.msra.mxu0 0
    %696 = vmatprep.subr.bf16.mxu0 0
    %697 = vmatpush2.bf16.xpose.msra.mxu0 0
    %698 = vmatprep.subr.bf16.mxu0 0
    %699 = vmatpush2.bf16.xpose.msra.mxu0 0
    %700 = vmatprep.subr.bf16.mxu0 0
    %701 = vmatpush2.bf16.xpose.msra.mxu0 0
    %702 = vmatprep.subr.bf16.mxu0 0
    %703 = vmatpush2.bf16.xpose.msra.mxu0 0
    %704 = vmatprep.subr.bf16.mxu0 0
    %705 = vmatpush2.bf16.xpose.msra.mxu0 0
    %706 = vmatprep.subr.bf16.mxu0 0
    %707 = vmatpush2.bf16.xpose.msra.mxu0 0
    %708 = vmatprep.subr.bf16.mxu0 0
    %709 = vmatpush2.bf16.xpose.msra.mxu0 0
    %710 = vmatprep.mubr.bf16.mxu0 0
    %711 = vmatmul.mubr.bf16.gmra.mxu0 %v676
    %v712 = vpop.f32.mrf.mxu0
    %v713 = vadd.f32 %v353, %v712
    %v714 = vpop.f32.mrf.mxu0
    %v715 = vpop.f32.mrf.mxu0
    %v716 = vpop.f32.mrf.mxu0
    %717 = vdwg.mxu0
    %v718 = vsel %vm652, %v713, -inf
    %719 = vmax.xlane.f32.xlu0 %v718
    %v720 = vpop.xlane.xlu0 %719
    %v721 = vsub.f32 %v713, %v720
    %v722 = vmul.f32 %v721, 1.442695
    %v723 = vpow.pop %v722
    %v724 = vsel %vm652, %v723, 0.0
    %725 = vadd.xlane.f32.xlu0 %v724
    %v726 = vpop.xlane.xlu0 %725
    %v727 = vrcp.pop %v726
    %v728 = vmul.f32 %v723, %v727
    %v729 = vmul.f32 %v592, %v671
    %v730 = vpack.c.bf16 %v728, %v728
    %v731 = vpack.c.bf16 %v729, %v729
    %v733 = vsel %vm652, %v730, 0
    %vm735 = vcmask 1043456
    %v737 = vsel %vm735, %v731, 0
    %739 = vmatprep.subr.bf16.mxu0 0
    %740 = vmatpush1.bf16.msra.mxu0 0
    %741 = vmatprep.subr.bf16.mxu0 0
    %742 = vmatpush1.bf16.msra.mxu0 0
    %743 = vmatprep.subr.bf16.mxu0 0
    %744 = vmatpush1.bf16.msra.mxu0 0
    %745 = vmatprep.subr.bf16.mxu0 0
    %746 = vmatpush1.bf16.msra.mxu0 0
    %747 = vmatprep.subr.bf16.mxu0 0
    %748 = vmatpush1.bf16.msra.mxu0 0
    %749 = vmatprep.subr.bf16.mxu0 0
    %750 = vmatpush1.bf16.msra.mxu0 0
    %751 = vmatprep.subr.bf16.mxu0 0
    %752 = vmatpush1.bf16.msra.mxu0 0
    %753 = vmatprep.subr.bf16.mxu0 0
    %754 = vmatpush1.bf16.msra.mxu0 %v737
    %755 = vmatprep.subr.bf16.mxu0 0
    %756 = vmatpush2.bf16.msra.mxu0 0
    %757 = vmatprep.subr.bf16.mxu0 0
    %758 = vmatpush2.bf16.msra.mxu0 0
    %759 = vmatprep.subr.bf16.mxu0 0
    %760 = vmatpush2.bf16.msra.mxu0 0
    %761 = vmatprep.subr.bf16.mxu0 0
    %762 = vmatpush2.bf16.msra.mxu0 0
    %763 = vmatprep.subr.bf16.mxu0 0
    %764 = vmatpush2.bf16.msra.mxu0 0
    %765 = vmatprep.subr.bf16.mxu0 0
    %766 = vmatpush2.bf16.msra.mxu0 0
    %767 = vmatprep.subr.bf16.mxu0 0
    %768 = vmatpush2.bf16.msra.mxu0 0
    %769 = vmatprep.subr.bf16.mxu0 0
    %770 = vmatpush2.bf16.msra.mxu0 0
    %771 = vmatprep.mubr.bf16.mxu0 0
    %772 = vmatmul.mubr.bf16.gmra.mxu0 %v733
    %v773 = vpop.f32.mrf.mxu0
    %v774 = vadd.f32 0.0, %v773
    %v775 = vpop.f32.mrf.mxu0
    %v776 = vpop.f32.mrf.mxu0
    %v777 = vpop.f32.mrf.mxu0
    %778 = vdwg.mxu0
    %v780 = vsel %vm652, %v665, 0
    %v783 = vsel %vm735, %v666, 0
    %785 = vmatprep.subr.bf16.mxu0 0
    %786 = vmatpush1.bf16.msra.mxu0 0
    %787 = vmatprep.subr.bf16.mxu0 0
    %788 = vmatpush1.bf16.msra.mxu0 0
    %789 = vmatprep.subr.bf16.mxu0 0
    %790 = vmatpush1.bf16.msra.mxu0 0
    %791 = vmatprep.subr.bf16.mxu0 0
    %792 = vmatpush1.bf16.msra.mxu0 0
    %793 = vmatprep.subr.bf16.mxu0 0
    %794 = vmatpush1.bf16.msra.mxu0 0
    %795 = vmatprep.subr.bf16.mxu0 0
    %796 = vmatpush1.bf16.msra.mxu0 0
    %797 = vmatprep.subr.bf16.mxu0 0
    %798 = vmatpush1.bf16.msra.mxu0 0
    %799 = vmatprep.subr.bf16.mxu0 0
    %800 = vmatpush1.bf16.msra.mxu0 %v783
    %801 = vmatprep.subr.bf16.mxu0 0
    %802 = vmatpush2.bf16.msra.mxu0 0
    %803 = vmatprep.subr.bf16.mxu0 0
    %804 = vmatpush2.bf16.msra.mxu0 0
    %805 = vmatprep.subr.bf16.mxu0 0
    %806 = vmatpush2.bf16.msra.mxu0 0
    %807 = vmatprep.subr.bf16.mxu0 0
    %808 = vmatpush2.bf16.msra.mxu0 0
    %809 = vmatprep.subr.bf16.mxu0 0
    %810 = vmatpush2.bf16.msra.mxu0 0
    %811 = vmatprep.subr.bf16.mxu0 0
    %812 = vmatpush2.bf16.msra.mxu0 0
    %813 = vmatprep.subr.bf16.mxu0 0
    %814 = vmatpush2.bf16.msra.mxu0 0
    %815 = vmatprep.subr.bf16.mxu0 0
    %816 = vmatpush2.bf16.msra.mxu0 0
    %817 = vmatprep.mubr.bf16.mxu0 0
    %818 = vmatmul.mubr.bf16.gmra.mxu0 %v780
    %v819 = vpop.f32.mrf.mxu0
    %v820 = vadd.f32 %v774, %v819
    %v821 = vpop.f32.mrf.mxu0
    %v822 = vpop.f32.mrf.mxu0
    %v823 = vpop.f32.mrf.mxu0
    %824 = vdwg.mxu0
    %v826 = vlaneseq
    %v827 = vshrl.u32 %v826, 7
    %v828 = vsub.s32 0, %v827
    %v829 = vrot.slane %v165, %v828
    %v831 = vmul.f32 %v438, %v829
    %v832 = vpack.c.bf16 %v831, %v831
    %v834 = vsel %vm385, %v832, 0
    %836 = vmatprep.subr.bf16.mxu0 0
    %837 = vmatpush1.bf16.xpose.msra.mxu0 0
    %838 = vmatprep.subr.bf16.mxu0 0
    %839 = vmatpush1.bf16.xpose.msra.mxu0 0
    %840 = vmatprep.subr.bf16.mxu0 0
    %841 = vmatpush1.bf16.xpose.msra.mxu0 0
    %842 = vmatprep.subr.bf16.mxu0 0
    %843 = vmatpush1.bf16.xpose.msra.mxu0 0
    %844 = vmatprep.subr.bf16.mxu0 0
    %845 = vmatpush1.bf16.xpose.msra.mxu0 0
    %846 = vmatprep.subr.bf16.mxu0 0
    %847 = vmatpush1.bf16.xpose.msra.mxu0 0
    %848 = vmatprep.subr.bf16.mxu0 0
    %849 = vmatpush1.bf16.xpose.msra.mxu0 0
    %850 = vmatprep.subr.bf16.mxu0 0
    %851 = vmatpush1.bf16.xpose.msra.mxu0 %v610
    %852 = vmatprep.subr.bf16.mxu0 0
    %853 = vmatpush2.bf16.xpose.msra.mxu0 0
    %854 = vmatprep.subr.bf16.mxu0 0
    %855 = vmatpush2.bf16.xpose.msra.mxu0 0
    %856 = vmatprep.subr.bf16.mxu0 0
    %857 = vmatpush2.bf16.xpose.msra.mxu0 0
    %858 = vmatprep.subr.bf16.mxu0 0
    %859 = vmatpush2.bf16.xpose.msra.mxu0 0
    %860 = vmatprep.subr.bf16.mxu0 0
    %861 = vmatpush2.bf16.xpose.msra.mxu0 0
    %862 = vmatprep.subr.bf16.mxu0 0
    %863 = vmatpush2.bf16.xpose.msra.mxu0 0
    %864 = vmatprep.subr.bf16.mxu0 0
    %865 = vmatpush2.bf16.xpose.msra.mxu0 0
    %866 = vmatprep.subr.bf16.mxu0 0
    %867 = vmatpush2.bf16.xpose.msra.mxu0 0
    %868 = vmatprep.mubr.bf16.mxu0 0
    %869 = vmatmul.mubr.bf16.gmra.mxu0 %v834
    %v870 = vpop.f32.mrf.mxu0
    %v871 = vadd.f32 %v353, %v870
    %v872 = vpop.f32.mrf.mxu0
    %v873 = vpop.f32.mrf.mxu0
    %v874 = vpop.f32.mrf.mxu0
    %875 = vdwg.mxu0
    %v876 = vsel %vm652, %v871, -inf
    %877 = vmax.xlane.f32.xlu0 %v876
    %v878 = vpop.xlane.xlu0 %877
    %v879 = vsub.f32 %v871, %v878
    %v880 = vmul.f32 %v879, 1.442695
    %v881 = vpow.pop %v880
    %v882 = vsel %vm652, %v881, 0.0
    %883 = vadd.xlane.f32.xlu0 %v882
    %v884 = vpop.xlane.xlu0 %883
    %v885 = vrcp.pop %v884
    %v886 = vmul.f32 %v881, %v885
    %v887 = vmul.f32 %v592, %v829
    %v888 = vpack.c.bf16 %v886, %v886
    %v889 = vpack.c.bf16 %v887, %v887
    %v891 = vsel %vm652, %v888, 0
    %v894 = vsel %vm735, %v889, 0
    %896 = vmatprep.subr.bf16.mxu0 0
    %897 = vmatpush1.bf16.msra.mxu0 0
    %898 = vmatprep.subr.bf16.mxu0 0
    %899 = vmatpush1.bf16.msra.mxu0 0
    %900 = vmatprep.subr.bf16.mxu0 0
    %901 = vmatpush1.bf16.msra.mxu0 0
    %902 = vmatprep.subr.bf16.mxu0 0
    %903 = vmatpush1.bf16.msra.mxu0 0
    %904 = vmatprep.subr.bf16.mxu0 0
    %905 = vmatpush1.bf16.msra.mxu0 0
    %906 = vmatprep.subr.bf16.mxu0 0
    %907 = vmatpush1.bf16.msra.mxu0 0
    %908 = vmatprep.subr.bf16.mxu0 0
    %909 = vmatpush1.bf16.msra.mxu0 0
    %910 = vmatprep.subr.bf16.mxu0 0
    %911 = vmatpush1.bf16.msra.mxu0 %v894
    %912 = vmatprep.subr.bf16.mxu0 0
    %913 = vmatpush2.bf16.msra.mxu0 0
    %914 = vmatprep.subr.bf16.mxu0 0
    %915 = vmatpush2.bf16.msra.mxu0 0
    %916 = vmatprep.subr.bf16.mxu0 0
    %917 = vmatpush2.bf16.msra.mxu0 0
    %918 = vmatprep.subr.bf16.mxu0 0
    %919 = vmatpush2.bf16.msra.mxu0 0
    %920 = vmatprep.subr.bf16.mxu0 0
    %921 = vmatpush2.bf16.msra.mxu0 0
    %922 = vmatprep.subr.bf16.mxu0 0
    %923 = vmatpush2.bf16.msra.mxu0 0
    %924 = vmatprep.subr.bf16.mxu0 0
    %925 = vmatpush2.bf16.msra.mxu0 0
    %926 = vmatprep.subr.bf16.mxu0 0
    %927 = vmatpush2.bf16.msra.mxu0 0
    %928 = vmatprep.mubr.bf16.mxu0 0
    %929 = vmatmul.mubr.bf16.gmra.mxu0 %v891
    %v930 = vpop.f32.mrf.mxu0
    %v931 = vadd.f32 0.0, %v930
    %v932 = vpop.f32.mrf.mxu0
    %v933 = vpop.f32.mrf.mxu0
    %v934 = vpop.f32.mrf.mxu0
    %935 = vdwg.mxu0
    %v936 = vadd.f32 %v820, %v931
    %v938 = vlaneseq
    %v939 = vshrl.u32 %v938, 7
    %v940 = vsub.s32 0, %v939
    %v941 = vrot.slane %v167, %v940
    %v943 = vmul.f32 %v438, %v941
    %v944 = vpack.c.bf16 %v943, %v943
    %v946 = vsel %vm385, %v944, 0
    %948 = vmatprep.subr.bf16.mxu0 0
    %949 = vmatpush1.bf16.xpose.msra.mxu0 0
    %950 = vmatprep.subr.bf16.mxu0 0
    %951 = vmatpush1.bf16.xpose.msra.mxu0 0
    %952 = vmatprep.subr.bf16.mxu0 0
    %953 = vmatpush1.bf16.xpose.msra.mxu0 0
    %954 = vmatprep.subr.bf16.mxu0 0
    %955 = vmatpush1.bf16.xpose.msra.mxu0 0
    %956 = vmatprep.subr.bf16.mxu0 0
    %957 = vmatpush1.bf16.xpose.msra.mxu0 0
    %958 = vmatprep.subr.bf16.mxu0 0
    %959 = vmatpush1.bf16.xpose.msra.mxu0 0
    %960 = vmatprep.subr.bf16.mxu0 0
    %961 = vmatpush1.bf16.xpose.msra.mxu0 0
    %962 = vmatprep.subr.bf16.mxu0 0
    %963 = vmatpush1.bf16.xpose.msra.mxu0 %v610
    %964 = vmatprep.subr.bf16.mxu0 0
    %965 = vmatpush2.bf16.xpose.msra.mxu0 0
    %966 = vmatprep.subr.bf16.mxu0 0
    %967 = vmatpush2.bf16.xpose.msra.mxu0 0
    %968 = vmatprep.subr.bf16.mxu0 0
    %969 = vmatpush2.bf16.xpose.msra.mxu0 0
    %970 = vmatprep.subr.bf16.mxu0 0
    %971 = vmatpush2.bf16.xpose.msra.mxu0 0
    %972 = vmatprep.subr.bf16.mxu0 0
    %973 = vmatpush2.bf16.xpose.msra.mxu0 0
    %974 = vmatprep.subr.bf16.mxu0 0
    %975 = vmatpush2.bf16.xpose.msra.mxu0 0
    %976 = vmatprep.subr.bf16.mxu0 0
    %977 = vmatpush2.bf16.xpose.msra.mxu0 0
    %978 = vmatprep.subr.bf16.mxu0 0
    %979 = vmatpush2.bf16.xpose.msra.mxu0 0
    %980 = vmatprep.mubr.bf16.mxu0 0
    %981 = vmatmul.mubr.bf16.gmra.mxu0 %v946
    %v982 = vpop.f32.mrf.mxu0
    %v983 = vadd.f32 %v353, %v982
    %v984 = vpop.f32.mrf.mxu0
    %v985 = vpop.f32.mrf.mxu0
    %v986 = vpop.f32.mrf.mxu0
    %987 = vdwg.mxu0
    %v988 = vsel %vm652, %v983, -inf
    %989 = vmax.xlane.f32.xlu0 %v988
    %v990 = vpop.xlane.xlu0 %989
    %v991 = vsub.f32 %v983, %v990
    %v992 = vmul.f32 %v991, 1.442695
    %v993 = vpow.pop %v992
    %v994 = vsel %vm652, %v993, 0.0
    %995 = vadd.xlane.f32.xlu0 %v994
    %v996 = vpop.xlane.xlu0 %995
    %v997 = vrcp.pop %v996
    %v998 = vmul.f32 %v993, %v997
    %v999 = vmul.f32 %v592, %v941
    %v1000 = vpack.c.bf16 %v998, %v998
    %v1001 = vpack.c.bf16 %v999, %v999
    %v1003 = vsel %vm652, %v1000, 0
    %v1006 = vsel %vm735, %v1001, 0
    %1008 = vmatprep.subr.bf16.mxu0 0
    %1009 = vmatpush1.bf16.msra.mxu0 0
    %1010 = vmatprep.subr.bf16.mxu0 0
    %1011 = vmatpush1.bf16.msra.mxu0 0
    %1012 = vmatprep.subr.bf16.mxu0 0
    %1013 = vmatpush1.bf16.msra.mxu0 0
    %1014 = vmatprep.subr.bf16.mxu0 0
    %1015 = vmatpush1.bf16.msra.mxu0 0
    %1016 = vmatprep.subr.bf16.mxu0 0
    %1017 = vmatpush1.bf16.msra.mxu0 0
    %1018 = vmatprep.subr.bf16.mxu0 0
    %1019 = vmatpush1.bf16.msra.mxu0 0
    %1020 = vmatprep.subr.bf16.mxu0 0
    %1021 = vmatpush1.bf16.msra.mxu0 0
    %1022 = vmatprep.subr.bf16.mxu0 0
    %1023 = vmatpush1.bf16.msra.mxu0 %v1006
    %1024 = vmatprep.subr.bf16.mxu0 0
    %1025 = vmatpush2.bf16.msra.mxu0 0
    %1026 = vmatprep.subr.bf16.mxu0 0
    %1027 = vmatpush2.bf16.msra.mxu0 0
    %1028 = vmatprep.subr.bf16.mxu0 0
    %1029 = vmatpush2.bf16.msra.mxu0 0
    %1030 = vmatprep.subr.bf16.mxu0 0
    %1031 = vmatpush2.bf16.msra.mxu0 0
    %1032 = vmatprep.subr.bf16.mxu0 0
    %1033 = vmatpush2.bf16.msra.mxu0 0
    %1034 = vmatprep.subr.bf16.mxu0 0
    %1035 = vmatpush2.bf16.msra.mxu0 0
    %1036 = vmatprep.subr.bf16.mxu0 0
    %1037 = vmatpush2.bf16.msra.mxu0 0
    %1038 = vmatprep.subr.bf16.mxu0 0
    %1039 = vmatpush2.bf16.msra.mxu0 0
    %1040 = vmatprep.mubr.bf16.mxu0 0
    %1041 = vmatmul.mubr.bf16.gmra.mxu0 %v1003
    %v1042 = vpop.f32.mrf.mxu0
    %v1043 = vadd.f32 0.0, %v1042
    %v1044 = vpop.f32.mrf.mxu0
    %v1045 = vpop.f32.mrf.mxu0
    %v1046 = vpop.f32.mrf.mxu0
    %1047 = vdwg.mxu0
    %v1048 = vadd.f32 %v936, %v1043
    %s1049 = scalar_lea.vmem %s12, 72
    %v1050 = vld [vmem:[%s1049] sm:$0xf]
    %v1051 = vld [vmem:[%s1049 + $0x4] sm:$0xf]
    %v1052 = vld [vmem:[%s1049 + $0x8] sm:$0xf]
    %v1053 = vld [vmem:[%s1049 + $0xc] sm:$0xf]
    %v1054 = vld [vmem:[%s1049 + $0x10] sm:$0xf]
    %v1055 = vld [vmem:[%s1049 + $0x14] sm:$0xf]
    %v1056 = vpack.c.bf16 %v1048, %v1048
    %s1057 = scalar_lea.vmem [#allocation6], 3
    %v1058 = vld [vmem:[%s1057] sm:$0x1]
    %v1060 = vlaneseq
    %v1061 = vshrl.u32 %v1060, 7
    %v1062 = vsub.s32 0, %v1061
    %v1063 = vrot.slane %v1058, %v1062
    %v1071 = vunpack.c.l.b16 %v1050
    %v1072 = vunpack.c.l.b16 %v1051
    %v1073 = vunpack.c.l.b16 %v1052
    %v1074 = vunpack.c.l.b16 %v1053
    %v1075 = vunpack.c.l.b16 %v1054
    %v1076 = vunpack.c.l.b16 %v1055
    %v1077 = vpack.c.b16 %v1072, %v1071
    %v1078 = vpack.c.b16 %v1074, %v1073
    %v1079 = vpack.c.b16 %v1076, %v1075
    %v1081 = vsel %vm385, %v1056, 0
    %v1084 = vsel %vm385, %v1077, 0
    %v1087 = vsel %vm385, %v1078, 0
    %v1090 = vsel %vm385, %v1079, 0
    %1092 = vmatprep.subr.bf16.mxu0 0
    %1093 = vmatpush1.bf16.xpose.msra.mxu0 0
    %1094 = vmatprep.subr.bf16.mxu0 0
    %1095 = vmatpush1.bf16.xpose.msra.mxu0 0
    %1096 = vmatprep.subr.bf16.mxu0 0
    %1097 = vmatpush1.bf16.xpose.msra.mxu0 0
    %1098 = vmatprep.subr.bf16.mxu0 0
    %1099 = vmatpush1.bf16.xpose.msra.mxu0 0
    %1100 = vmatprep.subr.bf16.mxu0 0
    %1101 = vmatpush1.bf16.xpose.msra.mxu0 0
    %1102 = vmatprep.subr.bf16.mxu0 0
    %1103 = vmatpush1.bf16.xpose.msra.mxu0 %v1090
    %1104 = vmatprep.subr.bf16.mxu0 0
    %1105 = vmatpush1.bf16.xpose.msra.mxu0 %v1087
    %1106 = vmatprep.subr.bf16.mxu0 0
    %1107 = vmatpush1.bf16.xpose.msra.mxu0 %v1084
    %1108 = vmatprep.subr.bf16.mxu0 0
    %1109 = vmatpush2.bf16.xpose.msra.mxu0 0
    %1110 = vmatprep.subr.bf16.mxu0 0
    %1111 = vmatpush2.bf16.xpose.msra.mxu0 0
    %1112 = vmatprep.subr.bf16.mxu0 0
    %1113 = vmatpush2.bf16.xpose.msra.mxu0 0
    %1114 = vmatprep.subr.bf16.mxu0 0
    %1115 = vmatpush2.bf16.xpose.msra.mxu0 0
    %1116 = vmatprep.subr.bf16.mxu0 0
    %1117 = vmatpush2.bf16.xpose.msra.mxu0 0
    %1118 = vmatprep.subr.bf16.mxu0 0
    %1119 = vmatpush2.bf16.xpose.msra.mxu0 0
    %1120 = vmatprep.subr.bf16.mxu0 0
    %1121 = vmatpush2.bf16.xpose.msra.mxu0 0
    %1122 = vmatprep.subr.bf16.mxu0 0
    %1123 = vmatpush2.bf16.xpose.msra.mxu0 0
    %1124 = vmatprep.mubr.bf16.mxu0 0
    %1125 = vmatmul.mubr.bf16.gmra.mxu0 %v1081
    %v1126 = vpop.f32.mrf.mxu0
    %v1127 = vadd.f32 %v1063, %v1126
    %v1128 = vpop.f32.mrf.mxu0
    %v1129 = vpop.f32.mrf.mxu0
    %v1130 = vpop.f32.mrf.mxu0
    %1131 = vdwg.mxu0
    %v1132 = vadd.f32 %v259, %v1127
    %v1133 = vsel %vm385, %v1132, 0.0
    %1134 = vadd.xlane.f32.xlu0 %v1133
    %v1135 = vpop.xlane.xlu0 %1134
    %v1136 = vrcp.pop 48.0
    %v1137 = vmul.f32 %v1135, %v1136
    %v1138 = vsub.f32 %v1132, %v1137
    %v1139 = vmul.f32 %v1138, %v1138
    %v1140 = vsel %vm385, %v1139, 0.0
    %1141 = vadd.xlane.f32.xlu0 %v1140
    %v1142 = vpop.xlane.xlu0 %1141
    %v1143 = vmul.f32 %v1142, %v1136
    %v1144 = vadd.f32 %v1143, 1e-05
    %v1145 = vrsqrt.pop %v1144
    %v1146 = vmul.f32 %v1138, %v1145
    %v1147 = vld [vmem:[%s18] sm:$0x1]
    %v1149 = vlaneseq
    %v1150 = vshrl.u32 %v1149, 7
    %v1151 = vsub.s32 0, %v1150
    %v1152 = vrot.slane %v1147, %v1151
    %v1154 = vmul.f32 %v1146, %v1152
    %v1155 = vld [vmem:[#allocation12] sm:$0x1]
    %v1157 = vlaneseq
    %v1158 = vshrl.u32 %v1157, 7
    %v1159 = vsub.s32 0, %v1158
    %v1160 = vrot.slane %v1155, %v1159
    %v1162 = vadd.f32 %v1154, %v1160
    %v1163 = vld [vmem:[%s14] sm:$0xf]
    %v1164 = vld [vmem:[%s14 + $0x4] sm:$0xf]
    %v1165 = vld [vmem:[%s14 + $0x8] sm:$0xf]
    %v1166 = vld [vmem:[%s14 + $0xc] sm:$0xf]
    %v1167 = vld [vmem:[%s14 + $0x10] sm:$0xf]
    %v1168 = vld [vmem:[%s14 + $0x14] sm:$0xf]
    %v1169 = vld [vmem:[%s14 + $0x18] sm:$0xf]
    %v1170 = vld [vmem:[%s14 + $0x1c] sm:$0xf]
    %v1171 = vpack.c.bf16 %v1162, %v1162
    %v1172 = vld [vmem:[#allocation7] sm:$0x1]
    %v1174 = vlaneseq
    %v1175 = vshrl.u32 %v1174, 7
    %v1176 = vsub.s32 0, %v1175
    %v1177 = vrot.slane %v1172, %v1176
    %v1187 = vunpack.c.l.b16 %v1163
    %v1188 = vunpack.c.l.b16 %v1164
    %v1189 = vunpack.c.l.b16 %v1165
    %v1190 = vunpack.c.l.b16 %v1166
    %v1191 = vunpack.c.l.b16 %v1167
    %v1192 = vunpack.c.l.b16 %v1168
    %v1193 = vunpack.c.l.b16 %v1169
    %v1194 = vunpack.c.l.b16 %v1170
    %v1195 = vpack.c.b16 %v1188, %v1187
    %v1196 = vpack.c.b16 %v1190, %v1189
    %v1197 = vpack.c.b16 %v1192, %v1191
    %v1198 = vpack.c.b16 %v1194, %v1193
    %v1200 = vsel %vm385, %v1171, 0
    %v1203 = vsel %vm385, %v1195, 0
    %v1206 = vsel %vm385, %v1196, 0
    %v1209 = vsel %vm385, %v1197, 0
    %v1212 = vsel %vm385, %v1198, 0
    %1214 = vmatprep.subr.bf16.mxu0 0
    %1215 = vmatpush1.bf16.xpose.msra.mxu0 0
    %1216 = vmatprep.subr.bf16.mxu0 0
    %1217 = vmatpush1.bf16.xpose.msra.mxu0 0
    %1218 = vmatprep.subr.bf16.mxu0 0
    %1219 = vmatpush1.bf16.xpose.msra.mxu0 0
    %1220 = vmatprep.subr.bf16.mxu0 0
    %1221 = vmatpush1.bf16.xpose.msra.mxu0 0
    %1222 = vmatprep.subr.bf16.mxu0 0
    %1223 = vmatpush1.bf16.xpose.msra.mxu0 %v1212
    %1224 = vmatprep.subr.bf16.mxu0 0
    %1225 = vmatpush1.bf16.xpose.msra.mxu0 %v1209
    %1226 = vmatprep.subr.bf16.mxu0 0
    %1227 = vmatpush1.bf16.xpose.msra.mxu0 %v1206
    %1228 = vmatprep.subr.bf16.mxu0 0
    %1229 = vmatpush1.bf16.xpose.msra.mxu0 %v1203
    %1230 = vmatprep.subr.bf16.mxu0 0
    %1231 = vmatpush2.bf16.xpose.msra.mxu0 0
    %1232 = vmatprep.subr.bf16.mxu0 0
    %1233 = vmatpush2.bf16.xpose.msra.mxu0 0
    %1234 = vmatprep.subr.bf16.mxu0 0
    %1235 = vmatpush2.bf16.xpose.msra.mxu0 0
    %1236 = vmatprep.subr.bf16.mxu0 0
    %1237 = vmatpush2.bf16.xpose.msra.mxu0 0
    %1238 = vmatprep.subr.bf16.mxu0 0
    %1239 = vmatpush2.bf16.xpose.msra.mxu0 0
    %1240 = vmatprep.subr.bf16.mxu0 0
    %1241 = vmatpush2.bf16.xpose.msra.mxu0 0
    %1242 = vmatprep.subr.bf16.mxu0 0
    %1243 = vmatpush2.bf16.xpose.msra.mxu0 0
    %1244 = vmatprep.subr.bf16.mxu0 0
    %1245 = vmatpush2.bf16.xpose.msra.mxu0 0
    %1246 = vmatprep.mubr.bf16.mxu0 0
    %1247 = vmatmul.mubr.bf16.gmra.mxu0 %v1200
    %v1248 = vpop.f32.mrf.mxu0
    %v1249 = vadd.f32 %v1177, %v1248
    %v1250 = vpop.f32.mrf.mxu0
    %v1251 = vpop.f32.mrf.mxu0
    %v1252 = vpop.f32.mrf.mxu0
    %1253 = vdwg.mxu0
    %v1254 = vmax.f32 %v1249, 0.0
    %v1255 = vld [vmem:[#allocation9] sm:$0xf]
    %v1256 = vld [vmem:[#allocation9 + $0x4] sm:$0xf]
    %v1257 = vld [vmem:[#allocation9 + $0x8] sm:$0xf]
    %v1258 = vld [vmem:[#allocation9 + $0xc] sm:$0xf]
    %v1259 = vld [vmem:[#allocation9 + $0x10] sm:$0xf]
    %v1260 = vld [vmem:[#allocation9 + $0x14] sm:$0xf]
    %v1261 = vpack.c.bf16 %v1254, %v1254
    %v1262 = vld [vmem:[#allocation10] sm:$0x1]
    %v1264 = vlaneseq
    %v1265 = vshrl.u32 %v1264, 7
    %v1266 = vsub.s32 0, %v1265
    %v1267 = vrot.slane %v1262, %v1266
    %v1275 = vunpack.c.l.b16 %v1255
    %v1276 = vunpack.c.l.b16 %v1256
    %v1277 = vunpack.c.l.b16 %v1257
    %v1278 = vunpack.c.l.b16 %v1258
    %v1279 = vunpack.c.l.b16 %v1259
    %v1280 = vunpack.c.l.b16 %v1260
    %v1281 = vpack.c.b16 %v1276, %v1275
    %v1282 = vpack.c.b16 %v1278, %v1277
    %v1283 = vpack.c.b16 %v1280, %v1279
    %vm1284 = vcmask 523264
    %v1286 = vsel %vm1284, %v1261, 0
    %v1289 = vsel %vm1284, %v1281, 0
    %v1292 = vsel %vm1284, %v1282, 0
    %v1295 = vsel %vm1284, %v1283, 0
    %1297 = vmatprep.subr.bf16.mxu0 0
    %1298 = vmatpush1.bf16.xpose.msra.mxu0 0
    %1299 = vmatprep.subr.bf16.mxu0 0
    %1300 = vmatpush1.bf16.xpose.msra.mxu0 0
    %1301 = vmatprep.subr.bf16.mxu0 0
    %1302 = vmatpush1.bf16.xpose.msra.mxu0 0
    %1303 = vmatprep.subr.bf16.mxu0 0
    %1304 = vmatpush1.bf16.xpose.msra.mxu0 0
    %1305 = vmatprep.subr.bf16.mxu0 0
    %1306 = vmatpush1.bf16.xpose.msra.mxu0 0
    %1307 = vmatprep.subr.bf16.mxu0 0
    %1308 = vmatpush1.bf16.xpose.msra.mxu0 %v1295
    %1309 = vmatprep.subr.bf16.mxu0 0
    %1310 = vmatpush1.bf16.xpose.msra.mxu0 %v1292
    %1311 = vmatprep.subr.bf16.mxu0 0
    %1312 = vmatpush1.bf16.xpose.msra.mxu0 %v1289
    %1313 = vmatprep.subr.bf16.mxu0 0
    %1314 = vmatpush2.bf16.xpose.msra.mxu0 0
    %1315 = vmatprep.subr.bf16.mxu0 0
    %1316 = vmatpush2.bf16.xpose.msra.mxu0 0
    %1317 = vmatprep.subr.bf16.mxu0 0
    %1318 = vmatpush2.bf16.xpose.msra.mxu0 0
    %1319 = vmatprep.subr.bf16.mxu0 0
    %1320 = vmatpush2.bf16.xpose.msra.mxu0 0
    %1321 = vmatprep.subr.bf16.mxu0 0
    %1322 = vmatpush2.bf16.xpose.msra.mxu0 0
    %1323 = vmatprep.subr.bf16.mxu0 0
    %1324 = vmatpush2.bf16.xpose.msra.mxu0 0
    %1325 = vmatprep.subr.bf16.mxu0 0
    %1326 = vmatpush2.bf16.xpose.msra.mxu0 0
    %1327 = vmatprep.subr.bf16.mxu0 0
    %1328 = vmatpush2.bf16.xpose.msra.mxu0 0
    %1329 = vmatprep.mubr.bf16.mxu0 0
    %1330 = vmatmul.mubr.bf16.gmra.mxu0 %v1286
    %v1331 = vpop.f32.mrf.mxu0
    %v1332 = vadd.f32 %v1267, %v1331
    %v1333 = vpop.f32.mrf.mxu0
    %v1334 = vpop.f32.mrf.mxu0
    %v1335 = vpop.f32.mrf.mxu0
    %1336 = vdwg.mxu0
    %v1337 = vadd.f32 %v1162, %v1332
    %v1338 = vsel %vm385, %v1337, 0.0
    %1339 = vadd.xlane.f32.xlu0 %v1338
    %v1340 = vpop.xlane.xlu0 %1339
    %v1341 = vmul.f32 %v1340, %v1136
    %v1342 = vsub.f32 %v1337, %v1341
    %v1343 = vmul.f32 %v1342, %v1342
    %v1344 = vsel %vm385, %v1343, 0.0
    %1345 = vadd.xlane.f32.xlu0 %v1344
    %v1346 = vpop.xlane.xlu0 %1345
    %v1347 = vmul.f32 %v1346, %v1136
    %v1348 = vadd.f32 %v1347, 1e-05
    %v1349 = vrsqrt.pop %v1348
    %v1350 = vmul.f32 %v1342, %v1349
    %s1351 = scalar_lea.vmem %s18, 1
    %v1352 = vld [vmem:[%s1351] sm:$0x1]
    %v1354 = vlaneseq
    %v1355 = vshrl.u32 %v1354, 7
    %v1356 = vsub.s32 0, %v1355
    %v1357 = vrot.slane %v1352, %v1356
    %v1359 = vmul.f32 %v1350, %v1357
    %s1360 = scalar_lea.vmem [#allocation12], 1
    %v1361 = vld [vmem:[%s1360] sm:$0x1]
    %v1363 = vlaneseq
    %v1364 = vshrl.u32 %v1363, 7
    %v1365 = vsub.s32 0, %v1364
    %v1366 = vrot.slane %v1361, %v1365
    %v1368 = vadd.f32 %v1359, %v1366
    %s1369 = scalar_lea.vmem %s12, 96
    %v1370 = vld [vmem:[%s1369] sm:$0xf]
    %v1371 = vld [vmem:[%s1369 + $0x4] sm:$0xf]
    %v1372 = vld [vmem:[%s1369 + $0x8] sm:$0xf]
    %v1373 = vld [vmem:[%s1369 + $0xc] sm:$0xf]
    %v1374 = vld [vmem:[%s1369 + $0x10] sm:$0xf]
    %v1375 = vld [vmem:[%s1369 + $0x14] sm:$0xf]
    %v1376 = vpack.c.bf16 %v1368, %v1368
    %s1377 = scalar_lea.vmem [#allocation6], 4
    %v1378 = vld [vmem:[%s1377] sm:$0x1]
    %v1380 = vlaneseq
    %v1381 = vshrl.u32 %v1380, 7
    %v1382 = vsub.s32 0, %v1381
    %v1383 = vrot.slane %v1378, %v1382
    %v1391 = vunpack.c.l.b16 %v1370
    %v1392 = vunpack.c.l.b16 %v1371
    %v1393 = vunpack.c.l.b16 %v1372
    %v1394 = vunpack.c.l.b16 %v1373
    %v1395 = vunpack.c.l.b16 %v1374
    %v1396 = vunpack.c.l.b16 %v1375
    %v1397 = vpack.c.b16 %v1392, %v1391
    %v1398 = vpack.c.b16 %v1394, %v1393
    %v1399 = vpack.c.b16 %v1396, %v1395
    %v1401 = vsel %vm385, %v1376, 0
    %v1404 = vsel %vm385, %v1397, 0
    %v1407 = vsel %vm385, %v1398, 0
    %v1410 = vsel %vm385, %v1399, 0
    %1412 = vmatprep.subr.bf16.mxu0 0
    %1413 = vmatpush1.bf16.xpose.msra.mxu0 0
    %1414 = vmatprep.subr.bf16.mxu0 0
    %1415 = vmatpush1.bf16.xpose.msra.mxu0 0
    %1416 = vmatprep.subr.bf16.mxu0 0
    %1417 = vmatpush1.bf16.xpose.msra.mxu0 0
    %1418 = vmatprep.subr.bf16.mxu0 0
    %1419 = vmatpush1.bf16.xpose.msra.mxu0 0
    %1420 = vmatprep.subr.bf16.mxu0 0
    %1421 = vmatpush1.bf16.xpose.msra.mxu0 0
    %1422 = vmatprep.subr.bf16.mxu0 0
    %1423 = vmatpush1.bf16.xpose.msra.mxu0 %v1410
    %1424 = vmatprep.subr.bf16.mxu0 0
    %1425 = vmatpush1.bf16.xpose.msra.mxu0 %v1407
    %1426 = vmatprep.subr.bf16.mxu0 0
    %1427 = vmatpush1.bf16.xpose.msra.mxu0 %v1404
    %1428 = vmatprep.subr.bf16.mxu0 0
    %1429 = vmatpush2.bf16.xpose.msra.mxu0 0
    %1430 = vmatprep.subr.bf16.mxu0 0
    %1431 = vmatpush2.bf16.xpose.msra.mxu0 0
    %1432 = vmatprep.subr.bf16.mxu0 0
    %1433 = vmatpush2.bf16.xpose.msra.mxu0 0
    %1434 = vmatprep.subr.bf16.mxu0 0
    %1435 = vmatpush2.bf16.xpose.msra.mxu0 0
    %1436 = vmatprep.subr.bf16.mxu0 0
    %1437 = vmatpush2.bf16.xpose.msra.mxu0 0
    %1438 = vmatprep.subr.bf16.mxu0 0
    %1439 = vmatpush2.bf16.xpose.msra.mxu0 0
    %1440 = vmatprep.subr.bf16.mxu0 0
    %1441 = vmatpush2.bf16.xpose.msra.mxu0 0
    %1442 = vmatprep.subr.bf16.mxu0 0
    %1443 = vmatpush2.bf16.xpose.msra.mxu0 0
    %1444 = vmatprep.mubr.bf16.mxu0 0
    %1445 = vmatmul.mubr.bf16.gmra.mxu0 %v1401
    %v1446 = vpop.f32.mrf.mxu0
    %v1447 = vadd.f32 %v1383, %v1446
    %v1448 = vpop.f32.mrf.mxu0
    %v1449 = vpop.f32.mrf.mxu0
    %v1450 = vpop.f32.mrf.mxu0
    %1451 = vdwg.mxu0
    %v1452 = vmul.f32 %v1447, 0.28867513
    %s1453 = scalar_lea.vmem %s12, 120
    %v1454 = vld [vmem:[%s1453] sm:$0xf]
    %v1455 = vld [vmem:[%s1453 + $0x4] sm:$0xf]
    %v1456 = vld [vmem:[%s1453 + $0x8] sm:$0xf]
    %v1457 = vld [vmem:[%s1453 + $0xc] sm:$0xf]
    %v1458 = vld [vmem:[%s1453 + $0x10] sm:$0xf]
    %v1459 = vld [vmem:[%s1453 + $0x14] sm:$0xf]
    %s1460 = scalar_lea.vmem [#allocation6], 5
    %v1461 = vld [vmem:[%s1460] sm:$0x1]
    %v1463 = vlaneseq
    %v1464 = vshrl.u32 %v1463, 7
    %v1465 = vsub.s32 0, %v1464
    %v1466 = vrot.slane %v1461, %v1465
    %v1474 = vunpack.c.l.b16 %v1454
    %v1475 = vunpack.c.l.b16 %v1455
    %v1476 = vunpack.c.l.b16 %v1456
    %v1477 = vunpack.c.l.b16 %v1457
    %v1478 = vunpack.c.l.b16 %v1458
    %v1479 = vunpack.c.l.b16 %v1459
    %v1480 = vpack.c.b16 %v1475, %v1474
    %v1481 = vpack.c.b16 %v1477, %v1476
    %v1482 = vpack.c.b16 %v1479, %v1478
    %v1484 = vsel %vm385, %v1480, 0
    %v1487 = vsel %vm385, %v1481, 0
    %v1490 = vsel %vm385, %v1482, 0
    %1492 = vmatprep.subr.bf16.mxu0 0
    %1493 = vmatpush1.bf16.xpose.msra.mxu0 0
    %1494 = vmatprep.subr.bf16.mxu0 0
    %1495 = vmatpush1.bf16.xpose.msra.mxu0 0
    %1496 = vmatprep.subr.bf16.mxu0 0
    %1497 = vmatpush1.bf16.xpose.msra.mxu0 0
    %1498 = vmatprep.subr.bf16.mxu0 0
    %1499 = vmatpush1.bf16.xpose.msra.mxu0 0
    %1500 = vmatprep.subr.bf16.mxu0 0
    %1501 = vmatpush1.bf16.xpose.msra.mxu0 0
    %1502 = vmatprep.subr.bf16.mxu0 0
    %1503 = vmatpush1.bf16.xpose.msra.mxu0 %v1490
    %1504 = vmatprep.subr.bf16.mxu0 0
    %1505 = vmatpush1.bf16.xpose.msra.mxu0 %v1487
    %1506 = vmatprep.subr.bf16.mxu0 0
    %1507 = vmatpush1.bf16.xpose.msra.mxu0 %v1484
    %1508 = vmatprep.subr.bf16.mxu0 0
    %1509 = vmatpush2.bf16.xpose.msra.mxu0 0
    %1510 = vmatprep.subr.bf16.mxu0 0
    %1511 = vmatpush2.bf16.xpose.msra.mxu0 0
    %1512 = vmatprep.subr.bf16.mxu0 0
    %1513 = vmatpush2.bf16.xpose.msra.mxu0 0
    %1514 = vmatprep.subr.bf16.mxu0 0
    %1515 = vmatpush2.bf16.xpose.msra.mxu0 0
    %1516 = vmatprep.subr.bf16.mxu0 0
    %1517 = vmatpush2.bf16.xpose.msra.mxu0 0
    %1518 = vmatprep.subr.bf16.mxu0 0
    %1519 = vmatpush2.bf16.xpose.msra.mxu0 0
    %1520 = vmatprep.subr.bf16.mxu0 0
    %1521 = vmatpush2.bf16.xpose.msra.mxu0 0
    %1522 = vmatprep.subr.bf16.mxu0 0
    %1523 = vmatpush2.bf16.xpose.msra.mxu0 0
    %1524 = vmatprep.mubr.bf16.mxu0 0
    %1525 = vmatmul.mubr.bf16.gmra.mxu0 %v1401
    %v1526 = vpop.f32.mrf.mxu0
    %v1527 = vadd.f32 %v1466, %v1526
    %v1528 = vpop.f32.mrf.mxu0
    %v1529 = vpop.f32.mrf.mxu0
    %v1530 = vpop.f32.mrf.mxu0
    %1531 = vdwg.mxu0
    %s1532 = scalar_lea.vmem %s12, 144
    %v1533 = vld [vmem:[%s1532] sm:$0xf]
    %v1534 = vld [vmem:[%s1532 + $0x4] sm:$0xf]
    %v1535 = vld [vmem:[%s1532 + $0x8] sm:$0xf]
    %v1536 = vld [vmem:[%s1532 + $0xc] sm:$0xf]
    %v1537 = vld [vmem:[%s1532 + $0x10] sm:$0xf]
    %v1538 = vld [vmem:[%s1532 + $0x14] sm:$0xf]
    %s1539 = scalar_lea.vmem [#allocation6], 6
    %v1540 = vld [vmem:[%s1539] sm:$0x1]
    %v1542 = vlaneseq
    %v1543 = vshrl.u32 %v1542, 7
    %v1544 = vsub.s32 0, %v1543
    %v1545 = vrot.slane %v1540, %v1544
    %v1553 = vunpack.c.l.b16 %v1533
    %v1554 = vunpack.c.l.b16 %v1534
    %v1555 = vunpack.c.l.b16 %v1535
    %v1556 = vunpack.c.l.b16 %v1536
    %v1557 = vunpack.c.l.b16 %v1537
    %v1558 = vunpack.c.l.b16 %v1538
    %v1559 = vpack.c.b16 %v1554, %v1553
    %v1560 = vpack.c.b16 %v1556, %v1555
    %v1561 = vpack.c.b16 %v1558, %v1557
    %v1563 = vsel %vm385, %v1559, 0
    %v1566 = vsel %vm385, %v1560, 0
    %v1569 = vsel %vm385, %v1561, 0
    %1571 = vmatprep.subr.bf16.mxu0 0
    %1572 = vmatpush1.bf16.xpose.msra.mxu0 0
    %1573 = vmatprep.subr.bf16.mxu0 0
    %1574 = vmatpush1.bf16.xpose.msra.mxu0 0
    %1575 = vmatprep.subr.bf16.mxu0 0
    %1576 = vmatpush1.bf16.xpose.msra.mxu0 0
    %1577 = vmatprep.subr.bf16.mxu0 0
    %1578 = vmatpush1.bf16.xpose.msra.mxu0 0
    %1579 = vmatprep.subr.bf16.mxu0 0
    %1580 = vmatpush1.bf16.xpose.msra.mxu0 0
    %1581 = vmatprep.subr.bf16.mxu0 0
    %1582 = vmatpush1.bf16.xpose.msra.mxu0 %v1569
    %1583 = vmatprep.subr.bf16.mxu0 0
    %1584 = vmatpush1.bf16.xpose.msra.mxu0 %v1566
    %1585 = vmatprep.subr.bf16.mxu0 0
    %1586 = vmatpush1.bf16.xpose.msra.mxu0 %v1563
    %1587 = vmatprep.subr.bf16.mxu0 0
    %1588 = vmatpush2.bf16.xpose.msra.mxu0 0
    %1589 = vmatprep.subr.bf16.mxu0 0
    %1590 = vmatpush2.bf16.xpose.msra.mxu0 0
    %1591 = vmatprep.subr.bf16.mxu0 0
    %1592 = vmatpush2.bf16.xpose.msra.mxu0 0
    %1593 = vmatprep.subr.bf16.mxu0 0
    %1594 = vmatpush2.bf16.xpose.msra.mxu0 0
    %1595 = vmatprep.subr.bf16.mxu0 0
    %1596 = vmatpush2.bf16.xpose.msra.mxu0 0
    %1597 = vmatprep.subr.bf16.mxu0 0
    %1598 = vmatpush2.bf16.xpose.msra.mxu0 0
    %1599 = vmatprep.subr.bf16.mxu0 0
    %1600 = vmatpush2.bf16.xpose.msra.mxu0 0
    %1601 = vmatprep.subr.bf16.mxu0 0
    %1602 = vmatpush2.bf16.xpose.msra.mxu0 0
    %1603 = vmatprep.mubr.bf16.mxu0 0
    %1604 = vmatmul.mubr.bf16.gmra.mxu0 %v1401
    %v1605 = vpop.f32.mrf.mxu0
    %v1606 = vadd.f32 %v1545, %v1605
    %v1607 = vpop.f32.mrf.mxu0
    %v1608 = vpop.f32.mrf.mxu0
    %v1609 = vpop.f32.mrf.mxu0
    %1610 = vdwg.mxu0
    %v1611 = vmul.f32 %v1452, %v601
    %v1612 = vpack.c.bf16 %v1611, %v1611
    %v1613 = vpack.c.bf16 %v1527, %v1527
    %v1615 = vsel %vm385, %v1612, 0
    %v1618 = vsel %vm385, %v1613, 0
    %1620 = vmatprep.subr.bf16.mxu0 0
    %1621 = vmatpush1.bf16.xpose.msra.mxu0 0
    %1622 = vmatprep.subr.bf16.mxu0 0
    %1623 = vmatpush1.bf16.xpose.msra.mxu0 0
    %1624 = vmatprep.subr.bf16.mxu0 0
    %1625 = vmatpush1.bf16.xpose.msra.mxu0 0
    %1626 = vmatprep.subr.bf16.mxu0 0
    %1627 = vmatpush1.bf16.xpose.msra.mxu0 0
    %1628 = vmatprep.subr.bf16.mxu0 0
    %1629 = vmatpush1.bf16.xpose.msra.mxu0 0
    %1630 = vmatprep.subr.bf16.mxu0 0
    %1631 = vmatpush1.bf16.xpose.msra.mxu0 0
    %1632 = vmatprep.subr.bf16.mxu0 0
    %1633 = vmatpush1.bf16.xpose.msra.mxu0 0
    %1634 = vmatprep.subr.bf16.mxu0 0
    %1635 = vmatpush1.bf16.xpose.msra.mxu0 %v1618
    %1636 = vmatprep.subr.bf16.mxu0 0
    %1637 = vmatpush2.bf16.xpose.msra.mxu0 0
    %1638 = vmatprep.subr.bf16.mxu0 0
    %1639 = vmatpush2.bf16.xpose.msra.mxu0 0
    %1640 = vmatprep.subr.bf16.mxu0 0
    %1641 = vmatpush2.bf16.xpose.msra.mxu0 0
    %1642 = vmatprep.subr.bf16.mxu0 0
    %1643 = vmatpush2.bf16.xpose.msra.mxu0 0
    %1644 = vmatprep.subr.bf16.mxu0 0
    %1645 = vmatpush2.bf16.xpose.msra.mxu0 0
    %1646 = vmatprep.subr.bf16.mxu0 0
    %1647 = vmatpush2.bf16.xpose.msra.mxu0 0
    %1648 = vmatprep.subr.bf16.mxu0 0
    %1649 = vmatpush2.bf16.xpose.msra.mxu0 0
    %1650 = vmatprep.subr.bf16.mxu0 0
    %1651 = vmatpush2.bf16.xpose.msra.mxu0 0
    %1652 = vmatprep.mubr.bf16.mxu0 0
    %1653 = vmatmul.mubr.bf16.gmra.mxu0 %v1615
    %v1654 = vpop.f32.mrf.mxu0
    %v1655 = vadd.f32 %v353, %v1654
    %v1656 = vpop.f32.mrf.mxu0
    %v1657 = vpop.f32.mrf.mxu0
    %v1658 = vpop.f32.mrf.mxu0
    %1659 = vdwg.mxu0
    %v1660 = vsel %vm652, %v1655, -inf
    %1661 = vmax.xlane.f32.xlu0 %v1660
    %v1662 = vpop.xlane.xlu0 %1661
    %v1663 = vsub.f32 %v1655, %v1662
    %v1664 = vmul.f32 %v1663, 1.442695
    %v1665 = vpow.pop %v1664
    %v1666 = vsel %vm652, %v1665, 0.0
    %1667 = vadd.xlane.f32.xlu0 %v1666
    %v1668 = vpop.xlane.xlu0 %1667
    %v1669 = vrcp.pop %v1668
    %v1670 = vmul.f32 %v1665, %v1669
    %v1671 = vmul.f32 %v1606, %v601
    %v1672 = vpack.c.bf16 %v1670, %v1670
    %v1673 = vpack.c.bf16 %v1671, %v1671
    %v1674 = vmul.f32 %v1452, %v671
    %v1675 = vpack.c.bf16 %v1674, %v1674
    %v1677 = vsel %vm385, %v1675, 0
    %1679 = vmatprep.subr.bf16.mxu0 0
    %1680 = vmatpush1.bf16.xpose.msra.mxu0 0
    %1681 = vmatprep.subr.bf16.mxu0 0
    %1682 = vmatpush1.bf16.xpose.msra.mxu0 0
    %1683 = vmatprep.subr.bf16.mxu0 0
    %1684 = vmatpush1.bf16.xpose.msra.mxu0 0
    %1685 = vmatprep.subr.bf16.mxu0 0
    %1686 = vmatpush1.bf16.xpose.msra.mxu0 0
    %1687 = vmatprep.subr.bf16.mxu0 0
    %1688 = vmatpush1.bf16.xpose.msra.mxu0 0
    %1689 = vmatprep.subr.bf16.mxu0 0
    %1690 = vmatpush1.bf16.xpose.msra.mxu0 0
    %1691 = vmatprep.subr.bf16.mxu0 0
    %1692 = vmatpush1.bf16.xpose.msra.mxu0 0
    %1693 = vmatprep.subr.bf16.mxu0 0
    %1694 = vmatpush1.bf16.xpose.msra.mxu0 %v1618
    %1695 = vmatprep.subr.bf16.mxu0 0
    %1696 = vmatpush2.bf16.xpose.msra.mxu0 0
    %1697 = vmatprep.subr.bf16.mxu0 0
    %1698 = vmatpush2.bf16.xpose.msra.mxu0 0
    %1699 = vmatprep.subr.bf16.mxu0 0
    %1700 = vmatpush2.bf16.xpose.msra.mxu0 0
    %1701 = vmatprep.subr.bf16.mxu0 0
    %1702 = vmatpush2.bf16.xpose.msra.mxu0 0
    %1703 = vmatprep.subr.bf16.mxu0 0
    %1704 = vmatpush2.bf16.xpose.msra.mxu0 0
    %1705 = vmatprep.subr.bf16.mxu0 0
    %1706 = vmatpush2.bf16.xpose.msra.mxu0 0
    %1707 = vmatprep.subr.bf16.mxu0 0
    %1708 = vmatpush2.bf16.xpose.msra.mxu0 0
    %1709 = vmatprep.subr.bf16.mxu0 0
    %1710 = vmatpush2.bf16.xpose.msra.mxu0 0
    %1711 = vmatprep.mubr.bf16.mxu0 0
    %1712 = vmatmul.mubr.bf16.gmra.mxu0 %v1677
    %v1713 = vpop.f32.mrf.mxu0
    %v1714 = vadd.f32 %v353, %v1713
    %v1715 = vpop.f32.mrf.mxu0
    %v1716 = vpop.f32.mrf.mxu0
    %v1717 = vpop.f32.mrf.mxu0
    %1718 = vdwg.mxu0
    %v1719 = vsel %vm652, %v1714, -inf
    %1720 = vmax.xlane.f32.xlu0 %v1719
    %v1721 = vpop.xlane.xlu0 %1720
    %v1722 = vsub.f32 %v1714, %v1721
    %v1723 = vmul.f32 %v1722, 1.442695
    %v1724 = vpow.pop %v1723
    %v1725 = vsel %vm652, %v1724, 0.0
    %1726 = vadd.xlane.f32.xlu0 %v1725
    %v1727 = vpop.xlane.xlu0 %1726
    %v1728 = vrcp.pop %v1727
    %v1729 = vmul.f32 %v1724, %v1728
    %v1730 = vmul.f32 %v1606, %v671
    %v1731 = vpack.c.bf16 %v1729, %v1729
    %v1732 = vpack.c.bf16 %v1730, %v1730
    %v1734 = vsel %vm652, %v1731, 0
    %v1737 = vsel %vm735, %v1732, 0
    %1739 = vmatprep.subr.bf16.mxu0 0
    %1740 = vmatpush1.bf16.msra.mxu0 0
    %1741 = vmatprep.subr.bf16.mxu0 0
    %1742 = vmatpush1.bf16.msra.mxu0 0
    %1743 = vmatprep.subr.bf16.mxu0 0
    %1744 = vmatpush1.bf16.msra.mxu0 0
    %1745 = vmatprep.subr.bf16.mxu0 0
    %1746 = vmatpush1.bf16.msra.mxu0 0
    %1747 = vmatprep.subr.bf16.mxu0 0
    %1748 = vmatpush1.bf16.msra.mxu0 0
    %1749 = vmatprep.subr.bf16.mxu0 0
    %1750 = vmatpush1.bf16.msra.mxu0 0
    %1751 = vmatprep.subr.bf16.mxu0 0
    %1752 = vmatpush1.bf16.msra.mxu0 0
    %1753 = vmatprep.subr.bf16.mxu0 0
    %1754 = vmatpush1.bf16.msra.mxu0 %v1737
    %1755 = vmatprep.subr.bf16.mxu0 0
    %1756 = vmatpush2.bf16.msra.mxu0 0
    %1757 = vmatprep.subr.bf16.mxu0 0
    %1758 = vmatpush2.bf16.msra.mxu0 0
    %1759 = vmatprep.subr.bf16.mxu0 0
    %1760 = vmatpush2.bf16.msra.mxu0 0
    %1761 = vmatprep.subr.bf16.mxu0 0
    %1762 = vmatpush2.bf16.msra.mxu0 0
    %1763 = vmatprep.subr.bf16.mxu0 0
    %1764 = vmatpush2.bf16.msra.mxu0 0
    %1765 = vmatprep.subr.bf16.mxu0 0
    %1766 = vmatpush2.bf16.msra.mxu0 0
    %1767 = vmatprep.subr.bf16.mxu0 0
    %1768 = vmatpush2.bf16.msra.mxu0 0
    %1769 = vmatprep.subr.bf16.mxu0 0
    %1770 = vmatpush2.bf16.msra.mxu0 0
    %1771 = vmatprep.mubr.bf16.mxu0 0
    %1772 = vmatmul.mubr.bf16.gmra.mxu0 %v1734
    %v1773 = vpop.f32.mrf.mxu0
    %v1774 = vadd.f32 0.0, %v1773
    %v1775 = vpop.f32.mrf.mxu0
    %v1776 = vpop.f32.mrf.mxu0
    %v1777 = vpop.f32.mrf.mxu0
    %1778 = vdwg.mxu0
    %v1780 = vsel %vm652, %v1672, 0
    %v1783 = vsel %vm735, %v1673, 0
    %1785 = vmatprep.subr.bf16.mxu0 0
    %1786 = vmatpush1.bf16.msra.mxu0 0
    %1787 = vmatprep.subr.bf16.mxu0 0
    %1788 = vmatpush1.bf16.msra.mxu0 0
    %1789 = vmatprep.subr.bf16.mxu0 0
    %1790 = vmatpush1.bf16.msra.mxu0 0
    %1791 = vmatprep.subr.bf16.mxu0 0
    %1792 = vmatpush1.bf16.msra.mxu0 0
    %1793 = vmatprep.subr.bf16.mxu0 0
    %1794 = vmatpush1.bf16.msra.mxu0 0
    %1795 = vmatprep.subr.bf16.mxu0 0
    %1796 = vmatpush1.bf16.msra.mxu0 0
    %1797 = vmatprep.subr.bf16.mxu0 0
    %1798 = vmatpush1.bf16.msra.mxu0 0
    %1799 = vmatprep.subr.bf16.mxu0 0
    %1800 = vmatpush1.bf16.msra.mxu0 %v1783
    %1801 = vmatprep.subr.bf16.mxu0 0
    %1802 = vmatpush2.bf16.msra.mxu0 0
    %1803 = vmatprep.subr.bf16.mxu0 0
    %1804 = vmatpush2.bf16.msra.mxu0 0
    %1805 = vmatprep.subr.bf16.mxu0 0
    %1806 = vmatpush2.bf16.msra.mxu0 0
    %1807 = vmatprep.subr.bf16.mxu0 0
    %1808 = vmatpush2.bf16.msra.mxu0 0
    %1809 = vmatprep.subr.bf16.mxu0 0
    %1810 = vmatpush2.bf16.msra.mxu0 0
    %1811 = vmatprep.subr.bf16.mxu0 0
    %1812 = vmatpush2.bf16.msra.mxu0 0
    %1813 = vmatprep.subr.bf16.mxu0 0
    %1814 = vmatpush2.bf16.msra.mxu0 0
    %1815 = vmatprep.subr.bf16.mxu0 0
    %1816 = vmatpush2.bf16.msra.mxu0 0
    %1817 = vmatprep.mubr.bf16.mxu0 0
    %1818 = vmatmul.mubr.bf16.gmra.mxu0 %v1780
    %v1819 = vpop.f32.mrf.mxu0
    %v1820 = vadd.f32 %v1774, %v1819
    %v1821 = vpop.f32.mrf.mxu0
    %v1822 = vpop.f32.mrf.mxu0
    %v1823 = vpop.f32.mrf.mxu0
    %1824 = vdwg.mxu0
    %v1825 = vmul.f32 %v1452, %v829
    %v1826 = vpack.c.bf16 %v1825, %v1825
    %v1828 = vsel %vm385, %v1826, 0
    %1830 = vmatprep.subr.bf16.mxu0 0
    %1831 = vmatpush1.bf16.xpose.msra.mxu0 0
    %1832 = vmatprep.subr.bf16.mxu0 0
    %1833 = vmatpush1.bf16.xpose.msra.mxu0 0
    %1834 = vmatprep.subr.bf16.mxu0 0
    %1835 = vmatpush1.bf16.xpose.msra.mxu0 0
    %1836 = vmatprep.subr.bf16.mxu0 0
    %1837 = vmatpush1.bf16.xpose.msra.mxu0 0
    %1838 = vmatprep.subr.bf16.mxu0 0
    %1839 = vmatpush1.bf16.xpose.msra.mxu0 0
    %1840 = vmatprep.subr.bf16.mxu0 0
    %1841 = vmatpush1.bf16.xpose.msra.mxu0 0
    %1842 = vmatprep.subr.bf16.mxu0 0
    %1843 = vmatpush1.bf16.xpose.msra.mxu0 0
    %1844 = vmatprep.subr.bf16.mxu0 0
    %1845 = vmatpush1.bf16.xpose.msra.mxu0 %v1618
    %1846 = vmatprep.subr.bf16.mxu0 0
    %1847 = vmatpush2.bf16.xpose.msra.mxu0 0
    %1848 = vmatprep.subr.bf16.mxu0 0
    %1849 = vmatpush2.bf16.xpose.msra.mxu0 0
    %1850 = vmatprep.subr.bf16.mxu0 0
    %1851 = vmatpush2.bf16.xpose.msra.mxu0 0
    %1852 = vmatprep.subr.bf16.mxu0 0
    %1853 = vmatpush2.bf16.xpose.msra.mxu0 0
    %1854 = vmatprep.subr.bf16.mxu0 0
    %1855 = vmatpush2.bf16.xpose.msra.mxu0 0
    %1856 = vmatprep.subr.bf16.mxu0 0
    %1857 = vmatpush2.bf16.xpose.msra.mxu0 0
    %1858 = vmatprep.subr.bf16.mxu0 0
    %1859 = vmatpush2.bf16.xpose.msra.mxu0 0
    %1860 = vmatprep.subr.bf16.mxu0 0
    %1861 = vmatpush2.bf16.xpose.msra.mxu0 0
    %1862 = vmatprep.mubr.bf16.mxu0 0
    %1863 = vmatmul.mubr.bf16.gmra.mxu0 %v1828
    %v1864 = vpop.f32.mrf.mxu0
    %v1865 = vadd.f32 %v353, %v1864
    %v1866 = vpop.f32.mrf.mxu0
    %v1867 = vpop.f32.mrf.mxu0
    %v1868 = vpop.f32.mrf.mxu0
    %1869 = vdwg.mxu0
    %v1870 = vsel %vm652, %v1865, -inf
    %1871 = vmax.xlane.f32.xlu0 %v1870
    %v1872 = vpop.xlane.xlu0 %1871
    %v1873 = vsub.f32 %v1865, %v1872
    %v1874 = vmul.f32 %v1873, 1.442695
    %v1875 = vpow.pop %v1874
    %v1876 = vsel %vm652, %v1875, 0.0
    %1877 = vadd.xlane.f32.xlu0 %v1876
    %v1878 = vpop.xlane.xlu0 %1877
    %v1879 = vrcp.pop %v1878
    %v1880 = vmul.f32 %v1875, %v1879
    %v1881 = vmul.f32 %v1606, %v829
    %v1882 = vpack.c.bf16 %v1880, %v1880
    %v1883 = vpack.c.bf16 %v1881, %v1881
    %v1885 = vsel %vm652, %v1882, 0
    %v1888 = vsel %vm735, %v1883, 0
    %1890 = vmatprep.subr.bf16.mxu0 0
    %1891 = vmatpush1.bf16.msra.mxu0 0
    %1892 = vmatprep.subr.bf16.mxu0 0
    %1893 = vmatpush1.bf16.msra.mxu0 0
    %1894 = vmatprep.subr.bf16.mxu0 0
    %1895 = vmatpush1.bf16.msra.mxu0 0
    %1896 = vmatprep.subr.bf16.mxu0 0
    %1897 = vmatpush1.bf16.msra.mxu0 0
    %1898 = vmatprep.subr.bf16.mxu0 0
    %1899 = vmatpush1.bf16.msra.mxu0 0
    %1900 = vmatprep.subr.bf16.mxu0 0
    %1901 = vmatpush1.bf16.msra.mxu0 0
    %1902 = vmatprep.subr.bf16.mxu0 0
    %1903 = vmatpush1.bf16.msra.mxu0 0
    %1904 = vmatprep.subr.bf16.mxu0 0
    %1905 = vmatpush1.bf16.msra.mxu0 %v1888
    %1906 = vmatprep.subr.bf16.mxu0 0
    %1907 = vmatpush2.bf16.msra.mxu0 0
    %1908 = vmatprep.subr.bf16.mxu0 0
    %1909 = vmatpush2.bf16.msra.mxu0 0
    %1910 = vmatprep.subr.bf16.mxu0 0
    %1911 = vmatpush2.bf16.msra.mxu0 0
    %1912 = vmatprep.subr.bf16.mxu0 0
    %1913 = vmatpush2.bf16.msra.mxu0 0
    %1914 = vmatprep.subr.bf16.mxu0 0
    %1915 = vmatpush2.bf16.msra.mxu0 0
    %1916 = vmatprep.subr.bf16.mxu0 0
    %1917 = vmatpush2.bf16.msra.mxu0 0
    %1918 = vmatprep.subr.bf16.mxu0 0
    %1919 = vmatpush2.bf16.msra.mxu0 0
    %1920 = vmatprep.subr.bf16.mxu0 0
    %1921 = vmatpush2.bf16.msra.mxu0 0
    %1922 = vmatprep.mubr.bf16.mxu0 0
    %1923 = vmatmul.mubr.bf16.gmra.mxu0 %v1885
    %v1924 = vpop.f32.mrf.mxu0
    %v1925 = vadd.f32 0.0, %v1924
    %v1926 = vpop.f32.mrf.mxu0
    %v1927 = vpop.f32.mrf.mxu0
    %v1928 = vpop.f32.mrf.mxu0
    %1929 = vdwg.mxu0
    %v1930 = vadd.f32 %v1820, %v1925
    %v1931 = vmul.f32 %v1452, %v941
    %v1932 = vpack.c.bf16 %v1931, %v1931
    %v1934 = vsel %vm385, %v1932, 0
    %1936 = vmatprep.subr.bf16.mxu0 0
    %1937 = vmatpush1.bf16.xpose.msra.mxu0 0
    %1938 = vmatprep.subr.bf16.mxu0 0
    %1939 = vmatpush1.bf16.xpose.msra.mxu0 0
    %1940 = vmatprep.subr.bf16.mxu0 0
    %1941 = vmatpush1.bf16.xpose.msra.mxu0 0
    %1942 = vmatprep.subr.bf16.mxu0 0
    %1943 = vmatpush1.bf16.xpose.msra.mxu0 0
    %1944 = vmatprep.subr.bf16.mxu0 0
    %1945 = vmatpush1.bf16.xpose.msra.mxu0 0
    %1946 = vmatprep.subr.bf16.mxu0 0
    %1947 = vmatpush1.bf16.xpose.msra.mxu0 0
    %1948 = vmatprep.subr.bf16.mxu0 0
    %1949 = vmatpush1.bf16.xpose.msra.mxu0 0
    %1950 = vmatprep.subr.bf16.mxu0 0
    %1951 = vmatpush1.bf16.xpose.msra.mxu0 %v1618
    %1952 = vmatprep.subr.bf16.mxu0 0
    %1953 = vmatpush2.bf16.xpose.msra.mxu0 0
    %1954 = vmatprep.subr.bf16.mxu0 0
    %1955 = vmatpush2.bf16.xpose.msra.mxu0 0
    %1956 = vmatprep.subr.bf16.mxu0 0
    %1957 = vmatpush2.bf16.xpose.msra.mxu0 0
    %1958 = vmatprep.subr.bf16.mxu0 0
    %1959 = vmatpush2.bf16.xpose.msra.mxu0 0
    %1960 = vmatprep.subr.bf16.mxu0 0
    %1961 = vmatpush2.bf16.xpose.msra.mxu0 0
    %1962 = vmatprep.subr.bf16.mxu0 0
    %1963 = vmatpush2.bf16.xpose.msra.mxu0 0
    %1964 = vmatprep.subr.bf16.mxu0 0
    %1965 = vmatpush2.bf16.xpose.msra.mxu0 0
    %1966 = vmatprep.subr.bf16.mxu0 0
    %1967 = vmatpush2.bf16.xpose.msra.mxu0 0
    %1968 = vmatprep.mubr.bf16.mxu0 0
    %1969 = vmatmul.mubr.bf16.gmra.mxu0 %v1934
    %v1970 = vpop.f32.mrf.mxu0
    %v1971 = vadd.f32 %v353, %v1970
    %v1972 = vpop.f32.mrf.mxu0
    %v1973 = vpop.f32.mrf.mxu0
    %v1974 = vpop.f32.mrf.mxu0
    %1975 = vdwg.mxu0
    %v1976 = vsel %vm652, %v1971, -inf
    %1977 = vmax.xlane.f32.xlu0 %v1976
    %v1978 = vpop.xlane.xlu0 %1977
    %v1979 = vsub.f32 %v1971, %v1978
    %v1980 = vmul.f32 %v1979, 1.442695
    %v1981 = vpow.pop %v1980
    %v1982 = vsel %vm652, %v1981, 0.0
    %1983 = vadd.xlane.f32.xlu0 %v1982
    %v1984 = vpop.xlane.xlu0 %1983
    %v1985 = vrcp.pop %v1984
    %v1986 = vmul.f32 %v1981, %v1985
    %v1987 = vmul.f32 %v1606, %v941
    %v1988 = vpack.c.bf16 %v1986, %v1986
    %v1989 = vpack.c.bf16 %v1987, %v1987
    %v1991 = vsel %vm652, %v1988, 0
    %v1994 = vsel %vm735, %v1989, 0
    %1996 = vmatprep.subr.bf16.mxu0 0
    %1997 = vmatpush1.bf16.msra.mxu0 0
    %1998 = vmatprep.subr.bf16.mxu0 0
    %1999 = vmatpush1.bf16.msra.mxu0 0
    %2000 = vmatprep.subr.bf16.mxu0 0
    %2001 = vmatpush1.bf16.msra.mxu0 0
    %2002 = vmatprep.subr.bf16.mxu0 0
    %2003 = vmatpush1.bf16.msra.mxu0 0
    %2004 = vmatprep.subr.bf16.mxu0 0
    %2005 = vmatpush1.bf16.msra.mxu0 0
    %2006 = vmatprep.subr.bf16.mxu0 0
    %2007 = vmatpush1.bf16.msra.mxu0 0
    %2008 = vmatprep.subr.bf16.mxu0 0
    %2009 = vmatpush1.bf16.msra.mxu0 0
    %2010 = vmatprep.subr.bf16.mxu0 0
    %2011 = vmatpush1.bf16.msra.mxu0 %v1994
    %2012 = vmatprep.subr.bf16.mxu0 0
    %2013 = vmatpush2.bf16.msra.mxu0 0
    %2014 = vmatprep.subr.bf16.mxu0 0
    %2015 = vmatpush2.bf16.msra.mxu0 0
    %2016 = vmatprep.subr.bf16.mxu0 0
    %2017 = vmatpush2.bf16.msra.mxu0 0
    %2018 = vmatprep.subr.bf16.mxu0 0
    %2019 = vmatpush2.bf16.msra.mxu0 0
    %2020 = vmatprep.subr.bf16.mxu0 0
    %2021 = vmatpush2.bf16.msra.mxu0 0
    %2022 = vmatprep.subr.bf16.mxu0 0
    %2023 = vmatpush2.bf16.msra.mxu0 0
    %2024 = vmatprep.subr.bf16.mxu0 0
    %2025 = vmatpush2.bf16.msra.mxu0 0
    %2026 = vmatprep.subr.bf16.mxu0 0
    %2027 = vmatpush2.bf16.msra.mxu0 0
    %2028 = vmatprep.mubr.bf16.mxu0 0
    %2029 = vmatmul.mubr.bf16.gmra.mxu0 %v1991
    %v2030 = vpop.f32.mrf.mxu0
    %v2031 = vadd.f32 0.0, %v2030
    %v2032 = vpop.f32.mrf.mxu0
    %v2033 = vpop.f32.mrf.mxu0
    %v2034 = vpop.f32.mrf.mxu0
    %2035 = vdwg.mxu0
    %v2036 = vadd.f32 %v1930, %v2031
    %s2037 = scalar_lea.vmem %s12, 168
    %v2038 = vld [vmem:[%s2037] sm:$0xf]
    %v2039 = vld [vmem:[%s2037 + $0x4] sm:$0xf]
    %v2040 = vld [vmem:[%s2037 + $0x8] sm:$0xf]
    %v2041 = vld [vmem:[%s2037 + $0xc] sm:$0xf]
    %v2042 = vld [vmem:[%s2037 + $0x10] sm:$0xf]
    %v2043 = vld [vmem:[%s2037 + $0x14] sm:$0xf]
    %v2044 = vpack.c.bf16 %v2036, %v2036
    %s2045 = scalar_lea.vmem [#allocation6], 7
    %v2046 = vld [vmem:[%s2045] sm:$0x1]
    %v2048 = vlaneseq
    %v2049 = vshrl.u32 %v2048, 7
    %v2050 = vsub.s32 0, %v2049
    %v2051 = vrot.slane %v2046, %v2050
    %v2059 = vunpack.c.l.b16 %v2038
    %v2060 = vunpack.c.l.b16 %v2039
    %v2061 = vunpack.c.l.b16 %v2040
    %v2062 = vunpack.c.l.b16 %v2041
    %v2063 = vunpack.c.l.b16 %v2042
    %v2064 = vunpack.c.l.b16 %v2043
    %v2065 = vpack.c.b16 %v2060, %v2059
    %v2066 = vpack.c.b16 %v2062, %v2061
    %v2067 = vpack.c.b16 %v2064, %v2063
    %v2069 = vsel %vm385, %v2044, 0
    %v2072 = vsel %vm385, %v2065, 0
    %v2075 = vsel %vm385, %v2066, 0
    %v2078 = vsel %vm385, %v2067, 0
    %2080 = vmatprep.subr.bf16.mxu0 0
    %2081 = vmatpush1.bf16.xpose.msra.mxu0 0
    %2082 = vmatprep.subr.bf16.mxu0 0
    %2083 = vmatpush1.bf16.xpose.msra.mxu0 0
    %2084 = vmatprep.subr.bf16.mxu0 0
    %2085 = vmatpush1.bf16.xpose.msra.mxu0 0
    %2086 = vmatprep.subr.bf16.mxu0 0
    %2087 = vmatpush1.bf16.xpose.msra.mxu0 0
    %2088 = vmatprep.subr.bf16.mxu0 0
    %2089 = vmatpush1.bf16.xpose.msra.mxu0 0
    %2090 = vmatprep.subr.bf16.mxu0 0
    %2091 = vmatpush1.bf16.xpose.msra.mxu0 %v2078
    %2092 = vmatprep.subr.bf16.mxu0 0
    %2093 = vmatpush1.bf16.xpose.msra.mxu0 %v2075
    %2094 = vmatprep.subr.bf16.mxu0 0
    %2095 = vmatpush1.bf16.xpose.msra.mxu0 %v2072
    %2096 = vmatprep.subr.bf16.mxu0 0
    %2097 = vmatpush2.bf16.xpose.msra.mxu0 0
    %2098 = vmatprep.subr.bf16.mxu0 0
    %2099 = vmatpush2.bf16.xpose.msra.mxu0 0
    %2100 = vmatprep.subr.bf16.mxu0 0
    %2101 = vmatpush2.bf16.xpose.msra.mxu0 0
    %2102 = vmatprep.subr.bf16.mxu0 0
    %2103 = vmatpush2.bf16.xpose.msra.mxu0 0
    %2104 = vmatprep.subr.bf16.mxu0 0
    %2105 = vmatpush2.bf16.xpose.msra.mxu0 0
    %2106 = vmatprep.subr.bf16.mxu0 0
    %2107 = vmatpush2.bf16.xpose.msra.mxu0 0
    %2108 = vmatprep.subr.bf16.mxu0 0
    %2109 = vmatpush2.bf16.xpose.msra.mxu0 0
    %2110 = vmatprep.subr.bf16.mxu0 0
    %2111 = vmatpush2.bf16.xpose.msra.mxu0 0
    %2112 = vmatprep.mubr.bf16.mxu0 0
    %2113 = vmatmul.mubr.bf16.gmra.mxu0 %v2069
    %v2114 = vpop.f32.mrf.mxu0
    %v2115 = vadd.f32 %v2051, %v2114
    %v2116 = vpop.f32.mrf.mxu0
    %v2117 = vpop.f32.mrf.mxu0
    %v2118 = vpop.f32.mrf.mxu0
    %2119 = vdwg.mxu0
    %v2120 = vadd.f32 %v1368, %v2115
    %v2121 = vsel %vm385, %v2120, 0.0
    %2122 = vadd.xlane.f32.xlu0 %v2121
    %v2123 = vpop.xlane.xlu0 %2122
    %v2124 = vmul.f32 %v2123, %v1136
    %v2125 = vsub.f32 %v2120, %v2124
    %v2126 = vmul.f32 %v2125, %v2125
    %v2127 = vsel %vm385, %v2126, 0.0
    %2128 = vadd.xlane.f32.xlu0 %v2127
    %v2129 = vpop.xlane.xlu0 %2128
    %v2130 = vmul.f32 %v2129, %v1136
    %v2131 = vadd.f32 %v2130, 1e-05
    %v2132 = vrsqrt.pop %v2131
    %v2133 = vmul.f32 %v2125, %v2132
    %s2134 = scalar_lea.vmem %s18, 2
    %v2135 = vld [vmem:[%s2134] sm:$0x1]
    %v2137 = vlaneseq
    %v2138 = vshrl.u32 %v2137, 7
    %v2139 = vsub.s32 0, %v2138
    %v2140 = vrot.slane %v2135, %v2139
    %v2142 = vmul.f32 %v2133, %v2140
    %s2143 = scalar_lea.vmem [#allocation12], 2
    %v2144 = vld [vmem:[%s2143] sm:$0x1]
    %v2146 = vlaneseq
    %v2147 = vshrl.u32 %v2146, 7
    %v2148 = vsub.s32 0, %v2147
    %v2149 = vrot.slane %v2144, %v2148
    %v2151 = vadd.f32 %v2142, %v2149
    %s2152 = scalar_lea.vmem %s14, 32
    %v2153 = vld [vmem:[%s2152] sm:$0xf]
    %v2154 = vld [vmem:[%s2152 + $0x4] sm:$0xf]
    %v2155 = vld [vmem:[%s2152 + $0x8] sm:$0xf]
    %v2156 = vld [vmem:[%s2152 + $0xc] sm:$0xf]
    %v2157 = vld [vmem:[%s2152 + $0x10] sm:$0xf]
    %v2158 = vld [vmem:[%s2152 + $0x14] sm:$0xf]
    %v2159 = vld [vmem:[%s2152 + $0x18] sm:$0xf]
    %v2160 = vld [vmem:[%s2152 + $0x1c] sm:$0xf]
    %v2161 = vpack.c.bf16 %v2151, %v2151
    %s2162 = scalar_lea.vmem [#allocation7], 1
    %v2163 = vld [vmem:[%s2162] sm:$0x1]
    %v2165 = vlaneseq
    %v2166 = vshrl.u32 %v2165, 7
    %v2167 = vsub.s32 0, %v2166
    %v2168 = vrot.slane %v2163, %v2167
    %v2178 = vunpack.c.l.b16 %v2153
    %v2179 = vunpack.c.l.b16 %v2154
    %v2180 = vunpack.c.l.b16 %v2155
    %v2181 = vunpack.c.l.b16 %v2156
    %v2182 = vunpack.c.l.b16 %v2157
    %v2183 = vunpack.c.l.b16 %v2158
    %v2184 = vunpack.c.l.b16 %v2159
    %v2185 = vunpack.c.l.b16 %v2160
    %v2186 = vpack.c.b16 %v2179, %v2178
    %v2187 = vpack.c.b16 %v2181, %v2180
    %v2188 = vpack.c.b16 %v2183, %v2182
    %v2189 = vpack.c.b16 %v2185, %v2184
    %v2191 = vsel %vm385, %v2161, 0
    %v2194 = vsel %vm385, %v2186, 0
    %v2197 = vsel %vm385, %v2187, 0
    %v2200 = vsel %vm385, %v2188, 0
    %v2203 = vsel %vm385, %v2189, 0
    %2205 = vmatprep.subr.bf16.mxu0 0
    %2206 = vmatpush1.bf16.xpose.msra.mxu0 0
    %2207 = vmatprep.subr.bf16.mxu0 0
    %2208 = vmatpush1.bf16.xpose.msra.mxu0 0
    %2209 = vmatprep.subr.bf16.mxu0 0
    %2210 = vmatpush1.bf16.xpose.msra.mxu0 0
    %2211 = vmatprep.subr.bf16.mxu0 0
    %2212 = vmatpush1.bf16.xpose.msra.mxu0 0
    %2213 = vmatprep.subr.bf16.mxu0 0
    %2214 = vmatpush1.bf16.xpose.msra.mxu0 %v2203
    %2215 = vmatprep.subr.bf16.mxu0 0
    %2216 = vmatpush1.bf16.xpose.msra.mxu0 %v2200
    %2217 = vmatprep.subr.bf16.mxu0 0
    %2218 = vmatpush1.bf16.xpose.msra.mxu0 %v2197
    %2219 = vmatprep.subr.bf16.mxu0 0
    %2220 = vmatpush1.bf16.xpose.msra.mxu0 %v2194
    %2221 = vmatprep.subr.bf16.mxu0 0
    %2222 = vmatpush2.bf16.xpose.msra.mxu0 0
    %2223 = vmatprep.subr.bf16.mxu0 0
    %2224 = vmatpush2.bf16.xpose.msra.mxu0 0
    %2225 = vmatprep.subr.bf16.mxu0 0
    %2226 = vmatpush2.bf16.xpose.msra.mxu0 0
    %2227 = vmatprep.subr.bf16.mxu0 0
    %2228 = vmatpush2.bf16.xpose.msra.mxu0 0
    %2229 = vmatprep.subr.bf16.mxu0 0
    %2230 = vmatpush2.bf16.xpose.msra.mxu0 0
    %2231 = vmatprep.subr.bf16.mxu0 0
    %2232 = vmatpush2.bf16.xpose.msra.mxu0 0
    %2233 = vmatprep.subr.bf16.mxu0 0
    %2234 = vmatpush2.bf16.xpose.msra.mxu0 0
    %2235 = vmatprep.subr.bf16.mxu0 0
    %2236 = vmatpush2.bf16.xpose.msra.mxu0 0
    %2237 = vmatprep.mubr.bf16.mxu0 0
    %2238 = vmatmul.mubr.bf16.gmra.mxu0 %v2191
    %v2239 = vpop.f32.mrf.mxu0
    %v2240 = vadd.f32 %v2168, %v2239
    %v2241 = vpop.f32.mrf.mxu0
    %v2242 = vpop.f32.mrf.mxu0
    %v2243 = vpop.f32.mrf.mxu0
    %2244 = vdwg.mxu0
    %v2245 = vmax.f32 %v2240, 0.0
    %s2246 = scalar_lea.vmem [#allocation9], 24
    %v2247 = vld [vmem:[%s2246] sm:$0xf]
    %v2248 = vld [vmem:[%s2246 + $0x4] sm:$0xf]
    %v2249 = vld [vmem:[%s2246 + $0x8] sm:$0xf]
    %v2250 = vld [vmem:[%s2246 + $0xc] sm:$0xf]
    %v2251 = vld [vmem:[%s2246 + $0x10] sm:$0xf]
    %v2252 = vld [vmem:[%s2246 + $0x14] sm:$0xf]
    %v2253 = vpack.c.bf16 %v2245, %v2245
    %s2254 = scalar_lea.vmem [#allocation10], 1
    %v2255 = vld [vmem:[%s2254] sm:$0x1]
    %v2257 = vlaneseq
    %v2258 = vshrl.u32 %v2257, 7
    %v2259 = vsub.s32 0, %v2258
    %v2260 = vrot.slane %v2255, %v2259
    %v2268 = vunpack.c.l.b16 %v2247
    %v2269 = vunpack.c.l.b16 %v2248
    %v2270 = vunpack.c.l.b16 %v2249
    %v2271 = vunpack.c.l.b16 %v2250
    %v2272 = vunpack.c.l.b16 %v2251
    %v2273 = vunpack.c.l.b16 %v2252
    %v2274 = vpack.c.b16 %v2269, %v2268
    %v2275 = vpack.c.b16 %v2271, %v2270
    %v2276 = vpack.c.b16 %v2273, %v2272
    %v2278 = vsel %vm1284, %v2253, 0
    %v2281 = vsel %vm1284, %v2274, 0
    %v2284 = vsel %vm1284, %v2275, 0
    %v2287 = vsel %vm1284, %v2276, 0
    %2289 = vmatprep.subr.bf16.mxu0 0
    %2290 = vmatpush1.bf16.xpose.msra.mxu0 0
    %2291 = vmatprep.subr.bf16.mxu0 0
    %2292 = vmatpush1.bf16.xpose.msra.mxu0 0
    %2293 = vmatprep.subr.bf16.mxu0 0
    %2294 = vmatpush1.bf16.xpose.msra.mxu0 0
    %2295 = vmatprep.subr.bf16.mxu0 0
    %2296 = vmatpush1.bf16.xpose.msra.mxu0 0
    %2297 = vmatprep.subr.bf16.mxu0 0
    %2298 = vmatpush1.bf16.xpose.msra.mxu0 0
    %2299 = vmatprep.subr.bf16.mxu0 0
    %2300 = vmatpush1.bf16.xpose.msra.mxu0 %v2287
    %2301 = vmatprep.subr.bf16.mxu0 0
    %2302 = vmatpush1.bf16.xpose.msra.mxu0 %v2284
    %2303 = vmatprep.subr.bf16.mxu0 0
    %2304 = vmatpush1.bf16.xpose.msra.mxu0 %v2281
    %2305 = vmatprep.subr.bf16.mxu0 0
    %2306 = vmatpush2.bf16.xpose.msra.mxu0 0
    %2307 = vmatprep.subr.bf16.mxu0 0
    %2308 = vmatpush2.bf16.xpose.msra.mxu0 0
    %2309 = vmatprep.subr.bf16.mxu0 0
    %2310 = vmatpush2.bf16.xpose.msra.mxu0 0
    %2311 = vmatprep.subr.bf16.mxu0 0
    %2312 = vmatpush2.bf16.xpose.msra.mxu0 0
    %2313 = vmatprep.subr.bf16.mxu0 0
    %2314 = vmatpush2.bf16.xpose.msra.mxu0 0
    %2315 = vmatprep.subr.bf16.mxu0 0
    %2316 = vmatpush2.bf16.xpose.msra.mxu0 0
    %2317 = vmatprep.subr.bf16.mxu0 0
    %2318 = vmatpush2.bf16.xpose.msra.mxu0 0
    %2319 = vmatprep.subr.bf16.mxu0 0
    %2320 = vmatpush2.bf16.xpose.msra.mxu0 0
    %2321 = vmatprep.mubr.bf16.mxu0 0
    %2322 = vmatmul.mubr.bf16.gmra.mxu0 %v2278
    %v2323 = vpop.f32.mrf.mxu0
    %v2324 = vadd.f32 %v2260, %v2323
    %v2325 = vpop.f32.mrf.mxu0
    %v2326 = vpop.f32.mrf.mxu0
    %v2327 = vpop.f32.mrf.mxu0
    %2328 = vdwg.mxu0
    %v2329 = vadd.f32 %v2151, %v2324
    %v2330 = vsel %vm385, %v2329, 0.0
    %2331 = vadd.xlane.f32.xlu0 %v2330
    %v2332 = vpop.xlane.xlu0 %2331
    %v2333 = vmul.f32 %v2332, %v1136
    %v2334 = vsub.f32 %v2329, %v2333
    %v2335 = vmul.f32 %v2334, %v2334
    %v2336 = vsel %vm385, %v2335, 0.0
    %2337 = vadd.xlane.f32.xlu0 %v2336
    %v2338 = vpop.xlane.xlu0 %2337
    %v2339 = vmul.f32 %v2338, %v1136
    %v2340 = vadd.f32 %v2339, 1e-05
    %v2341 = vrsqrt.pop %v2340
    %v2342 = vmul.f32 %v2334, %v2341
    %s2343 = scalar_lea.vmem %s18, 3
    %v2344 = vld [vmem:[%s2343] sm:$0x1]
    %v2346 = vlaneseq
    %v2347 = vshrl.u32 %v2346, 7
    %v2348 = vsub.s32 0, %v2347
    %v2349 = vrot.slane %v2344, %v2348
    %v2351 = vmul.f32 %v2342, %v2349
    %s2352 = scalar_lea.vmem [#allocation12], 3
    %v2353 = vld [vmem:[%s2352] sm:$0x1]
    %v2355 = vlaneseq
    %v2356 = vshrl.u32 %v2355, 7
    %v2357 = vsub.s32 0, %v2356
    %v2358 = vrot.slane %v2353, %v2357
    %v2360 = vadd.f32 %v2351, %v2358
    %v2361 = vsel %vm385, %v2360, 0.0
    %2362 = vadd.xlane.f32.xlu0 %v2361
    %v2363 = vpop.xlane.xlu0 %2362
    %v2364 = vmul.f32 %v2363, %v1136
    %v2365 = vsub.f32 %v2360, %v2364
    %v2366 = vmul.f32 %v2365, %v2365
    %v2367 = vsel %vm385, %v2366, 0.0
    %2368 = vadd.xlane.f32.xlu0 %v2367
    %v2369 = vpop.xlane.xlu0 %2368
    %v2370 = vmul.f32 %v2369, %v1136
    %v2371 = vadd.f32 %v2370, 1e-05
    %v2372 = vrsqrt.pop %v2371
    %v2373 = vmul.f32 %v2365, %v2372
    %s2374 = scalar_lea.vmem %s18, 10
    %v2375 = vld [vmem:[%s2374] sm:$0x1]
    %v2377 = vlaneseq
    %v2378 = vshrl.u32 %v2377, 7
    %v2379 = vsub.s32 0, %v2378
    %v2380 = vrot.slane %v2375, %v2379
    %v2382 = vmul.f32 %v2373, %v2380
    %s2383 = scalar_lea.vmem [#allocation12], 10
    %v2384 = vld [vmem:[%s2383] sm:$0x1]
    %v2386 = vlaneseq
    %v2387 = vshrl.u32 %v2386, 7
    %v2388 = vsub.s32 0, %v2387
    %v2389 = vrot.slane %v2384, %v2388
    %v2391 = vadd.f32 %v2382, %v2389
    %s2392 = scalar_lea.vmem %s12, 192
    %v2393 = vld [vmem:[%s2392] sm:$0xf]
    %v2394 = vld [vmem:[%s2392 + $0x4] sm:$0xf]
    %v2395 = vld [vmem:[%s2392 + $0x8] sm:$0xf]
    %v2396 = vld [vmem:[%s2392 + $0xc] sm:$0xf]
    %v2397 = vld [vmem:[%s2392 + $0x10] sm:$0xf]
    %v2398 = vld [vmem:[%s2392 + $0x14] sm:$0xf]
    %v2399 = vpack.c.bf16 %v352, %v352
    %s2400 = scalar_lea.vmem [#allocation6], 8
    %v2401 = vld [vmem:[%s2400] sm:$0x1]
    %v2403 = vlaneseq
    %v2404 = vshrl.u32 %v2403, 7
    %v2405 = vsub.s32 0, %v2404
    %v2406 = vrot.slane %v2401, %v2405
    %v2414 = vunpack.c.l.b16 %v2393
    %v2415 = vunpack.c.l.b16 %v2394
    %v2416 = vunpack.c.l.b16 %v2395
    %v2417 = vunpack.c.l.b16 %v2396
    %v2418 = vunpack.c.l.b16 %v2397
    %v2419 = vunpack.c.l.b16 %v2398
    %v2420 = vpack.c.b16 %v2415, %v2414
    %v2421 = vpack.c.b16 %v2417, %v2416
    %v2422 = vpack.c.b16 %v2419, %v2418
    %v2424 = vsel %vm385, %v2399, 0
    %v2427 = vsel %vm385, %v2420, 0
    %v2430 = vsel %vm385, %v2421, 0
    %v2433 = vsel %vm385, %v2422, 0
    %2435 = vmatprep.subr.bf16.mxu0 0
    %2436 = vmatpush1.bf16.xpose.msra.mxu0 0
    %2437 = vmatprep.subr.bf16.mxu0 0
    %2438 = vmatpush1.bf16.xpose.msra.mxu0 0
    %2439 = vmatprep.subr.bf16.mxu0 0
    %2440 = vmatpush1.bf16.xpose.msra.mxu0 0
    %2441 = vmatprep.subr.bf16.mxu0 0
    %2442 = vmatpush1.bf16.xpose.msra.mxu0 0
    %2443 = vmatprep.subr.bf16.mxu0 0
    %2444 = vmatpush1.bf16.xpose.msra.mxu0 0
    %2445 = vmatprep.subr.bf16.mxu0 0
    %2446 = vmatpush1.bf16.xpose.msra.mxu0 %v2433
    %2447 = vmatprep.subr.bf16.mxu0 0
    %2448 = vmatpush1.bf16.xpose.msra.mxu0 %v2430
    %2449 = vmatprep.subr.bf16.mxu0 0
    %2450 = vmatpush1.bf16.xpose.msra.mxu0 %v2427
    %2451 = vmatprep.subr.bf16.mxu0 0
    %2452 = vmatpush2.bf16.xpose.msra.mxu0 0
    %2453 = vmatprep.subr.bf16.mxu0 0
    %2454 = vmatpush2.bf16.xpose.msra.mxu0 0
    %2455 = vmatprep.subr.bf16.mxu0 0
    %2456 = vmatpush2.bf16.xpose.msra.mxu0 0
    %2457 = vmatprep.subr.bf16.mxu0 0
    %2458 = vmatpush2.bf16.xpose.msra.mxu0 0
    %2459 = vmatprep.subr.bf16.mxu0 0
    %2460 = vmatpush2.bf16.xpose.msra.mxu0 0
    %2461 = vmatprep.subr.bf16.mxu0 0
    %2462 = vmatpush2.bf16.xpose.msra.mxu0 0
    %2463 = vmatprep.subr.bf16.mxu0 0
    %2464 = vmatpush2.bf16.xpose.msra.mxu0 0
    %2465 = vmatprep.subr.bf16.mxu0 0
    %2466 = vmatpush2.bf16.xpose.msra.mxu0 0
    %2467 = vmatprep.mubr.bf16.mxu0 0
    %2468 = vmatmul.mubr.bf16.gmra.mxu0 %v2424
    %v2469 = vpop.f32.mrf.mxu0
    %v2470 = vadd.f32 %v2406, %v2469
    %v2471 = vpop.f32.mrf.mxu0
    %v2472 = vpop.f32.mrf.mxu0
    %v2473 = vpop.f32.mrf.mxu0
    %2474 = vdwg.mxu0
    %v2475 = vmul.f32 %v2470, 0.28867513
    %s2476 = scalar_lea.vmem %s12, 216
    %v2477 = vld [vmem:[%s2476] sm:$0xf]
    %v2478 = vld [vmem:[%s2476 + $0x4] sm:$0xf]
    %v2479 = vld [vmem:[%s2476 + $0x8] sm:$0xf]
    %v2480 = vld [vmem:[%s2476 + $0xc] sm:$0xf]
    %v2481 = vld [vmem:[%s2476 + $0x10] sm:$0xf]
    %v2482 = vld [vmem:[%s2476 + $0x14] sm:$0xf]
    %s2483 = scalar_lea.vmem [#allocation6], 9
    %v2484 = vld [vmem:[%s2483] sm:$0x1]
    %v2486 = vlaneseq
    %v2487 = vshrl.u32 %v2486, 7
    %v2488 = vsub.s32 0, %v2487
    %v2489 = vrot.slane %v2484, %v2488
    %v2497 = vunpack.c.l.b16 %v2477
    %v2498 = vunpack.c.l.b16 %v2478
    %v2499 = vunpack.c.l.b16 %v2479
    %v2500 = vunpack.c.l.b16 %v2480
    %v2501 = vunpack.c.l.b16 %v2481
    %v2502 = vunpack.c.l.b16 %v2482
    %v2503 = vpack.c.b16 %v2498, %v2497
    %v2504 = vpack.c.b16 %v2500, %v2499
    %v2505 = vpack.c.b16 %v2502, %v2501
    %v2507 = vsel %vm385, %v2503, 0
    %v2510 = vsel %vm385, %v2504, 0
    %v2513 = vsel %vm385, %v2505, 0
    %2515 = vmatprep.subr.bf16.mxu0 0
    %2516 = vmatpush1.bf16.xpose.msra.mxu0 0
    %2517 = vmatprep.subr.bf16.mxu0 0
    %2518 = vmatpush1.bf16.xpose.msra.mxu0 0
    %2519 = vmatprep.subr.bf16.mxu0 0
    %2520 = vmatpush1.bf16.xpose.msra.mxu0 0
    %2521 = vmatprep.subr.bf16.mxu0 0
    %2522 = vmatpush1.bf16.xpose.msra.mxu0 0
    %2523 = vmatprep.subr.bf16.mxu0 0
    %2524 = vmatpush1.bf16.xpose.msra.mxu0 0
    %2525 = vmatprep.subr.bf16.mxu0 0
    %2526 = vmatpush1.bf16.xpose.msra.mxu0 %v2513
    %2527 = vmatprep.subr.bf16.mxu0 0
    %2528 = vmatpush1.bf16.xpose.msra.mxu0 %v2510
    %2529 = vmatprep.subr.bf16.mxu0 0
    %2530 = vmatpush1.bf16.xpose.msra.mxu0 %v2507
    %2531 = vmatprep.subr.bf16.mxu0 0
    %2532 = vmatpush2.bf16.xpose.msra.mxu0 0
    %2533 = vmatprep.subr.bf16.mxu0 0
    %2534 = vmatpush2.bf16.xpose.msra.mxu0 0
    %2535 = vmatprep.subr.bf16.mxu0 0
    %2536 = vmatpush2.bf16.xpose.msra.mxu0 0
    %2537 = vmatprep.subr.bf16.mxu0 0
    %2538 = vmatpush2.bf16.xpose.msra.mxu0 0
    %2539 = vmatprep.subr.bf16.mxu0 0
    %2540 = vmatpush2.bf16.xpose.msra.mxu0 0
    %2541 = vmatprep.subr.bf16.mxu0 0
    %2542 = vmatpush2.bf16.xpose.msra.mxu0 0
    %2543 = vmatprep.subr.bf16.mxu0 0
    %2544 = vmatpush2.bf16.xpose.msra.mxu0 0
    %2545 = vmatprep.subr.bf16.mxu0 0
    %2546 = vmatpush2.bf16.xpose.msra.mxu0 0
    %2547 = vmatprep.mubr.bf16.mxu0 0
    %2548 = vmatmul.mubr.bf16.gmra.mxu0 %v2424
    %v2549 = vpop.f32.mrf.mxu0
    %v2550 = vadd.f32 %v2489, %v2549
    %v2551 = vpop.f32.mrf.mxu0
    %v2552 = vpop.f32.mrf.mxu0
    %v2553 = vpop.f32.mrf.mxu0
    %2554 = vdwg.mxu0
    %s2555 = scalar_lea.vmem %s12, 240
    %v2556 = vld [vmem:[%s2555] sm:$0xf]
    %v2557 = vld [vmem:[%s2555 + $0x4] sm:$0xf]
    %v2558 = vld [vmem:[%s2555 + $0x8] sm:$0xf]
    %v2559 = vld [vmem:[%s2555 + $0xc] sm:$0xf]
    %v2560 = vld [vmem:[%s2555 + $0x10] sm:$0xf]
    %v2561 = vld [vmem:[%s2555 + $0x14] sm:$0xf]
    %s2562 = scalar_lea.vmem [#allocation6], 10
    %v2563 = vld [vmem:[%s2562] sm:$0x1]
    %v2565 = vlaneseq
    %v2566 = vshrl.u32 %v2565, 7
    %v2567 = vsub.s32 0, %v2566
    %v2568 = vrot.slane %v2563, %v2567
    %v2576 = vunpack.c.l.b16 %v2556
    %v2577 = vunpack.c.l.b16 %v2557
    %v2578 = vunpack.c.l.b16 %v2558
    %v2579 = vunpack.c.l.b16 %v2559
    %v2580 = vunpack.c.l.b16 %v2560
    %v2581 = vunpack.c.l.b16 %v2561
    %v2582 = vpack.c.b16 %v2577, %v2576
    %v2583 = vpack.c.b16 %v2579, %v2578
    %v2584 = vpack.c.b16 %v2581, %v2580
    %v2586 = vsel %vm385, %v2582, 0
    %v2589 = vsel %vm385, %v2583, 0
    %v2592 = vsel %vm385, %v2584, 0
    %2594 = vmatprep.subr.bf16.mxu0 0
    %2595 = vmatpush1.bf16.xpose.msra.mxu0 0
    %2596 = vmatprep.subr.bf16.mxu0 0
    %2597 = vmatpush1.bf16.xpose.msra.mxu0 0
    %2598 = vmatprep.subr.bf16.mxu0 0
    %2599 = vmatpush1.bf16.xpose.msra.mxu0 0
    %2600 = vmatprep.subr.bf16.mxu0 0
    %2601 = vmatpush1.bf16.xpose.msra.mxu0 0
    %2602 = vmatprep.subr.bf16.mxu0 0
    %2603 = vmatpush1.bf16.xpose.msra.mxu0 0
    %2604 = vmatprep.subr.bf16.mxu0 0
    %2605 = vmatpush1.bf16.xpose.msra.mxu0 %v2592
    %2606 = vmatprep.subr.bf16.mxu0 0
    %2607 = vmatpush1.bf16.xpose.msra.mxu0 %v2589
    %2608 = vmatprep.subr.bf16.mxu0 0
    %2609 = vmatpush1.bf16.xpose.msra.mxu0 %v2586
    %2610 = vmatprep.subr.bf16.mxu0 0
    %2611 = vmatpush2.bf16.xpose.msra.mxu0 0
    %2612 = vmatprep.subr.bf16.mxu0 0
    %2613 = vmatpush2.bf16.xpose.msra.mxu0 0
    %2614 = vmatprep.subr.bf16.mxu0 0
    %2615 = vmatpush2.bf16.xpose.msra.mxu0 0
    %2616 = vmatprep.subr.bf16.mxu0 0
    %2617 = vmatpush2.bf16.xpose.msra.mxu0 0
    %2618 = vmatprep.subr.bf16.mxu0 0
    %2619 = vmatpush2.bf16.xpose.msra.mxu0 0
    %2620 = vmatprep.subr.bf16.mxu0 0
    %2621 = vmatpush2.bf16.xpose.msra.mxu0 0
    %2622 = vmatprep.subr.bf16.mxu0 0
    %2623 = vmatpush2.bf16.xpose.msra.mxu0 0
    %2624 = vmatprep.subr.bf16.mxu0 0
    %2625 = vmatpush2.bf16.xpose.msra.mxu0 0
    %2626 = vmatprep.mubr.bf16.mxu0 0
    %2627 = vmatmul.mubr.bf16.gmra.mxu0 %v2424
    %v2628 = vpop.f32.mrf.mxu0
    %v2629 = vadd.f32 %v2568, %v2628
    %v2630 = vpop.f32.mrf.mxu0
    %v2631 = vpop.f32.mrf.mxu0
    %v2632 = vpop.f32.mrf.mxu0
    %2633 = vdwg.mxu0
    %v2634 = vmul.f32 %v2475, %v601
    %v2635 = vpack.c.bf16 %v2634, %v2634
    %v2636 = vpack.c.bf16 %v2550, %v2550
    %v2638 = vsel %vm385, %v2635, 0
    %v2641 = vsel %vm385, %v2636, 0
    %2643 = vmatprep.subr.bf16.mxu0 0
    %2644 = vmatpush1.bf16.xpose.msra.mxu0 0
    %2645 = vmatprep.subr.bf16.mxu0 0
    %2646 = vmatpush1.bf16.xpose.msra.mxu0 0
    %2647 = vmatprep.subr.bf16.mxu0 0
    %2648 = vmatpush1.bf16.xpose.msra.mxu0 0
    %2649 = vmatprep.subr.bf16.mxu0 0
    %2650 = vmatpush1.bf16.xpose.msra.mxu0 0
    %2651 = vmatprep.subr.bf16.mxu0 0
    %2652 = vmatpush1.bf16.xpose.msra.mxu0 0
    %2653 = vmatprep.subr.bf16.mxu0 0
    %2654 = vmatpush1.bf16.xpose.msra.mxu0 0
    %2655 = vmatprep.subr.bf16.mxu0 0
    %2656 = vmatpush1.bf16.xpose.msra.mxu0 0
    %2657 = vmatprep.subr.bf16.mxu0 0
    %2658 = vmatpush1.bf16.xpose.msra.mxu0 %v2641
    %2659 = vmatprep.subr.bf16.mxu0 0
    %2660 = vmatpush2.bf16.xpose.msra.mxu0 0
    %2661 = vmatprep.subr.bf16.mxu0 0
    %2662 = vmatpush2.bf16.xpose.msra.mxu0 0
    %2663 = vmatprep.subr.bf16.mxu0 0
    %2664 = vmatpush2.bf16.xpose.msra.mxu0 0
    %2665 = vmatprep.subr.bf16.mxu0 0
    %2666 = vmatpush2.bf16.xpose.msra.mxu0 0
    %2667 = vmatprep.subr.bf16.mxu0 0
    %2668 = vmatpush2.bf16.xpose.msra.mxu0 0
    %2669 = vmatprep.subr.bf16.mxu0 0
    %2670 = vmatpush2.bf16.xpose.msra.mxu0 0
    %2671 = vmatprep.subr.bf16.mxu0 0
    %2672 = vmatpush2.bf16.xpose.msra.mxu0 0
    %2673 = vmatprep.subr.bf16.mxu0 0
    %2674 = vmatpush2.bf16.xpose.msra.mxu0 0
    %2675 = vmatprep.mubr.bf16.mxu0 0
    %2676 = vmatmul.mubr.bf16.gmra.mxu0 %v2638
    %v2677 = vpop.f32.mrf.mxu0
    %v2678 = vadd.f32 %v354, %v2677
    %v2679 = vpop.f32.mrf.mxu0
    %v2680 = vpop.f32.mrf.mxu0
    %v2681 = vpop.f32.mrf.mxu0
    %2682 = vdwg.mxu0
    %vm2683 = vcmask 46080
    %v2684 = vsel %vm2683, %v2678, -inf
    %2685 = vmax.xlane.f32.xlu0 %v2684
    %v2686 = vpop.xlane.xlu0 %2685
    %v2687 = vsub.f32 %v2678, %v2686
    %v2688 = vmul.f32 %v2687, 1.442695
    %v2689 = vpow.pop %v2688
    %v2690 = vsel %vm2683, %v2689, 0.0
    %2691 = vadd.xlane.f32.xlu0 %v2690
    %v2692 = vpop.xlane.xlu0 %2691
    %v2693 = vrcp.pop %v2692
    %v2694 = vmul.f32 %v2689, %v2693
    %v2695 = vmul.f32 %v2629, %v601
    %v2696 = vpack.c.bf16 %v2694, %v2694
    %v2697 = vpack.c.bf16 %v2695, %v2695
    %v2698 = vmul.f32 %v2475, %v671
    %v2699 = vpack.c.bf16 %v2698, %v2698
    %v2701 = vsel %vm385, %v2699, 0
    %2703 = vmatprep.subr.bf16.mxu0 0
    %2704 = vmatpush1.bf16.xpose.msra.mxu0 0
    %2705 = vmatprep.subr.bf16.mxu0 0
    %2706 = vmatpush1.bf16.xpose.msra.mxu0 0
    %2707 = vmatprep.subr.bf16.mxu0 0
    %2708 = vmatpush1.bf16.xpose.msra.mxu0 0
    %2709 = vmatprep.subr.bf16.mxu0 0
    %2710 = vmatpush1.bf16.xpose.msra.mxu0 0
    %2711 = vmatprep.subr.bf16.mxu0 0
    %2712 = vmatpush1.bf16.xpose.msra.mxu0 0
    %2713 = vmatprep.subr.bf16.mxu0 0
    %2714 = vmatpush1.bf16.xpose.msra.mxu0 0
    %2715 = vmatprep.subr.bf16.mxu0 0
    %2716 = vmatpush1.bf16.xpose.msra.mxu0 0
    %2717 = vmatprep.subr.bf16.mxu0 0
    %2718 = vmatpush1.bf16.xpose.msra.mxu0 %v2641
    %2719 = vmatprep.subr.bf16.mxu0 0
    %2720 = vmatpush2.bf16.xpose.msra.mxu0 0
    %2721 = vmatprep.subr.bf16.mxu0 0
    %2722 = vmatpush2.bf16.xpose.msra.mxu0 0
    %2723 = vmatprep.subr.bf16.mxu0 0
    %2724 = vmatpush2.bf16.xpose.msra.mxu0 0
    %2725 = vmatprep.subr.bf16.mxu0 0
    %2726 = vmatpush2.bf16.xpose.msra.mxu0 0
    %2727 = vmatprep.subr.bf16.mxu0 0
    %2728 = vmatpush2.bf16.xpose.msra.mxu0 0
    %2729 = vmatprep.subr.bf16.mxu0 0
    %2730 = vmatpush2.bf16.xpose.msra.mxu0 0
    %2731 = vmatprep.subr.bf16.mxu0 0
    %2732 = vmatpush2.bf16.xpose.msra.mxu0 0
    %2733 = vmatprep.subr.bf16.mxu0 0
    %2734 = vmatpush2.bf16.xpose.msra.mxu0 0
    %2735 = vmatprep.mubr.bf16.mxu0 0
    %2736 = vmatmul.mubr.bf16.gmra.mxu0 %v2701
    %v2737 = vpop.f32.mrf.mxu0
    %v2738 = vadd.f32 %v354, %v2737
    %v2739 = vpop.f32.mrf.mxu0
    %v2740 = vpop.f32.mrf.mxu0
    %v2741 = vpop.f32.mrf.mxu0
    %2742 = vdwg.mxu0
    %v2743 = vsel %vm2683, %v2738, -inf
    %2744 = vmax.xlane.f32.xlu0 %v2743
    %v2745 = vpop.xlane.xlu0 %2744
    %v2746 = vsub.f32 %v2738, %v2745
    %v2747 = vmul.f32 %v2746, 1.442695
    %v2748 = vpow.pop %v2747
    %v2749 = vsel %vm2683, %v2748, 0.0
    %2750 = vadd.xlane.f32.xlu0 %v2749
    %v2751 = vpop.xlane.xlu0 %2750
    %v2752 = vrcp.pop %v2751
    %v2753 = vmul.f32 %v2748, %v2752
    %v2754 = vmul.f32 %v2629, %v671
    %v2755 = vpack.c.bf16 %v2753, %v2753
    %v2756 = vpack.c.bf16 %v2754, %v2754
    %vm2757 = vcmask 48128
    %v2759 = vsel %vm2757, %v2755, 0
    %vm2761 = vcmask 1042432
    %v2763 = vsel %vm2761, %v2756, 0
    %2765 = vmatprep.subr.bf16.mxu0 0
    %2766 = vmatpush1.bf16.msra.mxu0 0
    %2767 = vmatprep.subr.bf16.mxu0 0
    %2768 = vmatpush1.bf16.msra.mxu0 0
    %2769 = vmatprep.subr.bf16.mxu0 0
    %2770 = vmatpush1.bf16.msra.mxu0 0
    %2771 = vmatprep.subr.bf16.mxu0 0
    %2772 = vmatpush1.bf16.msra.mxu0 0
    %2773 = vmatprep.subr.bf16.mxu0 0
    %2774 = vmatpush1.bf16.msra.mxu0 0
    %2775 = vmatprep.subr.bf16.mxu0 0
    %2776 = vmatpush1.bf16.msra.mxu0 0
    %2777 = vmatprep.subr.bf16.mxu0 0
    %2778 = vmatpush1.bf16.msra.mxu0 0
    %2779 = vmatprep.subr.bf16.mxu0 0
    %2780 = vmatpush1.bf16.msra.mxu0 %v2763
    %2781 = vmatprep.subr.bf16.mxu0 0
    %2782 = vmatpush2.bf16.msra.mxu0 0
    %2783 = vmatprep.subr.bf16.mxu0 0
    %2784 = vmatpush2.bf16.msra.mxu0 0
    %2785 = vmatprep.subr.bf16.mxu0 0
    %2786 = vmatpush2.bf16.msra.mxu0 0
    %2787 = vmatprep.subr.bf16.mxu0 0
    %2788 = vmatpush2.bf16.msra.mxu0 0
    %2789 = vmatprep.subr.bf16.mxu0 0
    %2790 = vmatpush2.bf16.msra.mxu0 0
    %2791 = vmatprep.subr.bf16.mxu0 0
    %2792 = vmatpush2.bf16.msra.mxu0 0
    %2793 = vmatprep.subr.bf16.mxu0 0
    %2794 = vmatpush2.bf16.msra.mxu0 0
    %2795 = vmatprep.subr.bf16.mxu0 0
    %2796 = vmatpush2.bf16.msra.mxu0 0
    %2797 = vmatprep.mubr.bf16.mxu0 0
    %2798 = vmatmul.mubr.bf16.gmra.mxu0 %v2759
    %v2799 = vpop.f32.mrf.mxu0
    %v2800 = vadd.f32 0.0, %v2799
    %v2801 = vpop.f32.mrf.mxu0
    %v2802 = vpop.f32.mrf.mxu0
    %v2803 = vpop.f32.mrf.mxu0
    %2804 = vdwg.mxu0
    %v2806 = vsel %vm2757, %v2696, 0
    %v2809 = vsel %vm2761, %v2697, 0
    %2811 = vmatprep.subr.bf16.mxu0 0
    %2812 = vmatpush1.bf16.msra.mxu0 0
    %2813 = vmatprep.subr.bf16.mxu0 0
    %2814 = vmatpush1.bf16.msra.mxu0 0
    %2815 = vmatprep.subr.bf16.mxu0 0
    %2816 = vmatpush1.bf16.msra.mxu0 0
    %2817 = vmatprep.subr.bf16.mxu0 0
    %2818 = vmatpush1.bf16.msra.mxu0 0
    %2819 = vmatprep.subr.bf16.mxu0 0
    %2820 = vmatpush1.bf16.msra.mxu0 0
    %2821 = vmatprep.subr.bf16.mxu0 0
    %2822 = vmatpush1.bf16.msra.mxu0 0
    %2823 = vmatprep.subr.bf16.mxu0 0
    %2824 = vmatpush1.bf16.msra.mxu0 0
    %2825 = vmatprep.subr.bf16.mxu0 0
    %2826 = vmatpush1.bf16.msra.mxu0 %v2809
    %2827 = vmatprep.subr.bf16.mxu0 0
    %2828 = vmatpush2.bf16.msra.mxu0 0
    %2829 = vmatprep.subr.bf16.mxu0 0
    %2830 = vmatpush2.bf16.msra.mxu0 0
    %2831 = vmatprep.subr.bf16.mxu0 0
    %2832 = vmatpush2.bf16.msra.mxu0 0
    %2833 = vmatprep.subr.bf16.mxu0 0
    %2834 = vmatpush2.bf16.msra.mxu0 0
    %2835 = vmatprep.subr.bf16.mxu0 0
    %2836 = vmatpush2.bf16.msra.mxu0 0
    %2837 = vmatprep.subr.bf16.mxu0 0
    %2838 = vmatpush2.bf16.msra.mxu0 0
    %2839 = vmatprep.subr.bf16.mxu0 0
    %2840 = vmatpush2.bf16.msra.mxu0 0
    %2841 = vmatprep.subr.bf16.mxu0 0
    %2842 = vmatpush2.bf16.msra.mxu0 0
    %2843 = vmatprep.mubr.bf16.mxu0 0
    %2844 = vmatmul.mubr.bf16.gmra.mxu0 %v2806
    %v2845 = vpop.f32.mrf.mxu0
    %v2846 = vadd.f32 %v2800, %v2845
    %v2847 = vpop.f32.mrf.mxu0
    %v2848 = vpop.f32.mrf.mxu0
    %v2849 = vpop.f32.mrf.mxu0
    %2850 = vdwg.mxu0
    %v2851 = vmul.f32 %v2475, %v829
    %v2852 = vpack.c.bf16 %v2851, %v2851
    %v2854 = vsel %vm385, %v2852, 0
    %2856 = vmatprep.subr.bf16.mxu0 0
    %2857 = vmatpush1.bf16.xpose.msra.mxu0 0
    %2858 = vmatprep.subr.bf16.mxu0 0
    %2859 = vmatpush1.bf16.xpose.msra.mxu0 0
    %2860 = vmatprep.subr.bf16.mxu0 0
    %2861 = vmatpush1.bf16.xpose.msra.mxu0 0
    %2862 = vmatprep.subr.bf16.mxu0 0
    %2863 = vmatpush1.bf16.xpose.msra.mxu0 0
    %2864 = vmatprep.subr.bf16.mxu0 0
    %2865 = vmatpush1.bf16.xpose.msra.mxu0 0
    %2866 = vmatprep.subr.bf16.mxu0 0
    %2867 = vmatpush1.bf16.xpose.msra.mxu0 0
    %2868 = vmatprep.subr.bf16.mxu0 0
    %2869 = vmatpush1.bf16.xpose.msra.mxu0 0
    %2870 = vmatprep.subr.bf16.mxu0 0
    %2871 = vmatpush1.bf16.xpose.msra.mxu0 %v2641
    %2872 = vmatprep.subr.bf16.mxu0 0
    %2873 = vmatpush2.bf16.xpose.msra.mxu0 0
    %2874 = vmatprep.subr.bf16.mxu0 0
    %2875 = vmatpush2.bf16.xpose.msra.mxu0 0
    %2876 = vmatprep.subr.bf16.mxu0 0
    %2877 = vmatpush2.bf16.xpose.msra.mxu0 0
    %2878 = vmatprep.subr.bf16.mxu0 0
    %2879 = vmatpush2.bf16.xpose.msra.mxu0 0
    %2880 = vmatprep.subr.bf16.mxu0 0
    %2881 = vmatpush2.bf16.xpose.msra.mxu0 0
    %2882 = vmatprep.subr.bf16.mxu0 0
    %2883 = vmatpush2.bf16.xpose.msra.mxu0 0
    %2884 = vmatprep.subr.bf16.mxu0 0
    %2885 = vmatpush2.bf16.xpose.msra.mxu0 0
    %2886 = vmatprep.subr.bf16.mxu0 0
    %2887 = vmatpush2.bf16.xpose.msra.mxu0 0
    %2888 = vmatprep.mubr.bf16.mxu0 0
    %2889 = vmatmul.mubr.bf16.gmra.mxu0 %v2854
    %v2890 = vpop.f32.mrf.mxu0
    %v2891 = vadd.f32 %v354, %v2890
    %v2892 = vpop.f32.mrf.mxu0
    %v2893 = vpop.f32.mrf.mxu0
    %v2894 = vpop.f32.mrf.mxu0
    %2895 = vdwg.mxu0
    %v2896 = vsel %vm2683, %v2891, -inf
    %2897 = vmax.xlane.f32.xlu0 %v2896
    %v2898 = vpop.xlane.xlu0 %2897
    %v2899 = vsub.f32 %v2891, %v2898
    %v2900 = vmul.f32 %v2899, 1.442695
    %v2901 = vpow.pop %v2900
    %v2902 = vsel %vm2683, %v2901, 0.0
    %2903 = vadd.xlane.f32.xlu0 %v2902
    %v2904 = vpop.xlane.xlu0 %2903
    %v2905 = vrcp.pop %v2904
    %v2906 = vmul.f32 %v2901, %v2905
    %v2907 = vmul.f32 %v2629, %v829
    %v2908 = vpack.c.bf16 %v2906, %v2906
    %v2909 = vpack.c.bf16 %v2907, %v2907
    %v2911 = vsel %vm2757, %v2908, 0
    %v2914 = vsel %vm2761, %v2909, 0
    %2916 = vmatprep.subr.bf16.mxu0 0
    %2917 = vmatpush1.bf16.msra.mxu0 0
    %2918 = vmatprep.subr.bf16.mxu0 0
    %2919 = vmatpush1.bf16.msra.mxu0 0
    %2920 = vmatprep.subr.bf16.mxu0 0
    %2921 = vmatpush1.bf16.msra.mxu0 0
    %2922 = vmatprep.subr.bf16.mxu0 0
    %2923 = vmatpush1.bf16.msra.mxu0 0
    %2924 = vmatprep.subr.bf16.mxu0 0
    %2925 = vmatpush1.bf16.msra.mxu0 0
    %2926 = vmatprep.subr.bf16.mxu0 0
    %2927 = vmatpush1.bf16.msra.mxu0 0
    %2928 = vmatprep.subr.bf16.mxu0 0
    %2929 = vmatpush1.bf16.msra.mxu0 0
    %2930 = vmatprep.subr.bf16.mxu0 0
    %2931 = vmatpush1.bf16.msra.mxu0 %v2914
    %2932 = vmatprep.subr.bf16.mxu0 0
    %2933 = vmatpush2.bf16.msra.mxu0 0
    %2934 = vmatprep.subr.bf16.mxu0 0
    %2935 = vmatpush2.bf16.msra.mxu0 0
    %2936 = vmatprep.subr.bf16.mxu0 0
    %2937 = vmatpush2.bf16.msra.mxu0 0
    %2938 = vmatprep.subr.bf16.mxu0 0
    %2939 = vmatpush2.bf16.msra.mxu0 0
    %2940 = vmatprep.subr.bf16.mxu0 0
    %2941 = vmatpush2.bf16.msra.mxu0 0
    %2942 = vmatprep.subr.bf16.mxu0 0
    %2943 = vmatpush2.bf16.msra.mxu0 0
    %2944 = vmatprep.subr.bf16.mxu0 0
    %2945 = vmatpush2.bf16.msra.mxu0 0
    %2946 = vmatprep.subr.bf16.mxu0 0
    %2947 = vmatpush2.bf16.msra.mxu0 0
    %2948 = vmatprep.mubr.bf16.mxu0 0
    %2949 = vmatmul.mubr.bf16.gmra.mxu0 %v2911
    %v2950 = vpop.f32.mrf.mxu0
    %v2951 = vadd.f32 0.0, %v2950
    %v2952 = vpop.f32.mrf.mxu0
    %v2953 = vpop.f32.mrf.mxu0
    %v2954 = vpop.f32.mrf.mxu0
    %2955 = vdwg.mxu0
    %v2956 = vadd.f32 %v2846, %v2951
    %v2957 = vmul.f32 %v2475, %v941
    %v2958 = vpack.c.bf16 %v2957, %v2957
    %v2960 = vsel %vm385, %v2958, 0
    %2962 = vmatprep.subr.bf16.mxu0 0
    %2963 = vmatpush1.bf16.xpose.msra.mxu0 0
    %2964 = vmatprep.subr.bf16.mxu0 0
    %2965 = vmatpush1.bf16.xpose.msra.mxu0 0
    %2966 = vmatprep.subr.bf16.mxu0 0
    %2967 = vmatpush1.bf16.xpose.msra.mxu0 0
    %2968 = vmatprep.subr.bf16.mxu0 0
    %2969 = vmatpush1.bf16.xpose.msra.mxu0 0
    %2970 = vmatprep.subr.bf16.mxu0 0
    %2971 = vmatpush1.bf16.xpose.msra.mxu0 0
    %2972 = vmatprep.subr.bf16.mxu0 0
    %2973 = vmatpush1.bf16.xpose.msra.mxu0 0
    %2974 = vmatprep.subr.bf16.mxu0 0
    %2975 = vmatpush1.bf16.xpose.msra.mxu0 0
    %2976 = vmatprep.subr.bf16.mxu0 0
    %2977 = vmatpush1.bf16.xpose.msra.mxu0 %v2641
    %2978 = vmatprep.subr.bf16.mxu0 0
    %2979 = vmatpush2.bf16.xpose.msra.mxu0 0
    %2980 = vmatprep.subr.bf16.mxu0 0
    %2981 = vmatpush2.bf16.xpose.msra.mxu0 0
    %2982 = vmatprep.subr.bf16.mxu0 0
    %2983 = vmatpush2.bf16.xpose.msra.mxu0 0
    %2984 = vmatprep.subr.bf16.mxu0 0
    %2985 = vmatpush2.bf16.xpose.msra.mxu0 0
    %2986 = vmatprep.subr.bf16.mxu0 0
    %2987 = vmatpush2.bf16.xpose.msra.mxu0 0
    %2988 = vmatprep.subr.bf16.mxu0 0
    %2989 = vmatpush2.bf16.xpose.msra.mxu0 0
    %2990 = vmatprep.subr.bf16.mxu0 0
    %2991 = vmatpush2.bf16.xpose.msra.mxu0 0
    %2992 = vmatprep.subr.bf16.mxu0 0
    %2993 = vmatpush2.bf16.xpose.msra.mxu0 0
    %2994 = vmatprep.mubr.bf16.mxu0 0
    %2995 = vmatmul.mubr.bf16.gmra.mxu0 %v2960
    %v2996 = vpop.f32.mrf.mxu0
    %v2997 = vadd.f32 %v354, %v2996
    %v2998 = vpop.f32.mrf.mxu0
    %v2999 = vpop.f32.mrf.mxu0
    %v3000 = vpop.f32.mrf.mxu0
    %3001 = vdwg.mxu0
    %v3002 = vsel %vm2683, %v2997, -inf
    %3003 = vmax.xlane.f32.xlu0 %v3002
    %v3004 = vpop.xlane.xlu0 %3003
    %v3005 = vsub.f32 %v2997, %v3004
    %v3006 = vmul.f32 %v3005, 1.442695
    %v3007 = vpow.pop %v3006
    %v3008 = vsel %vm2683, %v3007, 0.0
    %3009 = vadd.xlane.f32.xlu0 %v3008
    %v3010 = vpop.xlane.xlu0 %3009
    %v3011 = vrcp.pop %v3010
    %v3012 = vmul.f32 %v3007, %v3011
    %v3013 = vmul.f32 %v2629, %v941
    %v3014 = vpack.c.bf16 %v3012, %v3012
    %v3015 = vpack.c.bf16 %v3013, %v3013
    %v3017 = vsel %vm2757, %v3014, 0
    %v3020 = vsel %vm2761, %v3015, 0
    %3022 = vmatprep.subr.bf16.mxu0 0
    %3023 = vmatpush1.bf16.msra.mxu0 0
    %3024 = vmatprep.subr.bf16.mxu0 0
    %3025 = vmatpush1.bf16.msra.mxu0 0
    %3026 = vmatprep.subr.bf16.mxu0 0
    %3027 = vmatpush1.bf16.msra.mxu0 0
    %3028 = vmatprep.subr.bf16.mxu0 0
    %3029 = vmatpush1.bf16.msra.mxu0 0
    %3030 = vmatprep.subr.bf16.mxu0 0
    %3031 = vmatpush1.bf16.msra.mxu0 0
    %3032 = vmatprep.subr.bf16.mxu0 0
    %3033 = vmatpush1.bf16.msra.mxu0 0
    %3034 = vmatprep.subr.bf16.mxu0 0
    %3035 = vmatpush1.bf16.msra.mxu0 0
    %3036 = vmatprep.subr.bf16.mxu0 0
    %3037 = vmatpush1.bf16.msra.mxu0 %v3020
    %3038 = vmatprep.subr.bf16.mxu0 0
    %3039 = vmatpush2.bf16.msra.mxu0 0
    %3040 = vmatprep.subr.bf16.mxu0 0
    %3041 = vmatpush2.bf16.msra.mxu0 0
    %3042 = vmatprep.subr.bf16.mxu0 0
    %3043 = vmatpush2.bf16.msra.mxu0 0
    %3044 = vmatprep.subr.bf16.mxu0 0
    %3045 = vmatpush2.bf16.msra.mxu0 0
    %3046 = vmatprep.subr.bf16.mxu0 0
    %3047 = vmatpush2.bf16.msra.mxu0 0
    %3048 = vmatprep.subr.bf16.mxu0 0
    %3049 = vmatpush2.bf16.msra.mxu0 0
    %3050 = vmatprep.subr.bf16.mxu0 0
    %3051 = vmatpush2.bf16.msra.mxu0 0
    %3052 = vmatprep.subr.bf16.mxu0 0
    %3053 = vmatpush2.bf16.msra.mxu0 0
    %3054 = vmatprep.mubr.bf16.mxu0 0
    %3055 = vmatmul.mubr.bf16.gmra.mxu0 %v3017
    %v3056 = vpop.f32.mrf.mxu0
    %v3057 = vadd.f32 0.0, %v3056
    %v3058 = vpop.f32.mrf.mxu0
    %v3059 = vpop.f32.mrf.mxu0
    %v3060 = vpop.f32.mrf.mxu0
    %3061 = vdwg.mxu0
    %v3062 = vadd.f32 %v2956, %v3057
    %s3063 = scalar_lea.vmem %s12, 264
    %v3064 = vld [vmem:[%s3063] sm:$0xf]
    %v3065 = vld [vmem:[%s3063 + $0x4] sm:$0xf]
    %v3066 = vld [vmem:[%s3063 + $0x8] sm:$0xf]
    %v3067 = vld [vmem:[%s3063 + $0xc] sm:$0xf]
    %v3068 = vld [vmem:[%s3063 + $0x10] sm:$0xf]
    %v3069 = vld [vmem:[%s3063 + $0x14] sm:$0xf]
    %v3070 = vpack.c.bf16 %v3062, %v3062
    %s3071 = scalar_lea.vmem [#allocation6], 11
    %v3072 = vld [vmem:[%s3071] sm:$0x1]
    %v3074 = vlaneseq
    %v3075 = vshrl.u32 %v3074, 7
    %v3076 = vsub.s32 0, %v3075
    %v3077 = vrot.slane %v3072, %v3076
    %v3085 = vunpack.c.l.b16 %v3064
    %v3086 = vunpack.c.l.b16 %v3065
    %v3087 = vunpack.c.l.b16 %v3066
    %v3088 = vunpack.c.l.b16 %v3067
    %v3089 = vunpack.c.l.b16 %v3068
    %v3090 = vunpack.c.l.b16 %v3069
    %v3091 = vpack.c.b16 %v3086, %v3085
    %v3092 = vpack.c.b16 %v3088, %v3087
    %v3093 = vpack.c.b16 %v3090, %v3089
    %v3095 = vsel %vm385, %v3070, 0
    %v3098 = vsel %vm385, %v3091, 0
    %v3101 = vsel %vm385, %v3092, 0
    %v3104 = vsel %vm385, %v3093, 0
    %3106 = vmatprep.subr.bf16.mxu0 0
    %3107 = vmatpush1.bf16.xpose.msra.mxu0 0
    %3108 = vmatprep.subr.bf16.mxu0 0
    %3109 = vmatpush1.bf16.xpose.msra.mxu0 0
    %3110 = vmatprep.subr.bf16.mxu0 0
    %3111 = vmatpush1.bf16.xpose.msra.mxu0 0
    %3112 = vmatprep.subr.bf16.mxu0 0
    %3113 = vmatpush1.bf16.xpose.msra.mxu0 0
    %3114 = vmatprep.subr.bf16.mxu0 0
    %3115 = vmatpush1.bf16.xpose.msra.mxu0 0
    %3116 = vmatprep.subr.bf16.mxu0 0
    %3117 = vmatpush1.bf16.xpose.msra.mxu0 %v3104
    %3118 = vmatprep.subr.bf16.mxu0 0
    %3119 = vmatpush1.bf16.xpose.msra.mxu0 %v3101
    %3120 = vmatprep.subr.bf16.mxu0 0
    %3121 = vmatpush1.bf16.xpose.msra.mxu0 %v3098
    %3122 = vmatprep.subr.bf16.mxu0 0
    %3123 = vmatpush2.bf16.xpose.msra.mxu0 0
    %3124 = vmatprep.subr.bf16.mxu0 0
    %3125 = vmatpush2.bf16.xpose.msra.mxu0 0
    %3126 = vmatprep.subr.bf16.mxu0 0
    %3127 = vmatpush2.bf16.xpose.msra.mxu0 0
    %3128 = vmatprep.subr.bf16.mxu0 0
    %3129 = vmatpush2.bf16.xpose.msra.mxu0 0
    %3130 = vmatprep.subr.bf16.mxu0 0
    %3131 = vmatpush2.bf16.xpose.msra.mxu0 0
    %3132 = vmatprep.subr.bf16.mxu0 0
    %3133 = vmatpush2.bf16.xpose.msra.mxu0 0
    %3134 = vmatprep.subr.bf16.mxu0 0
    %3135 = vmatpush2.bf16.xpose.msra.mxu0 0
    %3136 = vmatprep.subr.bf16.mxu0 0
    %3137 = vmatpush2.bf16.xpose.msra.mxu0 0
    %3138 = vmatprep.mubr.bf16.mxu0 0
    %3139 = vmatmul.mubr.bf16.gmra.mxu0 %v3095
    %v3140 = vpop.f32.mrf.mxu0
    %v3141 = vadd.f32 %v3077, %v3140
    %v3142 = vpop.f32.mrf.mxu0
    %v3143 = vpop.f32.mrf.mxu0
    %v3144 = vpop.f32.mrf.mxu0
    %3145 = vdwg.mxu0
    %v3146 = vadd.f32 %v352, %v3141
    %vm3147 = vcmask 390144
    %v3148 = vsel %vm3147, %v3146, 0.0
    %3149 = vadd.xlane.f32.xlu0 %v3148
    %v3150 = vpop.xlane.xlu0 %3149
    %v3151 = vmul.f32 %v3150, %v1136
    %v3152 = vsub.f32 %v3146, %v3151
    %v3153 = vmul.f32 %v3152, %v3152
    %v3154 = vsel %vm3147, %v3153, 0.0
    %3155 = vadd.xlane.f32.xlu0 %v3154
    %v3156 = vpop.xlane.xlu0 %3155
    %v3157 = vmul.f32 %v3156, %v1136
    %v3158 = vadd.f32 %v3157, 1e-05
    %v3159 = vrsqrt.pop %v3158
    %v3160 = vmul.f32 %v3152, %v3159
    %s3161 = scalar_lea.vmem %s18, 4
    %v3162 = vld [vmem:[%s3161] sm:$0x1]
    %v3164 = vlaneseq
    %v3165 = vshrl.u32 %v3164, 7
    %v3166 = vsub.s32 0, %v3165
    %v3167 = vrot.slane %v3162, %v3166
    %v3169 = vmul.f32 %v3160, %v3167
    %s3170 = scalar_lea.vmem [#allocation12], 4
    %v3171 = vld [vmem:[%s3170] sm:$0x1]
    %v3173 = vlaneseq
    %v3174 = vshrl.u32 %v3173, 7
    %v3175 = vsub.s32 0, %v3174
    %v3176 = vrot.slane %v3171, %v3175
    %v3178 = vadd.f32 %v3169, %v3176
    %s3179 = scalar_lea.vmem %s12, 288
    %v3180 = vld [vmem:[%s3179] sm:$0xf]
    %v3181 = vld [vmem:[%s3179 + $0x4] sm:$0xf]
    %v3182 = vld [vmem:[%s3179 + $0x8] sm:$0xf]
    %v3183 = vld [vmem:[%s3179 + $0xc] sm:$0xf]
    %v3184 = vld [vmem:[%s3179 + $0x10] sm:$0xf]
    %v3185 = vld [vmem:[%s3179 + $0x14] sm:$0xf]
    %v3186 = vpack.c.bf16 %v3178, %v3178
    %s3187 = scalar_lea.vmem [#allocation6], 12
    %v3188 = vld [vmem:[%s3187] sm:$0x1]
    %v3190 = vlaneseq
    %v3191 = vshrl.u32 %v3190, 7
    %v3192 = vsub.s32 0, %v3191
    %v3193 = vrot.slane %v3188, %v3192
    %v3201 = vunpack.c.l.b16 %v3180
    %v3202 = vunpack.c.l.b16 %v3181
    %v3203 = vunpack.c.l.b16 %v3182
    %v3204 = vunpack.c.l.b16 %v3183
    %v3205 = vunpack.c.l.b16 %v3184
    %v3206 = vunpack.c.l.b16 %v3185
    %v3207 = vpack.c.b16 %v3202, %v3201
    %v3208 = vpack.c.b16 %v3204, %v3203
    %v3209 = vpack.c.b16 %v3206, %v3205
    %v3211 = vsel %vm385, %v3186, 0
    %v3214 = vsel %vm385, %v3207, 0
    %v3217 = vsel %vm385, %v3208, 0
    %v3220 = vsel %vm385, %v3209, 0
    %3222 = vmatprep.subr.bf16.mxu0 0
    %3223 = vmatpush1.bf16.xpose.msra.mxu0 0
    %3224 = vmatprep.subr.bf16.mxu0 0
    %3225 = vmatpush1.bf16.xpose.msra.mxu0 0
    %3226 = vmatprep.subr.bf16.mxu0 0
    %3227 = vmatpush1.bf16.xpose.msra.mxu0 0
    %3228 = vmatprep.subr.bf16.mxu0 0
    %3229 = vmatpush1.bf16.xpose.msra.mxu0 0
    %3230 = vmatprep.subr.bf16.mxu0 0
    %3231 = vmatpush1.bf16.xpose.msra.mxu0 0
    %3232 = vmatprep.subr.bf16.mxu0 0
    %3233 = vmatpush1.bf16.xpose.msra.mxu0 %v3220
    %3234 = vmatprep.subr.bf16.mxu0 0
    %3235 = vmatpush1.bf16.xpose.msra.mxu0 %v3217
    %3236 = vmatprep.subr.bf16.mxu0 0
    %3237 = vmatpush1.bf16.xpose.msra.mxu0 %v3214
    %3238 = vmatprep.subr.bf16.mxu0 0
    %3239 = vmatpush2.bf16.xpose.msra.mxu0 0
    %3240 = vmatprep.subr.bf16.mxu0 0
    %3241 = vmatpush2.bf16.xpose.msra.mxu0 0
    %3242 = vmatprep.subr.bf16.mxu0 0
    %3243 = vmatpush2.bf16.xpose.msra.mxu0 0
    %3244 = vmatprep.subr.bf16.mxu0 0
    %3245 = vmatpush2.bf16.xpose.msra.mxu0 0
    %3246 = vmatprep.subr.bf16.mxu0 0
    %3247 = vmatpush2.bf16.xpose.msra.mxu0 0
    %3248 = vmatprep.subr.bf16.mxu0 0
    %3249 = vmatpush2.bf16.xpose.msra.mxu0 0
    %3250 = vmatprep.subr.bf16.mxu0 0
    %3251 = vmatpush2.bf16.xpose.msra.mxu0 0
    %3252 = vmatprep.subr.bf16.mxu0 0
    %3253 = vmatpush2.bf16.xpose.msra.mxu0 0
    %3254 = vmatprep.mubr.bf16.mxu0 0
    %3255 = vmatmul.mubr.bf16.gmra.mxu0 %v3211
    %v3256 = vpop.f32.mrf.mxu0
    %v3257 = vadd.f32 %v3193, %v3256
    %v3258 = vpop.f32.mrf.mxu0
    %v3259 = vpop.f32.mrf.mxu0
    %v3260 = vpop.f32.mrf.mxu0
    %3261 = vdwg.mxu0
    %v3262 = vmul.f32 %v3257, 0.28867513
    %s3263 = scalar_lea.vmem %s12, 312
    %v3264 = vld [vmem:[%s3263] sm:$0xf]
    %v3265 = vld [vmem:[%s3263 + $0x4] sm:$0xf]
    %v3266 = vld [vmem:[%s3263 + $0x8] sm:$0xf]
    %v3267 = vld [vmem:[%s3263 + $0xc] sm:$0xf]
    %v3268 = vld [vmem:[%s3263 + $0x10] sm:$0xf]
    %v3269 = vld [vmem:[%s3263 + $0x14] sm:$0xf]
    %v3270 = vpack.c.bf16 %v2391, %v2391
    %s3271 = scalar_lea.vmem [#allocation6], 13
    %v3272 = vld [vmem:[%s3271] sm:$0x1]
    %v3274 = vlaneseq
    %v3275 = vshrl.u32 %v3274, 7
    %v3276 = vsub.s32 0, %v3275
    %v3277 = vrot.slane %v3272, %v3276
    %v3285 = vunpack.c.l.b16 %v3264
    %v3286 = vunpack.c.l.b16 %v3265
    %v3287 = vunpack.c.l.b16 %v3266
    %v3288 = vunpack.c.l.b16 %v3267
    %v3289 = vunpack.c.l.b16 %v3268
    %v3290 = vunpack.c.l.b16 %v3269
    %v3291 = vpack.c.b16 %v3286, %v3285
    %v3292 = vpack.c.b16 %v3288, %v3287
    %v3293 = vpack.c.b16 %v3290, %v3289
    %v3295 = vsel %vm385, %v3270, 0
    %v3298 = vsel %vm385, %v3291, 0
    %v3301 = vsel %vm385, %v3292, 0
    %v3304 = vsel %vm385, %v3293, 0
    %3306 = vmatprep.subr.bf16.mxu0 0
    %3307 = vmatpush1.bf16.xpose.msra.mxu0 0
    %3308 = vmatprep.subr.bf16.mxu0 0
    %3309 = vmatpush1.bf16.xpose.msra.mxu0 0
    %3310 = vmatprep.subr.bf16.mxu0 0
    %3311 = vmatpush1.bf16.xpose.msra.mxu0 0
    %3312 = vmatprep.subr.bf16.mxu0 0
    %3313 = vmatpush1.bf16.xpose.msra.mxu0 0
    %3314 = vmatprep.subr.bf16.mxu0 0
    %3315 = vmatpush1.bf16.xpose.msra.mxu0 0
    %3316 = vmatprep.subr.bf16.mxu0 0
    %3317 = vmatpush1.bf16.xpose.msra.mxu0 %v3304
    %3318 = vmatprep.subr.bf16.mxu0 0
    %3319 = vmatpush1.bf16.xpose.msra.mxu0 %v3301
    %3320 = vmatprep.subr.bf16.mxu0 0
    %3321 = vmatpush1.bf16.xpose.msra.mxu0 %v3298
    %3322 = vmatprep.subr.bf16.mxu0 0
    %3323 = vmatpush2.bf16.xpose.msra.mxu0 0
    %3324 = vmatprep.subr.bf16.mxu0 0
    %3325 = vmatpush2.bf16.xpose.msra.mxu0 0
    %3326 = vmatprep.subr.bf16.mxu0 0
    %3327 = vmatpush2.bf16.xpose.msra.mxu0 0
    %3328 = vmatprep.subr.bf16.mxu0 0
    %3329 = vmatpush2.bf16.xpose.msra.mxu0 0
    %3330 = vmatprep.subr.bf16.mxu0 0
    %3331 = vmatpush2.bf16.xpose.msra.mxu0 0
    %3332 = vmatprep.subr.bf16.mxu0 0
    %3333 = vmatpush2.bf16.xpose.msra.mxu0 0
    %3334 = vmatprep.subr.bf16.mxu0 0
    %3335 = vmatpush2.bf16.xpose.msra.mxu0 0
    %3336 = vmatprep.subr.bf16.mxu0 0
    %3337 = vmatpush2.bf16.xpose.msra.mxu0 0
    %3338 = vmatprep.mubr.bf16.mxu0 0
    %3339 = vmatmul.mubr.bf16.gmra.mxu0 %v3295
    %v3340 = vpop.f32.mrf.mxu0
    %v3341 = vadd.f32 %v3277, %v3340
    %v3342 = vpop.f32.mrf.mxu0
    %v3343 = vpop.f32.mrf.mxu0
    %v3344 = vpop.f32.mrf.mxu0
    %3345 = vdwg.mxu0
    %s3346 = scalar_lea.vmem %s12, 336
    %v3347 = vld [vmem:[%s3346] sm:$0xf]
    %v3348 = vld [vmem:[%s3346 + $0x4] sm:$0xf]
    %v3349 = vld [vmem:[%s3346 + $0x8] sm:$0xf]
    %v3350 = vld [vmem:[%s3346 + $0xc] sm:$0xf]
    %v3351 = vld [vmem:[%s3346 + $0x10] sm:$0xf]
    %v3352 = vld [vmem:[%s3346 + $0x14] sm:$0xf]
    %s3353 = scalar_lea.vmem [#allocation6], 14
    %v3354 = vld [vmem:[%s3353] sm:$0x1]
    %v3356 = vlaneseq
    %v3357 = vshrl.u32 %v3356, 7
    %v3358 = vsub.s32 0, %v3357
    %v3359 = vrot.slane %v3354, %v3358
    %v3367 = vunpack.c.l.b16 %v3347
    %v3368 = vunpack.c.l.b16 %v3348
    %v3369 = vunpack.c.l.b16 %v3349
    %v3370 = vunpack.c.l.b16 %v3350
    %v3371 = vunpack.c.l.b16 %v3351
    %v3372 = vunpack.c.l.b16 %v3352
    %v3373 = vpack.c.b16 %v3368, %v3367
    %v3374 = vpack.c.b16 %v3370, %v3369
    %v3375 = vpack.c.b16 %v3372, %v3371
    %v3377 = vsel %vm385, %v3373, 0
    %v3380 = vsel %vm385, %v3374, 0
    %v3383 = vsel %vm385, %v3375, 0
    %3385 = vmatprep.subr.bf16.mxu0 0
    %3386 = vmatpush1.bf16.xpose.msra.mxu0 0
    %3387 = vmatprep.subr.bf16.mxu0 0
    %3388 = vmatpush1.bf16.xpose.msra.mxu0 0
    %3389 = vmatprep.subr.bf16.mxu0 0
    %3390 = vmatpush1.bf16.xpose.msra.mxu0 0
    %3391 = vmatprep.subr.bf16.mxu0 0
    %3392 = vmatpush1.bf16.xpose.msra.mxu0 0
    %3393 = vmatprep.subr.bf16.mxu0 0
    %3394 = vmatpush1.bf16.xpose.msra.mxu0 0
    %3395 = vmatprep.subr.bf16.mxu0 0
    %3396 = vmatpush1.bf16.xpose.msra.mxu0 %v3383
    %3397 = vmatprep.subr.bf16.mxu0 0
    %3398 = vmatpush1.bf16.xpose.msra.mxu0 %v3380
    %3399 = vmatprep.subr.bf16.mxu0 0
    %3400 = vmatpush1.bf16.xpose.msra.mxu0 %v3377
    %3401 = vmatprep.subr.bf16.mxu0 0
    %3402 = vmatpush2.bf16.xpose.msra.mxu0 0
    %3403 = vmatprep.subr.bf16.mxu0 0
    %3404 = vmatpush2.bf16.xpose.msra.mxu0 0
    %3405 = vmatprep.subr.bf16.mxu0 0
    %3406 = vmatpush2.bf16.xpose.msra.mxu0 0
    %3407 = vmatprep.subr.bf16.mxu0 0
    %3408 = vmatpush2.bf16.xpose.msra.mxu0 0
    %3409 = vmatprep.subr.bf16.mxu0 0
    %3410 = vmatpush2.bf16.xpose.msra.mxu0 0
    %3411 = vmatprep.subr.bf16.mxu0 0
    %3412 = vmatpush2.bf16.xpose.msra.mxu0 0
    %3413 = vmatprep.subr.bf16.mxu0 0
    %3414 = vmatpush2.bf16.xpose.msra.mxu0 0
    %3415 = vmatprep.subr.bf16.mxu0 0
    %3416 = vmatpush2.bf16.xpose.msra.mxu0 0
    %3417 = vmatprep.mubr.bf16.mxu0 0
    %3418 = vmatmul.mubr.bf16.gmra.mxu0 %v3295
    %v3419 = vpop.f32.mrf.mxu0
    %v3420 = vadd.f32 %v3359, %v3419
    %v3421 = vpop.f32.mrf.mxu0
    %v3422 = vpop.f32.mrf.mxu0
    %v3423 = vpop.f32.mrf.mxu0
    %3424 = vdwg.mxu0
    %v3425 = vmul.f32 %v3262, %v601
    %v3426 = vpack.c.bf16 %v3425, %v3425
    %v3427 = vpack.c.bf16 %v3341, %v3341
    %v3429 = vsel %vm385, %v3426, 0
    %v3432 = vsel %vm385, %v3427, 0
    %3434 = vmatprep.subr.bf16.mxu0 0
    %3435 = vmatpush1.bf16.xpose.msra.mxu0 0
    %3436 = vmatprep.subr.bf16.mxu0 0
    %3437 = vmatpush1.bf16.xpose.msra.mxu0 0
    %3438 = vmatprep.subr.bf16.mxu0 0
    %3439 = vmatpush1.bf16.xpose.msra.mxu0 0
    %3440 = vmatprep.subr.bf16.mxu0 0
    %3441 = vmatpush1.bf16.xpose.msra.mxu0 0
    %3442 = vmatprep.subr.bf16.mxu0 0
    %3443 = vmatpush1.bf16.xpose.msra.mxu0 0
    %3444 = vmatprep.subr.bf16.mxu0 0
    %3445 = vmatpush1.bf16.xpose.msra.mxu0 0
    %3446 = vmatprep.subr.bf16.mxu0 0
    %3447 = vmatpush1.bf16.xpose.msra.mxu0 0
    %3448 = vmatprep.subr.bf16.mxu0 0
    %3449 = vmatpush1.bf16.xpose.msra.mxu0 %v3432
    %3450 = vmatprep.subr.bf16.mxu0 0
    %3451 = vmatpush2.bf16.xpose.msra.mxu0 0
    %3452 = vmatprep.subr.bf16.mxu0 0
    %3453 = vmatpush2.bf16.xpose.msra.mxu0 0
    %3454 = vmatprep.subr.bf16.mxu0 0
    %3455 = vmatpush2.bf16.xpose.msra.mxu0 0
    %3456 = vmatprep.subr.bf16.mxu0 0
    %3457 = vmatpush2.bf16.xpose.msra.mxu0 0
    %3458 = vmatprep.subr.bf16.mxu0 0
    %3459 = vmatpush2.bf16.xpose.msra.mxu0 0
    %3460 = vmatprep.subr.bf16.mxu0 0
    %3461 = vmatpush2.bf16.xpose.msra.mxu0 0
    %3462 = vmatprep.subr.bf16.mxu0 0
    %3463 = vmatpush2.bf16.xpose.msra.mxu0 0
    %3464 = vmatprep.subr.bf16.mxu0 0
    %3465 = vmatpush2.bf16.xpose.msra.mxu0 0
    %3466 = vmatprep.mubr.bf16.mxu0 0
    %3467 = vmatmul.mubr.bf16.gmra.mxu0 %v3429
    %v3468 = vpop.f32.mrf.mxu0
    %v3469 = vadd.f32 %v355, %v3468
    %v3470 = vpop.f32.mrf.mxu0
    %v3471 = vpop.f32.mrf.mxu0
    %v3472 = vpop.f32.mrf.mxu0
    %3473 = vdwg.mxu0
    %vm3474 = vcmask 62464
    %v3475 = vsel %vm3474, %v3469, -inf
    %3476 = vmax.xlane.f32.xlu0 %v3475
    %v3477 = vpop.xlane.xlu0 %3476
    %v3478 = vsub.f32 %v3469, %v3477
    %v3479 = vmul.f32 %v3478, 1.442695
    %v3480 = vpow.pop %v3479
    %v3481 = vsel %vm3474, %v3480, 0.0
    %3482 = vadd.xlane.f32.xlu0 %v3481
    %v3483 = vpop.xlane.xlu0 %3482
    %v3484 = vrcp.pop %v3483
    %v3485 = vmul.f32 %v3480, %v3484
    %v3486 = vmul.f32 %v3420, %v601
    %v3487 = vpack.c.bf16 %v3485, %v3485
    %v3488 = vpack.c.bf16 %v3486, %v3486
    %v3489 = vmul.f32 %v3262, %v671
    %v3490 = vpack.c.bf16 %v3489, %v3489
    %v3492 = vsel %vm385, %v3490, 0
    %3494 = vmatprep.subr.bf16.mxu0 0
    %3495 = vmatpush1.bf16.xpose.msra.mxu0 0
    %3496 = vmatprep.subr.bf16.mxu0 0
    %3497 = vmatpush1.bf16.xpose.msra.mxu0 0
    %3498 = vmatprep.subr.bf16.mxu0 0
    %3499 = vmatpush1.bf16.xpose.msra.mxu0 0
    %3500 = vmatprep.subr.bf16.mxu0 0
    %3501 = vmatpush1.bf16.xpose.msra.mxu0 0
    %3502 = vmatprep.subr.bf16.mxu0 0
    %3503 = vmatpush1.bf16.xpose.msra.mxu0 0
    %3504 = vmatprep.subr.bf16.mxu0 0
    %3505 = vmatpush1.bf16.xpose.msra.mxu0 0
    %3506 = vmatprep.subr.bf16.mxu0 0
    %3507 = vmatpush1.bf16.xpose.msra.mxu0 0
    %3508 = vmatprep.subr.bf16.mxu0 0
    %3509 = vmatpush1.bf16.xpose.msra.mxu0 %v3432
    %3510 = vmatprep.subr.bf16.mxu0 0
    %3511 = vmatpush2.bf16.xpose.msra.mxu0 0
    %3512 = vmatprep.subr.bf16.mxu0 0
    %3513 = vmatpush2.bf16.xpose.msra.mxu0 0
    %3514 = vmatprep.subr.bf16.mxu0 0
    %3515 = vmatpush2.bf16.xpose.msra.mxu0 0
    %3516 = vmatprep.subr.bf16.mxu0 0
    %3517 = vmatpush2.bf16.xpose.msra.mxu0 0
    %3518 = vmatprep.subr.bf16.mxu0 0
    %3519 = vmatpush2.bf16.xpose.msra.mxu0 0
    %3520 = vmatprep.subr.bf16.mxu0 0
    %3521 = vmatpush2.bf16.xpose.msra.mxu0 0
    %3522 = vmatprep.subr.bf16.mxu0 0
    %3523 = vmatpush2.bf16.xpose.msra.mxu0 0
    %3524 = vmatprep.subr.bf16.mxu0 0
    %3525 = vmatpush2.bf16.xpose.msra.mxu0 0
    %3526 = vmatprep.mubr.bf16.mxu0 0
    %3527 = vmatmul.mubr.bf16.gmra.mxu0 %v3492
    %v3528 = vpop.f32.mrf.mxu0
    %v3529 = vadd.f32 %v355, %v3528
    %v3530 = vpop.f32.mrf.mxu0
    %v3531 = vpop.f32.mrf.mxu0
    %v3532 = vpop.f32.mrf.mxu0
    %3533 = vdwg.mxu0
    %v3534 = vsel %vm3474, %v3529, -inf
    %3535 = vmax.xlane.f32.xlu0 %v3534
    %v3536 = vpop.xlane.xlu0 %3535
    %v3537 = vsub.f32 %v3529, %v3536
    %v3538 = vmul.f32 %v3537, 1.442695
    %v3539 = vpow.pop %v3538
    %v3540 = vsel %vm3474, %v3539, 0.0
    %3541 = vadd.xlane.f32.xlu0 %v3540
    %v3542 = vpop.xlane.xlu0 %3541
    %v3543 = vrcp.pop %v3542
    %v3544 = vmul.f32 %v3539, %v3543
    %v3545 = vmul.f32 %v3420, %v671
    %v3546 = vpack.c.bf16 %v3544, %v3544
    %v3547 = vpack.c.bf16 %v3545, %v3545
    %v3549 = vsel %vm652, %v3546, 0
    %v3552 = vsel %vm735, %v3547, 0
    %3554 = vmatprep.subr.bf16.mxu0 0
    %3555 = vmatpush1.bf16.msra.mxu0 0
    %3556 = vmatprep.subr.bf16.mxu0 0
    %3557 = vmatpush1.bf16.msra.mxu0 0
    %3558 = vmatprep.subr.bf16.mxu0 0
    %3559 = vmatpush1.bf16.msra.mxu0 0
    %3560 = vmatprep.subr.bf16.mxu0 0
    %3561 = vmatpush1.bf16.msra.mxu0 0
    %3562 = vmatprep.subr.bf16.mxu0 0
    %3563 = vmatpush1.bf16.msra.mxu0 0
    %3564 = vmatprep.subr.bf16.mxu0 0
    %3565 = vmatpush1.bf16.msra.mxu0 0
    %3566 = vmatprep.subr.bf16.mxu0 0
    %3567 = vmatpush1.bf16.msra.mxu0 0
    %3568 = vmatprep.subr.bf16.mxu0 0
    %3569 = vmatpush1.bf16.msra.mxu0 %v3552
    %3570 = vmatprep.subr.bf16.mxu0 0
    %3571 = vmatpush2.bf16.msra.mxu0 0
    %3572 = vmatprep.subr.bf16.mxu0 0
    %3573 = vmatpush2.bf16.msra.mxu0 0
    %3574 = vmatprep.subr.bf16.mxu0 0
    %3575 = vmatpush2.bf16.msra.mxu0 0
    %3576 = vmatprep.subr.bf16.mxu0 0
    %3577 = vmatpush2.bf16.msra.mxu0 0
    %3578 = vmatprep.subr.bf16.mxu0 0
    %3579 = vmatpush2.bf16.msra.mxu0 0
    %3580 = vmatprep.subr.bf16.mxu0 0
    %3581 = vmatpush2.bf16.msra.mxu0 0
    %3582 = vmatprep.subr.bf16.mxu0 0
    %3583 = vmatpush2.bf16.msra.mxu0 0
    %3584 = vmatprep.subr.bf16.mxu0 0
    %3585 = vmatpush2.bf16.msra.mxu0 0
    %3586 = vmatprep.mubr.bf16.mxu0 0
    %3587 = vmatmul.mubr.bf16.gmra.mxu0 %v3549
    %v3588 = vpop.f32.mrf.mxu0
    %v3589 = vadd.f32 0.0, %v3588
    %v3590 = vpop.f32.mrf.mxu0
    %v3591 = vpop.f32.mrf.mxu0
    %v3592 = vpop.f32.mrf.mxu0
    %3593 = vdwg.mxu0
    %v3595 = vsel %vm652, %v3487, 0
    %v3598 = vsel %vm735, %v3488, 0
    %3600 = vmatprep.subr.bf16.mxu0 0
    %3601 = vmatpush1.bf16.msra.mxu0 0
    %3602 = vmatprep.subr.bf16.mxu0 0
    %3603 = vmatpush1.bf16.msra.mxu0 0
    %3604 = vmatprep.subr.bf16.mxu0 0
    %3605 = vmatpush1.bf16.msra.mxu0 0
    %3606 = vmatprep.subr.bf16.mxu0 0
    %3607 = vmatpush1.bf16.msra.mxu0 0
    %3608 = vmatprep.subr.bf16.mxu0 0
    %3609 = vmatpush1.bf16.msra.mxu0 0
    %3610 = vmatprep.subr.bf16.mxu0 0
    %3611 = vmatpush1.bf16.msra.mxu0 0
    %3612 = vmatprep.subr.bf16.mxu0 0
    %3613 = vmatpush1.bf16.msra.mxu0 0
    %3614 = vmatprep.subr.bf16.mxu0 0
    %3615 = vmatpush1.bf16.msra.mxu0 %v3598
    %3616 = vmatprep.subr.bf16.mxu0 0
    %3617 = vmatpush2.bf16.msra.mxu0 0
    %3618 = vmatprep.subr.bf16.mxu0 0
    %3619 = vmatpush2.bf16.msra.mxu0 0
    %3620 = vmatprep.subr.bf16.mxu0 0
    %3621 = vmatpush2.bf16.msra.mxu0 0
    %3622 = vmatprep.subr.bf16.mxu0 0
    %3623 = vmatpush2.bf16.msra.mxu0 0
    %3624 = vmatprep.subr.bf16.mxu0 0
    %3625 = vmatpush2.bf16.msra.mxu0 0
    %3626 = vmatprep.subr.bf16.mxu0 0
    %3627 = vmatpush2.bf16.msra.mxu0 0
    %3628 = vmatprep.subr.bf16.mxu0 0
    %3629 = vmatpush2.bf16.msra.mxu0 0
    %3630 = vmatprep.subr.bf16.mxu0 0
    %3631 = vmatpush2.bf16.msra.mxu0 0
    %3632 = vmatprep.mubr.bf16.mxu0 0
    %3633 = vmatmul.mubr.bf16.gmra.mxu0 %v3595
    %v3634 = vpop.f32.mrf.mxu0
    %v3635 = vadd.f32 %v3589, %v3634
    %v3636 = vpop.f32.mrf.mxu0
    %v3637 = vpop.f32.mrf.mxu0
    %v3638 = vpop.f32.mrf.mxu0
    %3639 = vdwg.mxu0
    %v3640 = vmul.f32 %v3262, %v829
    %v3641 = vpack.c.bf16 %v3640, %v3640
    %v3643 = vsel %vm385, %v3641, 0
    %3645 = vmatprep.subr.bf16.mxu0 0
    %3646 = vmatpush1.bf16.xpose.msra.mxu0 0
    %3647 = vmatprep.subr.bf16.mxu0 0
    %3648 = vmatpush1.bf16.xpose.msra.mxu0 0
    %3649 = vmatprep.subr.bf16.mxu0 0
    %3650 = vmatpush1.bf16.xpose.msra.mxu0 0
    %3651 = vmatprep.subr.bf16.mxu0 0
    %3652 = vmatpush1.bf16.xpose.msra.mxu0 0
    %3653 = vmatprep.subr.bf16.mxu0 0
    %3654 = vmatpush1.bf16.xpose.msra.mxu0 0
    %3655 = vmatprep.subr.bf16.mxu0 0
    %3656 = vmatpush1.bf16.xpose.msra.mxu0 0
    %3657 = vmatprep.subr.bf16.mxu0 0
    %3658 = vmatpush1.bf16.xpose.msra.mxu0 0
    %3659 = vmatprep.subr.bf16.mxu0 0
    %3660 = vmatpush1.bf16.xpose.msra.mxu0 %v3432
    %3661 = vmatprep.subr.bf16.mxu0 0
    %3662 = vmatpush2.bf16.xpose.msra.mxu0 0
    %3663 = vmatprep.subr.bf16.mxu0 0
    %3664 = vmatpush2.bf16.xpose.msra.mxu0 0
    %3665 = vmatprep.subr.bf16.mxu0 0
    %3666 = vmatpush2.bf16.xpose.msra.mxu0 0
    %3667 = vmatprep.subr.bf16.mxu0 0
    %3668 = vmatpush2.bf16.xpose.msra.mxu0 0
    %3669 = vmatprep.subr.bf16.mxu0 0
    %3670 = vmatpush2.bf16.xpose.msra.mxu0 0
    %3671 = vmatprep.subr.bf16.mxu0 0
    %3672 = vmatpush2.bf16.xpose.msra.mxu0 0
    %3673 = vmatprep.subr.bf16.mxu0 0
    %3674 = vmatpush2.bf16.xpose.msra.mxu0 0
    %3675 = vmatprep.subr.bf16.mxu0 0
    %3676 = vmatpush2.bf16.xpose.msra.mxu0 0
    %3677 = vmatprep.mubr.bf16.mxu0 0
    %3678 = vmatmul.mubr.bf16.gmra.mxu0 %v3643
    %v3679 = vpop.f32.mrf.mxu0
    %v3680 = vadd.f32 %v355, %v3679
    %v3681 = vpop.f32.mrf.mxu0
    %v3682 = vpop.f32.mrf.mxu0
    %v3683 = vpop.f32.mrf.mxu0
    %3684 = vdwg.mxu0
    %v3685 = vsel %vm3474, %v3680, -inf
    %3686 = vmax.xlane.f32.xlu0 %v3685
    %v3687 = vpop.xlane.xlu0 %3686
    %v3688 = vsub.f32 %v3680, %v3687
    %v3689 = vmul.f32 %v3688, 1.442695
    %v3690 = vpow.pop %v3689
    %v3691 = vsel %vm3474, %v3690, 0.0
    %3692 = vadd.xlane.f32.xlu0 %v3691
    %v3693 = vpop.xlane.xlu0 %3692
    %v3694 = vrcp.pop %v3693
    %v3695 = vmul.f32 %v3690, %v3694
    %v3696 = vmul.f32 %v3420, %v829
    %v3697 = vpack.c.bf16 %v3695, %v3695
    %v3698 = vpack.c.bf16 %v3696, %v3696
    %v3700 = vsel %vm652, %v3697, 0
    %v3703 = vsel %vm735, %v3698, 0
    %3705 = vmatprep.subr.bf16.mxu0 0
    %3706 = vmatpush1.bf16.msra.mxu0 0
    %3707 = vmatprep.subr.bf16.mxu0 0
    %3708 = vmatpush1.bf16.msra.mxu0 0
    %3709 = vmatprep.subr.bf16.mxu0 0
    %3710 = vmatpush1.bf16.msra.mxu0 0
    %3711 = vmatprep.subr.bf16.mxu0 0
    %3712 = vmatpush1.bf16.msra.mxu0 0
    %3713 = vmatprep.subr.bf16.mxu0 0
    %3714 = vmatpush1.bf16.msra.mxu0 0
    %3715 = vmatprep.subr.bf16.mxu0 0
    %3716 = vmatpush1.bf16.msra.mxu0 0
    %3717 = vmatprep.subr.bf16.mxu0 0
    %3718 = vmatpush1.bf16.msra.mxu0 0
    %3719 = vmatprep.subr.bf16.mxu0 0
    %3720 = vmatpush1.bf16.msra.mxu0 %v3703
    %3721 = vmatprep.subr.bf16.mxu0 0
    %3722 = vmatpush2.bf16.msra.mxu0 0
    %3723 = vmatprep.subr.bf16.mxu0 0
    %3724 = vmatpush2.bf16.msra.mxu0 0
    %3725 = vmatprep.subr.bf16.mxu0 0
    %3726 = vmatpush2.bf16.msra.mxu0 0
    %3727 = vmatprep.subr.bf16.mxu0 0
    %3728 = vmatpush2.bf16.msra.mxu0 0
    %3729 = vmatprep.subr.bf16.mxu0 0
    %3730 = vmatpush2.bf16.msra.mxu0 0
    %3731 = vmatprep.subr.bf16.mxu0 0
    %3732 = vmatpush2.bf16.msra.mxu0 0
    %3733 = vmatprep.subr.bf16.mxu0 0
    %3734 = vmatpush2.bf16.msra.mxu0 0
    %3735 = vmatprep.subr.bf16.mxu0 0
    %3736 = vmatpush2.bf16.msra.mxu0 0
    %3737 = vmatprep.mubr.bf16.mxu0 0
    %3738 = vmatmul.mubr.bf16.gmra.mxu0 %v3700
    %v3739 = vpop.f32.mrf.mxu0
    %v3740 = vadd.f32 0.0, %v3739
    %v3741 = vpop.f32.mrf.mxu0
    %v3742 = vpop.f32.mrf.mxu0
    %v3743 = vpop.f32.mrf.mxu0
    %3744 = vdwg.mxu0
    %v3745 = vadd.f32 %v3635, %v3740
    %v3746 = vmul.f32 %v3262, %v941
    %v3747 = vpack.c.bf16 %v3746, %v3746
    %v3749 = vsel %vm385, %v3747, 0
    %3751 = vmatprep.subr.bf16.mxu0 0
    %3752 = vmatpush1.bf16.xpose.msra.mxu0 0
    %3753 = vmatprep.subr.bf16.mxu0 0
    %3754 = vmatpush1.bf16.xpose.msra.mxu0 0
    %3755 = vmatprep.subr.bf16.mxu0 0
    %3756 = vmatpush1.bf16.xpose.msra.mxu0 0
    %3757 = vmatprep.subr.bf16.mxu0 0
    %3758 = vmatpush1.bf16.xpose.msra.mxu0 0
    %3759 = vmatprep.subr.bf16.mxu0 0
    %3760 = vmatpush1.bf16.xpose.msra.mxu0 0
    %3761 = vmatprep.subr.bf16.mxu0 0
    %3762 = vmatpush1.bf16.xpose.msra.mxu0 0
    %3763 = vmatprep.subr.bf16.mxu0 0
    %3764 = vmatpush1.bf16.xpose.msra.mxu0 0
    %3765 = vmatprep.subr.bf16.mxu0 0
    %3766 = vmatpush1.bf16.xpose.msra.mxu0 %v3432
    %3767 = vmatprep.subr.bf16.mxu0 0
    %3768 = vmatpush2.bf16.xpose.msra.mxu0 0
    %3769 = vmatprep.subr.bf16.mxu0 0
    %3770 = vmatpush2.bf16.xpose.msra.mxu0 0
    %3771 = vmatprep.subr.bf16.mxu0 0
    %3772 = vmatpush2.bf16.xpose.msra.mxu0 0
    %3773 = vmatprep.subr.bf16.mxu0 0
    %3774 = vmatpush2.bf16.xpose.msra.mxu0 0
    %3775 = vmatprep.subr.bf16.mxu0 0
    %3776 = vmatpush2.bf16.xpose.msra.mxu0 0
    %3777 = vmatprep.subr.bf16.mxu0 0
    %3778 = vmatpush2.bf16.xpose.msra.mxu0 0
    %3779 = vmatprep.subr.bf16.mxu0 0
    %3780 = vmatpush2.bf16.xpose.msra.mxu0 0
    %3781 = vmatprep.subr.bf16.mxu0 0
    %3782 = vmatpush2.bf16.xpose.msra.mxu0 0
    %3783 = vmatprep.mubr.bf16.mxu0 0
    %3784 = vmatmul.mubr.bf16.gmra.mxu0 %v3749
    %v3785 = vpop.f32.mrf.mxu0
    %v3786 = vadd.f32 %v355, %v3785
    %v3787 = vpop.f32.mrf.mxu0
    %v3788 = vpop.f32.mrf.mxu0
    %v3789 = vpop.f32.mrf.mxu0
    %3790 = vdwg.mxu0
    %v3791 = vsel %vm3474, %v3786, -inf
    %3792 = vmax.xlane.f32.xlu0 %v3791
    %v3793 = vpop.xlane.xlu0 %3792
    %v3794 = vsub.f32 %v3786, %v3793
    %v3795 = vmul.f32 %v3794, 1.442695
    %v3796 = vpow.pop %v3795
    %v3797 = vsel %vm3474, %v3796, 0.0
    %3798 = vadd.xlane.f32.xlu0 %v3797
    %v3799 = vpop.xlane.xlu0 %3798
    %v3800 = vrcp.pop %v3799
    %v3801 = vmul.f32 %v3796, %v3800
    %v3802 = vmul.f32 %v3420, %v941
    %v3803 = vpack.c.bf16 %v3801, %v3801
    %v3804 = vpack.c.bf16 %v3802, %v3802
    %v3806 = vsel %vm652, %v3803, 0
    %v3809 = vsel %vm735, %v3804, 0
    %3811 = vmatprep.subr.bf16.mxu0 0
    %3812 = vmatpush1.bf16.msra.mxu0 0
    %3813 = vmatprep.subr.bf16.mxu0 0
    %3814 = vmatpush1.bf16.msra.mxu0 0
    %3815 = vmatprep.subr.bf16.mxu0 0
    %3816 = vmatpush1.bf16.msra.mxu0 0
    %3817 = vmatprep.subr.bf16.mxu0 0
    %3818 = vmatpush1.bf16.msra.mxu0 0
    %3819 = vmatprep.subr.bf16.mxu0 0
    %3820 = vmatpush1.bf16.msra.mxu0 0
    %3821 = vmatprep.subr.bf16.mxu0 0
    %3822 = vmatpush1.bf16.msra.mxu0 0
    %3823 = vmatprep.subr.bf16.mxu0 0
    %3824 = vmatpush1.bf16.msra.mxu0 0
    %3825 = vmatprep.subr.bf16.mxu0 0
    %3826 = vmatpush1.bf16.msra.mxu0 %v3809
    %3827 = vmatprep.subr.bf16.mxu0 0
    %3828 = vmatpush2.bf16.msra.mxu0 0
    %3829 = vmatprep.subr.bf16.mxu0 0
    %3830 = vmatpush2.bf16.msra.mxu0 0
    %3831 = vmatprep.subr.bf16.mxu0 0
    %3832 = vmatpush2.bf16.msra.mxu0 0
    %3833 = vmatprep.subr.bf16.mxu0 0
    %3834 = vmatpush2.bf16.msra.mxu0 0
    %3835 = vmatprep.subr.bf16.mxu0 0
    %3836 = vmatpush2.bf16.msra.mxu0 0
    %3837 = vmatprep.subr.bf16.mxu0 0
    %3838 = vmatpush2.bf16.msra.mxu0 0
    %3839 = vmatprep.subr.bf16.mxu0 0
    %3840 = vmatpush2.bf16.msra.mxu0 0
    %3841 = vmatprep.subr.bf16.mxu0 0
    %3842 = vmatpush2.bf16.msra.mxu0 0
    %3843 = vmatprep.mubr.bf16.mxu0 0
    %3844 = vmatmul.mubr.bf16.gmra.mxu0 %v3806
    %v3845 = vpop.f32.mrf.mxu0
    %v3846 = vadd.f32 0.0, %v3845
    %v3847 = vpop.f32.mrf.mxu0
    %v3848 = vpop.f32.mrf.mxu0
    %v3849 = vpop.f32.mrf.mxu0
    %3850 = vdwg.mxu0
    %v3851 = vadd.f32 %v3745, %v3846
    %s3852 = scalar_lea.vmem %s12, 360
    %v3853 = vld [vmem:[%s3852] sm:$0xf]
    %v3854 = vld [vmem:[%s3852 + $0x4] sm:$0xf]
    %v3855 = vld [vmem:[%s3852 + $0x8] sm:$0xf]
    %v3856 = vld [vmem:[%s3852 + $0xc] sm:$0xf]
    %v3857 = vld [vmem:[%s3852 + $0x10] sm:$0xf]
    %v3858 = vld [vmem:[%s3852 + $0x14] sm:$0xf]
    %v3859 = vpack.c.bf16 %v3851, %v3851
    %s3860 = scalar_lea.vmem [#allocation6], 15
    %v3861 = vld [vmem:[%s3860] sm:$0x1]
    %v3863 = vlaneseq
    %v3864 = vshrl.u32 %v3863, 7
    %v3865 = vsub.s32 0, %v3864
    %v3866 = vrot.slane %v3861, %v3865
    %v3874 = vunpack.c.l.b16 %v3853
    %v3875 = vunpack.c.l.b16 %v3854
    %v3876 = vunpack.c.l.b16 %v3855
    %v3877 = vunpack.c.l.b16 %v3856
    %v3878 = vunpack.c.l.b16 %v3857
    %v3879 = vunpack.c.l.b16 %v3858
    %v3880 = vpack.c.b16 %v3875, %v3874
    %v3881 = vpack.c.b16 %v3877, %v3876
    %v3882 = vpack.c.b16 %v3879, %v3878
    %v3884 = vsel %vm385, %v3859, 0
    %v3887 = vsel %vm385, %v3880, 0
    %v3890 = vsel %vm385, %v3881, 0
    %v3893 = vsel %vm385, %v3882, 0
    %3895 = vmatprep.subr.bf16.mxu0 0
    %3896 = vmatpush1.bf16.xpose.msra.mxu0 0
    %3897 = vmatprep.subr.bf16.mxu0 0
    %3898 = vmatpush1.bf16.xpose.msra.mxu0 0
    %3899 = vmatprep.subr.bf16.mxu0 0
    %3900 = vmatpush1.bf16.xpose.msra.mxu0 0
    %3901 = vmatprep.subr.bf16.mxu0 0
    %3902 = vmatpush1.bf16.xpose.msra.mxu0 0
    %3903 = vmatprep.subr.bf16.mxu0 0
    %3904 = vmatpush1.bf16.xpose.msra.mxu0 0
    %3905 = vmatprep.subr.bf16.mxu0 0
    %3906 = vmatpush1.bf16.xpose.msra.mxu0 %v3893
    %3907 = vmatprep.subr.bf16.mxu0 0
    %3908 = vmatpush1.bf16.xpose.msra.mxu0 %v3890
    %3909 = vmatprep.subr.bf16.mxu0 0
    %3910 = vmatpush1.bf16.xpose.msra.mxu0 %v3887
    %3911 = vmatprep.subr.bf16.mxu0 0
    %3912 = vmatpush2.bf16.xpose.msra.mxu0 0
    %3913 = vmatprep.subr.bf16.mxu0 0
    %3914 = vmatpush2.bf16.xpose.msra.mxu0 0
    %3915 = vmatprep.subr.bf16.mxu0 0
    %3916 = vmatpush2.bf16.xpose.msra.mxu0 0
    %3917 = vmatprep.subr.bf16.mxu0 0
    %3918 = vmatpush2.bf16.xpose.msra.mxu0 0
    %3919 = vmatprep.subr.bf16.mxu0 0
    %3920 = vmatpush2.bf16.xpose.msra.mxu0 0
    %3921 = vmatprep.subr.bf16.mxu0 0
    %3922 = vmatpush2.bf16.xpose.msra.mxu0 0
    %3923 = vmatprep.subr.bf16.mxu0 0
    %3924 = vmatpush2.bf16.xpose.msra.mxu0 0
    %3925 = vmatprep.subr.bf16.mxu0 0
    %3926 = vmatpush2.bf16.xpose.msra.mxu0 0
    %3927 = vmatprep.mubr.bf16.mxu0 0
    %3928 = vmatmul.mubr.bf16.gmra.mxu0 %v3884
    %v3929 = vpop.f32.mrf.mxu0
    %v3930 = vadd.f32 %v3866, %v3929
    %v3931 = vpop.f32.mrf.mxu0
    %v3932 = vpop.f32.mrf.mxu0
    %v3933 = vpop.f32.mrf.mxu0
    %3934 = vdwg.mxu0
    %v3935 = vadd.f32 %v3178, %v3930
    %v3936 = vsel %vm3147, %v3935, 0.0
    %3937 = vadd.xlane.f32.xlu0 %v3936
    %v3938 = vpop.xlane.xlu0 %3937
    %v3939 = vmul.f32 %v3938, %v1136
    %v3940 = vsub.f32 %v3935, %v3939
    %v3941 = vmul.f32 %v3940, %v3940
    %v3942 = vsel %vm3147, %v3941, 0.0
    %3943 = vadd.xlane.f32.xlu0 %v3942
    %v3944 = vpop.xlane.xlu0 %3943
    %v3945 = vmul.f32 %v3944, %v1136
    %v3946 = vadd.f32 %v3945, 1e-05
    %v3947 = vrsqrt.pop %v3946
    %v3948 = vmul.f32 %v3940, %v3947
    %s3949 = scalar_lea.vmem %s18, 5
    %v3950 = vld [vmem:[%s3949] sm:$0x1]
    %v3952 = vlaneseq
    %v3953 = vshrl.u32 %v3952, 7
    %v3954 = vsub.s32 0, %v3953
    %v3955 = vrot.slane %v3950, %v3954
    %v3957 = vmul.f32 %v3948, %v3955
    %s3958 = scalar_lea.vmem [#allocation12], 5
    %v3959 = vld [vmem:[%s3958] sm:$0x1]
    %v3961 = vlaneseq
    %v3962 = vshrl.u32 %v3961, 7
    %v3963 = vsub.s32 0, %v3962
    %v3964 = vrot.slane %v3959, %v3963
    %v3966 = vadd.f32 %v3957, %v3964
    %s3967 = scalar_lea.vmem %s14, 64
    %v3968 = vld [vmem:[%s3967] sm:$0xf]
    %v3969 = vld [vmem:[%s3967 + $0x4] sm:$0xf]
    %v3970 = vld [vmem:[%s3967 + $0x8] sm:$0xf]
    %v3971 = vld [vmem:[%s3967 + $0xc] sm:$0xf]
    %v3972 = vld [vmem:[%s3967 + $0x10] sm:$0xf]
    %v3973 = vld [vmem:[%s3967 + $0x14] sm:$0xf]
    %v3974 = vld [vmem:[%s3967 + $0x18] sm:$0xf]
    %v3975 = vld [vmem:[%s3967 + $0x1c] sm:$0xf]
    %v3976 = vpack.c.bf16 %v3966, %v3966
    %s3977 = scalar_lea.vmem [#allocation7], 2
    %v3978 = vld [vmem:[%s3977] sm:$0x1]
    %v3980 = vlaneseq
    %v3981 = vshrl.u32 %v3980, 7
    %v3982 = vsub.s32 0, %v3981
    %v3983 = vrot.slane %v3978, %v3982
    %v3993 = vunpack.c.l.b16 %v3968
    %v3994 = vunpack.c.l.b16 %v3969
    %v3995 = vunpack.c.l.b16 %v3970
    %v3996 = vunpack.c.l.b16 %v3971
    %v3997 = vunpack.c.l.b16 %v3972
    %v3998 = vunpack.c.l.b16 %v3973
    %v3999 = vunpack.c.l.b16 %v3974
    %v4000 = vunpack.c.l.b16 %v3975
    %v4001 = vpack.c.b16 %v3994, %v3993
    %v4002 = vpack.c.b16 %v3996, %v3995
    %v4003 = vpack.c.b16 %v3998, %v3997
    %v4004 = vpack.c.b16 %v4000, %v3999
    %v4006 = vsel %vm385, %v3976, 0
    %v4009 = vsel %vm385, %v4001, 0
    %v4012 = vsel %vm385, %v4002, 0
    %v4015 = vsel %vm385, %v4003, 0
    %v4018 = vsel %vm385, %v4004, 0
    %4020 = vmatprep.subr.bf16.mxu0 0
    %4021 = vmatpush1.bf16.xpose.msra.mxu0 0
    %4022 = vmatprep.subr.bf16.mxu0 0
    %4023 = vmatpush1.bf16.xpose.msra.mxu0 0
    %4024 = vmatprep.subr.bf16.mxu0 0
    %4025 = vmatpush1.bf16.xpose.msra.mxu0 0
    %4026 = vmatprep.subr.bf16.mxu0 0
    %4027 = vmatpush1.bf16.xpose.msra.mxu0 0
    %4028 = vmatprep.subr.bf16.mxu0 0
    %4029 = vmatpush1.bf16.xpose.msra.mxu0 %v4018
    %4030 = vmatprep.subr.bf16.mxu0 0
    %4031 = vmatpush1.bf16.xpose.msra.mxu0 %v4015
    %4032 = vmatprep.subr.bf16.mxu0 0
    %4033 = vmatpush1.bf16.xpose.msra.mxu0 %v4012
    %4034 = vmatprep.subr.bf16.mxu0 0
    %4035 = vmatpush1.bf16.xpose.msra.mxu0 %v4009
    %4036 = vmatprep.subr.bf16.mxu0 0
    %4037 = vmatpush2.bf16.xpose.msra.mxu0 0
    %4038 = vmatprep.subr.bf16.mxu0 0
    %4039 = vmatpush2.bf16.xpose.msra.mxu0 0
    %4040 = vmatprep.subr.bf16.mxu0 0
    %4041 = vmatpush2.bf16.xpose.msra.mxu0 0
    %4042 = vmatprep.subr.bf16.mxu0 0
    %4043 = vmatpush2.bf16.xpose.msra.mxu0 0
    %4044 = vmatprep.subr.bf16.mxu0 0
    %4045 = vmatpush2.bf16.xpose.msra.mxu0 0
    %4046 = vmatprep.subr.bf16.mxu0 0
    %4047 = vmatpush2.bf16.xpose.msra.mxu0 0
    %4048 = vmatprep.subr.bf16.mxu0 0
    %4049 = vmatpush2.bf16.xpose.msra.mxu0 0
    %4050 = vmatprep.subr.bf16.mxu0 0
    %4051 = vmatpush2.bf16.xpose.msra.mxu0 0
    %4052 = vmatprep.mubr.bf16.mxu0 0
    %4053 = vmatmul.mubr.bf16.gmra.mxu0 %v4006
    %v4054 = vpop.f32.mrf.mxu0
    %v4055 = vadd.f32 %v3983, %v4054
    %v4056 = vpop.f32.mrf.mxu0
    %v4057 = vpop.f32.mrf.mxu0
    %v4058 = vpop.f32.mrf.mxu0
    %4059 = vdwg.mxu0
    %v4060 = vmax.f32 %v4055, 0.0
    %s4061 = scalar_lea.vmem [#allocation9], 48
    %v4062 = vld [vmem:[%s4061] sm:$0xf]
    %v4063 = vld [vmem:[%s4061 + $0x4] sm:$0xf]
    %v4064 = vld [vmem:[%s4061 + $0x8] sm:$0xf]
    %v4065 = vld [vmem:[%s4061 + $0xc] sm:$0xf]
    %v4066 = vld [vmem:[%s4061 + $0x10] sm:$0xf]
    %v4067 = vld [vmem:[%s4061 + $0x14] sm:$0xf]
    %v4068 = vpack.c.bf16 %v4060, %v4060
    %s4069 = scalar_lea.vmem [#allocation10], 2
    %v4070 = vld [vmem:[%s4069] sm:$0x1]
    %v4072 = vlaneseq
    %v4073 = vshrl.u32 %v4072, 7
    %v4074 = vsub.s32 0, %v4073
    %v4075 = vrot.slane %v4070, %v4074
    %v4083 = vunpack.c.l.b16 %v4062
    %v4084 = vunpack.c.l.b16 %v4063
    %v4085 = vunpack.c.l.b16 %v4064
    %v4086 = vunpack.c.l.b16 %v4065
    %v4087 = vunpack.c.l.b16 %v4066
    %v4088 = vunpack.c.l.b16 %v4067
    %v4089 = vpack.c.b16 %v4084, %v4083
    %v4090 = vpack.c.b16 %v4086, %v4085
    %v4091 = vpack.c.b16 %v4088, %v4087
    %v4093 = vsel %vm1284, %v4068, 0
    %v4096 = vsel %vm1284, %v4089, 0
    %v4099 = vsel %vm1284, %v4090, 0
    %v4102 = vsel %vm1284, %v4091, 0
    %4104 = vmatprep.subr.bf16.mxu0 0
    %4105 = vmatpush1.bf16.xpose.msra.mxu0 0
    %4106 = vmatprep.subr.bf16.mxu0 0
    %4107 = vmatpush1.bf16.xpose.msra.mxu0 0
    %4108 = vmatprep.subr.bf16.mxu0 0
    %4109 = vmatpush1.bf16.xpose.msra.mxu0 0
    %4110 = vmatprep.subr.bf16.mxu0 0
    %4111 = vmatpush1.bf16.xpose.msra.mxu0 0
    %4112 = vmatprep.subr.bf16.mxu0 0
    %4113 = vmatpush1.bf16.xpose.msra.mxu0 0
    %4114 = vmatprep.subr.bf16.mxu0 0
    %4115 = vmatpush1.bf16.xpose.msra.mxu0 %v4102
    %4116 = vmatprep.subr.bf16.mxu0 0
    %4117 = vmatpush1.bf16.xpose.msra.mxu0 %v4099
    %4118 = vmatprep.subr.bf16.mxu0 0
    %4119 = vmatpush1.bf16.xpose.msra.mxu0 %v4096
    %4120 = vmatprep.subr.bf16.mxu0 0
    %4121 = vmatpush2.bf16.xpose.msra.mxu0 0
    %4122 = vmatprep.subr.bf16.mxu0 0
    %4123 = vmatpush2.bf16.xpose.msra.mxu0 0
    %4124 = vmatprep.subr.bf16.mxu0 0
    %4125 = vmatpush2.bf16.xpose.msra.mxu0 0
    %4126 = vmatprep.subr.bf16.mxu0 0
    %4127 = vmatpush2.bf16.xpose.msra.mxu0 0
    %4128 = vmatprep.subr.bf16.mxu0 0
    %4129 = vmatpush2.bf16.xpose.msra.mxu0 0
    %4130 = vmatprep.subr.bf16.mxu0 0
    %4131 = vmatpush2.bf16.xpose.msra.mxu0 0
    %4132 = vmatprep.subr.bf16.mxu0 0
    %4133 = vmatpush2.bf16.xpose.msra.mxu0 0
    %4134 = vmatprep.subr.bf16.mxu0 0
    %4135 = vmatpush2.bf16.xpose.msra.mxu0 0
    %4136 = vmatprep.mubr.bf16.mxu0 0
    %4137 = vmatmul.mubr.bf16.gmra.mxu0 %v4093
    %v4138 = vpop.f32.mrf.mxu0
    %v4139 = vadd.f32 %v4075, %v4138
    %v4140 = vpop.f32.mrf.mxu0
    %v4141 = vpop.f32.mrf.mxu0
    %v4142 = vpop.f32.mrf.mxu0
    %4143 = vdwg.mxu0
    %v4144 = vadd.f32 %v3966, %v4139
    %v4145 = vsel %vm3147, %v4144, 0.0
    %4146 = vadd.xlane.f32.xlu0 %v4145
    %v4147 = vpop.xlane.xlu0 %4146
    %v4148 = vmul.f32 %v4147, %v1136
    %v4149 = vsub.f32 %v4144, %v4148
    %v4150 = vmul.f32 %v4149, %v4149
    %v4151 = vsel %vm3147, %v4150, 0.0
    %4152 = vadd.xlane.f32.xlu0 %v4151
    %v4153 = vpop.xlane.xlu0 %4152
    %v4154 = vmul.f32 %v4153, %v1136
    %v4155 = vadd.f32 %v4154, 1e-05
    %v4156 = vrsqrt.pop %v4155
    %v4157 = vmul.f32 %v4149, %v4156
    %s4158 = scalar_lea.vmem %s18, 6
    %v4159 = vld [vmem:[%s4158] sm:$0x1]
    %v4161 = vlaneseq
    %v4162 = vshrl.u32 %v4161, 7
    %v4163 = vsub.s32 0, %v4162
    %v4164 = vrot.slane %v4159, %v4163
    %v4166 = vmul.f32 %v4157, %v4164
    %s4167 = scalar_lea.vmem [#allocation12], 6
    %v4168 = vld [vmem:[%s4167] sm:$0x1]
    %v4170 = vlaneseq
    %v4171 = vshrl.u32 %v4170, 7
    %v4172 = vsub.s32 0, %v4171
    %v4173 = vrot.slane %v4168, %v4172
    %v4175 = vadd.f32 %v4166, %v4173
    %s4176 = scalar_lea.vmem %s12, 384
    %v4177 = vld [vmem:[%s4176] sm:$0xf]
    %v4178 = vld [vmem:[%s4176 + $0x4] sm:$0xf]
    %v4179 = vld [vmem:[%s4176 + $0x8] sm:$0xf]
    %v4180 = vld [vmem:[%s4176 + $0xc] sm:$0xf]
    %v4181 = vld [vmem:[%s4176 + $0x10] sm:$0xf]
    %v4182 = vld [vmem:[%s4176 + $0x14] sm:$0xf]
    %v4183 = vpack.c.bf16 %v4175, %v4175
    %s4184 = scalar_lea.vmem [#allocation6], 16
    %v4185 = vld [vmem:[%s4184] sm:$0x1]
    %v4187 = vlaneseq
    %v4188 = vshrl.u32 %v4187, 7
    %v4189 = vsub.s32 0, %v4188
    %v4190 = vrot.slane %v4185, %v4189
    %v4198 = vunpack.c.l.b16 %v4177
    %v4199 = vunpack.c.l.b16 %v4178
    %v4200 = vunpack.c.l.b16 %v4179
    %v4201 = vunpack.c.l.b16 %v4180
    %v4202 = vunpack.c.l.b16 %v4181
    %v4203 = vunpack.c.l.b16 %v4182
    %v4204 = vpack.c.b16 %v4199, %v4198
    %v4205 = vpack.c.b16 %v4201, %v4200
    %v4206 = vpack.c.b16 %v4203, %v4202
    %v4208 = vsel %vm385, %v4183, 0
    %v4211 = vsel %vm385, %v4204, 0
    %v4214 = vsel %vm385, %v4205, 0
    %v4217 = vsel %vm385, %v4206, 0
    %4219 = vmatprep.subr.bf16.mxu0 0
    %4220 = vmatpush1.bf16.xpose.msra.mxu0 0
    %4221 = vmatprep.subr.bf16.mxu0 0
    %4222 = vmatpush1.bf16.xpose.msra.mxu0 0
    %4223 = vmatprep.subr.bf16.mxu0 0
    %4224 = vmatpush1.bf16.xpose.msra.mxu0 0
    %4225 = vmatprep.subr.bf16.mxu0 0
    %4226 = vmatpush1.bf16.xpose.msra.mxu0 0
    %4227 = vmatprep.subr.bf16.mxu0 0
    %4228 = vmatpush1.bf16.xpose.msra.mxu0 0
    %4229 = vmatprep.subr.bf16.mxu0 0
    %4230 = vmatpush1.bf16.xpose.msra.mxu0 %v4217
    %4231 = vmatprep.subr.bf16.mxu0 0
    %4232 = vmatpush1.bf16.xpose.msra.mxu0 %v4214
    %4233 = vmatprep.subr.bf16.mxu0 0
    %4234 = vmatpush1.bf16.xpose.msra.mxu0 %v4211
    %4235 = vmatprep.subr.bf16.mxu0 0
    %4236 = vmatpush2.bf16.xpose.msra.mxu0 0
    %4237 = vmatprep.subr.bf16.mxu0 0
    %4238 = vmatpush2.bf16.xpose.msra.mxu0 0
    %4239 = vmatprep.subr.bf16.mxu0 0
    %4240 = vmatpush2.bf16.xpose.msra.mxu0 0
    %4241 = vmatprep.subr.bf16.mxu0 0
    %4242 = vmatpush2.bf16.xpose.msra.mxu0 0
    %4243 = vmatprep.subr.bf16.mxu0 0
    %4244 = vmatpush2.bf16.xpose.msra.mxu0 0
    %4245 = vmatprep.subr.bf16.mxu0 0
    %4246 = vmatpush2.bf16.xpose.msra.mxu0 0
    %4247 = vmatprep.subr.bf16.mxu0 0
    %4248 = vmatpush2.bf16.xpose.msra.mxu0 0
    %4249 = vmatprep.subr.bf16.mxu0 0
    %4250 = vmatpush2.bf16.xpose.msra.mxu0 0
    %4251 = vmatprep.mubr.bf16.mxu0 0
    %4252 = vmatmul.mubr.bf16.gmra.mxu0 %v4208
    %v4253 = vpop.f32.mrf.mxu0
    %v4254 = vadd.f32 %v4190, %v4253
    %v4255 = vpop.f32.mrf.mxu0
    %v4256 = vpop.f32.mrf.mxu0
    %v4257 = vpop.f32.mrf.mxu0
    %4258 = vdwg.mxu0
    %v4259 = vmul.f32 %v4254, 0.28867513
    %s4260 = scalar_lea.vmem %s12, 408
    %v4261 = vld [vmem:[%s4260] sm:$0xf]
    %v4262 = vld [vmem:[%s4260 + $0x4] sm:$0xf]
    %v4263 = vld [vmem:[%s4260 + $0x8] sm:$0xf]
    %v4264 = vld [vmem:[%s4260 + $0xc] sm:$0xf]
    %v4265 = vld [vmem:[%s4260 + $0x10] sm:$0xf]
    %v4266 = vld [vmem:[%s4260 + $0x14] sm:$0xf]
    %s4267 = scalar_lea.vmem [#allocation6], 17
    %v4268 = vld [vmem:[%s4267] sm:$0x1]
    %v4270 = vlaneseq
    %v4271 = vshrl.u32 %v4270, 7
    %v4272 = vsub.s32 0, %v4271
    %v4273 = vrot.slane %v4268, %v4272
    %v4281 = vunpack.c.l.b16 %v4261
    %v4282 = vunpack.c.l.b16 %v4262
    %v4283 = vunpack.c.l.b16 %v4263
    %v4284 = vunpack.c.l.b16 %v4264
    %v4285 = vunpack.c.l.b16 %v4265
    %v4286 = vunpack.c.l.b16 %v4266
    %v4287 = vpack.c.b16 %v4282, %v4281
    %v4288 = vpack.c.b16 %v4284, %v4283
    %v4289 = vpack.c.b16 %v4286, %v4285
    %v4291 = vsel %vm385, %v4287, 0
    %v4294 = vsel %vm385, %v4288, 0
    %v4297 = vsel %vm385, %v4289, 0
    %4299 = vmatprep.subr.bf16.mxu0 0
    %4300 = vmatpush1.bf16.xpose.msra.mxu0 0
    %4301 = vmatprep.subr.bf16.mxu0 0
    %4302 = vmatpush1.bf16.xpose.msra.mxu0 0
    %4303 = vmatprep.subr.bf16.mxu0 0
    %4304 = vmatpush1.bf16.xpose.msra.mxu0 0
    %4305 = vmatprep.subr.bf16.mxu0 0
    %4306 = vmatpush1.bf16.xpose.msra.mxu0 0
    %4307 = vmatprep.subr.bf16.mxu0 0
    %4308 = vmatpush1.bf16.xpose.msra.mxu0 0
    %4309 = vmatprep.subr.bf16.mxu0 0
    %4310 = vmatpush1.bf16.xpose.msra.mxu0 %v4297
    %4311 = vmatprep.subr.bf16.mxu0 0
    %4312 = vmatpush1.bf16.xpose.msra.mxu0 %v4294
    %4313 = vmatprep.subr.bf16.mxu0 0
    %4314 = vmatpush1.bf16.xpose.msra.mxu0 %v4291
    %4315 = vmatprep.subr.bf16.mxu0 0
    %4316 = vmatpush2.bf16.xpose.msra.mxu0 0
    %4317 = vmatprep.subr.bf16.mxu0 0
    %4318 = vmatpush2.bf16.xpose.msra.mxu0 0
    %4319 = vmatprep.subr.bf16.mxu0 0
    %4320 = vmatpush2.bf16.xpose.msra.mxu0 0
    %4321 = vmatprep.subr.bf16.mxu0 0
    %4322 = vmatpush2.bf16.xpose.msra.mxu0 0
    %4323 = vmatprep.subr.bf16.mxu0 0
    %4324 = vmatpush2.bf16.xpose.msra.mxu0 0
    %4325 = vmatprep.subr.bf16.mxu0 0
    %4326 = vmatpush2.bf16.xpose.msra.mxu0 0
    %4327 = vmatprep.subr.bf16.mxu0 0
    %4328 = vmatpush2.bf16.xpose.msra.mxu0 0
    %4329 = vmatprep.subr.bf16.mxu0 0
    %4330 = vmatpush2.bf16.xpose.msra.mxu0 0
    %4331 = vmatprep.mubr.bf16.mxu0 0
    %4332 = vmatmul.mubr.bf16.gmra.mxu0 %v4208
    %v4333 = vpop.f32.mrf.mxu0
    %v4334 = vadd.f32 %v4273, %v4333
    %v4335 = vpop.f32.mrf.mxu0
    %v4336 = vpop.f32.mrf.mxu0
    %v4337 = vpop.f32.mrf.mxu0
    %4338 = vdwg.mxu0
    %s4339 = scalar_lea.vmem %s12, 432
    %v4340 = vld [vmem:[%s4339] sm:$0xf]
    %v4341 = vld [vmem:[%s4339 + $0x4] sm:$0xf]
    %v4342 = vld [vmem:[%s4339 + $0x8] sm:$0xf]
    %v4343 = vld [vmem:[%s4339 + $0xc] sm:$0xf]
    %v4344 = vld [vmem:[%s4339 + $0x10] sm:$0xf]
    %v4345 = vld [vmem:[%s4339 + $0x14] sm:$0xf]
    %s4346 = scalar_lea.vmem [#allocation6], 18
    %v4347 = vld [vmem:[%s4346] sm:$0x1]
    %v4349 = vlaneseq
    %v4350 = vshrl.u32 %v4349, 7
    %v4351 = vsub.s32 0, %v4350
    %v4352 = vrot.slane %v4347, %v4351
    %v4360 = vunpack.c.l.b16 %v4340
    %v4361 = vunpack.c.l.b16 %v4341
    %v4362 = vunpack.c.l.b16 %v4342
    %v4363 = vunpack.c.l.b16 %v4343
    %v4364 = vunpack.c.l.b16 %v4344
    %v4365 = vunpack.c.l.b16 %v4345
    %v4366 = vpack.c.b16 %v4361, %v4360
    %v4367 = vpack.c.b16 %v4363, %v4362
    %v4368 = vpack.c.b16 %v4365, %v4364
    %v4370 = vsel %vm385, %v4366, 0
    %v4373 = vsel %vm385, %v4367, 0
    %v4376 = vsel %vm385, %v4368, 0
    %4378 = vmatprep.subr.bf16.mxu0 0
    %4379 = vmatpush1.bf16.xpose.msra.mxu0 0
    %4380 = vmatprep.subr.bf16.mxu0 0
    %4381 = vmatpush1.bf16.xpose.msra.mxu0 0
    %4382 = vmatprep.subr.bf16.mxu0 0
    %4383 = vmatpush1.bf16.xpose.msra.mxu0 0
    %4384 = vmatprep.subr.bf16.mxu0 0
    %4385 = vmatpush1.bf16.xpose.msra.mxu0 0
    %4386 = vmatprep.subr.bf16.mxu0 0
    %4387 = vmatpush1.bf16.xpose.msra.mxu0 0
    %4388 = vmatprep.subr.bf16.mxu0 0
    %4389 = vmatpush1.bf16.xpose.msra.mxu0 %v4376
    %4390 = vmatprep.subr.bf16.mxu0 0
    %4391 = vmatpush1.bf16.xpose.msra.mxu0 %v4373
    %4392 = vmatprep.subr.bf16.mxu0 0
    %4393 = vmatpush1.bf16.xpose.msra.mxu0 %v4370
    %4394 = vmatprep.subr.bf16.mxu0 0
    %4395 = vmatpush2.bf16.xpose.msra.mxu0 0
    %4396 = vmatprep.subr.bf16.mxu0 0
    %4397 = vmatpush2.bf16.xpose.msra.mxu0 0
    %4398 = vmatprep.subr.bf16.mxu0 0
    %4399 = vmatpush2.bf16.xpose.msra.mxu0 0
    %4400 = vmatprep.subr.bf16.mxu0 0
    %4401 = vmatpush2.bf16.xpose.msra.mxu0 0
    %4402 = vmatprep.subr.bf16.mxu0 0
    %4403 = vmatpush2.bf16.xpose.msra.mxu0 0
    %4404 = vmatprep.subr.bf16.mxu0 0
    %4405 = vmatpush2.bf16.xpose.msra.mxu0 0
    %4406 = vmatprep.subr.bf16.mxu0 0
    %4407 = vmatpush2.bf16.xpose.msra.mxu0 0
    %4408 = vmatprep.subr.bf16.mxu0 0
    %4409 = vmatpush2.bf16.xpose.msra.mxu0 0
    %4410 = vmatprep.mubr.bf16.mxu0 0
    %4411 = vmatmul.mubr.bf16.gmra.mxu0 %v4208
    %v4412 = vpop.f32.mrf.mxu0
    %v4413 = vadd.f32 %v4352, %v4412
    %v4414 = vpop.f32.mrf.mxu0
    %v4415 = vpop.f32.mrf.mxu0
    %v4416 = vpop.f32.mrf.mxu0
    %4417 = vdwg.mxu0
    %v4418 = vmul.f32 %v4259, %v601
    %v4419 = vpack.c.bf16 %v4418, %v4418
    %v4420 = vpack.c.bf16 %v4334, %v4334
    %v4422 = vsel %vm385, %v4419, 0
    %v4425 = vsel %vm385, %v4420, 0
    %4427 = vmatprep.subr.bf16.mxu0 0
    %4428 = vmatpush1.bf16.xpose.msra.mxu0 0
    %4429 = vmatprep.subr.bf16.mxu0 0
    %4430 = vmatpush1.bf16.xpose.msra.mxu0 0
    %4431 = vmatprep.subr.bf16.mxu0 0
    %4432 = vmatpush1.bf16.xpose.msra.mxu0 0
    %4433 = vmatprep.subr.bf16.mxu0 0
    %4434 = vmatpush1.bf16.xpose.msra.mxu0 0
    %4435 = vmatprep.subr.bf16.mxu0 0
    %4436 = vmatpush1.bf16.xpose.msra.mxu0 0
    %4437 = vmatprep.subr.bf16.mxu0 0
    %4438 = vmatpush1.bf16.xpose.msra.mxu0 0
    %4439 = vmatprep.subr.bf16.mxu0 0
    %4440 = vmatpush1.bf16.xpose.msra.mxu0 0
    %4441 = vmatprep.subr.bf16.mxu0 0
    %4442 = vmatpush1.bf16.xpose.msra.mxu0 %v4425
    %4443 = vmatprep.subr.bf16.mxu0 0
    %4444 = vmatpush2.bf16.xpose.msra.mxu0 0
    %4445 = vmatprep.subr.bf16.mxu0 0
    %4446 = vmatpush2.bf16.xpose.msra.mxu0 0
    %4447 = vmatprep.subr.bf16.mxu0 0
    %4448 = vmatpush2.bf16.xpose.msra.mxu0 0
    %4449 = vmatprep.subr.bf16.mxu0 0
    %4450 = vmatpush2.bf16.xpose.msra.mxu0 0
    %4451 = vmatprep.subr.bf16.mxu0 0
    %4452 = vmatpush2.bf16.xpose.msra.mxu0 0
    %4453 = vmatprep.subr.bf16.mxu0 0
    %4454 = vmatpush2.bf16.xpose.msra.mxu0 0
    %4455 = vmatprep.subr.bf16.mxu0 0
    %4456 = vmatpush2.bf16.xpose.msra.mxu0 0
    %4457 = vmatprep.subr.bf16.mxu0 0
    %4458 = vmatpush2.bf16.xpose.msra.mxu0 0
    %4459 = vmatprep.mubr.bf16.mxu0 0
    %4460 = vmatmul.mubr.bf16.gmra.mxu0 %v4422
    %v4461 = vpop.f32.mrf.mxu0
    %v4462 = vadd.f32 %v354, %v4461
    %v4463 = vpop.f32.mrf.mxu0
    %v4464 = vpop.f32.mrf.mxu0
    %v4465 = vpop.f32.mrf.mxu0
    %4466 = vdwg.mxu0
    %v4467 = vsel %vm2683, %v4462, -inf
    %4468 = vmax.xlane.f32.xlu0 %v4467
    %v4469 = vpop.xlane.xlu0 %4468
    %v4470 = vsub.f32 %v4462, %v4469
    %v4471 = vmul.f32 %v4470, 1.442695
    %v4472 = vpow.pop %v4471
    %v4473 = vsel %vm2683, %v4472, 0.0
    %4474 = vadd.xlane.f32.xlu0 %v4473
    %v4475 = vpop.xlane.xlu0 %4474
    %v4476 = vrcp.pop %v4475
    %v4477 = vmul.f32 %v4472, %v4476
    %v4478 = vmul.f32 %v4413, %v601
    %v4479 = vpack.c.bf16 %v4477, %v4477
    %v4480 = vpack.c.bf16 %v4478, %v4478
    %v4481 = vmul.f32 %v4259, %v671
    %v4482 = vpack.c.bf16 %v4481, %v4481
    %v4484 = vsel %vm385, %v4482, 0
    %4486 = vmatprep.subr.bf16.mxu0 0
    %4487 = vmatpush1.bf16.xpose.msra.mxu0 0
    %4488 = vmatprep.subr.bf16.mxu0 0
    %4489 = vmatpush1.bf16.xpose.msra.mxu0 0
    %4490 = vmatprep.subr.bf16.mxu0 0
    %4491 = vmatpush1.bf16.xpose.msra.mxu0 0
    %4492 = vmatprep.subr.bf16.mxu0 0
    %4493 = vmatpush1.bf16.xpose.msra.mxu0 0
    %4494 = vmatprep.subr.bf16.mxu0 0
    %4495 = vmatpush1.bf16.xpose.msra.mxu0 0
    %4496 = vmatprep.subr.bf16.mxu0 0
    %4497 = vmatpush1.bf16.xpose.msra.mxu0 0
    %4498 = vmatprep.subr.bf16.mxu0 0
    %4499 = vmatpush1.bf16.xpose.msra.mxu0 0
    %4500 = vmatprep.subr.bf16.mxu0 0
    %4501 = vmatpush1.bf16.xpose.msra.mxu0 %v4425
    %4502 = vmatprep.subr.bf16.mxu0 0
    %4503 = vmatpush2.bf16.xpose.msra.mxu0 0
    %4504 = vmatprep.subr.bf16.mxu0 0
    %4505 = vmatpush2.bf16.xpose.msra.mxu0 0
    %4506 = vmatprep.subr.bf16.mxu0 0
    %4507 = vmatpush2.bf16.xpose.msra.mxu0 0
    %4508 = vmatprep.subr.bf16.mxu0 0
    %4509 = vmatpush2.bf16.xpose.msra.mxu0 0
    %4510 = vmatprep.subr.bf16.mxu0 0
    %4511 = vmatpush2.bf16.xpose.msra.mxu0 0
    %4512 = vmatprep.subr.bf16.mxu0 0
    %4513 = vmatpush2.bf16.xpose.msra.mxu0 0
    %4514 = vmatprep.subr.bf16.mxu0 0
    %4515 = vmatpush2.bf16.xpose.msra.mxu0 0
    %4516 = vmatprep.subr.bf16.mxu0 0
    %4517 = vmatpush2.bf16.xpose.msra.mxu0 0
    %4518 = vmatprep.mubr.bf16.mxu0 0
    %4519 = vmatmul.mubr.bf16.gmra.mxu0 %v4484
    %v4520 = vpop.f32.mrf.mxu0
    %v4521 = vadd.f32 %v354, %v4520
    %v4522 = vpop.f32.mrf.mxu0
    %v4523 = vpop.f32.mrf.mxu0
    %v4524 = vpop.f32.mrf.mxu0
    %4525 = vdwg.mxu0
    %v4526 = vsel %vm2683, %v4521, -inf
    %4527 = vmax.xlane.f32.xlu0 %v4526
    %v4528 = vpop.xlane.xlu0 %4527
    %v4529 = vsub.f32 %v4521, %v4528
    %v4530 = vmul.f32 %v4529, 1.442695
    %v4531 = vpow.pop %v4530
    %v4532 = vsel %vm2683, %v4531, 0.0
    %4533 = vadd.xlane.f32.xlu0 %v4532
    %v4534 = vpop.xlane.xlu0 %4533
    %v4535 = vrcp.pop %v4534
    %v4536 = vmul.f32 %v4531, %v4535
    %v4537 = vmul.f32 %v4413, %v671
    %v4538 = vpack.c.bf16 %v4536, %v4536
    %v4539 = vpack.c.bf16 %v4537, %v4537
    %v4541 = vsel %vm2757, %v4538, 0
    %v4544 = vsel %vm2761, %v4539, 0
    %4546 = vmatprep.subr.bf16.mxu0 0
    %4547 = vmatpush1.bf16.msra.mxu0 0
    %4548 = vmatprep.subr.bf16.mxu0 0
    %4549 = vmatpush1.bf16.msra.mxu0 0
    %4550 = vmatprep.subr.bf16.mxu0 0
    %4551 = vmatpush1.bf16.msra.mxu0 0
    %4552 = vmatprep.subr.bf16.mxu0 0
    %4553 = vmatpush1.bf16.msra.mxu0 0
    %4554 = vmatprep.subr.bf16.mxu0 0
    %4555 = vmatpush1.bf16.msra.mxu0 0
    %4556 = vmatprep.subr.bf16.mxu0 0
    %4557 = vmatpush1.bf16.msra.mxu0 0
    %4558 = vmatprep.subr.bf16.mxu0 0
    %4559 = vmatpush1.bf16.msra.mxu0 0
    %4560 = vmatprep.subr.bf16.mxu0 0
    %4561 = vmatpush1.bf16.msra.mxu0 %v4544
    %4562 = vmatprep.subr.bf16.mxu0 0
    %4563 = vmatpush2.bf16.msra.mxu0 0
    %4564 = vmatprep.subr.bf16.mxu0 0
    %4565 = vmatpush2.bf16.msra.mxu0 0
    %4566 = vmatprep.subr.bf16.mxu0 0
    %4567 = vmatpush2.bf16.msra.mxu0 0
    %4568 = vmatprep.subr.bf16.mxu0 0
    %4569 = vmatpush2.bf16.msra.mxu0 0
    %4570 = vmatprep.subr.bf16.mxu0 0
    %4571 = vmatpush2.bf16.msra.mxu0 0
    %4572 = vmatprep.subr.bf16.mxu0 0
    %4573 = vmatpush2.bf16.msra.mxu0 0
    %4574 = vmatprep.subr.bf16.mxu0 0
    %4575 = vmatpush2.bf16.msra.mxu0 0
    %4576 = vmatprep.subr.bf16.mxu0 0
    %4577 = vmatpush2.bf16.msra.mxu0 0
    %4578 = vmatprep.mubr.bf16.mxu0 0
    %4579 = vmatmul.mubr.bf16.gmra.mxu0 %v4541
    %v4580 = vpop.f32.mrf.mxu0
    %v4581 = vadd.f32 0.0, %v4580
    %v4582 = vpop.f32.mrf.mxu0
    %v4583 = vpop.f32.mrf.mxu0
    %v4584 = vpop.f32.mrf.mxu0
    %4585 = vdwg.mxu0
    %v4587 = vsel %vm2757, %v4479, 0
    %v4590 = vsel %vm2761, %v4480, 0
    %4592 = vmatprep.subr.bf16.mxu0 0
    %4593 = vmatpush1.bf16.msra.mxu0 0
    %4594 = vmatprep.subr.bf16.mxu0 0
    %4595 = vmatpush1.bf16.msra.mxu0 0
    %4596 = vmatprep.subr.bf16.mxu0 0
    %4597 = vmatpush1.bf16.msra.mxu0 0
    %4598 = vmatprep.subr.bf16.mxu0 0
    %4599 = vmatpush1.bf16.msra.mxu0 0
    %4600 = vmatprep.subr.bf16.mxu0 0
    %4601 = vmatpush1.bf16.msra.mxu0 0
    %4602 = vmatprep.subr.bf16.mxu0 0
    %4603 = vmatpush1.bf16.msra.mxu0 0
    %4604 = vmatprep.subr.bf16.mxu0 0
    %4605 = vmatpush1.bf16.msra.mxu0 0
    %4606 = vmatprep.subr.bf16.mxu0 0
    %4607 = vmatpush1.bf16.msra.mxu0 %v4590
    %4608 = vmatprep.subr.bf16.mxu0 0
    %4609 = vmatpush2.bf16.msra.mxu0 0
    %4610 = vmatprep.subr.bf16.mxu0 0
    %4611 = vmatpush2.bf16.msra.mxu0 0
    %4612 = vmatprep.subr.bf16.mxu0 0
    %4613 = vmatpush2.bf16.msra.mxu0 0
    %4614 = vmatprep.subr.bf16.mxu0 0
    %4615 = vmatpush2.bf16.msra.mxu0 0
    %4616 = vmatprep.subr.bf16.mxu0 0
    %4617 = vmatpush2.bf16.msra.mxu0 0
    %4618 = vmatprep.subr.bf16.mxu0 0
    %4619 = vmatpush2.bf16.msra.mxu0 0
    %4620 = vmatprep.subr.bf16.mxu0 0
    %4621 = vmatpush2.bf16.msra.mxu0 0
    %4622 = vmatprep.subr.bf16.mxu0 0
    %4623 = vmatpush2.bf16.msra.mxu0 0
    %4624 = vmatprep.mubr.bf16.mxu0 0
    %4625 = vmatmul.mubr.bf16.gmra.mxu0 %v4587
    %v4626 = vpop.f32.mrf.mxu0
    %v4627 = vadd.f32 %v4581, %v4626
    %v4628 = vpop.f32.mrf.mxu0
    %v4629 = vpop.f32.mrf.mxu0
    %v4630 = vpop.f32.mrf.mxu0
    %4631 = vdwg.mxu0
    %v4632 = vmul.f32 %v4259, %v829
    %v4633 = vpack.c.bf16 %v4632, %v4632
    %v4635 = vsel %vm385, %v4633, 0
    %4637 = vmatprep.subr.bf16.mxu0 0
    %4638 = vmatpush1.bf16.xpose.msra.mxu0 0
    %4639 = vmatprep.subr.bf16.mxu0 0
    %4640 = vmatpush1.bf16.xpose.msra.mxu0 0
    %4641 = vmatprep.subr.bf16.mxu0 0
    %4642 = vmatpush1.bf16.xpose.msra.mxu0 0
    %4643 = vmatprep.subr.bf16.mxu0 0
    %4644 = vmatpush1.bf16.xpose.msra.mxu0 0
    %4645 = vmatprep.subr.bf16.mxu0 0
    %4646 = vmatpush1.bf16.xpose.msra.mxu0 0
    %4647 = vmatprep.subr.bf16.mxu0 0
    %4648 = vmatpush1.bf16.xpose.msra.mxu0 0
    %4649 = vmatprep.subr.bf16.mxu0 0
    %4650 = vmatpush1.bf16.xpose.msra.mxu0 0
    %4651 = vmatprep.subr.bf16.mxu0 0
    %4652 = vmatpush1.bf16.xpose.msra.mxu0 %v4425
    %4653 = vmatprep.subr.bf16.mxu0 0
    %4654 = vmatpush2.bf16.xpose.msra.mxu0 0
    %4655 = vmatprep.subr.bf16.mxu0 0
    %4656 = vmatpush2.bf16.xpose.msra.mxu0 0
    %4657 = vmatprep.subr.bf16.mxu0 0
    %4658 = vmatpush2.bf16.xpose.msra.mxu0 0
    %4659 = vmatprep.subr.bf16.mxu0 0
    %4660 = vmatpush2.bf16.xpose.msra.mxu0 0
    %4661 = vmatprep.subr.bf16.mxu0 0
    %4662 = vmatpush2.bf16.xpose.msra.mxu0 0
    %4663 = vmatprep.subr.bf16.mxu0 0
    %4664 = vmatpush2.bf16.xpose.msra.mxu0 0
    %4665 = vmatprep.subr.bf16.mxu0 0
    %4666 = vmatpush2.bf16.xpose.msra.mxu0 0
    %4667 = vmatprep.subr.bf16.mxu0 0
    %4668 = vmatpush2.bf16.xpose.msra.mxu0 0
    %4669 = vmatprep.mubr.bf16.mxu0 0
    %4670 = vmatmul.mubr.bf16.gmra.mxu0 %v4635
    %v4671 = vpop.f32.mrf.mxu0
    %v4672 = vadd.f32 %v354, %v4671
    %v4673 = vpop.f32.mrf.mxu0
    %v4674 = vpop.f32.mrf.mxu0
    %v4675 = vpop.f32.mrf.mxu0
    %4676 = vdwg.mxu0
    %v4677 = vsel %vm2683, %v4672, -inf
    %4678 = vmax.xlane.f32.xlu0 %v4677
    %v4679 = vpop.xlane.xlu0 %4678
    %v4680 = vsub.f32 %v4672, %v4679
    %v4681 = vmul.f32 %v4680, 1.442695
    %v4682 = vpow.pop %v4681
    %v4683 = vsel %vm2683, %v4682, 0.0
    %4684 = vadd.xlane.f32.xlu0 %v4683
    %v4685 = vpop.xlane.xlu0 %4684
    %v4686 = vrcp.pop %v4685
    %v4687 = vmul.f32 %v4682, %v4686
    %v4688 = vmul.f32 %v4413, %v829
    %v4689 = vpack.c.bf16 %v4687, %v4687
    %v4690 = vpack.c.bf16 %v4688, %v4688
    %v4692 = vsel %vm2757, %v4689, 0
    %v4695 = vsel %vm2761, %v4690, 0
    %4697 = vmatprep.subr.bf16.mxu0 0
    %4698 = vmatpush1.bf16.msra.mxu0 0
    %4699 = vmatprep.subr.bf16.mxu0 0
    %4700 = vmatpush1.bf16.msra.mxu0 0
    %4701 = vmatprep.subr.bf16.mxu0 0
    %4702 = vmatpush1.bf16.msra.mxu0 0
    %4703 = vmatprep.subr.bf16.mxu0 0
    %4704 = vmatpush1.bf16.msra.mxu0 0
    %4705 = vmatprep.subr.bf16.mxu0 0
    %4706 = vmatpush1.bf16.msra.mxu0 0
    %4707 = vmatprep.subr.bf16.mxu0 0
    %4708 = vmatpush1.bf16.msra.mxu0 0
    %4709 = vmatprep.subr.bf16.mxu0 0
    %4710 = vmatpush1.bf16.msra.mxu0 0
    %4711 = vmatprep.subr.bf16.mxu0 0
    %4712 = vmatpush1.bf16.msra.mxu0 %v4695
    %4713 = vmatprep.subr.bf16.mxu0 0
    %4714 = vmatpush2.bf16.msra.mxu0 0
    %4715 = vmatprep.subr.bf16.mxu0 0
    %4716 = vmatpush2.bf16.msra.mxu0 0
    %4717 = vmatprep.subr.bf16.mxu0 0
    %4718 = vmatpush2.bf16.msra.mxu0 0
    %4719 = vmatprep.subr.bf16.mxu0 0
    %4720 = vmatpush2.bf16.msra.mxu0 0
    %4721 = vmatprep.subr.bf16.mxu0 0
    %4722 = vmatpush2.bf16.msra.mxu0 0
    %4723 = vmatprep.subr.bf16.mxu0 0
    %4724 = vmatpush2.bf16.msra.mxu0 0
    %4725 = vmatprep.subr.bf16.mxu0 0
    %4726 = vmatpush2.bf16.msra.mxu0 0
    %4727 = vmatprep.subr.bf16.mxu0 0
    %4728 = vmatpush2.bf16.msra.mxu0 0
    %4729 = vmatprep.mubr.bf16.mxu0 0
    %4730 = vmatmul.mubr.bf16.gmra.mxu0 %v4692
    %v4731 = vpop.f32.mrf.mxu0
    %v4732 = vadd.f32 0.0, %v4731
    %v4733 = vpop.f32.mrf.mxu0
    %v4734 = vpop.f32.mrf.mxu0
    %v4735 = vpop.f32.mrf.mxu0
    %4736 = vdwg.mxu0
    %v4737 = vadd.f32 %v4627, %v4732
    %v4738 = vmul.f32 %v4259, %v941
    %v4739 = vpack.c.bf16 %v4738, %v4738
    %v4741 = vsel %vm385, %v4739, 0
    %4743 = vmatprep.subr.bf16.mxu0 0
    %4744 = vmatpush1.bf16.xpose.msra.mxu0 0
    %4745 = vmatprep.subr.bf16.mxu0 0
    %4746 = vmatpush1.bf16.xpose.msra.mxu0 0
    %4747 = vmatprep.subr.bf16.mxu0 0
    %4748 = vmatpush1.bf16.xpose.msra.mxu0 0
    %4749 = vmatprep.subr.bf16.mxu0 0
    %4750 = vmatpush1.bf16.xpose.msra.mxu0 0
    %4751 = vmatprep.subr.bf16.mxu0 0
    %4752 = vmatpush1.bf16.xpose.msra.mxu0 0
    %4753 = vmatprep.subr.bf16.mxu0 0
    %4754 = vmatpush1.bf16.xpose.msra.mxu0 0
    %4755 = vmatprep.subr.bf16.mxu0 0
    %4756 = vmatpush1.bf16.xpose.msra.mxu0 0
    %4757 = vmatprep.subr.bf16.mxu0 0
    %4758 = vmatpush1.bf16.xpose.msra.mxu0 %v4425
    %4759 = vmatprep.subr.bf16.mxu0 0
    %4760 = vmatpush2.bf16.xpose.msra.mxu0 0
    %4761 = vmatprep.subr.bf16.mxu0 0
    %4762 = vmatpush2.bf16.xpose.msra.mxu0 0
    %4763 = vmatprep.subr.bf16.mxu0 0
    %4764 = vmatpush2.bf16.xpose.msra.mxu0 0
    %4765 = vmatprep.subr.bf16.mxu0 0
    %4766 = vmatpush2.bf16.xpose.msra.mxu0 0
    %4767 = vmatprep.subr.bf16.mxu0 0
    %4768 = vmatpush2.bf16.xpose.msra.mxu0 0
    %4769 = vmatprep.subr.bf16.mxu0 0
    %4770 = vmatpush2.bf16.xpose.msra.mxu0 0
    %4771 = vmatprep.subr.bf16.mxu0 0
    %4772 = vmatpush2.bf16.xpose.msra.mxu0 0
    %4773 = vmatprep.subr.bf16.mxu0 0
    %4774 = vmatpush2.bf16.xpose.msra.mxu0 0
    %4775 = vmatprep.mubr.bf16.mxu0 0
    %4776 = vmatmul.mubr.bf16.gmra.mxu0 %v4741
    %v4777 = vpop.f32.mrf.mxu0
    %v4778 = vadd.f32 %v354, %v4777
    %v4779 = vpop.f32.mrf.mxu0
    %v4780 = vpop.f32.mrf.mxu0
    %v4781 = vpop.f32.mrf.mxu0
    %4782 = vdwg.mxu0
    %v4783 = vsel %vm2683, %v4778, -inf
    %4784 = vmax.xlane.f32.xlu0 %v4783
    %v4785 = vpop.xlane.xlu0 %4784
    %v4786 = vsub.f32 %v4778, %v4785
    %v4787 = vmul.f32 %v4786, 1.442695
    %v4788 = vpow.pop %v4787
    %v4789 = vsel %vm2683, %v4788, 0.0
    %4790 = vadd.xlane.f32.xlu0 %v4789
    %v4791 = vpop.xlane.xlu0 %4790
    %v4792 = vrcp.pop %v4791
    %v4793 = vmul.f32 %v4788, %v4792
    %v4794 = vmul.f32 %v4413, %v941
    %v4795 = vpack.c.bf16 %v4793, %v4793
    %v4796 = vpack.c.bf16 %v4794, %v4794
    %v4798 = vsel %vm2757, %v4795, 0
    %v4801 = vsel %vm2761, %v4796, 0
    %4803 = vmatprep.subr.bf16.mxu0 0
    %4804 = vmatpush1.bf16.msra.mxu0 0
    %4805 = vmatprep.subr.bf16.mxu0 0
    %4806 = vmatpush1.bf16.msra.mxu0 0
    %4807 = vmatprep.subr.bf16.mxu0 0
    %4808 = vmatpush1.bf16.msra.mxu0 0
    %4809 = vmatprep.subr.bf16.mxu0 0
    %4810 = vmatpush1.bf16.msra.mxu0 0
    %4811 = vmatprep.subr.bf16.mxu0 0
    %4812 = vmatpush1.bf16.msra.mxu0 0
    %4813 = vmatprep.subr.bf16.mxu0 0
    %4814 = vmatpush1.bf16.msra.mxu0 0
    %4815 = vmatprep.subr.bf16.mxu0 0
    %4816 = vmatpush1.bf16.msra.mxu0 0
    %4817 = vmatprep.subr.bf16.mxu0 0
    %4818 = vmatpush1.bf16.msra.mxu0 %v4801
    %4819 = vmatprep.subr.bf16.mxu0 0
    %4820 = vmatpush2.bf16.msra.mxu0 0
    %4821 = vmatprep.subr.bf16.mxu0 0
    %4822 = vmatpush2.bf16.msra.mxu0 0
    %4823 = vmatprep.subr.bf16.mxu0 0
    %4824 = vmatpush2.bf16.msra.mxu0 0
    %4825 = vmatprep.subr.bf16.mxu0 0
    %4826 = vmatpush2.bf16.msra.mxu0 0
    %4827 = vmatprep.subr.bf16.mxu0 0
    %4828 = vmatpush2.bf16.msra.mxu0 0
    %4829 = vmatprep.subr.bf16.mxu0 0
    %4830 = vmatpush2.bf16.msra.mxu0 0
    %4831 = vmatprep.subr.bf16.mxu0 0
    %4832 = vmatpush2.bf16.msra.mxu0 0
    %4833 = vmatprep.subr.bf16.mxu0 0
    %4834 = vmatpush2.bf16.msra.mxu0 0
    %4835 = vmatprep.mubr.bf16.mxu0 0
    %4836 = vmatmul.mubr.bf16.gmra.mxu0 %v4798
    %v4837 = vpop.f32.mrf.mxu0
    %v4838 = vadd.f32 0.0, %v4837
    %v4839 = vpop.f32.mrf.mxu0
    %v4840 = vpop.f32.mrf.mxu0
    %v4841 = vpop.f32.mrf.mxu0
    %4842 = vdwg.mxu0
    %v4843 = vadd.f32 %v4737, %v4838
    %s4844 = scalar_lea.vmem %s12, 456
    %v4845 = vld [vmem:[%s4844] sm:$0xf]
    %v4846 = vld [vmem:[%s4844 + $0x4] sm:$0xf]
    %v4847 = vld [vmem:[%s4844 + $0x8] sm:$0xf]
    %v4848 = vld [vmem:[%s4844 + $0xc] sm:$0xf]
    %v4849 = vld [vmem:[%s4844 + $0x10] sm:$0xf]
    %v4850 = vld [vmem:[%s4844 + $0x14] sm:$0xf]
    %v4851 = vpack.c.bf16 %v4843, %v4843
    %s4852 = scalar_lea.vmem [#allocation6], 19
    %v4853 = vld [vmem:[%s4852] sm:$0x1]
    %v4855 = vlaneseq
    %v4856 = vshrl.u32 %v4855, 7
    %v4857 = vsub.s32 0, %v4856
    %v4858 = vrot.slane %v4853, %v4857
    %v4866 = vunpack.c.l.b16 %v4845
    %v4867 = vunpack.c.l.b16 %v4846
    %v4868 = vunpack.c.l.b16 %v4847
    %v4869 = vunpack.c.l.b16 %v4848
    %v4870 = vunpack.c.l.b16 %v4849
    %v4871 = vunpack.c.l.b16 %v4850
    %v4872 = vpack.c.b16 %v4867, %v4866
    %v4873 = vpack.c.b16 %v4869, %v4868
    %v4874 = vpack.c.b16 %v4871, %v4870
    %v4876 = vsel %vm385, %v4851, 0
    %v4879 = vsel %vm385, %v4872, 0
    %v4882 = vsel %vm385, %v4873, 0
    %v4885 = vsel %vm385, %v4874, 0
    %4887 = vmatprep.subr.bf16.mxu0 0
    %4888 = vmatpush1.bf16.xpose.msra.mxu0 0
    %4889 = vmatprep.subr.bf16.mxu0 0
    %4890 = vmatpush1.bf16.xpose.msra.mxu0 0
    %4891 = vmatprep.subr.bf16.mxu0 0
    %4892 = vmatpush1.bf16.xpose.msra.mxu0 0
    %4893 = vmatprep.subr.bf16.mxu0 0
    %4894 = vmatpush1.bf16.xpose.msra.mxu0 0
    %4895 = vmatprep.subr.bf16.mxu0 0
    %4896 = vmatpush1.bf16.xpose.msra.mxu0 0
    %4897 = vmatprep.subr.bf16.mxu0 0
    %4898 = vmatpush1.bf16.xpose.msra.mxu0 %v4885
    %4899 = vmatprep.subr.bf16.mxu0 0
    %4900 = vmatpush1.bf16.xpose.msra.mxu0 %v4882
    %4901 = vmatprep.subr.bf16.mxu0 0
    %4902 = vmatpush1.bf16.xpose.msra.mxu0 %v4879
    %4903 = vmatprep.subr.bf16.mxu0 0
    %4904 = vmatpush2.bf16.xpose.msra.mxu0 0
    %4905 = vmatprep.subr.bf16.mxu0 0
    %4906 = vmatpush2.bf16.xpose.msra.mxu0 0
    %4907 = vmatprep.subr.bf16.mxu0 0
    %4908 = vmatpush2.bf16.xpose.msra.mxu0 0
    %4909 = vmatprep.subr.bf16.mxu0 0
    %4910 = vmatpush2.bf16.xpose.msra.mxu0 0
    %4911 = vmatprep.subr.bf16.mxu0 0
    %4912 = vmatpush2.bf16.xpose.msra.mxu0 0
    %4913 = vmatprep.subr.bf16.mxu0 0
    %4914 = vmatpush2.bf16.xpose.msra.mxu0 0
    %4915 = vmatprep.subr.bf16.mxu0 0
    %4916 = vmatpush2.bf16.xpose.msra.mxu0 0
    %4917 = vmatprep.subr.bf16.mxu0 0
    %4918 = vmatpush2.bf16.xpose.msra.mxu0 0
    %4919 = vmatprep.mubr.bf16.mxu0 0
    %4920 = vmatmul.mubr.bf16.gmra.mxu0 %v4876
    %v4921 = vpop.f32.mrf.mxu0
    %v4922 = vadd.f32 %v4858, %v4921
    %v4923 = vpop.f32.mrf.mxu0
    %v4924 = vpop.f32.mrf.mxu0
    %v4925 = vpop.f32.mrf.mxu0
    %4926 = vdwg.mxu0
    %v4927 = vadd.f32 %v4175, %v4922
    %v4928 = vsel %vm3147, %v4927, 0.0
    %4929 = vadd.xlane.f32.xlu0 %v4928
    %v4930 = vpop.xlane.xlu0 %4929
    %v4931 = vmul.f32 %v4930, %v1136
    %v4932 = vsub.f32 %v4927, %v4931
    %v4933 = vmul.f32 %v4932, %v4932
    %v4934 = vsel %vm3147, %v4933, 0.0
    %4935 = vadd.xlane.f32.xlu0 %v4934
    %v4936 = vpop.xlane.xlu0 %4935
    %v4937 = vmul.f32 %v4936, %v1136
    %v4938 = vadd.f32 %v4937, 1e-05
    %v4939 = vrsqrt.pop %v4938
    %v4940 = vmul.f32 %v4932, %v4939
    %s4941 = scalar_lea.vmem %s18, 7
    %v4942 = vld [vmem:[%s4941] sm:$0x1]
    %v4944 = vlaneseq
    %v4945 = vshrl.u32 %v4944, 7
    %v4946 = vsub.s32 0, %v4945
    %v4947 = vrot.slane %v4942, %v4946
    %v4949 = vmul.f32 %v4940, %v4947
    %s4950 = scalar_lea.vmem [#allocation12], 7
    %v4951 = vld [vmem:[%s4950] sm:$0x1]
    %v4953 = vlaneseq
    %v4954 = vshrl.u32 %v4953, 7
    %v4955 = vsub.s32 0, %v4954
    %v4956 = vrot.slane %v4951, %v4955
    %v4958 = vadd.f32 %v4949, %v4956
    %s4959 = scalar_lea.vmem %s12, 480
    %v4960 = vld [vmem:[%s4959] sm:$0xf]
    %v4961 = vld [vmem:[%s4959 + $0x4] sm:$0xf]
    %v4962 = vld [vmem:[%s4959 + $0x8] sm:$0xf]
    %v4963 = vld [vmem:[%s4959 + $0xc] sm:$0xf]
    %v4964 = vld [vmem:[%s4959 + $0x10] sm:$0xf]
    %v4965 = vld [vmem:[%s4959 + $0x14] sm:$0xf]
    %v4966 = vpack.c.bf16 %v4958, %v4958
    %s4967 = scalar_lea.vmem [#allocation6], 20
    %v4968 = vld [vmem:[%s4967] sm:$0x1]
    %v4970 = vlaneseq
    %v4971 = vshrl.u32 %v4970, 7
    %v4972 = vsub.s32 0, %v4971
    %v4973 = vrot.slane %v4968, %v4972
    %v4981 = vunpack.c.l.b16 %v4960
    %v4982 = vunpack.c.l.b16 %v4961
    %v4983 = vunpack.c.l.b16 %v4962
    %v4984 = vunpack.c.l.b16 %v4963
    %v4985 = vunpack.c.l.b16 %v4964
    %v4986 = vunpack.c.l.b16 %v4965
    %v4987 = vpack.c.b16 %v4982, %v4981
    %v4988 = vpack.c.b16 %v4984, %v4983
    %v4989 = vpack.c.b16 %v4986, %v4985
    %v4991 = vsel %vm385, %v4966, 0
    %v4994 = vsel %vm385, %v4987, 0
    %v4997 = vsel %vm385, %v4988, 0
    %v5000 = vsel %vm385, %v4989, 0
    %5002 = vmatprep.subr.bf16.mxu0 0
    %5003 = vmatpush1.bf16.xpose.msra.mxu0 0
    %5004 = vmatprep.subr.bf16.mxu0 0
    %5005 = vmatpush1.bf16.xpose.msra.mxu0 0
    %5006 = vmatprep.subr.bf16.mxu0 0
    %5007 = vmatpush1.bf16.xpose.msra.mxu0 0
    %5008 = vmatprep.subr.bf16.mxu0 0
    %5009 = vmatpush1.bf16.xpose.msra.mxu0 0
    %5010 = vmatprep.subr.bf16.mxu0 0
    %5011 = vmatpush1.bf16.xpose.msra.mxu0 0
    %5012 = vmatprep.subr.bf16.mxu0 0
    %5013 = vmatpush1.bf16.xpose.msra.mxu0 %v5000
    %5014 = vmatprep.subr.bf16.mxu0 0
    %5015 = vmatpush1.bf16.xpose.msra.mxu0 %v4997
    %5016 = vmatprep.subr.bf16.mxu0 0
    %5017 = vmatpush1.bf16.xpose.msra.mxu0 %v4994
    %5018 = vmatprep.subr.bf16.mxu0 0
    %5019 = vmatpush2.bf16.xpose.msra.mxu0 0
    %5020 = vmatprep.subr.bf16.mxu0 0
    %5021 = vmatpush2.bf16.xpose.msra.mxu0 0
    %5022 = vmatprep.subr.bf16.mxu0 0
    %5023 = vmatpush2.bf16.xpose.msra.mxu0 0
    %5024 = vmatprep.subr.bf16.mxu0 0
    %5025 = vmatpush2.bf16.xpose.msra.mxu0 0
    %5026 = vmatprep.subr.bf16.mxu0 0
    %5027 = vmatpush2.bf16.xpose.msra.mxu0 0
    %5028 = vmatprep.subr.bf16.mxu0 0
    %5029 = vmatpush2.bf16.xpose.msra.mxu0 0
    %5030 = vmatprep.subr.bf16.mxu0 0
    %5031 = vmatpush2.bf16.xpose.msra.mxu0 0
    %5032 = vmatprep.subr.bf16.mxu0 0
    %5033 = vmatpush2.bf16.xpose.msra.mxu0 0
    %5034 = vmatprep.mubr.bf16.mxu0 0
    %5035 = vmatmul.mubr.bf16.gmra.mxu0 %v4991
    %v5036 = vpop.f32.mrf.mxu0
    %v5037 = vadd.f32 %v4973, %v5036
    %v5038 = vpop.f32.mrf.mxu0
    %v5039 = vpop.f32.mrf.mxu0
    %v5040 = vpop.f32.mrf.mxu0
    %5041 = vdwg.mxu0
    %v5042 = vmul.f32 %v5037, 0.28867513
    %s5043 = scalar_lea.vmem %s12, 504
    %v5044 = vld [vmem:[%s5043] sm:$0xf]
    %v5045 = vld [vmem:[%s5043 + $0x4] sm:$0xf]
    %v5046 = vld [vmem:[%s5043 + $0x8] sm:$0xf]
    %v5047 = vld [vmem:[%s5043 + $0xc] sm:$0xf]
    %v5048 = vld [vmem:[%s5043 + $0x10] sm:$0xf]
    %v5049 = vld [vmem:[%s5043 + $0x14] sm:$0xf]
    %s5050 = scalar_lea.vmem [#allocation6], 21
    %v5051 = vld [vmem:[%s5050] sm:$0x1]
    %v5053 = vlaneseq
    %v5054 = vshrl.u32 %v5053, 7
    %v5055 = vsub.s32 0, %v5054
    %v5056 = vrot.slane %v5051, %v5055
    %v5064 = vunpack.c.l.b16 %v5044
    %v5065 = vunpack.c.l.b16 %v5045
    %v5066 = vunpack.c.l.b16 %v5046
    %v5067 = vunpack.c.l.b16 %v5047
    %v5068 = vunpack.c.l.b16 %v5048
    %v5069 = vunpack.c.l.b16 %v5049
    %v5070 = vpack.c.b16 %v5065, %v5064
    %v5071 = vpack.c.b16 %v5067, %v5066
    %v5072 = vpack.c.b16 %v5069, %v5068
    %v5074 = vsel %vm385, %v5070, 0
    %v5077 = vsel %vm385, %v5071, 0
    %v5080 = vsel %vm385, %v5072, 0
    %5082 = vmatprep.subr.bf16.mxu0 0
    %5083 = vmatpush1.bf16.xpose.msra.mxu0 0
    %5084 = vmatprep.subr.bf16.mxu0 0
    %5085 = vmatpush1.bf16.xpose.msra.mxu0 0
    %5086 = vmatprep.subr.bf16.mxu0 0
    %5087 = vmatpush1.bf16.xpose.msra.mxu0 0
    %5088 = vmatprep.subr.bf16.mxu0 0
    %5089 = vmatpush1.bf16.xpose.msra.mxu0 0
    %5090 = vmatprep.subr.bf16.mxu0 0
    %5091 = vmatpush1.bf16.xpose.msra.mxu0 0
    %5092 = vmatprep.subr.bf16.mxu0 0
    %5093 = vmatpush1.bf16.xpose.msra.mxu0 %v5080
    %5094 = vmatprep.subr.bf16.mxu0 0
    %5095 = vmatpush1.bf16.xpose.msra.mxu0 %v5077
    %5096 = vmatprep.subr.bf16.mxu0 0
    %5097 = vmatpush1.bf16.xpose.msra.mxu0 %v5074
    %5098 = vmatprep.subr.bf16.mxu0 0
    %5099 = vmatpush2.bf16.xpose.msra.mxu0 0
    %5100 = vmatprep.subr.bf16.mxu0 0
    %5101 = vmatpush2.bf16.xpose.msra.mxu0 0
    %5102 = vmatprep.subr.bf16.mxu0 0
    %5103 = vmatpush2.bf16.xpose.msra.mxu0 0
    %5104 = vmatprep.subr.bf16.mxu0 0
    %5105 = vmatpush2.bf16.xpose.msra.mxu0 0
    %5106 = vmatprep.subr.bf16.mxu0 0
    %5107 = vmatpush2.bf16.xpose.msra.mxu0 0
    %5108 = vmatprep.subr.bf16.mxu0 0
    %5109 = vmatpush2.bf16.xpose.msra.mxu0 0
    %5110 = vmatprep.subr.bf16.mxu0 0
    %5111 = vmatpush2.bf16.xpose.msra.mxu0 0
    %5112 = vmatprep.subr.bf16.mxu0 0
    %5113 = vmatpush2.bf16.xpose.msra.mxu0 0
    %5114 = vmatprep.mubr.bf16.mxu0 0
    %5115 = vmatmul.mubr.bf16.gmra.mxu0 %v3295
    %v5116 = vpop.f32.mrf.mxu0
    %v5117 = vadd.f32 %v5056, %v5116
    %v5118 = vpop.f32.mrf.mxu0
    %v5119 = vpop.f32.mrf.mxu0
    %v5120 = vpop.f32.mrf.mxu0
    %5121 = vdwg.mxu0
    %s5122 = scalar_lea.vmem %s12, 528
    %v5123 = vld [vmem:[%s5122] sm:$0xf]
    %v5124 = vld [vmem:[%s5122 + $0x4] sm:$0xf]
    %v5125 = vld [vmem:[%s5122 + $0x8] sm:$0xf]
    %v5126 = vld [vmem:[%s5122 + $0xc] sm:$0xf]
    %v5127 = vld [vmem:[%s5122 + $0x10] sm:$0xf]
    %v5128 = vld [vmem:[%s5122 + $0x14] sm:$0xf]
    %s5129 = scalar_lea.vmem [#allocation6], 22
    %v5130 = vld [vmem:[%s5129] sm:$0x1]
    %v5132 = vlaneseq
    %v5133 = vshrl.u32 %v5132, 7
    %v5134 = vsub.s32 0, %v5133
    %v5135 = vrot.slane %v5130, %v5134
    %v5143 = vunpack.c.l.b16 %v5123
    %v5144 = vunpack.c.l.b16 %v5124
    %v5145 = vunpack.c.l.b16 %v5125
    %v5146 = vunpack.c.l.b16 %v5126
    %v5147 = vunpack.c.l.b16 %v5127
    %v5148 = vunpack.c.l.b16 %v5128
    %v5149 = vpack.c.b16 %v5144, %v5143
    %v5150 = vpack.c.b16 %v5146, %v5145
    %v5151 = vpack.c.b16 %v5148, %v5147
    %v5153 = vsel %vm385, %v5149, 0
    %v5156 = vsel %vm385, %v5150, 0
    %v5159 = vsel %vm385, %v5151, 0
    %5161 = vmatprep.subr.bf16.mxu0 0
    %5162 = vmatpush1.bf16.xpose.msra.mxu0 0
    %5163 = vmatprep.subr.bf16.mxu0 0
    %5164 = vmatpush1.bf16.xpose.msra.mxu0 0
    %5165 = vmatprep.subr.bf16.mxu0 0
    %5166 = vmatpush1.bf16.xpose.msra.mxu0 0
    %5167 = vmatprep.subr.bf16.mxu0 0
    %5168 = vmatpush1.bf16.xpose.msra.mxu0 0
    %5169 = vmatprep.subr.bf16.mxu0 0
    %5170 = vmatpush1.bf16.xpose.msra.mxu0 0
    %5171 = vmatprep.subr.bf16.mxu0 0
    %5172 = vmatpush1.bf16.xpose.msra.mxu0 %v5159
    %5173 = vmatprep.subr.bf16.mxu0 0
    %5174 = vmatpush1.bf16.xpose.msra.mxu0 %v5156
    %5175 = vmatprep.subr.bf16.mxu0 0
    %5176 = vmatpush1.bf16.xpose.msra.mxu0 %v5153
    %5177 = vmatprep.subr.bf16.mxu0 0
    %5178 = vmatpush2.bf16.xpose.msra.mxu0 0
    %5179 = vmatprep.subr.bf16.mxu0 0
    %5180 = vmatpush2.bf16.xpose.msra.mxu0 0
    %5181 = vmatprep.subr.bf16.mxu0 0
    %5182 = vmatpush2.bf16.xpose.msra.mxu0 0
    %5183 = vmatprep.subr.bf16.mxu0 0
    %5184 = vmatpush2.bf16.xpose.msra.mxu0 0
    %5185 = vmatprep.subr.bf16.mxu0 0
    %5186 = vmatpush2.bf16.xpose.msra.mxu0 0
    %5187 = vmatprep.subr.bf16.mxu0 0
    %5188 = vmatpush2.bf16.xpose.msra.mxu0 0
    %5189 = vmatprep.subr.bf16.mxu0 0
    %5190 = vmatpush2.bf16.xpose.msra.mxu0 0
    %5191 = vmatprep.subr.bf16.mxu0 0
    %5192 = vmatpush2.bf16.xpose.msra.mxu0 0
    %5193 = vmatprep.mubr.bf16.mxu0 0
    %5194 = vmatmul.mubr.bf16.gmra.mxu0 %v3295
    %v5195 = vpop.f32.mrf.mxu0
    %v5196 = vadd.f32 %v5135, %v5195
    %v5197 = vpop.f32.mrf.mxu0
    %v5198 = vpop.f32.mrf.mxu0
    %v5199 = vpop.f32.mrf.mxu0
    %5200 = vdwg.mxu0
    %v5201 = vmul.f32 %v5042, %v601
    %v5202 = vpack.c.bf16 %v5201, %v5201
    %v5203 = vpack.c.bf16 %v5117, %v5117
    %v5205 = vsel %vm385, %v5202, 0
    %v5208 = vsel %vm385, %v5203, 0
    %5210 = vmatprep.subr.bf16.mxu0 0
    %5211 = vmatpush1.bf16.xpose.msra.mxu0 0
    %5212 = vmatprep.subr.bf16.mxu0 0
    %5213 = vmatpush1.bf16.xpose.msra.mxu0 0
    %5214 = vmatprep.subr.bf16.mxu0 0
    %5215 = vmatpush1.bf16.xpose.msra.mxu0 0
    %5216 = vmatprep.subr.bf16.mxu0 0
    %5217 = vmatpush1.bf16.xpose.msra.mxu0 0
    %5218 = vmatprep.subr.bf16.mxu0 0
    %5219 = vmatpush1.bf16.xpose.msra.mxu0 0
    %5220 = vmatprep.subr.bf16.mxu0 0
    %5221 = vmatpush1.bf16.xpose.msra.mxu0 0
    %5222 = vmatprep.subr.bf16.mxu0 0
    %5223 = vmatpush1.bf16.xpose.msra.mxu0 0
    %5224 = vmatprep.subr.bf16.mxu0 0
    %5225 = vmatpush1.bf16.xpose.msra.mxu0 %v5208
    %5226 = vmatprep.subr.bf16.mxu0 0
    %5227 = vmatpush2.bf16.xpose.msra.mxu0 0
    %5228 = vmatprep.subr.bf16.mxu0 0
    %5229 = vmatpush2.bf16.xpose.msra.mxu0 0
    %5230 = vmatprep.subr.bf16.mxu0 0
    %5231 = vmatpush2.bf16.xpose.msra.mxu0 0
    %5232 = vmatprep.subr.bf16.mxu0 0
    %5233 = vmatpush2.bf16.xpose.msra.mxu0 0
    %5234 = vmatprep.subr.bf16.mxu0 0
    %5235 = vmatpush2.bf16.xpose.msra.mxu0 0
    %5236 = vmatprep.subr.bf16.mxu0 0
    %5237 = vmatpush2.bf16.xpose.msra.mxu0 0
    %5238 = vmatprep.subr.bf16.mxu0 0
    %5239 = vmatpush2.bf16.xpose.msra.mxu0 0
    %5240 = vmatprep.subr.bf16.mxu0 0
    %5241 = vmatpush2.bf16.xpose.msra.mxu0 0
    %5242 = vmatprep.mubr.bf16.mxu0 0
    %5243 = vmatmul.mubr.bf16.gmra.mxu0 %v5205
    %v5244 = vpop.f32.mrf.mxu0
    %v5245 = vadd.f32 %v355, %v5244
    %v5246 = vpop.f32.mrf.mxu0
    %v5247 = vpop.f32.mrf.mxu0
    %v5248 = vpop.f32.mrf.mxu0
    %5249 = vdwg.mxu0
    %v5250 = vsel %vm3474, %v5245, -inf
    %5251 = vmax.xlane.f32.xlu0 %v5250
    %v5252 = vpop.xlane.xlu0 %5251
    %v5253 = vsub.f32 %v5245, %v5252
    %v5254 = vmul.f32 %v5253, 1.442695
    %v5255 = vpow.pop %v5254
    %v5256 = vsel %vm3474, %v5255, 0.0
    %5257 = vadd.xlane.f32.xlu0 %v5256
    %v5258 = vpop.xlane.xlu0 %5257
    %v5259 = vrcp.pop %v5258
    %v5260 = vmul.f32 %v5255, %v5259
    %v5261 = vmul.f32 %v5196, %v601
    %v5262 = vpack.c.bf16 %v5260, %v5260
    %v5263 = vpack.c.bf16 %v5261, %v5261
    %v5264 = vmul.f32 %v5042, %v671
    %v5265 = vpack.c.bf16 %v5264, %v5264
    %v5267 = vsel %vm385, %v5265, 0
    %5269 = vmatprep.subr.bf16.mxu0 0
    %5270 = vmatpush1.bf16.xpose.msra.mxu0 0
    %5271 = vmatprep.subr.bf16.mxu0 0
    %5272 = vmatpush1.bf16.xpose.msra.mxu0 0
    %5273 = vmatprep.subr.bf16.mxu0 0
    %5274 = vmatpush1.bf16.xpose.msra.mxu0 0
    %5275 = vmatprep.subr.bf16.mxu0 0
    %5276 = vmatpush1.bf16.xpose.msra.mxu0 0
    %5277 = vmatprep.subr.bf16.mxu0 0
    %5278 = vmatpush1.bf16.xpose.msra.mxu0 0
    %5279 = vmatprep.subr.bf16.mxu0 0
    %5280 = vmatpush1.bf16.xpose.msra.mxu0 0
    %5281 = vmatprep.subr.bf16.mxu0 0
    %5282 = vmatpush1.bf16.xpose.msra.mxu0 0
    %5283 = vmatprep.subr.bf16.mxu0 0
    %5284 = vmatpush1.bf16.xpose.msra.mxu0 %v5208
    %5285 = vmatprep.subr.bf16.mxu0 0
    %5286 = vmatpush2.bf16.xpose.msra.mxu0 0
    %5287 = vmatprep.subr.bf16.mxu0 0
    %5288 = vmatpush2.bf16.xpose.msra.mxu0 0
    %5289 = vmatprep.subr.bf16.mxu0 0
    %5290 = vmatpush2.bf16.xpose.msra.mxu0 0
    %5291 = vmatprep.subr.bf16.mxu0 0
    %5292 = vmatpush2.bf16.xpose.msra.mxu0 0
    %5293 = vmatprep.subr.bf16.mxu0 0
    %5294 = vmatpush2.bf16.xpose.msra.mxu0 0
    %5295 = vmatprep.subr.bf16.mxu0 0
    %5296 = vmatpush2.bf16.xpose.msra.mxu0 0
    %5297 = vmatprep.subr.bf16.mxu0 0
    %5298 = vmatpush2.bf16.xpose.msra.mxu0 0
    %5299 = vmatprep.subr.bf16.mxu0 0
    %5300 = vmatpush2.bf16.xpose.msra.mxu0 0
    %5301 = vmatprep.mubr.bf16.mxu0 0
    %5302 = vmatmul.mubr.bf16.gmra.mxu0 %v5267
    %v5303 = vpop.f32.mrf.mxu0
    %v5304 = vadd.f32 %v355, %v5303
    %v5305 = vpop.f32.mrf.mxu0
    %v5306 = vpop.f32.mrf.mxu0
    %v5307 = vpop.f32.mrf.mxu0
    %5308 = vdwg.mxu0
    %v5309 = vsel %vm3474, %v5304, -inf
    %5310 = vmax.xlane.f32.xlu0 %v5309
    %v5311 = vpop.xlane.xlu0 %5310
    %v5312 = vsub.f32 %v5304, %v5311
    %v5313 = vmul.f32 %v5312, 1.442695
    %v5314 = vpow.pop %v5313
    %v5315 = vsel %vm3474, %v5314, 0.0
    %5316 = vadd.xlane.f32.xlu0 %v5315
    %v5317 = vpop.xlane.xlu0 %5316
    %v5318 = vrcp.pop %v5317
    %v5319 = vmul.f32 %v5314, %v5318
    %v5320 = vmul.f32 %v5196, %v671
    %v5321 = vpack.c.bf16 %v5319, %v5319
    %v5322 = vpack.c.bf16 %v5320, %v5320
    %v5324 = vsel %vm652, %v5321, 0
    %v5327 = vsel %vm735, %v5322, 0
    %5329 = vmatprep.subr.bf16.mxu0 0
    %5330 = vmatpush1.bf16.msra.mxu0 0
    %5331 = vmatprep.subr.bf16.mxu0 0
    %5332 = vmatpush1.bf16.msra.mxu0 0
    %5333 = vmatprep.subr.bf16.mxu0 0
    %5334 = vmatpush1.bf16.msra.mxu0 0
    %5335 = vmatprep.subr.bf16.mxu0 0
    %5336 = vmatpush1.bf16.msra.mxu0 0
    %5337 = vmatprep.subr.bf16.mxu0 0
    %5338 = vmatpush1.bf16.msra.mxu0 0
    %5339 = vmatprep.subr.bf16.mxu0 0
    %5340 = vmatpush1.bf16.msra.mxu0 0
    %5341 = vmatprep.subr.bf16.mxu0 0
    %5342 = vmatpush1.bf16.msra.mxu0 0
    %5343 = vmatprep.subr.bf16.mxu0 0
    %5344 = vmatpush1.bf16.msra.mxu0 %v5327
    %5345 = vmatprep.subr.bf16.mxu0 0
    %5346 = vmatpush2.bf16.msra.mxu0 0
    %5347 = vmatprep.subr.bf16.mxu0 0
    %5348 = vmatpush2.bf16.msra.mxu0 0
    %5349 = vmatprep.subr.bf16.mxu0 0
    %5350 = vmatpush2.bf16.msra.mxu0 0
    %5351 = vmatprep.subr.bf16.mxu0 0
    %5352 = vmatpush2.bf16.msra.mxu0 0
    %5353 = vmatprep.subr.bf16.mxu0 0
    %5354 = vmatpush2.bf16.msra.mxu0 0
    %5355 = vmatprep.subr.bf16.mxu0 0
    %5356 = vmatpush2.bf16.msra.mxu0 0
    %5357 = vmatprep.subr.bf16.mxu0 0
    %5358 = vmatpush2.bf16.msra.mxu0 0
    %5359 = vmatprep.subr.bf16.mxu0 0
    %5360 = vmatpush2.bf16.msra.mxu0 0
    %5361 = vmatprep.mubr.bf16.mxu0 0
    %5362 = vmatmul.mubr.bf16.gmra.mxu0 %v5324
    %v5363 = vpop.f32.mrf.mxu0
    %v5364 = vadd.f32 0.0, %v5363
    %v5365 = vpop.f32.mrf.mxu0
    %v5366 = vpop.f32.mrf.mxu0
    %v5367 = vpop.f32.mrf.mxu0
    %5368 = vdwg.mxu0
    %v5370 = vsel %vm652, %v5262, 0
    %v5373 = vsel %vm735, %v5263, 0
    %5375 = vmatprep.subr.bf16.mxu0 0
    %5376 = vmatpush1.bf16.msra.mxu0 0
    %5377 = vmatprep.subr.bf16.mxu0 0
    %5378 = vmatpush1.bf16.msra.mxu0 0
    %5379 = vmatprep.subr.bf16.mxu0 0
    %5380 = vmatpush1.bf16.msra.mxu0 0
    %5381 = vmatprep.subr.bf16.mxu0 0
    %5382 = vmatpush1.bf16.msra.mxu0 0
    %5383 = vmatprep.subr.bf16.mxu0 0
    %5384 = vmatpush1.bf16.msra.mxu0 0
    %5385 = vmatprep.subr.bf16.mxu0 0
    %5386 = vmatpush1.bf16.msra.mxu0 0
    %5387 = vmatprep.subr.bf16.mxu0 0
    %5388 = vmatpush1.bf16.msra.mxu0 0
    %5389 = vmatprep.subr.bf16.mxu0 0
    %5390 = vmatpush1.bf16.msra.mxu0 %v5373
    %5391 = vmatprep.subr.bf16.mxu0 0
    %5392 = vmatpush2.bf16.msra.mxu0 0
    %5393 = vmatprep.subr.bf16.mxu0 0
    %5394 = vmatpush2.bf16.msra.mxu0 0
    %5395 = vmatprep.subr.bf16.mxu0 0
    %5396 = vmatpush2.bf16.msra.mxu0 0
    %5397 = vmatprep.subr.bf16.mxu0 0
    %5398 = vmatpush2.bf16.msra.mxu0 0
    %5399 = vmatprep.subr.bf16.mxu0 0
    %5400 = vmatpush2.bf16.msra.mxu0 0
    %5401 = vmatprep.subr.bf16.mxu0 0
    %5402 = vmatpush2.bf16.msra.mxu0 0
    %5403 = vmatprep.subr.bf16.mxu0 0
    %5404 = vmatpush2.bf16.msra.mxu0 0
    %5405 = vmatprep.subr.bf16.mxu0 0
    %5406 = vmatpush2.bf16.msra.mxu0 0
    %5407 = vmatprep.mubr.bf16.mxu0 0
    %5408 = vmatmul.mubr.bf16.gmra.mxu0 %v5370
    %v5409 = vpop.f32.mrf.mxu0
    %v5410 = vadd.f32 %v5364, %v5409
    %v5411 = vpop.f32.mrf.mxu0
    %v5412 = vpop.f32.mrf.mxu0
    %v5413 = vpop.f32.mrf.mxu0
    %5414 = vdwg.mxu0
    %v5415 = vmul.f32 %v5042, %v829
    %v5416 = vpack.c.bf16 %v5415, %v5415
    %v5418 = vsel %vm385, %v5416, 0
    %5420 = vmatprep.subr.bf16.mxu0 0
    %5421 = vmatpush1.bf16.xpose.msra.mxu0 0
    %5422 = vmatprep.subr.bf16.mxu0 0
    %5423 = vmatpush1.bf16.xpose.msra.mxu0 0
    %5424 = vmatprep.subr.bf16.mxu0 0
    %5425 = vmatpush1.bf16.xpose.msra.mxu0 0
    %5426 = vmatprep.subr.bf16.mxu0 0
    %5427 = vmatpush1.bf16.xpose.msra.mxu0 0
    %5428 = vmatprep.subr.bf16.mxu0 0
    %5429 = vmatpush1.bf16.xpose.msra.mxu0 0
    %5430 = vmatprep.subr.bf16.mxu0 0
    %5431 = vmatpush1.bf16.xpose.msra.mxu0 0
    %5432 = vmatprep.subr.bf16.mxu0 0
    %5433 = vmatpush1.bf16.xpose.msra.mxu0 0
    %5434 = vmatprep.subr.bf16.mxu0 0
    %5435 = vmatpush1.bf16.xpose.msra.mxu0 %v5208
    %5436 = vmatprep.subr.bf16.mxu0 0
    %5437 = vmatpush2.bf16.xpose.msra.mxu0 0
    %5438 = vmatprep.subr.bf16.mxu0 0
    %5439 = vmatpush2.bf16.xpose.msra.mxu0 0
    %5440 = vmatprep.subr.bf16.mxu0 0
    %5441 = vmatpush2.bf16.xpose.msra.mxu0 0
    %5442 = vmatprep.subr.bf16.mxu0 0
    %5443 = vmatpush2.bf16.xpose.msra.mxu0 0
    %5444 = vmatprep.subr.bf16.mxu0 0
    %5445 = vmatpush2.bf16.xpose.msra.mxu0 0
    %5446 = vmatprep.subr.bf16.mxu0 0
    %5447 = vmatpush2.bf16.xpose.msra.mxu0 0
    %5448 = vmatprep.subr.bf16.mxu0 0
    %5449 = vmatpush2.bf16.xpose.msra.mxu0 0
    %5450 = vmatprep.subr.bf16.mxu0 0
    %5451 = vmatpush2.bf16.xpose.msra.mxu0 0
    %5452 = vmatprep.mubr.bf16.mxu0 0
    %5453 = vmatmul.mubr.bf16.gmra.mxu0 %v5418
    %v5454 = vpop.f32.mrf.mxu0
    %v5455 = vadd.f32 %v355, %v5454
    %v5456 = vpop.f32.mrf.mxu0
    %v5457 = vpop.f32.mrf.mxu0
    %v5458 = vpop.f32.mrf.mxu0
    %5459 = vdwg.mxu0
    %v5460 = vsel %vm3474, %v5455, -inf
    %5461 = vmax.xlane.f32.xlu0 %v5460
    %v5462 = vpop.xlane.xlu0 %5461
    %v5463 = vsub.f32 %v5455, %v5462
    %v5464 = vmul.f32 %v5463, 1.442695
    %v5465 = vpow.pop %v5464
    %v5466 = vsel %vm3474, %v5465, 0.0
    %5467 = vadd.xlane.f32.xlu0 %v5466
    %v5468 = vpop.xlane.xlu0 %5467
    %v5469 = vrcp.pop %v5468
    %v5470 = vmul.f32 %v5465, %v5469
    %v5471 = vmul.f32 %v5196, %v829
    %v5472 = vpack.c.bf16 %v5470, %v5470
    %v5473 = vpack.c.bf16 %v5471, %v5471
    %v5475 = vsel %vm652, %v5472, 0
    %v5478 = vsel %vm735, %v5473, 0
    %5480 = vmatprep.subr.bf16.mxu0 0
    %5481 = vmatpush1.bf16.msra.mxu0 0
    %5482 = vmatprep.subr.bf16.mxu0 0
    %5483 = vmatpush1.bf16.msra.mxu0 0
    %5484 = vmatprep.subr.bf16.mxu0 0
    %5485 = vmatpush1.bf16.msra.mxu0 0
    %5486 = vmatprep.subr.bf16.mxu0 0
    %5487 = vmatpush1.bf16.msra.mxu0 0
    %5488 = vmatprep.subr.bf16.mxu0 0
    %5489 = vmatpush1.bf16.msra.mxu0 0
    %5490 = vmatprep.subr.bf16.mxu0 0
    %5491 = vmatpush1.bf16.msra.mxu0 0
    %5492 = vmatprep.subr.bf16.mxu0 0
    %5493 = vmatpush1.bf16.msra.mxu0 0
    %5494 = vmatprep.subr.bf16.mxu0 0
    %5495 = vmatpush1.bf16.msra.mxu0 %v5478
    %5496 = vmatprep.subr.bf16.mxu0 0
    %5497 = vmatpush2.bf16.msra.mxu0 0
    %5498 = vmatprep.subr.bf16.mxu0 0
    %5499 = vmatpush2.bf16.msra.mxu0 0
    %5500 = vmatprep.subr.bf16.mxu0 0
    %5501 = vmatpush2.bf16.msra.mxu0 0
    %5502 = vmatprep.subr.bf16.mxu0 0
    %5503 = vmatpush2.bf16.msra.mxu0 0
    %5504 = vmatprep.subr.bf16.mxu0 0
    %5505 = vmatpush2.bf16.msra.mxu0 0
    %5506 = vmatprep.subr.bf16.mxu0 0
    %5507 = vmatpush2.bf16.msra.mxu0 0
    %5508 = vmatprep.subr.bf16.mxu0 0
    %5509 = vmatpush2.bf16.msra.mxu0 0
    %5510 = vmatprep.subr.bf16.mxu0 0
    %5511 = vmatpush2.bf16.msra.mxu0 0
    %5512 = vmatprep.mubr.bf16.mxu0 0
    %5513 = vmatmul.mubr.bf16.gmra.mxu0 %v5475
    %v5514 = vpop.f32.mrf.mxu0
    %v5515 = vadd.f32 0.0, %v5514
    %v5516 = vpop.f32.mrf.mxu0
    %v5517 = vpop.f32.mrf.mxu0
    %v5518 = vpop.f32.mrf.mxu0
    %5519 = vdwg.mxu0
    %v5520 = vadd.f32 %v5410, %v5515
    %v5521 = vmul.f32 %v5042, %v941
    %v5522 = vpack.c.bf16 %v5521, %v5521
    %v5524 = vsel %vm385, %v5522, 0
    %5526 = vmatprep.subr.bf16.mxu0 0
    %5527 = vmatpush1.bf16.xpose.msra.mxu0 0
    %5528 = vmatprep.subr.bf16.mxu0 0
    %5529 = vmatpush1.bf16.xpose.msra.mxu0 0
    %5530 = vmatprep.subr.bf16.mxu0 0
    %5531 = vmatpush1.bf16.xpose.msra.mxu0 0
    %5532 = vmatprep.subr.bf16.mxu0 0
    %5533 = vmatpush1.bf16.xpose.msra.mxu0 0
    %5534 = vmatprep.subr.bf16.mxu0 0
    %5535 = vmatpush1.bf16.xpose.msra.mxu0 0
    %5536 = vmatprep.subr.bf16.mxu0 0
    %5537 = vmatpush1.bf16.xpose.msra.mxu0 0
    %5538 = vmatprep.subr.bf16.mxu0 0
    %5539 = vmatpush1.bf16.xpose.msra.mxu0 0
    %5540 = vmatprep.subr.bf16.mxu0 0
    %5541 = vmatpush1.bf16.xpose.msra.mxu0 %v5208
    %5542 = vmatprep.subr.bf16.mxu0 0
    %5543 = vmatpush2.bf16.xpose.msra.mxu0 0
    %5544 = vmatprep.subr.bf16.mxu0 0
    %5545 = vmatpush2.bf16.xpose.msra.mxu0 0
    %5546 = vmatprep.subr.bf16.mxu0 0
    %5547 = vmatpush2.bf16.xpose.msra.mxu0 0
    %5548 = vmatprep.subr.bf16.mxu0 0
    %5549 = vmatpush2.bf16.xpose.msra.mxu0 0
    %5550 = vmatprep.subr.bf16.mxu0 0
    %5551 = vmatpush2.bf16.xpose.msra.mxu0 0
    %5552 = vmatprep.subr.bf16.mxu0 0
    %5553 = vmatpush2.bf16.xpose.msra.mxu0 0
    %5554 = vmatprep.subr.bf16.mxu0 0
    %5555 = vmatpush2.bf16.xpose.msra.mxu0 0
    %5556 = vmatprep.subr.bf16.mxu0 0
    %5557 = vmatpush2.bf16.xpose.msra.mxu0 0
    %5558 = vmatprep.mubr.bf16.mxu0 0
    %5559 = vmatmul.mubr.bf16.gmra.mxu0 %v5524
    %v5560 = vpop.f32.mrf.mxu0
    %v5561 = vadd.f32 %v355, %v5560
    %v5562 = vpop.f32.mrf.mxu0
    %v5563 = vpop.f32.mrf.mxu0
    %v5564 = vpop.f32.mrf.mxu0
    %5565 = vdwg.mxu0
    %v5566 = vsel %vm3474, %v5561, -inf
    %5567 = vmax.xlane.f32.xlu0 %v5566
    %v5568 = vpop.xlane.xlu0 %5567
    %v5569 = vsub.f32 %v5561, %v5568
    %v5570 = vmul.f32 %v5569, 1.442695
    %v5571 = vpow.pop %v5570
    %v5572 = vsel %vm3474, %v5571, 0.0
    %5573 = vadd.xlane.f32.xlu0 %v5572
    %v5574 = vpop.xlane.xlu0 %5573
    %v5575 = vrcp.pop %v5574
    %v5576 = vmul.f32 %v5571, %v5575
    %v5577 = vmul.f32 %v5196, %v941
    %v5578 = vpack.c.bf16 %v5576, %v5576
    %v5579 = vpack.c.bf16 %v5577, %v5577
    %v5581 = vsel %vm652, %v5578, 0
    %v5584 = vsel %vm735, %v5579, 0
    %5586 = vmatprep.subr.bf16.mxu0 0
    %5587 = vmatpush1.bf16.msra.mxu0 0
    %5588 = vmatprep.subr.bf16.mxu0 0
    %5589 = vmatpush1.bf16.msra.mxu0 0
    %5590 = vmatprep.subr.bf16.mxu0 0
    %5591 = vmatpush1.bf16.msra.mxu0 0
    %5592 = vmatprep.subr.bf16.mxu0 0
    %5593 = vmatpush1.bf16.msra.mxu0 0
    %5594 = vmatprep.subr.bf16.mxu0 0
    %5595 = vmatpush1.bf16.msra.mxu0 0
    %5596 = vmatprep.subr.bf16.mxu0 0
    %5597 = vmatpush1.bf16.msra.mxu0 0
    %5598 = vmatprep.subr.bf16.mxu0 0
    %5599 = vmatpush1.bf16.msra.mxu0 0
    %5600 = vmatprep.subr.bf16.mxu0 0
    %5601 = vmatpush1.bf16.msra.mxu0 %v5584
    %5602 = vmatprep.subr.bf16.mxu0 0
    %5603 = vmatpush2.bf16.msra.mxu0 0
    %5604 = vmatprep.subr.bf16.mxu0 0
    %5605 = vmatpush2.bf16.msra.mxu0 0
    %5606 = vmatprep.subr.bf16.mxu0 0
    %5607 = vmatpush2.bf16.msra.mxu0 0
    %5608 = vmatprep.subr.bf16.mxu0 0
    %5609 = vmatpush2.bf16.msra.mxu0 0
    %5610 = vmatprep.subr.bf16.mxu0 0
    %5611 = vmatpush2.bf16.msra.mxu0 0
    %5612 = vmatprep.subr.bf16.mxu0 0
    %5613 = vmatpush2.bf16.msra.mxu0 0
    %5614 = vmatprep.subr.bf16.mxu0 0
    %5615 = vmatpush2.bf16.msra.mxu0 0
    %5616 = vmatprep.subr.bf16.mxu0 0
    %5617 = vmatpush2.bf16.msra.mxu0 0
    %5618 = vmatprep.mubr.bf16.mxu0 0
    %5619 = vmatmul.mubr.bf16.gmra.mxu0 %v5581
    %v5620 = vpop.f32.mrf.mxu0
    %v5621 = vadd.f32 0.0, %v5620
    %v5622 = vpop.f32.mrf.mxu0
    %v5623 = vpop.f32.mrf.mxu0
    %v5624 = vpop.f32.mrf.mxu0
    %5625 = vdwg.mxu0
    %v5626 = vadd.f32 %v5520, %v5621
    %s5627 = scalar_lea.vmem %s12, 552
    %v5628 = vld [vmem:[%s5627] sm:$0xf]
    %v5629 = vld [vmem:[%s5627 + $0x4] sm:$0xf]
    %v5630 = vld [vmem:[%s5627 + $0x8] sm:$0xf]
    %v5631 = vld [vmem:[%s5627 + $0xc] sm:$0xf]
    %v5632 = vld [vmem:[%s5627 + $0x10] sm:$0xf]
    %v5633 = vld [vmem:[%s5627 + $0x14] sm:$0xf]
    %v5634 = vpack.c.bf16 %v5626, %v5626
    %s5635 = scalar_lea.vmem [#allocation6], 23
    %v5636 = vld [vmem:[%s5635] sm:$0x1]
    %v5638 = vlaneseq
    %v5639 = vshrl.u32 %v5638, 7
    %v5640 = vsub.s32 0, %v5639
    %v5641 = vrot.slane %v5636, %v5640
    %v5649 = vunpack.c.l.b16 %v5628
    %v5650 = vunpack.c.l.b16 %v5629
    %v5651 = vunpack.c.l.b16 %v5630
    %v5652 = vunpack.c.l.b16 %v5631
    %v5653 = vunpack.c.l.b16 %v5632
    %v5654 = vunpack.c.l.b16 %v5633
    %v5655 = vpack.c.b16 %v5650, %v5649
    %v5656 = vpack.c.b16 %v5652, %v5651
    %v5657 = vpack.c.b16 %v5654, %v5653
    %v5659 = vsel %vm385, %v5634, 0
    %v5662 = vsel %vm385, %v5655, 0
    %v5665 = vsel %vm385, %v5656, 0
    %v5668 = vsel %vm385, %v5657, 0
    %5670 = vmatprep.subr.bf16.mxu0 0
    %5671 = vmatpush1.bf16.xpose.msra.mxu0 0
    %5672 = vmatprep.subr.bf16.mxu0 0
    %5673 = vmatpush1.bf16.xpose.msra.mxu0 0
    %5674 = vmatprep.subr.bf16.mxu0 0
    %5675 = vmatpush1.bf16.xpose.msra.mxu0 0
    %5676 = vmatprep.subr.bf16.mxu0 0
    %5677 = vmatpush1.bf16.xpose.msra.mxu0 0
    %5678 = vmatprep.subr.bf16.mxu0 0
    %5679 = vmatpush1.bf16.xpose.msra.mxu0 0
    %5680 = vmatprep.subr.bf16.mxu0 0
    %5681 = vmatpush1.bf16.xpose.msra.mxu0 %v5668
    %5682 = vmatprep.subr.bf16.mxu0 0
    %5683 = vmatpush1.bf16.xpose.msra.mxu0 %v5665
    %5684 = vmatprep.subr.bf16.mxu0 0
    %5685 = vmatpush1.bf16.xpose.msra.mxu0 %v5662
    %5686 = vmatprep.subr.bf16.mxu0 0
    %5687 = vmatpush2.bf16.xpose.msra.mxu0 0
    %5688 = vmatprep.subr.bf16.mxu0 0
    %5689 = vmatpush2.bf16.xpose.msra.mxu0 0
    %5690 = vmatprep.subr.bf16.mxu0 0
    %5691 = vmatpush2.bf16.xpose.msra.mxu0 0
    %5692 = vmatprep.subr.bf16.mxu0 0
    %5693 = vmatpush2.bf16.xpose.msra.mxu0 0
    %5694 = vmatprep.subr.bf16.mxu0 0
    %5695 = vmatpush2.bf16.xpose.msra.mxu0 0
    %5696 = vmatprep.subr.bf16.mxu0 0
    %5697 = vmatpush2.bf16.xpose.msra.mxu0 0
    %5698 = vmatprep.subr.bf16.mxu0 0
    %5699 = vmatpush2.bf16.xpose.msra.mxu0 0
    %5700 = vmatprep.subr.bf16.mxu0 0
    %5701 = vmatpush2.bf16.xpose.msra.mxu0 0
    %5702 = vmatprep.mubr.bf16.mxu0 0
    %5703 = vmatmul.mubr.bf16.gmra.mxu0 %v5659
    %v5704 = vpop.f32.mrf.mxu0
    %v5705 = vadd.f32 %v5641, %v5704
    %v5706 = vpop.f32.mrf.mxu0
    %v5707 = vpop.f32.mrf.mxu0
    %v5708 = vpop.f32.mrf.mxu0
    %5709 = vdwg.mxu0
    %v5710 = vadd.f32 %v4958, %v5705
    %v5711 = vsel %vm3147, %v5710, 0.0
    %5712 = vadd.xlane.f32.xlu0 %v5711
    %v5713 = vpop.xlane.xlu0 %5712
    %v5714 = vmul.f32 %v5713, %v1136
    %v5715 = vsub.f32 %v5710, %v5714
    %v5716 = vmul.f32 %v5715, %v5715
    %v5717 = vsel %vm3147, %v5716, 0.0
    %5718 = vadd.xlane.f32.xlu0 %v5717
    %v5719 = vpop.xlane.xlu0 %5718
    %v5720 = vmul.f32 %v5719, %v1136
    %v5721 = vadd.f32 %v5720, 1e-05
    %v5722 = vrsqrt.pop %v5721
    %v5723 = vmul.f32 %v5715, %v5722
    %s5724 = scalar_lea.vmem %s18, 8
    %v5725 = vld [vmem:[%s5724] sm:$0x1]
    %v5727 = vlaneseq
    %v5728 = vshrl.u32 %v5727, 7
    %v5729 = vsub.s32 0, %v5728
    %v5730 = vrot.slane %v5725, %v5729
    %v5732 = vmul.f32 %v5723, %v5730
    %s5733 = scalar_lea.vmem [#allocation12], 8
    %v5734 = vld [vmem:[%s5733] sm:$0x1]
    %v5736 = vlaneseq
    %v5737 = vshrl.u32 %v5736, 7
    %v5738 = vsub.s32 0, %v5737
    %v5739 = vrot.slane %v5734, %v5738
    %v5741 = vadd.f32 %v5732, %v5739
    %s5742 = scalar_lea.vmem %s14, 96
    %v5743 = vld [vmem:[%s5742] sm:$0xf]
    %v5744 = vld [vmem:[%s5742 + $0x4] sm:$0xf]
    %v5745 = vld [vmem:[%s5742 + $0x8] sm:$0xf]
    %v5746 = vld [vmem:[%s5742 + $0xc] sm:$0xf]
    %v5747 = vld [vmem:[%s5742 + $0x10] sm:$0xf]
    %v5748 = vld [vmem:[%s5742 + $0x14] sm:$0xf]
    %v5749 = vld [vmem:[%s5742 + $0x18] sm:$0xf]
    %v5750 = vld [vmem:[%s5742 + $0x1c] sm:$0xf]
    %v5751 = vpack.c.bf16 %v5741, %v5741
    %s5752 = scalar_lea.vmem [#allocation7], 3
    %v5753 = vld [vmem:[%s5752] sm:$0x1]
    %v5755 = vlaneseq
    %v5756 = vshrl.u32 %v5755, 7
    %v5757 = vsub.s32 0, %v5756
    %v5758 = vrot.slane %v5753, %v5757
    %v5768 = vunpack.c.l.b16 %v5743
    %v5769 = vunpack.c.l.b16 %v5744
    %v5770 = vunpack.c.l.b16 %v5745
    %v5771 = vunpack.c.l.b16 %v5746
    %v5772 = vunpack.c.l.b16 %v5747
    %v5773 = vunpack.c.l.b16 %v5748
    %v5774 = vunpack.c.l.b16 %v5749
    %v5775 = vunpack.c.l.b16 %v5750
    %v5776 = vpack.c.b16 %v5769, %v5768
    %v5777 = vpack.c.b16 %v5771, %v5770
    %v5778 = vpack.c.b16 %v5773, %v5772
    %v5779 = vpack.c.b16 %v5775, %v5774
    %v5781 = vsel %vm385, %v5751, 0
    %v5784 = vsel %vm385, %v5776, 0
    %v5787 = vsel %vm385, %v5777, 0
    %v5790 = vsel %vm385, %v5778, 0
    %v5793 = vsel %vm385, %v5779, 0
    %5795 = vmatprep.subr.bf16.mxu0 0
    %5796 = vmatpush1.bf16.xpose.msra.mxu0 0
    %5797 = vmatprep.subr.bf16.mxu0 0
    %5798 = vmatpush1.bf16.xpose.msra.mxu0 0
    %5799 = vmatprep.subr.bf16.mxu0 0
    %5800 = vmatpush1.bf16.xpose.msra.mxu0 0
    %5801 = vmatprep.subr.bf16.mxu0 0
    %5802 = vmatpush1.bf16.xpose.msra.mxu0 0
    %5803 = vmatprep.subr.bf16.mxu0 0
    %5804 = vmatpush1.bf16.xpose.msra.mxu0 %v5793
    %5805 = vmatprep.subr.bf16.mxu0 0
    %5806 = vmatpush1.bf16.xpose.msra.mxu0 %v5790
    %5807 = vmatprep.subr.bf16.mxu0 0
    %5808 = vmatpush1.bf16.xpose.msra.mxu0 %v5787
    %5809 = vmatprep.subr.bf16.mxu0 0
    %5810 = vmatpush1.bf16.xpose.msra.mxu0 %v5784
    %5811 = vmatprep.subr.bf16.mxu0 0
    %5812 = vmatpush2.bf16.xpose.msra.mxu0 0
    %5813 = vmatprep.subr.bf16.mxu0 0
    %5814 = vmatpush2.bf16.xpose.msra.mxu0 0
    %5815 = vmatprep.subr.bf16.mxu0 0
    %5816 = vmatpush2.bf16.xpose.msra.mxu0 0
    %5817 = vmatprep.subr.bf16.mxu0 0
    %5818 = vmatpush2.bf16.xpose.msra.mxu0 0
    %5819 = vmatprep.subr.bf16.mxu0 0
    %5820 = vmatpush2.bf16.xpose.msra.mxu0 0
    %5821 = vmatprep.subr.bf16.mxu0 0
    %5822 = vmatpush2.bf16.xpose.msra.mxu0 0
    %5823 = vmatprep.subr.bf16.mxu0 0
    %5824 = vmatpush2.bf16.xpose.msra.mxu0 0
    %5825 = vmatprep.subr.bf16.mxu0 0
    %5826 = vmatpush2.bf16.xpose.msra.mxu0 0
    %5827 = vmatprep.mubr.bf16.mxu0 0
    %5828 = vmatmul.mubr.bf16.gmra.mxu0 %v5781
    %v5829 = vpop.f32.mrf.mxu0
    %v5830 = vadd.f32 %v5758, %v5829
    %v5831 = vpop.f32.mrf.mxu0
    %v5832 = vpop.f32.mrf.mxu0
    %v5833 = vpop.f32.mrf.mxu0
    %5834 = vdwg.mxu0
    %v5835 = vmax.f32 %v5830, 0.0
    %s5836 = scalar_lea.vmem [#allocation9], 72
    %v5837 = vld [vmem:[%s5836] sm:$0xf]
    %v5838 = vld [vmem:[%s5836 + $0x4] sm:$0xf]
    %v5839 = vld [vmem:[%s5836 + $0x8] sm:$0xf]
    %v5840 = vld [vmem:[%s5836 + $0xc] sm:$0xf]
    %v5841 = vld [vmem:[%s5836 + $0x10] sm:$0xf]
    %v5842 = vld [vmem:[%s5836 + $0x14] sm:$0xf]
    %v5843 = vpack.c.bf16 %v5835, %v5835
    %s5844 = scalar_lea.vmem [#allocation10], 3
    %v5845 = vld [vmem:[%s5844] sm:$0x1]
    %v5847 = vlaneseq
    %v5848 = vshrl.u32 %v5847, 7
    %v5849 = vsub.s32 0, %v5848
    %v5850 = vrot.slane %v5845, %v5849
    %v5858 = vunpack.c.l.b16 %v5837
    %v5859 = vunpack.c.l.b16 %v5838
    %v5860 = vunpack.c.l.b16 %v5839
    %v5861 = vunpack.c.l.b16 %v5840
    %v5862 = vunpack.c.l.b16 %v5841
    %v5863 = vunpack.c.l.b16 %v5842
    %v5864 = vpack.c.b16 %v5859, %v5858
    %v5865 = vpack.c.b16 %v5861, %v5860
    %v5866 = vpack.c.b16 %v5863, %v5862
    %v5868 = vsel %vm1284, %v5843, 0
    %v5871 = vsel %vm1284, %v5864, 0
    %v5874 = vsel %vm1284, %v5865, 0
    %v5877 = vsel %vm1284, %v5866, 0
    %5879 = vmatprep.subr.bf16.mxu0 0
    %5880 = vmatpush1.bf16.xpose.msra.mxu0 0
    %5881 = vmatprep.subr.bf16.mxu0 0
    %5882 = vmatpush1.bf16.xpose.msra.mxu0 0
    %5883 = vmatprep.subr.bf16.mxu0 0
    %5884 = vmatpush1.bf16.xpose.msra.mxu0 0
    %5885 = vmatprep.subr.bf16.mxu0 0
    %5886 = vmatpush1.bf16.xpose.msra.mxu0 0
    %5887 = vmatprep.subr.bf16.mxu0 0
    %5888 = vmatpush1.bf16.xpose.msra.mxu0 0
    %5889 = vmatprep.subr.bf16.mxu0 0
    %5890 = vmatpush1.bf16.xpose.msra.mxu0 %v5877
    %5891 = vmatprep.subr.bf16.mxu0 0
    %5892 = vmatpush1.bf16.xpose.msra.mxu0 %v5874
    %5893 = vmatprep.subr.bf16.mxu0 0
    %5894 = vmatpush1.bf16.xpose.msra.mxu0 %v5871
    %5895 = vmatprep.subr.bf16.mxu0 0
    %5896 = vmatpush2.bf16.xpose.msra.mxu0 0
    %5897 = vmatprep.subr.bf16.mxu0 0
    %5898 = vmatpush2.bf16.xpose.msra.mxu0 0
    %5899 = vmatprep.subr.bf16.mxu0 0
    %5900 = vmatpush2.bf16.xpose.msra.mxu0 0
    %5901 = vmatprep.subr.bf16.mxu0 0
    %5902 = vmatpush2.bf16.xpose.msra.mxu0 0
    %5903 = vmatprep.subr.bf16.mxu0 0
    %5904 = vmatpush2.bf16.xpose.msra.mxu0 0
    %5905 = vmatprep.subr.bf16.mxu0 0
    %5906 = vmatpush2.bf16.xpose.msra.mxu0 0
    %5907 = vmatprep.subr.bf16.mxu0 0
    %5908 = vmatpush2.bf16.xpose.msra.mxu0 0
    %5909 = vmatprep.subr.bf16.mxu0 0
    %5910 = vmatpush2.bf16.xpose.msra.mxu0 0
    %5911 = vmatprep.mubr.bf16.mxu0 0
    %5912 = vmatmul.mubr.bf16.gmra.mxu0 %v5868
    %v5913 = vpop.f32.mrf.mxu0
    %v5914 = vadd.f32 %v5850, %v5913
    %v5915 = vpop.f32.mrf.mxu0
    %v5916 = vpop.f32.mrf.mxu0
    %v5917 = vpop.f32.mrf.mxu0
    %5918 = vdwg.mxu0
    %v5919 = vadd.f32 %v5741, %v5914
    %v5920 = vsel %vm3147, %v5919, 0.0
    %5921 = vadd.xlane.f32.xlu0 %v5920
    %v5922 = vpop.xlane.xlu0 %5921
    %v5923 = vmul.f32 %v5922, %v1136
    %v5924 = vsub.f32 %v5919, %v5923
    %v5925 = vmul.f32 %v5924, %v5924
    %v5926 = vsel %vm3147, %v5925, 0.0
    %5927 = vadd.xlane.f32.xlu0 %v5926
    %v5928 = vpop.xlane.xlu0 %5927
    %v5929 = vmul.f32 %v5928, %v1136
    %v5930 = vadd.f32 %v5929, 1e-05
    %v5931 = vrsqrt.pop %v5930
    %v5932 = vmul.f32 %v5924, %v5931
    %s5933 = scalar_lea.vmem %s18, 9
    %v5934 = vld [vmem:[%s5933] sm:$0x1]
    %v5936 = vlaneseq
    %v5937 = vshrl.u32 %v5936, 7
    %v5938 = vsub.s32 0, %v5937
    %v5939 = vrot.slane %v5934, %v5938
    %v5941 = vmul.f32 %v5932, %v5939
    %s5942 = scalar_lea.vmem [#allocation12], 9
    %v5943 = vld [vmem:[%s5942] sm:$0x1]
    %v5945 = vlaneseq
    %v5946 = vshrl.u32 %v5945, 7
    %v5947 = vsub.s32 0, %v5946
    %v5948 = vrot.slane %v5943, %v5947
    %v5950 = vadd.f32 %v5941, %v5948
    %v5951 = vsel %vm3147, %v5950, 0.0
    %5952 = vadd.xlane.f32.xlu0 %v5951
    %v5953 = vpop.xlane.xlu0 %5952
    %v5954 = vmul.f32 %v5953, %v1136
    %v5955 = vsub.f32 %v5950, %v5954
    %v5956 = vmul.f32 %v5955, %v5955
    %v5957 = vsel %vm3147, %v5956, 0.0
    %5958 = vadd.xlane.f32.xlu0 %v5957
    %v5959 = vpop.xlane.xlu0 %5958
    %v5960 = vmul.f32 %v5959, %v1136
    %v5961 = vadd.f32 %v5960, 1e-05
    %v5962 = vrsqrt.pop %v5961
    %v5963 = vmul.f32 %v5955, %v5962
    %s5964 = scalar_lea.vmem %s18, 11
    %v5965 = vld [vmem:[%s5964] sm:$0x1]
    %v5967 = vlaneseq
    %v5968 = vshrl.u32 %v5967, 7
    %v5969 = vsub.s32 0, %v5968
    %v5970 = vrot.slane %v5965, %v5969
    %v5972 = vmul.f32 %v5963, %v5970
    %s5973 = scalar_lea.vmem [#allocation12], 11
    %v5974 = vld [vmem:[%s5973] sm:$0x1]
    %v5976 = vlaneseq
    %v5977 = vshrl.u32 %v5976, 7
    %v5978 = vsub.s32 0, %v5977
    %v5979 = vrot.slane %v5974, %v5978
    %v5981 = vadd.f32 %v5972, %v5979
    %5982 = vst.msk [vmem:[%s20] sm:$0x3f] %vm3147, %v5981
    // Predicated region
    $region110: #{seq2seq_forward.1} parent=1 // pred_check
      _
    $region111: #{seq2seq_forward.1} parent=1 // pred_check_branch
      %5984 = sbr.rel (0) target = $region113
    $region112: #{seq2seq_forward.1} parent=1 // pred_region
      _
    $region113: #{seq2seq_forward.1} parent=1 // pred_fallthru
      _
    // Predicated region
    $region114: #{seq2seq_forward.1} parent=1 // pred_check
      _
    $region115: #{seq2seq_forward.1} parent=1 // pred_check_branch
      %5986 = sbr.rel (0) target = $region117
    $region116: #{seq2seq_forward.1} parent=1 // pred_region
      _
    $region117: #{seq2seq_forward.1} parent=1 // pred_fallthru
      _
    %5987 = vsyncpa [#allocation3], 1
    %5988 = vsyncpa [#allocation5], 1
    %5989 = vsyncpa [#allocation8], 1
    %5990 = vsyncpa [#allocation11], 1

</llo_original>
